<compile_context>
chip_gen: v6e
topology: v6e:2x2x1
jax: 0.10.0
libtpu: 0.0.40
codegen_flags: <defaults>
</compile_context>

<pallas_src>
import numpy as np
import jax
import jax.numpy as jnp
from jax.experimental import pallas as pl
from jax.experimental.pallas import tpu as pltpu


# ---------------------------------------------------------------------------
# Host-side (one-time) parameter packing helpers
# ---------------------------------------------------------------------------
def _tconv_lane_weights(wt, w_img):
    """ConvTranspose3d weight (Cin, Cmid, 1, 2, 2) -> two lane-transform matrices M_i
    (i = output-row parity), each (W*Cin, 2W*Cmid):
        up[2h+i, (2w+j)*Cmid+co] = sum_ci x[h, w*Cin+ci] * wt[ci, co, 0, i, j]."""
    wt = np.asarray(wt, np.float32)
    cin, cmid = wt.shape[0], wt.shape[1]
    mats = []
    for i in range(2):
        M = np.zeros((w_img * cin, 2 * w_img * cmid), np.float32)
        for w in range(w_img):
            for j in range(2):
                M[w * cin:(w + 1) * cin,
                  (2 * w + j) * cmid:(2 * w + j + 1) * cmid] = wt[:, :, 0, i, j]
        mats.append(M)
    return mats


def _row_interleave_mats(d_img, h_img):
    """R_i (D*2H, D*H): scatter parity-i rows to output rows d*2H + 2h + i, i.e. the
    stride-2 transpose-conv row interleave done as a matmul instead of a sublane shuffle."""
    mats = []
    for i in range(2):
        R = np.zeros((d_img * 2 * h_img, d_img * h_img), np.float32)
        for d in range(d_img):
            for h in range(h_img):
                R[d * 2 * h_img + 2 * h + i, d * h_img + h] = 1.0
        mats.append(R)
    return mats


def _toeplitz_conv3d_weight(w_dhwio, w_img):
    """Pack a DHWIO (3,3,3,Cin,Cout) conv weight into one block-Toeplitz matrix so a whole
    3x3x3 'same' conv over lane-dense (D*H, W*Cin) data is a SINGLE matmul:

        out = concat_{kd,kh}( shifted slab, axis=lanes ) @ T,   slabs at (W*Cin)-aligned lanes

    T[((kd*3 + kh)*W + w_in)*Cin + ci, p*Cout + co] = w[kd, kh, w_in - p + 1, ci, co]
    (zero otherwise) — the W-direction 'same' padding is folded into T."""
    kd, kh, kw, cin, cout = w_dhwio.shape
    w_np = np.asarray(w_dhwio, np.float32)
    T = np.zeros((kd * kh * w_img * cin, w_img * cout), np.float32)
    for zd in range(kd):
        for yd in range(kh):
            for p in range(w_img):
                for xd in range(kw):
                    w_in = p + xd - 1
                    if 0 <= w_in < w_img:
                        r0 = ((zd * kh + yd) * w_img + w_in) * cin
                        T[r0:r0 + cin, p * cout:(p + 1) * cout] = w_np[zd, yd, xd]
    return T


def _chan_projector(w_img, c):
    """Sums the strided channel lanes and broadcasts back (InstanceNorm stats on the MXU)."""
    return np.kron(np.ones((w_img, w_img), np.float32), np.eye(c, dtype=np.float32))


def _h_boundary_masks(d_img, h_img):
    """Row masks (D*Ho, 1) that zero the H-halo rows that would bleed across depth slices."""
    rows = np.arange(d_img * h_img) % h_img
    top = (rows != 0).astype(np.float32).reshape(-1, 1)          # invalid for the h-1 tap
    bot = (rows != h_img - 1).astype(np.float32).reshape(-1, 1)  # invalid for the h+1 tap
    return top, bot


def _gelu_exact(x):
    """nn.GELU() default (erf form).  Abramowitz–Stegun 7.1.26 erf (|err| <= 1.5e-7) built
    from exp/mul/add only, so it lowers cleanly in Mosaic (EUP exp, VPU arithmetic)."""
    z = x * 0.7071067811865476
    az = jnp.abs(z)
    t = 1.0 / (1.0 + 0.3275911 * az)
    poly = t * (0.254829592 + t * (-0.284496736 + t * (1.421413741
              + t * (-1.453152027 + t * 1.061405429))))
    erf_abs = 1.0 - poly * jnp.exp(-az * az)
    erf = jnp.where(z >= 0.0, erf_abs, -erf_abs)
    return 0.5 * x * (1.0 + erf)


# ---------------------------------------------------------------------------
# Fused kernel: ConvTranspose3d((1,2,2)/(1,2,2)) -> (conv3x3x3 -> InstanceNorm3d -> GELU) x 2
# ---------------------------------------------------------------------------
def up3d_block_lane_dense(x_ncdhw, params):
    """Input  x: (N, Cin, D, H, W)  (PyTorch NCDHW).
    Output: lane-dense NDHWC-flat (N, D*2H, 2W*Cout) — the layout the next conv stage
    consumes directly (no output transpose in the kernel path)."""
    wt, bt, w1, b1, w2, b2 = params
    N, Cin, D, H, W = x_ncdhw.shape
    C0 = wt.shape[1]                      # Cin // 2 (transpose-conv output channels)
    C1 = w1.shape[4]                      # DoubleConv mid channels
    C2 = w2.shape[4]                      # DoubleConv out channels
    assert wt.shape == (Cin, C0, 1, 2, 2)
    assert w1.shape[:4] == (3, 3, 3, C0) and w2.shape[:4] == (3, 3, 3, C1)
    Ho, Wo = 2 * H, 2 * W
    DH, DHo = D * H, D * Ho

    # ---- packed constants (host side, once; these are static parameters) -------------
    m0_np, m1_np = _tconv_lane_weights(wt, W)
    r0_np, r1_np = _row_interleave_mats(D, H)
    mtop_np, mbot_np = _h_boundary_masks(D, Ho)
    m0, m1 = jnp.asarray(m0_np), jnp.asarray(m1_np)            # (W*Cin, Wo*C0)
    r0, r1 = jnp.asarray(r0_np), jnp.asarray(r1_np)            # (D*Ho, D*H)
    mtop, mbot = jnp.asarray(mtop_np), jnp.asarray(mbot_np)    # (D*Ho, 1)
    btl = jnp.asarray(np.tile(np.asarray(bt, np.float32).reshape(1, C0), (1, Wo)))
    t1 = jnp.asarray(_toeplitz_conv3d_weight(np.asarray(w1), Wo))    # (9*Wo*C0, Wo*C1)
    t2 = jnp.asarray(_toeplitz_conv3d_weight(np.asarray(w2), Wo))    # (9*Wo*C1, Wo*C2)
    b1l = jnp.asarray(np.tile(np.asarray(b1, np.float32).reshape(1, C1), (1, Wo)))
    b2l = jnp.asarray(np.tile(np.asarray(b2, np.float32).reshape(1, C2), (1, Wo)))
    g1 = jnp.asarray(_chan_projector(Wo, C1))                        # (Wo*C1, Wo*C1)
    g2 = jnp.asarray(_chan_projector(Wo, C2))                        # (Wo*C2, Wo*C2)

    # lane-dense NDHWC-flat input (relayout of the small PRE-upsample tensor only;
    # everything downstream stays lane-dense inside the single kernel)
    x_ld = jnp.transpose(x_ncdhw, (0, 2, 3, 4, 1)).reshape(N, DH, W * Cin).astype(jnp.float32)

    inv_sp = 1.0 / float(D * Ho * Wo)
    eps = 1e-5

    def kernel(x_ref, m0_ref, m1_ref, r0_ref, r1_ref, bt_ref, mtop_ref, mbot_ref,
               t1_ref, b1_ref, g1_ref, t2_ref, b2_ref, g2_ref, o_ref):
        x = x_ref[0]                                                        # (D*H, W*Cin)
        # ---- ConvTranspose3d k=(1,2,2) s=(1,2,2): lane transform per output-row parity,
        #      then row interleave on the MXU (no sublane shuffles, no broadcast_to) -----
        y0 = jnp.dot(x, m0_ref[...], preferred_element_type=jnp.float32)    # (D*H, Wo*C0)
        y1 = jnp.dot(x, m1_ref[...], preferred_element_type=jnp.float32)
        u = (jnp.dot(r0_ref[...], y0, preferred_element_type=jnp.float32)
             + jnp.dot(r1_ref[...], y1, preferred_element_type=jnp.float32)
             + bt_ref[...])                                                 # (D*Ho, Wo*C0)

        mtop_v = mtop_ref[...]          # (D*Ho, 1): 0 where h == 0    (h-1 tap invalid)
        mbot_v = mbot_ref[...]          # (D*Ho, 1): 0 where h == Ho-1 (h+1 tap invalid)

        def conv3d_in_gelu(a, t_ref, b_ref, g_ref):
            # 3x3x3 'same' conv as ONE block-Toeplitz matmul on lane-dense (D*Ho, Wo*C):
            # three H-shifted copies (depth-slice bleed zeroed by the row masks), then
            # three whole-slice D shifts of that slab, concatenated along lanes at
            # (Wo*C)-aligned offsets.  W padding is already folded into T.
            L = a.shape[1]
            zr = jnp.zeros((1, L), jnp.float32)
            ap = jnp.concatenate([zr, a, zr], axis=0)                 # (D*Ho+2, L)
            a_up = ap[0:DHo] * mtop_v                                 # reads row h-1
            a_dn = ap[2:DHo + 2] * mbot_v                             # reads row h+1
            a3 = jnp.concatenate([a_up, a, a_dn], axis=1)             # (D*Ho, 3L)
            zs = jnp.zeros((Ho, 3 * L), jnp.float32)
            a3p = jnp.concatenate([zs, a3, zs], axis=0)               # depth halo
            p9 = jnp.concatenate([a3p[0:DHo], a3p[Ho:Ho + DHo],
                                  a3p[2 * Ho:2 * Ho + DHo]], axis=1)  # (D*Ho, 9L)
            y = jnp.dot(p9, t_ref[...],
                        preferred_element_type=jnp.float32) + b_ref[...]    # (D*Ho, Wo*Co)
            # InstanceNorm3d (affine=False, eps=1e-5): per-channel stats over D*Ho*Wo.
            # The channel projector sums the strided channel lanes and broadcasts back,
            # all while staying lane-dense (strided reduction on the MXU).
            s1 = jnp.sum(y, axis=0, keepdims=True)
            mean = jnp.dot(s1, g_ref[...], preferred_element_type=jnp.float32) * inv_sp
            d = y - mean
            s2 = jnp.sum(d * d, axis=0, keepdims=True)
            var = jnp.dot(s2, g_ref[...], preferred_element_type=jnp.float32) * inv_sp
            # (for large channel counts the matmul operands would be cast to bf16 with f32
            # accumulation for MXU peak; kept f32 at these sizes for exactness)
            return _gelu_exact(d * jax.lax.rsqrt(var + eps))

        h = conv3d_in_gelu(u, t1_ref, b1_ref, g1_ref)                # (D*Ho, Wo*C1)
        h = conv3d_in_gelu(h, t2_ref, b2_ref, g2_ref)                # (D*Ho, Wo*C2)
        o_ref[0] = h                                                 # 128-multiple lanes -> unmasked vst

    # NOTE: at the large early decoder stages a depth-block grid axis (with a 1-slice halo
    # via index_map) would be added so the per-step working set stays inside VMEM; at this
    # size one sample per grid step is comfortably resident.
    out = pl.pallas_call(
        kernel,
        out_shape=jax.ShapeDtypeStruct((N, DHo, Wo * C2), jnp.float32),
        grid_spec=pltpu.PrefetchScalarGridSpec(
            num_scalar_prefetch=0,
            grid=(N,),
            in_specs=[
                pl.BlockSpec((1, DH, W * Cin), lambda n: (n, 0, 0)),
                pl.BlockSpec((W * Cin, Wo * C0), lambda n: (0, 0)),
                pl.BlockSpec((W * Cin, Wo * C0), lambda n: (0, 0)),
                pl.BlockSpec((DHo, DH), lambda n: (0, 0)),
                pl.BlockSpec((DHo, DH), lambda n: (0, 0)),
                pl.BlockSpec((1, Wo * C0), lambda n: (0, 0)),
                pl.BlockSpec((DHo, 1), lambda n: (0, 0)),
                pl.BlockSpec((DHo, 1), lambda n: (0, 0)),
                pl.BlockSpec((9 * Wo * C0, Wo * C1), lambda n: (0, 0)),
                pl.BlockSpec((1, Wo * C1), lambda n: (0, 0)),
                pl.BlockSpec((Wo * C1, Wo * C1), lambda n: (0, 0)),
                pl.BlockSpec((9 * Wo * C1, Wo * C2), lambda n: (0, 0)),
                pl.BlockSpec((1, Wo * C2), lambda n: (0, 0)),
                pl.BlockSpec((Wo * C2, Wo * C2), lambda n: (0, 0)),
            ],
            out_specs=pl.BlockSpec((1, DHo, Wo * C2), lambda n: (n, 0, 0)),
        ),
        compiler_params=pltpu.CompilerParams(
            dimension_semantics=("parallel",),        # batch shards across TensorCores
            vmem_limit_bytes=48 * 1024 * 1024,
        ),
    )(x_ld, m0, m1, r0, r1, btl, mtop, mbot, t1, b1l, g1, t2, b2l, g2)
    return out


def up3d_block_ncdhw(x_ncdhw, params):
    """Optional glue for callers that want PyTorch NCDHW back (not in the kernel path)."""
    N, _, D, H, W = x_ncdhw.shape
    C2 = params[4].shape[4]
    out = up3d_block_lane_dense(x_ncdhw, params)
    return out.reshape(N, D, 2 * H, 2 * W, C2).transpose(0, 4, 1, 2, 3)


# ---------------------------------------------------------------------------
# Pure-JAX reference (same math via XLA ops) for the correctness check
# ---------------------------------------------------------------------------
def _reference_lane_dense(x_ncdhw, params):
    wt, bt, w1, b1, w2, b2 = params
    N, Cin, D, H, W = x_ncdhw.shape
    C0 = wt.shape[1]
    Ho, Wo = 2 * H, 2 * W
    hp = jax.lax.Precision.HIGHEST

    # ConvTranspose3d(k=(1,2,2), s=(1,2,2)): each input pixel emits a 2x2 spatial block.
    y = jnp.einsum("ncdhw,coij->nodhiwj", x_ncdhw, wt[:, :, 0], precision=hp)
    y = y.reshape(N, C0, D, Ho, Wo) + bt.reshape(1, -1, 1, 1, 1)
    a = jnp.transpose(y, (0, 2, 3, 4, 1))                          # NDHWC

    def conv(a, w, b):
        out = jax.lax.conv_general_dilated(
            a, w, (1, 1, 1), "SAME",
            dimension_numbers=("NDHWC", "DHWIO", "NDHWC"), precision=hp)
        return out + b.reshape(1, 1, 1, 1, -1)

    def inorm_gelu(y):
        m = jnp.mean(y, axis=(1, 2, 3), keepdims=True)
        v = jnp.mean((y - m) ** 2, axis=(1, 2, 3), keepdims=True)
        return jax.nn.gelu((y - m) * jax.lax.rsqrt(v + 1e-5), approximate=False)

    h = inorm_gelu(conv(a, w1, b1))
    h = inorm_gelu(conv(h, w2, b2))
    C2 = w2.shape[4]
    return h.reshape(N, D * Ho, Wo * C2)                           # lane-dense NDHWC-flat


if __name__ == "__main__":
    # Last decoder stage Up_3d(32, 16) with bilinear=False (the module default):
    # ConvTranspose3d(32 -> 16, k=(1,2,2), s=(1,2,2)), then DoubleConv_3d(16, 16).
    # Small test shapes: batch=2, Cin=32, D=4, H=W=8 (spatial 8 -> 16 after the upsample).
    N, Cin, D, H, W = 2, 32, 4, 8, 8
    C0, C1, C2 = Cin // 2, 16, 16

    key = jax.random.PRNGKey(0)
    kx, k0, k1, k2, k3, k4, k5 = jax.random.split(key, 7)
    x = jax.random.normal(kx, (N, Cin, D, H, W), jnp.float32)
    wt = jax.random.normal(k0, (Cin, C0, 1, 2, 2), jnp.float32) * 0.2   # ConvTranspose3d (in,out,kD,kH,kW)
    bt = jax.random.normal(k1, (C0,), jnp.float32) * 0.1
    w1 = jax.random.normal(k2, (3, 3, 3, C0, C1), jnp.float32) * 0.15   # Conv3d, DHWIO
    b1 = jax.random.normal(k3, (C1,), jnp.float32) * 0.1
    w2 = jax.random.normal(k4, (3, 3, 3, C1, C2), jnp.float32) * 0.15   # Conv3d, DHWIO
    b2 = jax.random.normal(k5, (C2,), jnp.float32) * 0.1
    params = (wt, bt, w1, b1, w2, b2)

    out = jax.block_until_ready(up3d_block_lane_dense(x, params))
    ref = jax.block_until_ready(_reference_lane_dense(x, params))
    assert out.shape == (N, D * 2 * H, 2 * W * C2), out.shape
    np.testing.assert_allclose(np.asarray(out), np.asarray(ref), atol=2e-2, rtol=2e-2)
    print("KERNEL_OK")
</pallas_src>

<mosaic_0001>
module attributes {stable_mosaic.version = 11 : i64} {
  func.func @kernel(%arg0: i32, %arg1: memref<1x32x256xf32, #tpu.memory_space<vmem>>, %arg2: memref<256x256xf32, #tpu.memory_space<vmem>>, %arg3: memref<256x256xf32, #tpu.memory_space<vmem>>, %arg4: memref<64x32xf32, #tpu.memory_space<vmem>>, %arg5: memref<64x32xf32, #tpu.memory_space<vmem>>, %arg6: memref<1x256xf32, #tpu.memory_space<vmem>>, %arg7: memref<64x1xf32, #tpu.memory_space<vmem>>, %arg8: memref<64x1xf32, #tpu.memory_space<vmem>>, %arg9: memref<2304x256xf32, #tpu.memory_space<vmem>>, %arg10: memref<1x256xf32, #tpu.memory_space<vmem>>, %arg11: memref<256x256xf32, #tpu.memory_space<vmem>>, %arg12: memref<2304x256xf32, #tpu.memory_space<vmem>>, %arg13: memref<1x256xf32, #tpu.memory_space<vmem>>, %arg14: memref<256x256xf32, #tpu.memory_space<vmem>>, %arg15: memref<1x64x256xf32, #tpu.memory_space<vmem>>) attributes {dimension_semantics = [#tpu.dimension_semantics<parallel>], iteration_bounds = array<i64: 2>, scalar_prefetch = 0 : i64, scratch_operands = 0 : i64, tpu.core_type = #tpu.core_type<tc>, window_params = [{transform_indices = @transform_0, window_bounds = array<i64: 1, 32, 256>}, {pipeline_mode = #tpu.pipeline_mode<synchronous>, transform_indices = @transform_1, window_bounds = array<i64: 256, 256>}, {pipeline_mode = #tpu.pipeline_mode<synchronous>, transform_indices = @transform_2, window_bounds = array<i64: 256, 256>}, {pipeline_mode = #tpu.pipeline_mode<synchronous>, transform_indices = @transform_3, window_bounds = array<i64: 64, 32>}, {pipeline_mode = #tpu.pipeline_mode<synchronous>, transform_indices = @transform_4, window_bounds = array<i64: 64, 32>}, {pipeline_mode = #tpu.pipeline_mode<synchronous>, transform_indices = @transform_5, window_bounds = array<i64: 1, 256>}, {pipeline_mode = #tpu.pipeline_mode<synchronous>, transform_indices = @transform_6, window_bounds = array<i64: 64, 1>}, {pipeline_mode = #tpu.pipeline_mode<synchronous>, transform_indices = @transform_7, window_bounds = array<i64: 64, 1>}, {pipeline_mode = #tpu.pipeline_mode<synchronous>, transform_indices = @transform_8, window_bounds = array<i64: 2304, 256>}, {pipeline_mode = #tpu.pipeline_mode<synchronous>, transform_indices = @transform_9, window_bounds = array<i64: 1, 256>}, {pipeline_mode = #tpu.pipeline_mode<synchronous>, transform_indices = @transform_10, window_bounds = array<i64: 256, 256>}, {pipeline_mode = #tpu.pipeline_mode<synchronous>, transform_indices = @transform_11, window_bounds = array<i64: 2304, 256>}, {pipeline_mode = #tpu.pipeline_mode<synchronous>, transform_indices = @transform_12, window_bounds = array<i64: 1, 256>}, {pipeline_mode = #tpu.pipeline_mode<synchronous>, transform_indices = @transform_13, window_bounds = array<i64: 256, 256>}, {transform_indices = @transform_14, window_bounds = array<i64: 1, 64, 256>}]} {
    %c0 = arith.constant 0 : index
    %c0_0 = arith.constant 0 : index
    %c0_1 = arith.constant 0 : index
    %0 = vector.load %arg1[%c0, %c0_0, %c0_1] : memref<1x32x256xf32, #tpu.memory_space<vmem>>, vector<1x32x256xf32>
    %1 = vector.shape_cast %0 : vector<1x32x256xf32> to vector<32x256xf32>
    %c0_2 = arith.constant 0 : index
    %c0_3 = arith.constant 0 : index
    %2 = vector.load %arg2[%c0_2, %c0_3] : memref<256x256xf32, #tpu.memory_space<vmem>>, vector<256x256xf32>
    %cst = arith.constant dense<0.000000e+00> : vector<32x256xf32>
    %3 = tpu.matmul %1, %2, %cst {dimension_numbers = #tpu.dot_dimension_numbers<[1], [0], [0], [1], [0, 0, 1, 1], [], []>} : vector<32x256xf32>, vector<256x256xf32>, vector<32x256xf32> -> vector<32x256xf32>
    %c0_4 = arith.constant 0 : index
    %c0_5 = arith.constant 0 : index
    %4 = vector.load %arg3[%c0_4, %c0_5] : memref<256x256xf32, #tpu.memory_space<vmem>>, vector<256x256xf32>
    %cst_6 = arith.constant dense<0.000000e+00> : vector<32x256xf32>
    %5 = tpu.matmul %1, %4, %cst_6 {dimension_numbers = #tpu.dot_dimension_numbers<[1], [0], [0], [1], [0, 0, 1, 1], [], []>} : vector<32x256xf32>, vector<256x256xf32>, vector<32x256xf32> -> vector<32x256xf32>
    %c0_7 = arith.constant 0 : index
    %c0_8 = arith.constant 0 : index
    %6 = vector.load %arg4[%c0_7, %c0_8] : memref<64x32xf32, #tpu.memory_space<vmem>>, vector<64x32xf32>
    %cst_9 = arith.constant dense<0.000000e+00> : vector<64x256xf32>
    %7 = tpu.matmul %6, %3, %cst_9 {dimension_numbers = #tpu.dot_dimension_numbers<[1], [0], [0], [1], [0, 0, 1, 1], [], []>} : vector<64x32xf32>, vector<32x256xf32>, vector<64x256xf32> -> vector<64x256xf32>
    %c0_10 = arith.constant 0 : index
    %c0_11 = arith.constant 0 : index
    %8 = vector.load %arg5[%c0_10, %c0_11] : memref<64x32xf32, #tpu.memory_space<vmem>>, vector<64x32xf32>
    %cst_12 = arith.constant dense<0.000000e+00> : vector<64x256xf32>
    %9 = tpu.matmul %8, %5, %cst_12 {dimension_numbers = #tpu.dot_dimension_numbers<[1], [0], [0], [1], [0, 0, 1, 1], [], []>} : vector<64x32xf32>, vector<32x256xf32>, vector<64x256xf32> -> vector<64x256xf32>
    %10 = arith.addf %7, %9 : vector<64x256xf32>
    %c0_13 = arith.constant 0 : index
    %c0_14 = arith.constant 0 : index
    %11 = vector.load %arg6[%c0_13, %c0_14] : memref<1x256xf32, #tpu.memory_space<vmem>>, vector<1x256xf32>
    %12 = vector.broadcast %11 : vector<1x256xf32> to vector<64x256xf32>
    %13 = arith.addf %10, %12 : vector<64x256xf32>
    %c0_15 = arith.constant 0 : index
    %c0_16 = arith.constant 0 : index
    %14 = vector.load %arg7[%c0_15, %c0_16] : memref<64x1xf32, #tpu.memory_space<vmem>>, vector<64x1xf32>
    %c0_17 = arith.constant 0 : index
    %c0_18 = arith.constant 0 : index
    %15 = vector.load %arg8[%c0_17, %c0_18] : memref<64x1xf32, #tpu.memory_space<vmem>>, vector<64x1xf32>
    %cst_19 = arith.constant 0.000000e+00 : f32
    %16 = vector.broadcast %cst_19 : f32 to vector<1x256xf32>
    %17 = tpu.concatenate %16, %13, %16 in 0 : vector<1x256xf32>, vector<64x256xf32>, vector<1x256xf32> -> vector<66x256xf32>
    %18 = vector.extract_strided_slice %17 {offsets = [0, 0], sizes = [64, 256], strides = [1, 1]} : vector<66x256xf32> to vector<64x256xf32>
    %19 = vector.broadcast %14 : vector<64x1xf32> to vector<64x256xf32>
    %20 = arith.mulf %18, %19 : vector<64x256xf32>
    %21 = vector.extract_strided_slice %17 {offsets = [2, 0], sizes = [64, 256], strides = [1, 1]} : vector<66x256xf32> to vector<64x256xf32>
    %22 = vector.broadcast %15 : vector<64x1xf32> to vector<64x256xf32>
    %23 = arith.mulf %21, %22 : vector<64x256xf32>
    %24 = tpu.concatenate %20, %13, %23 in 1 : vector<64x256xf32>, vector<64x256xf32>, vector<64x256xf32> -> vector<64x768xf32>
    %cst_20 = arith.constant 0.000000e+00 : f32
    %25 = vector.broadcast %cst_20 : f32 to vector<16x768xf32>
    %26 = tpu.concatenate %25, %24, %25 in 0 : vector<16x768xf32>, vector<64x768xf32>, vector<16x768xf32> -> vector<96x768xf32>
    %27 = vector.extract_strided_slice %26 {offsets = [0, 0], sizes = [64, 768], strides = [1, 1]} : vector<96x768xf32> to vector<64x768xf32>
    %28 = vector.extract_strided_slice %26 {offsets = [16, 0], sizes = [64, 768], strides = [1, 1]} : vector<96x768xf32> to vector<64x768xf32>
    %29 = vector.extract_strided_slice %26 {offsets = [32, 0], sizes = [64, 768], strides = [1, 1]} : vector<96x768xf32> to vector<64x768xf32>
    %30 = tpu.concatenate %27, %28, %29 in 1 : vector<64x768xf32>, vector<64x768xf32>, vector<64x768xf32> -> vector<64x2304xf32>
    %c0_21 = arith.constant 0 : index
    %c0_22 = arith.constant 0 : index
    %31 = vector.load %arg9[%c0_21, %c0_22] : memref<2304x256xf32, #tpu.memory_space<vmem>>, vector<2304x256xf32>
    %cst_23 = arith.constant dense<0.000000e+00> : vector<64x256xf32>
    %32 = tpu.matmul %30, %31, %cst_23 {dimension_numbers = #tpu.dot_dimension_numbers<[1], [0], [0], [1], [0, 0, 1, 1], [], []>} : vector<64x2304xf32>, vector<2304x256xf32>, vector<64x256xf32> -> vector<64x256xf32>
    %c0_24 = arith.constant 0 : index
    %c0_25 = arith.constant 0 : index
    %33 = vector.load %arg10[%c0_24, %c0_25] : memref<1x256xf32, #tpu.memory_space<vmem>>, vector<1x256xf32>
    %34 = vector.broadcast %33 : vector<1x256xf32> to vector<64x256xf32>
    %35 = arith.addf %32, %34 : vector<64x256xf32>
    %cst_26 = arith.constant dense<0.000000e+00> : vector<256xf32>
    %36 = vector.multi_reduction <add>, %35, %cst_26 [0] : vector<64x256xf32> to vector<256xf32>
    %37 = vector.shape_cast %36 : vector<256xf32> to vector<1x256xf32>
    %c0_27 = arith.constant 0 : index
    %c0_28 = arith.constant 0 : index
    %38 = vector.load %arg11[%c0_27, %c0_28] : memref<256x256xf32, #tpu.memory_space<vmem>>, vector<256x256xf32>
    %cst_29 = arith.constant dense<0.000000e+00> : vector<1x256xf32>
    %39 = tpu.matmul %37, %38, %cst_29 {dimension_numbers = #tpu.dot_dimension_numbers<[1], [0], [0], [1], [0, 0, 1, 1], [], []>} : vector<1x256xf32>, vector<256x256xf32>, vector<1x256xf32> -> vector<1x256xf32>
    %cst_30 = arith.constant 9.765625E-4 : f32
    %40 = vector.broadcast %cst_30 : f32 to vector<1x256xf32>
    %41 = arith.mulf %39, %40 : vector<1x256xf32>
    %42 = vector.broadcast %41 : vector<1x256xf32> to vector<64x256xf32>
    %43 = arith.subf %35, %42 : vector<64x256xf32>
    %44 = arith.mulf %43, %43 : vector<64x256xf32>
    %cst_31 = arith.constant dense<0.000000e+00> : vector<256xf32>
    %45 = vector.multi_reduction <add>, %44, %cst_31 [0] : vector<64x256xf32> to vector<256xf32>
    %46 = vector.shape_cast %45 : vector<256xf32> to vector<1x256xf32>
    %c0_32 = arith.constant 0 : index
    %c0_33 = arith.constant 0 : index
    %47 = vector.load %arg11[%c0_32, %c0_33] : memref<256x256xf32, #tpu.memory_space<vmem>>, vector<256x256xf32>
    %cst_34 = arith.constant dense<0.000000e+00> : vector<1x256xf32>
    %48 = tpu.matmul %46, %47, %cst_34 {dimension_numbers = #tpu.dot_dimension_numbers<[1], [0], [0], [1], [0, 0, 1, 1], [], []>} : vector<1x256xf32>, vector<256x256xf32>, vector<1x256xf32> -> vector<1x256xf32>
    %cst_35 = arith.constant 9.765625E-4 : f32
    %49 = vector.broadcast %cst_35 : f32 to vector<1x256xf32>
    %50 = arith.mulf %48, %49 : vector<1x256xf32>
    %cst_36 = arith.constant 9.99999974E-6 : f32
    %51 = vector.broadcast %cst_36 : f32 to vector<1x256xf32>
    %52 = arith.addf %50, %51 : vector<1x256xf32>
    %53 = math.rsqrt %52 : vector<1x256xf32>
    %54 = vector.broadcast %53 : vector<1x256xf32> to vector<64x256xf32>
    %55 = arith.mulf %43, %54 : vector<64x256xf32>
    %cst_37 = arith.constant 0.707106769 : f32
    %56 = vector.broadcast %cst_37 : f32 to vector<64x256xf32>
    %57 = arith.mulf %55, %56 : vector<64x256xf32>
    %58 = math.absf %57 : vector<64x256xf32>
    %cst_38 = arith.constant 0.327591091 : f32
    %59 = vector.broadcast %cst_38 : f32 to vector<64x256xf32>
    %60 = arith.mulf %59, %58 : vector<64x256xf32>
    %cst_39 = arith.constant 1.000000e+00 : f32
    %61 = vector.broadcast %cst_39 : f32 to vector<64x256xf32>
    %62 = arith.addf %61, %60 : vector<64x256xf32>
    %cst_40 = arith.constant 1.000000e+00 : f32
    %63 = vector.broadcast %cst_40 : f32 to vector<64x256xf32>
    %64 = arith.divf %63, %62 : vector<64x256xf32>
    %cst_41 = arith.constant 1.06140542 : f32
    %65 = vector.broadcast %cst_41 : f32 to vector<64x256xf32>
    %66 = arith.mulf %64, %65 : vector<64x256xf32>
    %cst_42 = arith.constant -1.45315206 : f32
    %67 = vector.broadcast %cst_42 : f32 to vector<64x256xf32>
    %68 = arith.addf %67, %66 : vector<64x256xf32>
    %69 = arith.mulf %64, %68 : vector<64x256xf32>
    %cst_43 = arith.constant 1.42141378 : f32
    %70 = vector.broadcast %cst_43 : f32 to vector<64x256xf32>
    %71 = arith.addf %70, %69 : vector<64x256xf32>
    %72 = arith.mulf %64, %71 : vector<64x256xf32>
    %cst_44 = arith.constant -0.284496725 : f32
    %73 = vector.broadcast %cst_44 : f32 to vector<64x256xf32>
    %74 = arith.addf %73, %72 : vector<64x256xf32>
    %75 = arith.mulf %64, %74 : vector<64x256xf32>
    %cst_45 = arith.constant 0.254829586 : f32
    %76 = vector.broadcast %cst_45 : f32 to vector<64x256xf32>
    %77 = arith.addf %76, %75 : vector<64x256xf32>
    %78 = arith.mulf %64, %77 : vector<64x256xf32>
    %cst_46 = arith.constant 0.000000e+00 : f32
    %79 = vector.broadcast %cst_46 : f32 to vector<64x256xf32>
    %80 = arith.subf %79, %58 : vector<64x256xf32>
    %81 = arith.mulf %80, %58 : vector<64x256xf32>
    %82 = math.exp %81 : vector<64x256xf32>
    %83 = arith.mulf %78, %82 : vector<64x256xf32>
    %cst_47 = arith.constant 1.000000e+00 : f32
    %84 = vector.broadcast %cst_47 : f32 to vector<64x256xf32>
    %85 = arith.subf %84, %83 : vector<64x256xf32>
    %cst_48 = arith.constant 0.000000e+00 : f32
    %86 = vector.broadcast %cst_48 : f32 to vector<64x256xf32>
    %87 = arith.cmpf oge, %57, %86 : vector<64x256xf32>
    %cst_49 = arith.constant 0.000000e+00 : f32
    %88 = vector.broadcast %cst_49 : f32 to vector<64x256xf32>
    %89 = arith.subf %88, %85 : vector<64x256xf32>
    %90 = arith.select %87, %85, %89 : vector<64x256xi1>, vector<64x256xf32>
    %cst_50 = arith.constant 5.000000e-01 : f32
    %91 = vector.broadcast %cst_50 : f32 to vector<64x256xf32>
    %92 = arith.mulf %91, %55 : vector<64x256xf32>
    %cst_51 = arith.constant 1.000000e+00 : f32
    %93 = vector.broadcast %cst_51 : f32 to vector<64x256xf32>
    %94 = arith.addf %93, %90 : vector<64x256xf32>
    %95 = arith.mulf %92, %94 : vector<64x256xf32>
    %cst_52 = arith.constant 0.000000e+00 : f32
    %96 = vector.broadcast %cst_52 : f32 to vector<1x256xf32>
    %97 = tpu.concatenate %96, %95, %96 in 0 : vector<1x256xf32>, vector<64x256xf32>, vector<1x256xf32> -> vector<66x256xf32>
    %98 = vector.extract_strided_slice %97 {offsets = [0, 0], sizes = [64, 256], strides = [1, 1]} : vector<66x256xf32> to vector<64x256xf32>
    %99 = vector.broadcast %14 : vector<64x1xf32> to vector<64x256xf32>
    %100 = arith.mulf %98, %99 : vector<64x256xf32>
    %101 = vector.extract_strided_slice %97 {offsets = [2, 0], sizes = [64, 256], strides = [1, 1]} : vector<66x256xf32> to vector<64x256xf32>
    %102 = vector.broadcast %15 : vector<64x1xf32> to vector<64x256xf32>
    %103 = arith.mulf %101, %102 : vector<64x256xf32>
    %104 = tpu.concatenate %100, %95, %103 in 1 : vector<64x256xf32>, vector<64x256xf32>, vector<64x256xf32> -> vector<64x768xf32>
    %cst_53 = arith.constant 0.000000e+00 : f32
    %105 = vector.broadcast %cst_53 : f32 to vector<16x768xf32>
    %106 = tpu.concatenate %105, %104, %105 in 0 : vector<16x768xf32>, vector<64x768xf32>, vector<16x768xf32> -> vector<96x768xf32>
    %107 = vector.extract_strided_slice %106 {offsets = [0, 0], sizes = [64, 768], strides = [1, 1]} : vector<96x768xf32> to vector<64x768xf32>
    %108 = vector.extract_strided_slice %106 {offsets = [16, 0], sizes = [64, 768], strides = [1, 1]} : vector<96x768xf32> to vector<64x768xf32>
    %109 = vector.extract_strided_slice %106 {offsets = [32, 0], sizes = [64, 768], strides = [1, 1]} : vector<96x768xf32> to vector<64x768xf32>
    %110 = tpu.concatenate %107, %108, %109 in 1 : vector<64x768xf32>, vector<64x768xf32>, vector<64x768xf32> -> vector<64x2304xf32>
    %c0_54 = arith.constant 0 : index
    %c0_55 = arith.constant 0 : index
    %111 = vector.load %arg12[%c0_54, %c0_55] : memref<2304x256xf32, #tpu.memory_space<vmem>>, vector<2304x256xf32>
    %cst_56 = arith.constant dense<0.000000e+00> : vector<64x256xf32>
    %112 = tpu.matmul %110, %111, %cst_56 {dimension_numbers = #tpu.dot_dimension_numbers<[1], [0], [0], [1], [0, 0, 1, 1], [], []>} : vector<64x2304xf32>, vector<2304x256xf32>, vector<64x256xf32> -> vector<64x256xf32>
    %c0_57 = arith.constant 0 : index
    %c0_58 = arith.constant 0 : index
    %113 = vector.load %arg13[%c0_57, %c0_58] : memref<1x256xf32, #tpu.memory_space<vmem>>, vector<1x256xf32>
    %114 = vector.broadcast %113 : vector<1x256xf32> to vector<64x256xf32>
    %115 = arith.addf %112, %114 : vector<64x256xf32>
    %cst_59 = arith.constant dense<0.000000e+00> : vector<256xf32>
    %116 = vector.multi_reduction <add>, %115, %cst_59 [0] : vector<64x256xf32> to vector<256xf32>
    %117 = vector.shape_cast %116 : vector<256xf32> to vector<1x256xf32>
    %c0_60 = arith.constant 0 : index
    %c0_61 = arith.constant 0 : index
    %118 = vector.load %arg14[%c0_60, %c0_61] : memref<256x256xf32, #tpu.memory_space<vmem>>, vector<256x256xf32>
    %cst_62 = arith.constant dense<0.000000e+00> : vector<1x256xf32>
    %119 = tpu.matmul %117, %118, %cst_62 {dimension_numbers = #tpu.dot_dimension_numbers<[1], [0], [0], [1], [0, 0, 1, 1], [], []>} : vector<1x256xf32>, vector<256x256xf32>, vector<1x256xf32> -> vector<1x256xf32>
    %cst_63 = arith.constant 9.765625E-4 : f32
    %120 = vector.broadcast %cst_63 : f32 to vector<1x256xf32>
    %121 = arith.mulf %119, %120 : vector<1x256xf32>
    %122 = vector.broadcast %121 : vector<1x256xf32> to vector<64x256xf32>
    %123 = arith.subf %115, %122 : vector<64x256xf32>
    %124 = arith.mulf %123, %123 : vector<64x256xf32>
    %cst_64 = arith.constant dense<0.000000e+00> : vector<256xf32>
    %125 = vector.multi_reduction <add>, %124, %cst_64 [0] : vector<64x256xf32> to vector<256xf32>
    %126 = vector.shape_cast %125 : vector<256xf32> to vector<1x256xf32>
    %c0_65 = arith.constant 0 : index
    %c0_66 = arith.constant 0 : index
    %127 = vector.load %arg14[%c0_65, %c0_66] : memref<256x256xf32, #tpu.memory_space<vmem>>, vector<256x256xf32>
    %cst_67 = arith.constant dense<0.000000e+00> : vector<1x256xf32>
    %128 = tpu.matmul %126, %127, %cst_67 {dimension_numbers = #tpu.dot_dimension_numbers<[1], [0], [0], [1], [0, 0, 1, 1], [], []>} : vector<1x256xf32>, vector<256x256xf32>, vector<1x256xf32> -> vector<1x256xf32>
    %cst_68 = arith.constant 9.765625E-4 : f32
    %129 = vector.broadcast %cst_68 : f32 to vector<1x256xf32>
    %130 = arith.mulf %128, %129 : vector<1x256xf32>
    %cst_69 = arith.constant 9.99999974E-6 : f32
    %131 = vector.broadcast %cst_69 : f32 to vector<1x256xf32>
    %132 = arith.addf %130, %131 : vector<1x256xf32>
    %133 = math.rsqrt %132 : vector<1x256xf32>
    %134 = vector.broadcast %133 : vector<1x256xf32> to vector<64x256xf32>
    %135 = arith.mulf %123, %134 : vector<64x256xf32>
    %cst_70 = arith.constant 0.707106769 : f32
    %136 = vector.broadcast %cst_70 : f32 to vector<64x256xf32>
    %137 = arith.mulf %135, %136 : vector<64x256xf32>
    %138 = math.absf %137 : vector<64x256xf32>
    %cst_71 = arith.constant 0.327591091 : f32
    %139 = vector.broadcast %cst_71 : f32 to vector<64x256xf32>
    %140 = arith.mulf %139, %138 : vector<64x256xf32>
    %cst_72 = arith.constant 1.000000e+00 : f32
    %141 = vector.broadcast %cst_72 : f32 to vector<64x256xf32>
    %142 = arith.addf %141, %140 : vector<64x256xf32>
    %cst_73 = arith.constant 1.000000e+00 : f32
    %143 = vector.broadcast %cst_73 : f32 to vector<64x256xf32>
    %144 = arith.divf %143, %142 : vector<64x256xf32>
    %cst_74 = arith.constant 1.06140542 : f32
    %145 = vector.broadcast %cst_74 : f32 to vector<64x256xf32>
    %146 = arith.mulf %144, %145 : vector<64x256xf32>
    %cst_75 = arith.constant -1.45315206 : f32
    %147 = vector.broadcast %cst_75 : f32 to vector<64x256xf32>
    %148 = arith.addf %147, %146 : vector<64x256xf32>
    %149 = arith.mulf %144, %148 : vector<64x256xf32>
    %cst_76 = arith.constant 1.42141378 : f32
    %150 = vector.broadcast %cst_76 : f32 to vector<64x256xf32>
    %151 = arith.addf %150, %149 : vector<64x256xf32>
    %152 = arith.mulf %144, %151 : vector<64x256xf32>
    %cst_77 = arith.constant -0.284496725 : f32
    %153 = vector.broadcast %cst_77 : f32 to vector<64x256xf32>
    %154 = arith.addf %153, %152 : vector<64x256xf32>
    %155 = arith.mulf %144, %154 : vector<64x256xf32>
    %cst_78 = arith.constant 0.254829586 : f32
    %156 = vector.broadcast %cst_78 : f32 to vector<64x256xf32>
    %157 = arith.addf %156, %155 : vector<64x256xf32>
    %158 = arith.mulf %144, %157 : vector<64x256xf32>
    %cst_79 = arith.constant 0.000000e+00 : f32
    %159 = vector.broadcast %cst_79 : f32 to vector<64x256xf32>
    %160 = arith.subf %159, %138 : vector<64x256xf32>
    %161 = arith.mulf %160, %138 : vector<64x256xf32>
    %162 = math.exp %161 : vector<64x256xf32>
    %163 = arith.mulf %158, %162 : vector<64x256xf32>
    %cst_80 = arith.constant 1.000000e+00 : f32
    %164 = vector.broadcast %cst_80 : f32 to vector<64x256xf32>
    %165 = arith.subf %164, %163 : vector<64x256xf32>
    %cst_81 = arith.constant 0.000000e+00 : f32
    %166 = vector.broadcast %cst_81 : f32 to vector<64x256xf32>
    %167 = arith.cmpf oge, %137, %166 : vector<64x256xf32>
    %cst_82 = arith.constant 0.000000e+00 : f32
    %168 = vector.broadcast %cst_82 : f32 to vector<64x256xf32>
    %169 = arith.subf %168, %165 : vector<64x256xf32>
    %170 = arith.select %167, %165, %169 : vector<64x256xi1>, vector<64x256xf32>
    %cst_83 = arith.constant 5.000000e-01 : f32
    %171 = vector.broadcast %cst_83 : f32 to vector<64x256xf32>
    %172 = arith.mulf %171, %135 : vector<64x256xf32>
    %cst_84 = arith.constant 1.000000e+00 : f32
    %173 = vector.broadcast %cst_84 : f32 to vector<64x256xf32>
    %174 = arith.addf %173, %170 : vector<64x256xf32>
    %175 = arith.mulf %172, %174 : vector<64x256xf32>
    %c0_85 = arith.constant 0 : index
    %c0_86 = arith.constant 0 : index
    %c0_87 = arith.constant 0 : index
    %176 = vector.load %arg15[%c0_85, %c0_86, %c0_87] : memref<1x64x256xf32, #tpu.memory_space<vmem>>, vector<1x64x256xf32>
    %177 = vector.shape_cast %176 : vector<1x64x256xf32> to vector<64x256xf32>
    %178 = vector.shape_cast %175 : vector<64x256xf32> to vector<1x64x256xf32>
    tpu.vector_store %arg15[%c0_85, %c0_86, %c0_87], %178 {strides = array<i32>} : memref<1x64x256xf32, #tpu.memory_space<vmem>>, vector<1x64x256xf32>,
    return
  }
  func.func @transform_0(%arg0: i32) -> (i32, i32, i32) {
    %c0_i32 = arith.constant 0 : i32
    %c0_i32_0 = arith.constant 0 : i32
    %c0_i32_1 = arith.constant 0 : i32
    return %arg0, %c0_i32, %c0_i32_0 : i32, i32, i32
  }
  func.func @transform_1(%arg0: i32) -> (i32, i32) {
    %c0_i32 = arith.constant 0 : i32
    %c0_i32_0 = arith.constant 0 : i32
    %c0_i32_1 = arith.constant 0 : i32
    return %c0_i32, %c0_i32_0 : i32, i32
  }
  func.func @transform_2(%arg0: i32) -> (i32, i32) {
    %c0_i32 = arith.constant 0 : i32
    %c0_i32_0 = arith.constant 0 : i32
    %c0_i32_1 = arith.constant 0 : i32
    return %c0_i32, %c0_i32_0 : i32, i32
  }
  func.func @transform_3(%arg0: i32) -> (i32, i32) {
    %c0_i32 = arith.constant 0 : i32
    %c0_i32_0 = arith.constant 0 : i32
    %c0_i32_1 = arith.constant 0 : i32
    return %c0_i32, %c0_i32_0 : i32, i32
  }
  func.func @transform_4(%arg0: i32) -> (i32, i32) {
    %c0_i32 = arith.constant 0 : i32
    %c0_i32_0 = arith.constant 0 : i32
    %c0_i32_1 = arith.constant 0 : i32
    return %c0_i32, %c0_i32_0 : i32, i32
  }
  func.func @transform_5(%arg0: i32) -> (i32, i32) {
    %c0_i32 = arith.constant 0 : i32
    %c0_i32_0 = arith.constant 0 : i32
    %c0_i32_1 = arith.constant 0 : i32
    return %c0_i32, %c0_i32_0 : i32, i32
  }
  func.func @transform_6(%arg0: i32) -> (i32, i32) {
    %c0_i32 = arith.constant 0 : i32
    %c0_i32_0 = arith.constant 0 : i32
    %c0_i32_1 = arith.constant 0 : i32
    return %c0_i32, %c0_i32_0 : i32, i32
  }
  func.func @transform_7(%arg0: i32) -> (i32, i32) {
    %c0_i32 = arith.constant 0 : i32
    %c0_i32_0 = arith.constant 0 : i32
    %c0_i32_1 = arith.constant 0 : i32
    return %c0_i32, %c0_i32_0 : i32, i32
  }
  func.func @transform_8(%arg0: i32) -> (i32, i32) {
    %c0_i32 = arith.constant 0 : i32
    %c0_i32_0 = arith.constant 0 : i32
    %c0_i32_1 = arith.constant 0 : i32
    return %c0_i32, %c0_i32_0 : i32, i32
  }
  func.func @transform_9(%arg0: i32) -> (i32, i32) {
    %c0_i32 = arith.constant 0 : i32
    %c0_i32_0 = arith.constant 0 : i32
    %c0_i32_1 = arith.constant 0 : i32
    return %c0_i32, %c0_i32_0 : i32, i32
  }
  func.func @transform_10(%arg0: i32) -> (i32, i32) {
    %c0_i32 = arith.constant 0 : i32
    %c0_i32_0 = arith.constant 0 : i32
    %c0_i32_1 = arith.constant 0 : i32
    return %c0_i32, %c0_i32_0 : i32, i32
  }
  func.func @transform_11(%arg0: i32) -> (i32, i32) {
    %c0_i32 = arith.constant 0 : i32
    %c0_i32_0 = arith.constant 0 : i32
    %c0_i32_1 = arith.constant 0 : i32
    return %c0_i32, %c0_i32_0 : i32, i32
  }
  func.func @transform_12(%arg0: i32) -> (i32, i32) {
    %c0_i32 = arith.constant 0 : i32
    %c0_i32_0 = arith.constant 0 : i32
    %c0_i32_1 = arith.constant 0 : i32
    return %c0_i32, %c0_i32_0 : i32, i32
  }
  func.func @transform_13(%arg0: i32) -> (i32, i32) {
    %c0_i32 = arith.constant 0 : i32
    %c0_i32_0 = arith.constant 0 : i32
    %c0_i32_1 = arith.constant 0 : i32
    return %c0_i32, %c0_i32_0 : i32, i32
  }
  func.func @transform_14(%arg0: i32) -> (i32, i32, i32) {
    %c0_i32 = arith.constant 0 : i32
    %c0_i32_0 = arith.constant 0 : i32
    %c0_i32_1 = arith.constant 0 : i32
    return %arg0, %c0_i32, %c0_i32_0 : i32, i32, i32
  }
}

</mosaic_0001>

<llo_original>
// kernel: tpu_custom_call.1
$region0: #{tpu_custom_call.1}
  #allocation0 [shape = 'u32[]', space=smem, size = 0x4, offset = 0x4, fixed_abs, tag = 'smem constant byte address 0x4 - core index']
  #allocation1 [shape = 'u32[144,128]{1,0:T(1,128)}', space=vmem, size = 0x12000, scoped, tag = 'internal scratch']
  %s0 = inlined_call_operand.hbm [shape: f32[2,32,256], index: 0, kind: input, shape index: {}]
  %s1 = inlined_call_operand.hbm [shape: f32[256,256], index: 1, kind: input, shape index: {}]
  %s2 = inlined_call_operand.hbm [shape: f32[256,256], index: 2, kind: input, shape index: {}]
  %s3 = inlined_call_operand.vmem [shape: f32[64,32], index: 3, kind: input, shape index: {}]
  %s4 = inlined_call_operand.vmem [shape: f32[64,32], index: 4, kind: input, shape index: {}]
  %s5 = inlined_call_operand.hbm [shape: f32[1,256], index: 5, kind: input, shape index: {}]
  %s6 = inlined_call_operand.vmem [shape: f32[64,1], index: 6, kind: input, shape index: {}]
  %s7 = inlined_call_operand.vmem [shape: f32[64,1], index: 7, kind: input, shape index: {}]
  %s8 = inlined_call_operand.hbm [shape: f32[2304,256], index: 8, kind: input, shape index: {}]
  %s9 = inlined_call_operand.hbm [shape: f32[1,256], index: 9, kind: input, shape index: {}]
  %s10 = inlined_call_operand.hbm [shape: f32[256,256], index: 10, kind: input, shape index: {}]
  %s11 = inlined_call_operand.hbm [shape: f32[2304,256], index: 11, kind: input, shape index: {}]
  %s12 = inlined_call_operand.hbm [shape: f32[1,256], index: 12, kind: input, shape index: {}]
  %s13 = inlined_call_operand.hbm [shape: f32[256,256], index: 13, kind: input, shape index: {}]
  %s14 = inlined_call_operand.hbm [shape: f32[2,64,256], index: 14, kind: output, shape index: {}]
  %s15 = sld [smem:[#allocation0]]
  $region129: #{tpu_custom_call.1} parent=0
    _
  %s17 = ssub.s32 1, %s15
  %s18 = scalar_select 0, %s17, %s15
  $region1: #{tpu_custom_call.1} parent=0
    #allocation2 [shape = 'u8[65536]{0}', space=vmem, size = 0x10000, scoped, tag = 'input window, operand 0']
    #allocation3 [shape = 's32[2]{0}', space=sflag, size = 0x8, scoped, tag = 'scoped memory for tpu_custom_call.1']
    #allocation4 [shape = 's32[2]{0}', space=sflag, size = 0x8, scoped, tag = 'scoped memory for tpu_custom_call.1']
    #allocation5 [shape = 'u8[262144]{0}', space=vmem, size = 0x40000, scoped, tag = 'input window, operand 1, single buffered']
    #allocation6 [shape = 's32[1]{0}', space=sflag, size = 0x4, scoped, tag = 'scoped memory for tpu_custom_call.1']
    #allocation7 [shape = 'u8[262144]{0}', space=vmem, size = 0x40000, scoped, tag = 'input window, operand 2, single buffered']
    #allocation8 [shape = 'u8[1024]{0}', space=vmem, size = 0x400, scoped, tag = 'input window, operand 5, single buffered']
    #allocation9 [shape = 's32[1]{0}', space=sflag, size = 0x4, scoped, tag = 'scoped memory for tpu_custom_call.1']
    #allocation10 [shape = 'u8[2359296]{0}', space=vmem, size = 0x240000, scoped, tag = 'input window, operand 8, single buffered']
    #allocation11 [shape = 'u8[1024]{0}', space=vmem, size = 0x400, scoped, tag = 'input window, operand 9, single buffered']
    #allocation12 [shape = 's32[1]{0}', space=sflag, size = 0x4, scoped, tag = 'scoped memory for tpu_custom_call.1']
    #allocation13 [shape = 'u8[262144]{0}', space=vmem, size = 0x40000, scoped, tag = 'input window, operand 10, single buffered']
    #allocation14 [shape = 'u8[2359296]{0}', space=vmem, size = 0x240000, scoped, tag = 'input window, operand 11, single buffered']
    #allocation15 [shape = 's32[1]{0}', space=sflag, size = 0x4, scoped, tag = 'scoped memory for tpu_custom_call.1']
    #allocation16 [shape = 'u8[1024]{0}', space=vmem, size = 0x400, scoped, tag = 'input window, operand 12, single buffered']
    #allocation17 [shape = 'u8[262144]{0}', space=vmem, size = 0x40000, scoped, tag = 'input window, operand 13, single buffered']
    #allocation18 [shape = 's32[1]{0}', space=sflag, size = 0x4, scoped, tag = 'scoped memory for tpu_custom_call.1']
    #allocation19 [shape = 'u8[131072]{0}', space=vmem, size = 0x20000, scoped, tag = 'output window, operand 0']
    %19 = vsyncpa [#allocation3], 0
    %s20 = scalar_lea.sflag [#allocation3], 1
    %21 = vsyncpa %s20, 0
    %22 = vsyncpa [#allocation6], 0
    %23 = vsyncpa [#allocation9], 0
    %24 = vsyncpa [#allocation12], 0
    %25 = vsyncpa [#allocation15], 0
    %26 = vsyncpa [#allocation18], 0
    %27 = vsyncpa [#allocation4], 0
    %s28 = scalar_lea.sflag [#allocation4], 1
    %29 = vsyncpa %s28, 0
    loop: start=0, step=1, limit=4
    $region2: #{tpu_custom_call.1} parent=1 // loop_pre_header
      _
    $region3: #{tpu_custom_call.1} parent=1 // loop_header
      %s31 = sphi 0, %s35
      %p32 = scmp.ge.s32.totalorder %s31, 4
      %s41 = sphi 0, %s43
      %s44 = sphi 0, %s41
      %s45 = sphi 0, %s44
      %s61 = sphi 0, %s45
      %s65 = sphi 0, %s65
      %s67 = sphi 0, %s65
      %s68 = sphi 0, %s67
      %s82 = sphi 0, %s68
      %s86 = sphi 0, %s86
      %s88 = sphi 0, %s86
      %s89 = sphi 0, %s88
      %s103 = sphi 0, %s89
      %s107 = sphi 0, %s107
      %s109 = sphi 0, %s107
      %s110 = sphi 0, %s109
      %s124 = sphi 0, %s110
      %s128 = sphi 0, %s128
      %s130 = sphi 0, %s128
      %s131 = sphi 0, %s130
      %s145 = sphi 0, %s131
      %s149 = sphi 0, %s149
      %s151 = sphi 0, %s149
      %s152 = sphi 0, %s151
      %s166 = sphi 0, %s152
      %s170 = sphi 0, %s170
      %s172 = sphi 0, %s170
      %s173 = sphi 0, %s172
      %s187 = sphi 0, %s173
      %s191 = sphi 0, %s191
      %s193 = sphi 0, %s191
      %s194 = sphi 0, %s193
      %s208 = sphi 0, %s194
      %s212 = sphi 0, %s212
      %s214 = sphi 0, %s212
      %s215 = sphi 0, %s214
      %s229 = sphi 0, %s215
      %s233 = sphi 0, %s233
      %s235 = sphi 0, %s233
      %s236 = sphi 0, %s235
      %s250 = sphi 0, %s236
      %s254 = sphi 0, %s254
      %s256 = sphi 0, %s254
      %s257 = sphi 0, %s256
      %s271 = sphi 0, %s257
      %s275 = sphi 0, %s275
      %s277 = sphi 0, %s275
      %s278 = sphi 0, %s277
      %s292 = sphi 0, %s278
      %s296 = sphi 0, %s296
      %s298 = sphi 0, %s296
      %s299 = sphi 0, %s298
      %s313 = sphi 0, %s299
      %s317 = sphi 0, %s317
      %s319 = sphi 0, %s317
      %s320 = sphi 0, %s319
      %s334 = sphi 0, %s320
      %s340 = sphi 0, %s342
      %s343 = sphi 0, %s340
      %s344 = sphi 0, %s343
      %s360 = sphi 0, %s344
    $region4: #{tpu_custom_call.1} parent=1 // loop_header_branch
      %34 = sbr.rel (%p32) target = $region8
    $region5: #{tpu_custom_call.1} parent=1 // loop_body
      %s36 = ssub.s32 %s31, 1
      %s37 = ssub.s32 %s31, 2
      %s38 = sadd.s32 %s31, 1
      %s39 = ssub.s32 %s31, %s38
      %p40 = scmp.eq.s32.totalorder %s39, 0
      %s42 = sadd.s32 %s41, 1
      %s43 = scalar_select %p40, %s41, %s42
      %p46 = pneg %p40
      %p47 = scmp.eq.s32.totalorder %s31, 1
      %p48 = por %p46, %p47
      %p49 = scmp.ne.s32.totalorder %s41, %s44
      %p50 = scmp.eq.s32.totalorder %s31, 0
      %p51 = por %p49, %p50
      %p52 = scmp.ne.s32.totalorder %s41, %s44
      %p53 = scmp.eq.s32.totalorder %s36, 1
      %p54 = por %p52, %p53
      %p55 = scmp.ne.s32.totalorder %s44, %s45
      %p56 = scmp.eq.s32.totalorder %s36, 0
      %p57 = por %p55, %p56
      %p58 = scmp.ne.s32.totalorder %s44, %s45
      %p59 = scmp.eq.s32.totalorder %s37, 1
      %p60 = por %p58, %p59
      %p62 = scmp.ne.s32.totalorder %s45, %s61
      %p63 = scmp.eq.s32.totalorder %s37, 0
      %p64 = por %p62, %p63
      %s66 = sadd.s32 %s65, 1
      %p69 = scmp.eq.s32.totalorder %s31, 1
      %p70 = scmp.ne.s32.totalorder %s65, %s67
      %p71 = scmp.eq.s32.totalorder %s31, 0
      %p72 = por %p70, %p71
      %p73 = scmp.ne.s32.totalorder %s65, %s67
      %p74 = scmp.eq.s32.totalorder %s36, 1
      %p75 = por %p73, %p74
      %p76 = scmp.ne.s32.totalorder %s67, %s68
      %p77 = scmp.eq.s32.totalorder %s36, 0
      %p78 = por %p76, %p77
      %p79 = scmp.ne.s32.totalorder %s67, %s68
      %p80 = scmp.eq.s32.totalorder %s37, 1
      %p81 = por %p79, %p80
      %p83 = scmp.ne.s32.totalorder %s68, %s82
      %p84 = scmp.eq.s32.totalorder %s37, 0
      %p85 = por %p83, %p84
      %s87 = sadd.s32 %s86, 1
      %p90 = scmp.eq.s32.totalorder %s31, 1
      %p91 = scmp.ne.s32.totalorder %s86, %s88
      %p92 = scmp.eq.s32.totalorder %s31, 0
      %p93 = por %p91, %p92
      %p94 = scmp.ne.s32.totalorder %s86, %s88
      %p95 = scmp.eq.s32.totalorder %s36, 1
      %p96 = por %p94, %p95
      %p97 = scmp.ne.s32.totalorder %s88, %s89
      %p98 = scmp.eq.s32.totalorder %s36, 0
      %p99 = por %p97, %p98
      %p100 = scmp.ne.s32.totalorder %s88, %s89
      %p101 = scmp.eq.s32.totalorder %s37, 1
      %p102 = por %p100, %p101
      %p104 = scmp.ne.s32.totalorder %s89, %s103
      %p105 = scmp.eq.s32.totalorder %s37, 0
      %p106 = por %p104, %p105
      %s108 = sadd.s32 %s107, 1
      %p111 = scmp.eq.s32.totalorder %s31, 1
      %p112 = scmp.ne.s32.totalorder %s107, %s109
      %p113 = scmp.eq.s32.totalorder %s31, 0
      %p114 = por %p112, %p113
      %p115 = scmp.ne.s32.totalorder %s107, %s109
      %p116 = scmp.eq.s32.totalorder %s36, 1
      %p117 = por %p115, %p116
      %p118 = scmp.ne.s32.totalorder %s109, %s110
      %p119 = scmp.eq.s32.totalorder %s36, 0
      %p120 = por %p118, %p119
      %p121 = scmp.ne.s32.totalorder %s109, %s110
      %p122 = scmp.eq.s32.totalorder %s37, 1
      %p123 = por %p121, %p122
      %p125 = scmp.ne.s32.totalorder %s110, %s124
      %p126 = scmp.eq.s32.totalorder %s37, 0
      %p127 = por %p125, %p126
      %s129 = sadd.s32 %s128, 1
      %p132 = scmp.eq.s32.totalorder %s31, 1
      %p133 = scmp.ne.s32.totalorder %s128, %s130
      %p134 = scmp.eq.s32.totalorder %s31, 0
      %p135 = por %p133, %p134
      %p136 = scmp.ne.s32.totalorder %s128, %s130
      %p137 = scmp.eq.s32.totalorder %s36, 1
      %p138 = por %p136, %p137
      %p139 = scmp.ne.s32.totalorder %s130, %s131
      %p140 = scmp.eq.s32.totalorder %s36, 0
      %p141 = por %p139, %p140
      %p142 = scmp.ne.s32.totalorder %s130, %s131
      %p143 = scmp.eq.s32.totalorder %s37, 1
      %p144 = por %p142, %p143
      %p146 = scmp.ne.s32.totalorder %s131, %s145
      %p147 = scmp.eq.s32.totalorder %s37, 0
      %p148 = por %p146, %p147
      %s150 = sadd.s32 %s149, 1
      %p153 = scmp.eq.s32.totalorder %s31, 1
      %p154 = scmp.ne.s32.totalorder %s149, %s151
      %p155 = scmp.eq.s32.totalorder %s31, 0
      %p156 = por %p154, %p155
      %p157 = scmp.ne.s32.totalorder %s149, %s151
      %p158 = scmp.eq.s32.totalorder %s36, 1
      %p159 = por %p157, %p158
      %p160 = scmp.ne.s32.totalorder %s151, %s152
      %p161 = scmp.eq.s32.totalorder %s36, 0
      %p162 = por %p160, %p161
      %p163 = scmp.ne.s32.totalorder %s151, %s152
      %p164 = scmp.eq.s32.totalorder %s37, 1
      %p165 = por %p163, %p164
      %p167 = scmp.ne.s32.totalorder %s152, %s166
      %p168 = scmp.eq.s32.totalorder %s37, 0
      %p169 = por %p167, %p168
      %s171 = sadd.s32 %s170, 1
      %p174 = scmp.eq.s32.totalorder %s31, 1
      %p175 = scmp.ne.s32.totalorder %s170, %s172
      %p176 = scmp.eq.s32.totalorder %s31, 0
      %p177 = por %p175, %p176
      %p178 = scmp.ne.s32.totalorder %s170, %s172
      %p179 = scmp.eq.s32.totalorder %s36, 1
      %p180 = por %p178, %p179
      %p181 = scmp.ne.s32.totalorder %s172, %s173
      %p182 = scmp.eq.s32.totalorder %s36, 0
      %p183 = por %p181, %p182
      %p184 = scmp.ne.s32.totalorder %s172, %s173
      %p185 = scmp.eq.s32.totalorder %s37, 1
      %p186 = por %p184, %p185
      %p188 = scmp.ne.s32.totalorder %s173, %s187
      %p189 = scmp.eq.s32.totalorder %s37, 0
      %p190 = por %p188, %p189
      %s192 = sadd.s32 %s191, 1
      %p195 = scmp.eq.s32.totalorder %s31, 1
      %p196 = scmp.ne.s32.totalorder %s191, %s193
      %p197 = scmp.eq.s32.totalorder %s31, 0
      %p198 = por %p196, %p197
      %p199 = scmp.ne.s32.totalorder %s191, %s193
      %p200 = scmp.eq.s32.totalorder %s36, 1
      %p201 = por %p199, %p200
      %p202 = scmp.ne.s32.totalorder %s193, %s194
      %p203 = scmp.eq.s32.totalorder %s36, 0
      %p204 = por %p202, %p203
      %p205 = scmp.ne.s32.totalorder %s193, %s194
      %p206 = scmp.eq.s32.totalorder %s37, 1
      %p207 = por %p205, %p206
      %p209 = scmp.ne.s32.totalorder %s194, %s208
      %p210 = scmp.eq.s32.totalorder %s37, 0
      %p211 = por %p209, %p210
      %s213 = sadd.s32 %s212, 1
      %p216 = scmp.eq.s32.totalorder %s31, 1
      %p217 = scmp.ne.s32.totalorder %s212, %s214
      %p218 = scmp.eq.s32.totalorder %s31, 0
      %p219 = por %p217, %p218
      %p220 = scmp.ne.s32.totalorder %s212, %s214
      %p221 = scmp.eq.s32.totalorder %s36, 1
      %p222 = por %p220, %p221
      %p223 = scmp.ne.s32.totalorder %s214, %s215
      %p224 = scmp.eq.s32.totalorder %s36, 0
      %p225 = por %p223, %p224
      %p226 = scmp.ne.s32.totalorder %s214, %s215
      %p227 = scmp.eq.s32.totalorder %s37, 1
      %p228 = por %p226, %p227
      %p230 = scmp.ne.s32.totalorder %s215, %s229
      %p231 = scmp.eq.s32.totalorder %s37, 0
      %p232 = por %p230, %p231
      %s234 = sadd.s32 %s233, 1
      %p237 = scmp.eq.s32.totalorder %s31, 1
      %p238 = scmp.ne.s32.totalorder %s233, %s235
      %p239 = scmp.eq.s32.totalorder %s31, 0
      %p240 = por %p238, %p239
      %p241 = scmp.ne.s32.totalorder %s233, %s235
      %p242 = scmp.eq.s32.totalorder %s36, 1
      %p243 = por %p241, %p242
      %p244 = scmp.ne.s32.totalorder %s235, %s236
      %p245 = scmp.eq.s32.totalorder %s36, 0
      %p246 = por %p244, %p245
      %p247 = scmp.ne.s32.totalorder %s235, %s236
      %p248 = scmp.eq.s32.totalorder %s37, 1
      %p249 = por %p247, %p248
      %p251 = scmp.ne.s32.totalorder %s236, %s250
      %p252 = scmp.eq.s32.totalorder %s37, 0
      %p253 = por %p251, %p252
      %s255 = sadd.s32 %s254, 1
      %p258 = scmp.eq.s32.totalorder %s31, 1
      %p259 = scmp.ne.s32.totalorder %s254, %s256
      %p260 = scmp.eq.s32.totalorder %s31, 0
      %p261 = por %p259, %p260
      %p262 = scmp.ne.s32.totalorder %s254, %s256
      %p263 = scmp.eq.s32.totalorder %s36, 1
      %p264 = por %p262, %p263
      %p265 = scmp.ne.s32.totalorder %s256, %s257
      %p266 = scmp.eq.s32.totalorder %s36, 0
      %p267 = por %p265, %p266
      %p268 = scmp.ne.s32.totalorder %s256, %s257
      %p269 = scmp.eq.s32.totalorder %s37, 1
      %p270 = por %p268, %p269
      %p272 = scmp.ne.s32.totalorder %s257, %s271
      %p273 = scmp.eq.s32.totalorder %s37, 0
      %p274 = por %p272, %p273
      %s276 = sadd.s32 %s275, 1
      %p279 = scmp.eq.s32.totalorder %s31, 1
      %p280 = scmp.ne.s32.totalorder %s275, %s277
      %p281 = scmp.eq.s32.totalorder %s31, 0
      %p282 = por %p280, %p281
      %p283 = scmp.ne.s32.totalorder %s275, %s277
      %p284 = scmp.eq.s32.totalorder %s36, 1
      %p285 = por %p283, %p284
      %p286 = scmp.ne.s32.totalorder %s277, %s278
      %p287 = scmp.eq.s32.totalorder %s36, 0
      %p288 = por %p286, %p287
      %p289 = scmp.ne.s32.totalorder %s277, %s278
      %p290 = scmp.eq.s32.totalorder %s37, 1
      %p291 = por %p289, %p290
      %p293 = scmp.ne.s32.totalorder %s278, %s292
      %p294 = scmp.eq.s32.totalorder %s37, 0
      %p295 = por %p293, %p294
      %s297 = sadd.s32 %s296, 1
      %p300 = scmp.eq.s32.totalorder %s31, 1
      %p301 = scmp.ne.s32.totalorder %s296, %s298
      %p302 = scmp.eq.s32.totalorder %s31, 0
      %p303 = por %p301, %p302
      %p304 = scmp.ne.s32.totalorder %s296, %s298
      %p305 = scmp.eq.s32.totalorder %s36, 1
      %p306 = por %p304, %p305
      %p307 = scmp.ne.s32.totalorder %s298, %s299
      %p308 = scmp.eq.s32.totalorder %s36, 0
      %p309 = por %p307, %p308
      %p310 = scmp.ne.s32.totalorder %s298, %s299
      %p311 = scmp.eq.s32.totalorder %s37, 1
      %p312 = por %p310, %p311
      %p314 = scmp.ne.s32.totalorder %s299, %s313
      %p315 = scmp.eq.s32.totalorder %s37, 0
      %p316 = por %p314, %p315
      %s318 = sadd.s32 %s317, 1
      %p321 = scmp.eq.s32.totalorder %s31, 1
      %p322 = scmp.ne.s32.totalorder %s317, %s319
      %p323 = scmp.eq.s32.totalorder %s31, 0
      %p324 = por %p322, %p323
      %p325 = scmp.ne.s32.totalorder %s317, %s319
      %p326 = scmp.eq.s32.totalorder %s36, 1
      %p327 = por %p325, %p326
      %p328 = scmp.ne.s32.totalorder %s319, %s320
      %p329 = scmp.eq.s32.totalorder %s36, 0
      %p330 = por %p328, %p329
      %p331 = scmp.ne.s32.totalorder %s319, %s320
      %p332 = scmp.eq.s32.totalorder %s37, 1
      %p333 = por %p331, %p332
      %p335 = scmp.ne.s32.totalorder %s320, %s334
      %p336 = scmp.eq.s32.totalorder %s37, 0
      %p337 = por %p335, %p336
      %s338 = ssub.s32 %s31, %s38
      %p339 = scmp.eq.s32.totalorder %s338, 0
      %s341 = sadd.s32 %s340, 1
      %s342 = scalar_select %p339, %s340, %s341
      %p345 = pneg %p339
      %p346 = scmp.eq.s32.totalorder %s31, 1
      %p347 = por %p345, %p346
      %p348 = scmp.ne.s32.totalorder %s340, %s343
      %p349 = scmp.eq.s32.totalorder %s31, 0
      %p350 = por %p348, %p349
      %p351 = scmp.ne.s32.totalorder %s340, %s343
      %p352 = scmp.eq.s32.totalorder %s36, 1
      %p353 = por %p351, %p352
      %p354 = scmp.ne.s32.totalorder %s343, %s344
      %p355 = scmp.eq.s32.totalorder %s36, 0
      %p356 = por %p354, %p355
      %p357 = scmp.ne.s32.totalorder %s343, %s344
      %p358 = scmp.eq.s32.totalorder %s37, 1
      %p359 = por %p357, %p358
      %p361 = scmp.ne.s32.totalorder %s344, %s360
      %p362 = scmp.eq.s32.totalorder %s37, 0
      %p363 = por %p361, %p362
      %p364 = scmp.le.s32.totalorder 1, %s31
      %p365 = scmp.lt.s32.totalorder %s31, 3
      %p366 = pnand %p364, %p365
      %p367 = pneg %p366
      // Predicated region
      $region9: #{tpu_custom_call.1} parent=5 // pred_check
        _
      $region10: #{tpu_custom_call.1} parent=5 // pred_check_branch
        %369 = sbr.rel (%p366) target = $region12
      $region11: #{tpu_custom_call.1} parent=5 // pred_region
        %s370 = ssub.s32 %s31, 1
        // Predicated region
        $region13: #{tpu_custom_call.1} parent=11 // pred_check
          %p371 = pneg %p78
        $region14: #{tpu_custom_call.1} parent=11 // pred_check_branch
          %373 = sbr.rel (%p371) target = $region16
        $region15: #{tpu_custom_call.1} parent=11 // pred_region
          %s375 = ssub.s32 8192, 8192
          %376 = vsyncadd [#allocation6], %s375
          %s377 = sshll.u32 [#allocation5], 4
          %s378 = int_to_ptr.vmem [resolvable:$true] %s377
          %383 = dma.hbm_to_vmem [thread:$0]  %s1, 8192, %s378, [#allocation6], 256, 256, 16
        $region16: #{tpu_custom_call.1} parent=11 // pred_fallthru
          _
        // Predicated region
        $region17: #{tpu_custom_call.1} parent=11 // pred_check
          %p384 = pneg %p99
        $region18: #{tpu_custom_call.1} parent=11 // pred_check_branch
          %386 = sbr.rel (%p384) target = $region20
        $region19: #{tpu_custom_call.1} parent=11 // pred_region
          %s388 = ssub.s32 8192, 8192
          %389 = vsyncadd [#allocation6], %s388
          %s390 = sshll.u32 [#allocation7], 4
          %s391 = int_to_ptr.vmem [resolvable:$true] %s390
          %396 = dma.hbm_to_vmem [thread:$0]  %s2, 8192, %s391, [#allocation6], 256, 256, 16
        $region20: #{tpu_custom_call.1} parent=11 // pred_fallthru
          _
        // Predicated region
        $region21: #{tpu_custom_call.1} parent=11 // pred_check
          %p397 = pneg %p120
        $region22: #{tpu_custom_call.1} parent=11 // pred_check_branch
          %399 = sbr.rel (%p397) target = $region24
        $region23: #{tpu_custom_call.1} parent=11 // pred_region
          _
        $region24: #{tpu_custom_call.1} parent=11 // pred_fallthru
          _
        // Predicated region
        $region25: #{tpu_custom_call.1} parent=11 // pred_check
          %p400 = pneg %p141
        $region26: #{tpu_custom_call.1} parent=11 // pred_check_branch
          %402 = sbr.rel (%p400) target = $region28
        $region27: #{tpu_custom_call.1} parent=11 // pred_region
          _
        $region28: #{tpu_custom_call.1} parent=11 // pred_fallthru
          _
        // Predicated region
        $region29: #{tpu_custom_call.1} parent=11 // pred_check
          %p403 = pneg %p162
        $region30: #{tpu_custom_call.1} parent=11 // pred_check_branch
          %405 = sbr.rel (%p403) target = $region32
        $region31: #{tpu_custom_call.1} parent=11 // pred_region
          %s407 = ssub.s32 32, 32
          %408 = vsyncadd [#allocation9], %s407
          %s410 = sshll.u32 [#allocation8], 4
          %s411 = int_to_ptr.vmem [resolvable:$true] %s410
          %413 = dma.hbm_to_vmem [thread:$0]  %s5, 32, %s411, [#allocation9]
        $region32: #{tpu_custom_call.1} parent=11 // pred_fallthru
          _
        // Predicated region
        $region33: #{tpu_custom_call.1} parent=11 // pred_check
          %p414 = pneg %p183
        $region34: #{tpu_custom_call.1} parent=11 // pred_check_branch
          %416 = sbr.rel (%p414) target = $region36
        $region35: #{tpu_custom_call.1} parent=11 // pred_region
          _
        $region36: #{tpu_custom_call.1} parent=11 // pred_fallthru
          _
        // Predicated region
        $region37: #{tpu_custom_call.1} parent=11 // pred_check
          %p417 = pneg %p204
        $region38: #{tpu_custom_call.1} parent=11 // pred_check_branch
          %419 = sbr.rel (%p417) target = $region40
        $region39: #{tpu_custom_call.1} parent=11 // pred_region
          _
        $region40: #{tpu_custom_call.1} parent=11 // pred_fallthru
          _
        // Predicated region
        $region41: #{tpu_custom_call.1} parent=11 // pred_check
          %p420 = pneg %p225
        $region42: #{tpu_custom_call.1} parent=11 // pred_check_branch
          %422 = sbr.rel (%p420) target = $region44
        $region43: #{tpu_custom_call.1} parent=11 // pred_region
          %s424 = ssub.s32 73728, 73728
          %425 = vsyncadd [#allocation9], %s424
          %s426 = sshll.u32 [#allocation10], 4
          %s427 = int_to_ptr.vmem [resolvable:$true] %s426
          %432 = dma.hbm_to_vmem [thread:$0]  %s8, 73728, %s427, [#allocation9], 256, 256, 16
        $region44: #{tpu_custom_call.1} parent=11 // pred_fallthru
          _
        // Predicated region
        $region45: #{tpu_custom_call.1} parent=11 // pred_check
          %p433 = pneg %p246
        $region46: #{tpu_custom_call.1} parent=11 // pred_check_branch
          %435 = sbr.rel (%p433) target = $region48
        $region47: #{tpu_custom_call.1} parent=11 // pred_region
          %s437 = ssub.s32 32, 32
          %438 = vsyncadd [#allocation12], %s437
          %s440 = sshll.u32 [#allocation11], 4
          %s441 = int_to_ptr.vmem [resolvable:$true] %s440
          %443 = dma.hbm_to_vmem [thread:$0]  %s9, 32, %s441, [#allocation12]
        $region48: #{tpu_custom_call.1} parent=11 // pred_fallthru
          _
        // Predicated region
        $region49: #{tpu_custom_call.1} parent=11 // pred_check
          %p444 = pneg %p267
        $region50: #{tpu_custom_call.1} parent=11 // pred_check_branch
          %446 = sbr.rel (%p444) target = $region52
        $region51: #{tpu_custom_call.1} parent=11 // pred_region
          %s448 = ssub.s32 8192, 8192
          %449 = vsyncadd [#allocation12], %s448
          %s450 = sshll.u32 [#allocation13], 4
          %s451 = int_to_ptr.vmem [resolvable:$true] %s450
          %456 = dma.hbm_to_vmem [thread:$0]  %s10, 8192, %s451, [#allocation12], 256, 256, 16
        $region52: #{tpu_custom_call.1} parent=11 // pred_fallthru
          _
        // Predicated region
        $region53: #{tpu_custom_call.1} parent=11 // pred_check
          %p457 = pneg %p288
        $region54: #{tpu_custom_call.1} parent=11 // pred_check_branch
          %459 = sbr.rel (%p457) target = $region56
        $region55: #{tpu_custom_call.1} parent=11 // pred_region
          %s461 = ssub.s32 73728, 73728
          %462 = vsyncadd [#allocation15], %s461
          %s463 = sshll.u32 [#allocation14], 4
          %s464 = int_to_ptr.vmem [resolvable:$true] %s463
          %469 = dma.hbm_to_vmem [thread:$0]  %s11, 73728, %s464, [#allocation15], 256, 256, 16
        $region56: #{tpu_custom_call.1} parent=11 // pred_fallthru
          _
        // Predicated region
        $region57: #{tpu_custom_call.1} parent=11 // pred_check
          %p470 = pneg %p309
        $region58: #{tpu_custom_call.1} parent=11 // pred_check_branch
          %472 = sbr.rel (%p470) target = $region60
        $region59: #{tpu_custom_call.1} parent=11 // pred_region
          %s474 = ssub.s32 32, 32
          %475 = vsyncadd [#allocation15], %s474
          %s477 = sshll.u32 [#allocation16], 4
          %s478 = int_to_ptr.vmem [resolvable:$true] %s477
          %480 = dma.hbm_to_vmem [thread:$0]  %s12, 32, %s478, [#allocation15]
        $region60: #{tpu_custom_call.1} parent=11 // pred_fallthru
          _
        // Predicated region
        $region61: #{tpu_custom_call.1} parent=11 // pred_check
          %p481 = pneg %p330
        $region62: #{tpu_custom_call.1} parent=11 // pred_check_branch
          %483 = sbr.rel (%p481) target = $region64
        $region63: #{tpu_custom_call.1} parent=11 // pred_region
          %s485 = ssub.s32 8192, 8192
          %486 = vsyncadd [#allocation18], %s485
          %s487 = sshll.u32 [#allocation17], 4
          %s488 = int_to_ptr.vmem [resolvable:$true] %s487
          %493 = dma.hbm_to_vmem [thread:$0]  %s13, 8192, %s488, [#allocation18], 256, 256, 16
        $region64: #{tpu_custom_call.1} parent=11 // pred_fallthru
          _
      $region12: #{tpu_custom_call.1} parent=5 // pred_fallthru
        _
      %p494 = scmp.lt.s32.totalorder %s31, 2
      // Predicated region
      $region65: #{tpu_custom_call.1} parent=5 // pred_check
        %p495 = pneg %p494
      $region66: #{tpu_custom_call.1} parent=5 // pred_check_branch
        %497 = sbr.rel (%p495) target = $region68
      $region67: #{tpu_custom_call.1} parent=5 // pred_region
        // Predicated region
        $region69: #{tpu_custom_call.1} parent=67 // pred_check
          %p498 = pneg %p51
        $region70: #{tpu_custom_call.1} parent=67 // pred_check_branch
          %500 = sbr.rel (%p498) target = $region72
        $region71: #{tpu_custom_call.1} parent=67 // pred_region
          %s501 = sand.u32 %s41, 1
          %s502 = scalar_lea.sflag [#allocation3], %s501
          %s503 = sand.u32 %s41, 1
          %s504 = smul.addr %s503, 64
          %s505 = scalar_lea.vmem [#allocation2], %s504
          %s507 = ssub.s32 1024, 1024
          %508 = vsyncadd %s502, %s507
          %s509 = smul.addr %s31, 8
          %s510 = smul.addr %s509, 128
          %s511 = scalar_lea.hbm %s0, %s510
          %s512 = sshll.u32 %s505, 4
          %s513 = int_to_ptr.vmem [resolvable:$true] %s512
          %518 = dma.hbm_to_vmem [thread:$0]  %s511, 1024, %s513, %s502, 256, 256, 16
        $region72: #{tpu_custom_call.1} parent=67 // pred_fallthru
          _
      $region68: #{tpu_custom_call.1} parent=5 // pred_fallthru
        _
      %p519 = scmp.le.s32.totalorder 1, %s31
      %p520 = scmp.lt.s32.totalorder %s31, 3
      %p521 = pnand %p519, %p520
      %p522 = pneg %p521
      // Predicated region
      $region73: #{tpu_custom_call.1} parent=5 // pred_check
        _
      $region74: #{tpu_custom_call.1} parent=5 // pred_check_branch
        %524 = sbr.rel (%p521) target = $region76
      $region75: #{tpu_custom_call.1} parent=5 // pred_region
        %s525 = ssub.s32 %s31, 1
        %s526 = sand.u32 %s44, 1
        %s527 = scalar_lea.sflag [#allocation3], %s526
        %s528 = sand.u32 %s44, 1
        %s529 = smul.addr %s528, 64
        %s530 = scalar_lea.vmem [#allocation2], %s529
        // Predicated region
        $region77: #{tpu_custom_call.1} parent=75 // pred_check
          %p531 = pneg %p57
        $region78: #{tpu_custom_call.1} parent=75 // pred_check_branch
          %533 = sbr.rel (%p531) target = $region80
        $region79: #{tpu_custom_call.1} parent=75 // pred_region
          %534 = dma.done %s527, 1024
        $region80: #{tpu_custom_call.1} parent=75 // pred_fallthru
          _
        // Predicated region
        $region81: #{tpu_custom_call.1} parent=75 // pred_check
          %p535 = pneg %p78
        $region82: #{tpu_custom_call.1} parent=75 // pred_check_branch
          %537 = sbr.rel (%p535) target = $region84
        $region83: #{tpu_custom_call.1} parent=75 // pred_region
          %538 = dma.done [#allocation6], 8192
        $region84: #{tpu_custom_call.1} parent=75 // pred_fallthru
          _
        // Predicated region
        $region85: #{tpu_custom_call.1} parent=75 // pred_check
          %p539 = pneg %p99
        $region86: #{tpu_custom_call.1} parent=75 // pred_check_branch
          %541 = sbr.rel (%p539) target = $region88
        $region87: #{tpu_custom_call.1} parent=75 // pred_region
          %542 = dma.done [#allocation6], 8192
        $region88: #{tpu_custom_call.1} parent=75 // pred_fallthru
          _
        // Predicated region
        $region89: #{tpu_custom_call.1} parent=75 // pred_check
          %p543 = pneg %p162
        $region90: #{tpu_custom_call.1} parent=75 // pred_check_branch
          %545 = sbr.rel (%p543) target = $region92
        $region91: #{tpu_custom_call.1} parent=75 // pred_region
          %546 = dma.done [#allocation9], 32
        $region92: #{tpu_custom_call.1} parent=75 // pred_fallthru
          _
        // Predicated region
        $region93: #{tpu_custom_call.1} parent=75 // pred_check
          %p547 = pneg %p225
        $region94: #{tpu_custom_call.1} parent=75 // pred_check_branch
          %549 = sbr.rel (%p547) target = $region96
        $region95: #{tpu_custom_call.1} parent=75 // pred_region
          %550 = dma.done [#allocation9], 73728
        $region96: #{tpu_custom_call.1} parent=75 // pred_fallthru
          _
        // Predicated region
        $region97: #{tpu_custom_call.1} parent=75 // pred_check
          %p551 = pneg %p246
        $region98: #{tpu_custom_call.1} parent=75 // pred_check_branch
          %553 = sbr.rel (%p551) target = $region100
        $region99: #{tpu_custom_call.1} parent=75 // pred_region
          %554 = dma.done [#allocation12], 32
        $region100: #{tpu_custom_call.1} parent=75 // pred_fallthru
          _
        // Predicated region
        $region101: #{tpu_custom_call.1} parent=75 // pred_check
          %p555 = pneg %p267
        $region102: #{tpu_custom_call.1} parent=75 // pred_check_branch
          %557 = sbr.rel (%p555) target = $region104
        $region103: #{tpu_custom_call.1} parent=75 // pred_region
          %558 = dma.done [#allocation12], 8192
        $region104: #{tpu_custom_call.1} parent=75 // pred_fallthru
          _
        // Predicated region
        $region105: #{tpu_custom_call.1} parent=75 // pred_check
          %p559 = pneg %p288
        $region106: #{tpu_custom_call.1} parent=75 // pred_check_branch
          %561 = sbr.rel (%p559) target = $region108
        $region107: #{tpu_custom_call.1} parent=75 // pred_region
          %562 = dma.done [#allocation15], 73728
        $region108: #{tpu_custom_call.1} parent=75 // pred_fallthru
          _
        // Predicated region
        $region109: #{tpu_custom_call.1} parent=75 // pred_check
          %p563 = pneg %p309
        $region110: #{tpu_custom_call.1} parent=75 // pred_check_branch
          %565 = sbr.rel (%p563) target = $region112
        $region111: #{tpu_custom_call.1} parent=75 // pred_region
          %566 = dma.done [#allocation15], 32
        $region112: #{tpu_custom_call.1} parent=75 // pred_fallthru
          _
        // Predicated region
        $region113: #{tpu_custom_call.1} parent=75 // pred_check
          %p567 = pneg %p330
        $region114: #{tpu_custom_call.1} parent=75 // pred_check_branch
          %569 = sbr.rel (%p567) target = $region116
        $region115: #{tpu_custom_call.1} parent=75 // pred_region
          %570 = dma.done [#allocation18], 8192
        $region116: #{tpu_custom_call.1} parent=75 // pred_fallthru
          _
        %s571 = sand.u32 %s44, 1
        %s572 = scalar_lea.sflag [#allocation3], %s571
        %s573 = sand.u32 %s44, 1
        %s574 = smul.addr %s573, 64
        %s575 = scalar_lea.vmem [#allocation2], %s574
        %p576 = pneg %p57
        %p577 = pneg %p54
        %p578 = pneg %p78
        %p579 = pneg %p75
        %p580 = pneg %p99
        %p581 = pneg %p96
        %p582 = pneg %p120
        %p583 = pneg %p117
        %p584 = pneg %p141
        %p585 = pneg %p138
        %p586 = pneg %p162
        %p587 = pneg %p159
        %p588 = pneg %p183
        %p589 = pneg %p180
        %p590 = pneg %p204
        %p591 = pneg %p201
        %p592 = pneg %p225
        %p593 = pneg %p222
        %p594 = pneg %p246
        %p595 = pneg %p243
        %p596 = pneg %p267
        %p597 = pneg %p264
        %p598 = pneg %p288
        %p599 = pneg %p285
        %p600 = pneg %p309
        %p601 = pneg %p306
        %p602 = pneg %p330
        %p603 = pneg %p327
        %p604 = pneg %p356
        %p605 = pneg %p353
        %s606 = sand.u32 %s343, 1
        %s607 = scalar_lea.sflag [#allocation4], %s606
        %s608 = sand.u32 %s343, 1
        %s609 = smul.addr %s608, 128
        %s610 = scalar_lea.vmem [#allocation19], %s609
        %v611 = vld [vmem:[%s530] sm:$0xff]
        %v612 = vld [vmem:[%s530 + $0x8] sm:$0xff]
        %v613 = vld [vmem:[%s530 + $0x10] sm:$0xff]
        %v614 = vld [vmem:[%s530 + $0x18] sm:$0xff]
        %v615 = vld [vmem:[%s530 + $0x20] sm:$0xff]
        %v616 = vld [vmem:[%s530 + $0x28] sm:$0xff]
        %v617 = vld [vmem:[%s530 + $0x30] sm:$0xff]
        %v618 = vld [vmem:[%s530 + $0x38] sm:$0xff]
        %v619 = vld [vmem:[#allocation5] sm:$0xff]
        %v620 = vld [vmem:[#allocation5 + $0x8] sm:$0xff]
        %v621 = vld [vmem:[#allocation5 + $0x10] sm:$0xff]
        %v622 = vld [vmem:[#allocation5 + $0x18] sm:$0xff]
        %v623 = vld [vmem:[#allocation5 + $0x20] sm:$0xff]
        %v624 = vld [vmem:[#allocation5 + $0x28] sm:$0xff]
        %v625 = vld [vmem:[#allocation5 + $0x30] sm:$0xff]
        %v626 = vld [vmem:[#allocation5 + $0x38] sm:$0xff]
        %v627 = vld [vmem:[#allocation5 + $0x40] sm:$0xff]
        %v628 = vld [vmem:[#allocation5 + $0x48] sm:$0xff]
        %v629 = vld [vmem:[#allocation5 + $0x50] sm:$0xff]
        %v630 = vld [vmem:[#allocation5 + $0x58] sm:$0xff]
        %v631 = vld [vmem:[#allocation5 + $0x60] sm:$0xff]
        %v632 = vld [vmem:[#allocation5 + $0x68] sm:$0xff]
        %v633 = vld [vmem:[#allocation5 + $0x70] sm:$0xff]
        %v634 = vld [vmem:[#allocation5 + $0x78] sm:$0xff]
        %v635 = vld [vmem:[#allocation5 + $0x80] sm:$0xff]
        %v636 = vld [vmem:[#allocation5 + $0x88] sm:$0xff]
        %v637 = vld [vmem:[#allocation5 + $0x90] sm:$0xff]
        %v638 = vld [vmem:[#allocation5 + $0x98] sm:$0xff]
        %v639 = vld [vmem:[#allocation5 + $0xa0] sm:$0xff]
        %v640 = vld [vmem:[#allocation5 + $0xa8] sm:$0xff]
        %v641 = vld [vmem:[#allocation5 + $0xb0] sm:$0xff]
        %v642 = vld [vmem:[#allocation5 + $0xb8] sm:$0xff]
        %v643 = vld [vmem:[#allocation5 + $0xc0] sm:$0xff]
        %v644 = vld [vmem:[#allocation5 + $0xc8] sm:$0xff]
        %v645 = vld [vmem:[#allocation5 + $0xd0] sm:$0xff]
        %v646 = vld [vmem:[#allocation5 + $0xd8] sm:$0xff]
        %v647 = vld [vmem:[#allocation5 + $0xe0] sm:$0xff]
        %v648 = vld [vmem:[#allocation5 + $0xe8] sm:$0xff]
        %v649 = vld [vmem:[#allocation5 + $0xf0] sm:$0xff]
        %v650 = vld [vmem:[#allocation5 + $0xf8] sm:$0xff]
        %v651 = vld [vmem:[#allocation5 + $0x100] sm:$0xff]
        %v652 = vld [vmem:[#allocation5 + $0x108] sm:$0xff]
        %v653 = vld [vmem:[#allocation5 + $0x110] sm:$0xff]
        %v654 = vld [vmem:[#allocation5 + $0x118] sm:$0xff]
        %v655 = vld [vmem:[#allocation5 + $0x120] sm:$0xff]
        %v656 = vld [vmem:[#allocation5 + $0x128] sm:$0xff]
        %v657 = vld [vmem:[#allocation5 + $0x130] sm:$0xff]
        %v658 = vld [vmem:[#allocation5 + $0x138] sm:$0xff]
        %v659 = vld [vmem:[#allocation5 + $0x140] sm:$0xff]
        %v660 = vld [vmem:[#allocation5 + $0x148] sm:$0xff]
        %v661 = vld [vmem:[#allocation5 + $0x150] sm:$0xff]
        %v662 = vld [vmem:[#allocation5 + $0x158] sm:$0xff]
        %v663 = vld [vmem:[#allocation5 + $0x160] sm:$0xff]
        %v664 = vld [vmem:[#allocation5 + $0x168] sm:$0xff]
        %v665 = vld [vmem:[#allocation5 + $0x170] sm:$0xff]
        %v666 = vld [vmem:[#allocation5 + $0x178] sm:$0xff]
        %v667 = vld [vmem:[#allocation5 + $0x180] sm:$0xff]
        %v668 = vld [vmem:[#allocation5 + $0x188] sm:$0xff]
        %v669 = vld [vmem:[#allocation5 + $0x190] sm:$0xff]
        %v670 = vld [vmem:[#allocation5 + $0x198] sm:$0xff]
        %v671 = vld [vmem:[#allocation5 + $0x1a0] sm:$0xff]
        %v672 = vld [vmem:[#allocation5 + $0x1a8] sm:$0xff]
        %v673 = vld [vmem:[#allocation5 + $0x1b0] sm:$0xff]
        %v674 = vld [vmem:[#allocation5 + $0x1b8] sm:$0xff]
        %v675 = vld [vmem:[#allocation5 + $0x1c0] sm:$0xff]
        %v676 = vld [vmem:[#allocation5 + $0x1c8] sm:$0xff]
        %v677 = vld [vmem:[#allocation5 + $0x1d0] sm:$0xff]
        %v678 = vld [vmem:[#allocation5 + $0x1d8] sm:$0xff]
        %v679 = vld [vmem:[#allocation5 + $0x1e0] sm:$0xff]
        %v680 = vld [vmem:[#allocation5 + $0x1e8] sm:$0xff]
        %v681 = vld [vmem:[#allocation5 + $0x1f0] sm:$0xff]
        %v682 = vld [vmem:[#allocation5 + $0x1f8] sm:$0xff]
        %683 = vmatprep.subr.mxu0 %v650
        %684 = vmatpush1.msra.mxu0 %v649
        %685 = vmatprep.subr.mxu0 %v648
        %686 = vmatpush1.msra.mxu0 %v647
        %687 = vmatprep.subr.mxu0 %v646
        %688 = vmatpush1.msra.mxu0 %v645
        %689 = vmatprep.subr.mxu0 %v644
        %690 = vmatpush1.msra.mxu0 %v643
        %691 = vmatprep.subr.mxu0 %v642
        %692 = vmatpush1.msra.mxu0 %v641
        %693 = vmatprep.subr.mxu0 %v640
        %694 = vmatpush1.msra.mxu0 %v639
        %695 = vmatprep.subr.mxu0 %v638
        %696 = vmatpush1.msra.mxu0 %v637
        %697 = vmatprep.subr.mxu0 %v636
        %698 = vmatpush1.msra.mxu0 %v635
        %699 = vmatprep.subr.mxu0 %v634
        %700 = vmatpush1.msra.mxu0 %v633
        %701 = vmatprep.subr.mxu0 %v632
        %702 = vmatpush1.msra.mxu0 %v631
        %703 = vmatprep.subr.mxu0 %v630
        %704 = vmatpush1.msra.mxu0 %v629
        %705 = vmatprep.subr.mxu0 %v628
        %706 = vmatpush1.msra.mxu0 %v627
        %707 = vmatprep.subr.mxu0 %v626
        %708 = vmatpush1.msra.mxu0 %v625
        %709 = vmatprep.subr.mxu0 %v624
        %710 = vmatpush1.msra.mxu0 %v623
        %711 = vmatprep.subr.mxu0 %v622
        %712 = vmatpush1.msra.mxu0 %v621
        %713 = vmatprep.subr.mxu0 %v620
        %714 = vmatpush1.msra.mxu0 %v619
        %715 = vmatprep.subr.mxu0 %v682
        %716 = vmatpush2.msra.mxu0 %v681
        %717 = vmatprep.subr.mxu0 %v680
        %718 = vmatpush2.msra.mxu0 %v679
        %719 = vmatprep.subr.mxu0 %v678
        %720 = vmatpush2.msra.mxu0 %v677
        %721 = vmatprep.subr.mxu0 %v676
        %722 = vmatpush2.msra.mxu0 %v675
        %723 = vmatprep.subr.mxu0 %v674
        %724 = vmatpush2.msra.mxu0 %v673
        %725 = vmatprep.subr.mxu0 %v672
        %726 = vmatpush2.msra.mxu0 %v671
        %727 = vmatprep.subr.mxu0 %v670
        %728 = vmatpush2.msra.mxu0 %v669
        %729 = vmatprep.subr.mxu0 %v668
        %730 = vmatpush2.msra.mxu0 %v667
        %731 = vmatprep.subr.mxu0 %v666
        %732 = vmatpush2.msra.mxu0 %v665
        %733 = vmatprep.subr.mxu0 %v664
        %734 = vmatpush2.msra.mxu0 %v663
        %735 = vmatprep.subr.mxu0 %v662
        %736 = vmatpush2.msra.mxu0 %v661
        %737 = vmatprep.subr.mxu0 %v660
        %738 = vmatpush2.msra.mxu0 %v659
        %739 = vmatprep.subr.mxu0 %v658
        %740 = vmatpush2.msra.mxu0 %v657
        %741 = vmatprep.subr.mxu0 %v656
        %742 = vmatpush2.msra.mxu0 %v655
        %743 = vmatprep.subr.mxu0 %v654
        %744 = vmatpush2.msra.mxu0 %v653
        %745 = vmatprep.subr.mxu0 %v652
        %746 = vmatpush2.msra.mxu0 %v651
        %747 = vmatprep.mubr.f32.mxu0 %v612
        %748 = vmatmul.mubr.f32.gmra.mxu0 %v611
        %v749 = vpop.f32.mrf.mxu0
        %v750 = vadd.f32 0.0, %v749
        %v751 = vpop.f32.mrf.mxu0
        %v752 = vadd.f32 0.0, %v751
        %753 = vmatprep.mubr.f32.mxu0 %v614
        %754 = vmatmul.mubr.f32.gmra.mxu0 %v613
        %v755 = vpop.f32.mrf.mxu0
        %v756 = vadd.f32 0.0, %v755
        %v757 = vpop.f32.mrf.mxu0
        %v758 = vadd.f32 0.0, %v757
        %759 = vmatprep.mubr.f32.mxu0 %v616
        %760 = vmatmul.mubr.f32.gmra.mxu0 %v615
        %v761 = vpop.f32.mrf.mxu0
        %v762 = vadd.f32 0.0, %v761
        %v763 = vpop.f32.mrf.mxu0
        %v764 = vadd.f32 0.0, %v763
        %765 = vmatprep.mubr.f32.mxu0 %v618
        %766 = vmatmul.mubr.f32.gmra.mxu0 %v617
        %v767 = vpop.f32.mrf.mxu0
        %v768 = vadd.f32 0.0, %v767
        %v769 = vpop.f32.mrf.mxu0
        %v770 = vadd.f32 0.0, %v769
        %771 = vdwg.mxu0
        %v772 = vld [vmem:[#allocation7] sm:$0xff]
        %v773 = vld [vmem:[#allocation7 + $0x8] sm:$0xff]
        %v774 = vld [vmem:[#allocation7 + $0x10] sm:$0xff]
        %v775 = vld [vmem:[#allocation7 + $0x18] sm:$0xff]
        %v776 = vld [vmem:[#allocation7 + $0x20] sm:$0xff]
        %v777 = vld [vmem:[#allocation7 + $0x28] sm:$0xff]
        %v778 = vld [vmem:[#allocation7 + $0x30] sm:$0xff]
        %v779 = vld [vmem:[#allocation7 + $0x38] sm:$0xff]
        %v780 = vld [vmem:[#allocation7 + $0x40] sm:$0xff]
        %v781 = vld [vmem:[#allocation7 + $0x48] sm:$0xff]
        %v782 = vld [vmem:[#allocation7 + $0x50] sm:$0xff]
        %v783 = vld [vmem:[#allocation7 + $0x58] sm:$0xff]
        %v784 = vld [vmem:[#allocation7 + $0x60] sm:$0xff]
        %v785 = vld [vmem:[#allocation7 + $0x68] sm:$0xff]
        %v786 = vld [vmem:[#allocation7 + $0x70] sm:$0xff]
        %v787 = vld [vmem:[#allocation7 + $0x78] sm:$0xff]
        %v788 = vld [vmem:[#allocation7 + $0x80] sm:$0xff]
        %v789 = vld [vmem:[#allocation7 + $0x88] sm:$0xff]
        %v790 = vld [vmem:[#allocation7 + $0x90] sm:$0xff]
        %v791 = vld [vmem:[#allocation7 + $0x98] sm:$0xff]
        %v792 = vld [vmem:[#allocation7 + $0xa0] sm:$0xff]
        %v793 = vld [vmem:[#allocation7 + $0xa8] sm:$0xff]
        %v794 = vld [vmem:[#allocation7 + $0xb0] sm:$0xff]
        %v795 = vld [vmem:[#allocation7 + $0xb8] sm:$0xff]
        %v796 = vld [vmem:[#allocation7 + $0xc0] sm:$0xff]
        %v797 = vld [vmem:[#allocation7 + $0xc8] sm:$0xff]
        %v798 = vld [vmem:[#allocation7 + $0xd0] sm:$0xff]
        %v799 = vld [vmem:[#allocation7 + $0xd8] sm:$0xff]
        %v800 = vld [vmem:[#allocation7 + $0xe0] sm:$0xff]
        %v801 = vld [vmem:[#allocation7 + $0xe8] sm:$0xff]
        %v802 = vld [vmem:[#allocation7 + $0xf0] sm:$0xff]
        %v803 = vld [vmem:[#allocation7 + $0xf8] sm:$0xff]
        %v804 = vld [vmem:[#allocation7 + $0x100] sm:$0xff]
        %v805 = vld [vmem:[#allocation7 + $0x108] sm:$0xff]
        %v806 = vld [vmem:[#allocation7 + $0x110] sm:$0xff]
        %v807 = vld [vmem:[#allocation7 + $0x118] sm:$0xff]
        %v808 = vld [vmem:[#allocation7 + $0x120] sm:$0xff]
        %v809 = vld [vmem:[#allocation7 + $0x128] sm:$0xff]
        %v810 = vld [vmem:[#allocation7 + $0x130] sm:$0xff]
        %v811 = vld [vmem:[#allocation7 + $0x138] sm:$0xff]
        %v812 = vld [vmem:[#allocation7 + $0x140] sm:$0xff]
        %v813 = vld [vmem:[#allocation7 + $0x148] sm:$0xff]
        %v814 = vld [vmem:[#allocation7 + $0x150] sm:$0xff]
        %v815 = vld [vmem:[#allocation7 + $0x158] sm:$0xff]
        %v816 = vld [vmem:[#allocation7 + $0x160] sm:$0xff]
        %v817 = vld [vmem:[#allocation7 + $0x168] sm:$0xff]
        %v818 = vld [vmem:[#allocation7 + $0x170] sm:$0xff]
        %v819 = vld [vmem:[#allocation7 + $0x178] sm:$0xff]
        %v820 = vld [vmem:[#allocation7 + $0x180] sm:$0xff]
        %v821 = vld [vmem:[#allocation7 + $0x188] sm:$0xff]
        %v822 = vld [vmem:[#allocation7 + $0x190] sm:$0xff]
        %v823 = vld [vmem:[#allocation7 + $0x198] sm:$0xff]
        %v824 = vld [vmem:[#allocation7 + $0x1a0] sm:$0xff]
        %v825 = vld [vmem:[#allocation7 + $0x1a8] sm:$0xff]
        %v826 = vld [vmem:[#allocation7 + $0x1b0] sm:$0xff]
        %v827 = vld [vmem:[#allocation7 + $0x1b8] sm:$0xff]
        %v828 = vld [vmem:[#allocation7 + $0x1c0] sm:$0xff]
        %v829 = vld [vmem:[#allocation7 + $0x1c8] sm:$0xff]
        %v830 = vld [vmem:[#allocation7 + $0x1d0] sm:$0xff]
        %v831 = vld [vmem:[#allocation7 + $0x1d8] sm:$0xff]
        %v832 = vld [vmem:[#allocation7 + $0x1e0] sm:$0xff]
        %v833 = vld [vmem:[#allocation7 + $0x1e8] sm:$0xff]
        %v834 = vld [vmem:[#allocation7 + $0x1f0] sm:$0xff]
        %v835 = vld [vmem:[#allocation7 + $0x1f8] sm:$0xff]
        %836 = vmatprep.subr.mxu0 %v803
        %837 = vmatpush1.msra.mxu0 %v802
        %838 = vmatprep.subr.mxu0 %v801
        %839 = vmatpush1.msra.mxu0 %v800
        %840 = vmatprep.subr.mxu0 %v799
        %841 = vmatpush1.msra.mxu0 %v798
        %842 = vmatprep.subr.mxu0 %v797
        %843 = vmatpush1.msra.mxu0 %v796
        %844 = vmatprep.subr.mxu0 %v795
        %845 = vmatpush1.msra.mxu0 %v794
        %846 = vmatprep.subr.mxu0 %v793
        %847 = vmatpush1.msra.mxu0 %v792
        %848 = vmatprep.subr.mxu0 %v791
        %849 = vmatpush1.msra.mxu0 %v790
        %850 = vmatprep.subr.mxu0 %v789
        %851 = vmatpush1.msra.mxu0 %v788
        %852 = vmatprep.subr.mxu0 %v787
        %853 = vmatpush1.msra.mxu0 %v786
        %854 = vmatprep.subr.mxu0 %v785
        %855 = vmatpush1.msra.mxu0 %v784
        %856 = vmatprep.subr.mxu0 %v783
        %857 = vmatpush1.msra.mxu0 %v782
        %858 = vmatprep.subr.mxu0 %v781
        %859 = vmatpush1.msra.mxu0 %v780
        %860 = vmatprep.subr.mxu0 %v779
        %861 = vmatpush1.msra.mxu0 %v778
        %862 = vmatprep.subr.mxu0 %v777
        %863 = vmatpush1.msra.mxu0 %v776
        %864 = vmatprep.subr.mxu0 %v775
        %865 = vmatpush1.msra.mxu0 %v774
        %866 = vmatprep.subr.mxu0 %v773
        %867 = vmatpush1.msra.mxu0 %v772
        %868 = vmatprep.subr.mxu0 %v835
        %869 = vmatpush2.msra.mxu0 %v834
        %870 = vmatprep.subr.mxu0 %v833
        %871 = vmatpush2.msra.mxu0 %v832
        %872 = vmatprep.subr.mxu0 %v831
        %873 = vmatpush2.msra.mxu0 %v830
        %874 = vmatprep.subr.mxu0 %v829
        %875 = vmatpush2.msra.mxu0 %v828
        %876 = vmatprep.subr.mxu0 %v827
        %877 = vmatpush2.msra.mxu0 %v826
        %878 = vmatprep.subr.mxu0 %v825
        %879 = vmatpush2.msra.mxu0 %v824
        %880 = vmatprep.subr.mxu0 %v823
        %881 = vmatpush2.msra.mxu0 %v822
        %882 = vmatprep.subr.mxu0 %v821
        %883 = vmatpush2.msra.mxu0 %v820
        %884 = vmatprep.subr.mxu0 %v819
        %885 = vmatpush2.msra.mxu0 %v818
        %886 = vmatprep.subr.mxu0 %v817
        %887 = vmatpush2.msra.mxu0 %v816
        %888 = vmatprep.subr.mxu0 %v815
        %889 = vmatpush2.msra.mxu0 %v814
        %890 = vmatprep.subr.mxu0 %v813
        %891 = vmatpush2.msra.mxu0 %v812
        %892 = vmatprep.subr.mxu0 %v811
        %893 = vmatpush2.msra.mxu0 %v810
        %894 = vmatprep.subr.mxu0 %v809
        %895 = vmatpush2.msra.mxu0 %v808
        %896 = vmatprep.subr.mxu0 %v807
        %897 = vmatpush2.msra.mxu0 %v806
        %898 = vmatprep.subr.mxu0 %v805
        %899 = vmatpush2.msra.mxu0 %v804
        %900 = vmatprep.mubr.f32.mxu0 %v612
        %901 = vmatmul.mubr.f32.gmra.mxu0 %v611
        %v902 = vpop.f32.mrf.mxu0
        %v903 = vadd.f32 0.0, %v902
        %v904 = vpop.f32.mrf.mxu0
        %v905 = vadd.f32 0.0, %v904
        %906 = vmatprep.mubr.f32.mxu0 %v614
        %907 = vmatmul.mubr.f32.gmra.mxu0 %v613
        %v908 = vpop.f32.mrf.mxu0
        %v909 = vadd.f32 0.0, %v908
        %v910 = vpop.f32.mrf.mxu0
        %v911 = vadd.f32 0.0, %v910
        %912 = vmatprep.mubr.f32.mxu0 %v616
        %913 = vmatmul.mubr.f32.gmra.mxu0 %v615
        %v914 = vpop.f32.mrf.mxu0
        %v915 = vadd.f32 0.0, %v914
        %v916 = vpop.f32.mrf.mxu0
        %v917 = vadd.f32 0.0, %v916
        %918 = vmatprep.mubr.f32.mxu0 %v618
        %919 = vmatmul.mubr.f32.gmra.mxu0 %v617
        %v920 = vpop.f32.mrf.mxu0
        %v921 = vadd.f32 0.0, %v920
        %v922 = vpop.f32.mrf.mxu0
        %v923 = vadd.f32 0.0, %v922
        %924 = vdwg.mxu0
        %v925 = vld [vmem:[%s3] sm:$0xff]
        %v926 = vld [vmem:[%s3 + $0x8] sm:$0xff]
        %v927 = vld [vmem:[%s3 + $0x10] sm:$0xff]
        %v928 = vld [vmem:[%s3 + $0x18] sm:$0xff]
        %v929 = vld [vmem:[%s3 + $0x20] sm:$0xff]
        %v930 = vld [vmem:[%s3 + $0x28] sm:$0xff]
        %v931 = vld [vmem:[%s3 + $0x30] sm:$0xff]
        %v932 = vld [vmem:[%s3 + $0x38] sm:$0xff]
        %v933 = vld [vmem:[%s4] sm:$0xff]
        %v934 = vld [vmem:[%s4 + $0x8] sm:$0xff]
        %v935 = vld [vmem:[%s4 + $0x10] sm:$0xff]
        %v936 = vld [vmem:[%s4 + $0x18] sm:$0xff]
        %v937 = vld [vmem:[%s4 + $0x20] sm:$0xff]
        %v938 = vld [vmem:[%s4 + $0x28] sm:$0xff]
        %v939 = vld [vmem:[%s4 + $0x30] sm:$0xff]
        %v940 = vld [vmem:[%s4 + $0x38] sm:$0xff]
        %vm941 = vcmask 261120
        %v943 = vsel %vm941, %v933, 0
        %v946 = vsel %vm941, %v934, 0
        %v949 = vsel %vm941, %v935, 0
        %v952 = vsel %vm941, %v936, 0
        %v955 = vsel %vm941, %v937, 0
        %v958 = vsel %vm941, %v938, 0
        %v961 = vsel %vm941, %v939, 0
        %v964 = vsel %vm941, %v940, 0
        %966 = vmatprep.subr.mxu0 0.0
        %967 = vmatpush1.msra.mxu0 0.0
        %968 = vmatprep.subr.mxu0 0.0
        %969 = vmatpush1.msra.mxu0 0.0
        %970 = vmatprep.subr.mxu0 0.0
        %971 = vmatpush1.msra.mxu0 0.0
        %972 = vmatprep.subr.mxu0 0.0
        %973 = vmatpush1.msra.mxu0 0.0
        %974 = vmatprep.subr.mxu0 0.0
        %975 = vmatpush1.msra.mxu0 0.0
        %976 = vmatprep.subr.mxu0 0.0
        %977 = vmatpush1.msra.mxu0 0.0
        %978 = vmatprep.subr.mxu0 0.0
        %979 = vmatpush1.msra.mxu0 0.0
        %980 = vmatprep.subr.mxu0 0.0
        %981 = vmatpush1.msra.mxu0 0.0
        %982 = vmatprep.subr.mxu0 0.0
        %983 = vmatpush1.msra.mxu0 0.0
        %984 = vmatprep.subr.mxu0 0.0
        %985 = vmatpush1.msra.mxu0 0.0
        %986 = vmatprep.subr.mxu0 0.0
        %987 = vmatpush1.msra.mxu0 0.0
        %988 = vmatprep.subr.mxu0 0.0
        %989 = vmatpush1.msra.mxu0 0.0
        %990 = vmatprep.subr.mxu0 %v923
        %991 = vmatpush1.msra.mxu0 %v921
        %992 = vmatprep.subr.mxu0 %v917
        %993 = vmatpush1.msra.mxu0 %v915
        %994 = vmatprep.subr.mxu0 %v911
        %995 = vmatpush1.msra.mxu0 %v909
        %996 = vmatprep.subr.mxu0 %v905
        %997 = vmatpush1.msra.mxu0 %v903
        %998 = vmatprep.subr.mxu0 0.0
        %999 = vmatpush2.msra.mxu0 0.0
        %1000 = vmatprep.subr.mxu0 0.0
        %1001 = vmatpush2.msra.mxu0 0.0
        %1002 = vmatprep.subr.mxu0 0.0
        %1003 = vmatpush2.msra.mxu0 0.0
        %1004 = vmatprep.subr.mxu0 0.0
        %1005 = vmatpush2.msra.mxu0 0.0
        %1006 = vmatprep.subr.mxu0 0.0
        %1007 = vmatpush2.msra.mxu0 0.0
        %1008 = vmatprep.subr.mxu0 0.0
        %1009 = vmatpush2.msra.mxu0 0.0
        %1010 = vmatprep.subr.mxu0 0.0
        %1011 = vmatpush2.msra.mxu0 0.0
        %1012 = vmatprep.subr.mxu0 0.0
        %1013 = vmatpush2.msra.mxu0 0.0
        %1014 = vmatprep.subr.mxu0 0.0
        %1015 = vmatpush2.msra.mxu0 0.0
        %1016 = vmatprep.subr.mxu0 0.0
        %1017 = vmatpush2.msra.mxu0 0.0
        %1018 = vmatprep.subr.mxu0 0.0
        %1019 = vmatpush2.msra.mxu0 0.0
        %1020 = vmatprep.subr.mxu0 0.0
        %1021 = vmatpush2.msra.mxu0 0.0
        %1022 = vmatprep.subr.mxu0 0.0
        %1023 = vmatpush2.msra.mxu0 0.0
        %1024 = vmatprep.subr.mxu0 0.0
        %1025 = vmatpush2.msra.mxu0 0.0
        %1026 = vmatprep.subr.mxu0 0.0
        %1027 = vmatpush2.msra.mxu0 0.0
        %1028 = vmatprep.subr.mxu0 0.0
        %1029 = vmatpush2.msra.mxu0 0.0
        %1030 = vmatprep.mubr.f32.mxu0 0.0
        %1031 = vmatmul.mubr.f32.gmra.mxu0 %v943
        %v1032 = vpop.f32.mrf.mxu0
        %v1033 = vadd.f32 0.0, %v1032
        %v1034 = vpop.f32.mrf.mxu0
        %v1035 = vadd.f32 0.0, %v1034
        %1036 = vmatprep.mubr.f32.mxu0 0.0
        %1037 = vmatmul.mubr.f32.gmra.mxu0 %v946
        %v1038 = vpop.f32.mrf.mxu0
        %v1039 = vadd.f32 0.0, %v1038
        %v1040 = vpop.f32.mrf.mxu0
        %v1041 = vadd.f32 0.0, %v1040
        %1042 = vmatprep.mubr.f32.mxu0 0.0
        %1043 = vmatmul.mubr.f32.gmra.mxu0 %v949
        %v1044 = vpop.f32.mrf.mxu0
        %v1045 = vadd.f32 0.0, %v1044
        %v1046 = vpop.f32.mrf.mxu0
        %v1047 = vadd.f32 0.0, %v1046
        %1048 = vmatprep.mubr.f32.mxu0 0.0
        %1049 = vmatmul.mubr.f32.gmra.mxu0 %v952
        %v1050 = vpop.f32.mrf.mxu0
        %v1051 = vadd.f32 0.0, %v1050
        %v1052 = vpop.f32.mrf.mxu0
        %v1053 = vadd.f32 0.0, %v1052
        %1054 = vmatprep.mubr.f32.mxu0 0.0
        %1055 = vmatmul.mubr.f32.gmra.mxu0 %v955
        %v1056 = vpop.f32.mrf.mxu0
        %v1057 = vadd.f32 0.0, %v1056
        %v1058 = vpop.f32.mrf.mxu0
        %v1059 = vadd.f32 0.0, %v1058
        %1060 = vmatprep.mubr.f32.mxu0 0.0
        %1061 = vmatmul.mubr.f32.gmra.mxu0 %v958
        %v1062 = vpop.f32.mrf.mxu0
        %v1063 = vadd.f32 0.0, %v1062
        %v1064 = vpop.f32.mrf.mxu0
        %v1065 = vadd.f32 0.0, %v1064
        %1066 = vmatprep.mubr.f32.mxu0 0.0
        %1067 = vmatmul.mubr.f32.gmra.mxu0 %v961
        %v1068 = vpop.f32.mrf.mxu0
        %v1069 = vadd.f32 0.0, %v1068
        %v1070 = vpop.f32.mrf.mxu0
        %v1071 = vadd.f32 0.0, %v1070
        %1072 = vmatprep.mubr.f32.mxu0 0.0
        %1073 = vmatmul.mubr.f32.gmra.mxu0 %v964
        %v1074 = vpop.f32.mrf.mxu0
        %v1075 = vadd.f32 0.0, %v1074
        %v1076 = vpop.f32.mrf.mxu0
        %v1077 = vadd.f32 0.0, %v1076
        %1078 = vdwg.mxu0
        %v1080 = vsel %vm941, %v925, 0
        %v1083 = vsel %vm941, %v926, 0
        %v1086 = vsel %vm941, %v927, 0
        %v1089 = vsel %vm941, %v928, 0
        %v1092 = vsel %vm941, %v929, 0
        %v1095 = vsel %vm941, %v930, 0
        %v1098 = vsel %vm941, %v931, 0
        %v1101 = vsel %vm941, %v932, 0
        %1103 = vmatprep.subr.mxu0 0.0
        %1104 = vmatpush1.msra.mxu0 0.0
        %1105 = vmatprep.subr.mxu0 0.0
        %1106 = vmatpush1.msra.mxu0 0.0
        %1107 = vmatprep.subr.mxu0 0.0
        %1108 = vmatpush1.msra.mxu0 0.0
        %1109 = vmatprep.subr.mxu0 0.0
        %1110 = vmatpush1.msra.mxu0 0.0
        %1111 = vmatprep.subr.mxu0 0.0
        %1112 = vmatpush1.msra.mxu0 0.0
        %1113 = vmatprep.subr.mxu0 0.0
        %1114 = vmatpush1.msra.mxu0 0.0
        %1115 = vmatprep.subr.mxu0 0.0
        %1116 = vmatpush1.msra.mxu0 0.0
        %1117 = vmatprep.subr.mxu0 0.0
        %1118 = vmatpush1.msra.mxu0 0.0
        %1119 = vmatprep.subr.mxu0 0.0
        %1120 = vmatpush1.msra.mxu0 0.0
        %1121 = vmatprep.subr.mxu0 0.0
        %1122 = vmatpush1.msra.mxu0 0.0
        %1123 = vmatprep.subr.mxu0 0.0
        %1124 = vmatpush1.msra.mxu0 0.0
        %1125 = vmatprep.subr.mxu0 0.0
        %1126 = vmatpush1.msra.mxu0 0.0
        %1127 = vmatprep.subr.mxu0 %v770
        %1128 = vmatpush1.msra.mxu0 %v768
        %1129 = vmatprep.subr.mxu0 %v764
        %1130 = vmatpush1.msra.mxu0 %v762
        %1131 = vmatprep.subr.mxu0 %v758
        %1132 = vmatpush1.msra.mxu0 %v756
        %1133 = vmatprep.subr.mxu0 %v752
        %1134 = vmatpush1.msra.mxu0 %v750
        %1135 = vmatprep.subr.mxu0 0.0
        %1136 = vmatpush2.msra.mxu0 0.0
        %1137 = vmatprep.subr.mxu0 0.0
        %1138 = vmatpush2.msra.mxu0 0.0
        %1139 = vmatprep.subr.mxu0 0.0
        %1140 = vmatpush2.msra.mxu0 0.0
        %1141 = vmatprep.subr.mxu0 0.0
        %1142 = vmatpush2.msra.mxu0 0.0
        %1143 = vmatprep.subr.mxu0 0.0
        %1144 = vmatpush2.msra.mxu0 0.0
        %1145 = vmatprep.subr.mxu0 0.0
        %1146 = vmatpush2.msra.mxu0 0.0
        %1147 = vmatprep.subr.mxu0 0.0
        %1148 = vmatpush2.msra.mxu0 0.0
        %1149 = vmatprep.subr.mxu0 0.0
        %1150 = vmatpush2.msra.mxu0 0.0
        %1151 = vmatprep.subr.mxu0 0.0
        %1152 = vmatpush2.msra.mxu0 0.0
        %1153 = vmatprep.subr.mxu0 0.0
        %1154 = vmatpush2.msra.mxu0 0.0
        %1155 = vmatprep.subr.mxu0 0.0
        %1156 = vmatpush2.msra.mxu0 0.0
        %1157 = vmatprep.subr.mxu0 0.0
        %1158 = vmatpush2.msra.mxu0 0.0
        %1159 = vmatprep.subr.mxu0 0.0
        %1160 = vmatpush2.msra.mxu0 0.0
        %1161 = vmatprep.subr.mxu0 0.0
        %1162 = vmatpush2.msra.mxu0 0.0
        %1163 = vmatprep.subr.mxu0 0.0
        %1164 = vmatpush2.msra.mxu0 0.0
        %1165 = vmatprep.subr.mxu0 0.0
        %1166 = vmatpush2.msra.mxu0 0.0
        %1167 = vmatprep.mubr.f32.mxu0 0.0
        %1168 = vmatmul.mubr.f32.gmra.mxu0 %v1080
        %v1169 = vpop.f32.mrf.mxu0
        %v1170 = vadd.f32 %v1033, %v1169
        %v1171 = vpop.f32.mrf.mxu0
        %v1172 = vadd.f32 %v1035, %v1171
        %1173 = vmatprep.mubr.f32.mxu0 0.0
        %1174 = vmatmul.mubr.f32.gmra.mxu0 %v1083
        %v1175 = vpop.f32.mrf.mxu0
        %v1176 = vadd.f32 %v1039, %v1175
        %v1177 = vpop.f32.mrf.mxu0
        %v1178 = vadd.f32 %v1041, %v1177
        %1179 = vmatprep.mubr.f32.mxu0 0.0
        %1180 = vmatmul.mubr.f32.gmra.mxu0 %v1086
        %v1181 = vpop.f32.mrf.mxu0
        %v1182 = vadd.f32 %v1045, %v1181
        %v1183 = vpop.f32.mrf.mxu0
        %v1184 = vadd.f32 %v1047, %v1183
        %1185 = vmatprep.mubr.f32.mxu0 0.0
        %1186 = vmatmul.mubr.f32.gmra.mxu0 %v1089
        %v1187 = vpop.f32.mrf.mxu0
        %v1188 = vadd.f32 %v1051, %v1187
        %v1189 = vpop.f32.mrf.mxu0
        %v1190 = vadd.f32 %v1053, %v1189
        %1191 = vmatprep.mubr.f32.mxu0 0.0
        %1192 = vmatmul.mubr.f32.gmra.mxu0 %v1092
        %v1193 = vpop.f32.mrf.mxu0
        %v1194 = vadd.f32 %v1057, %v1193
        %v1195 = vpop.f32.mrf.mxu0
        %v1196 = vadd.f32 %v1059, %v1195
        %1197 = vmatprep.mubr.f32.mxu0 0.0
        %1198 = vmatmul.mubr.f32.gmra.mxu0 %v1095
        %v1199 = vpop.f32.mrf.mxu0
        %v1200 = vadd.f32 %v1063, %v1199
        %v1201 = vpop.f32.mrf.mxu0
        %v1202 = vadd.f32 %v1065, %v1201
        %1203 = vmatprep.mubr.f32.mxu0 0.0
        %1204 = vmatmul.mubr.f32.gmra.mxu0 %v1098
        %v1205 = vpop.f32.mrf.mxu0
        %v1206 = vadd.f32 %v1069, %v1205
        %v1207 = vpop.f32.mrf.mxu0
        %v1208 = vadd.f32 %v1071, %v1207
        %1209 = vmatprep.mubr.f32.mxu0 0.0
        %1210 = vmatmul.mubr.f32.gmra.mxu0 %v1101
        %v1211 = vpop.f32.mrf.mxu0
        %v1212 = vadd.f32 %v1075, %v1211
        %v1213 = vpop.f32.mrf.mxu0
        %v1214 = vadd.f32 %v1077, %v1213
        %1215 = vdwg.mxu0
        %v1216 = vld [vmem:[#allocation8] sm:$0x3]
        %v1218 = vlaneseq
        %v1219 = vshrl.u32 %v1218, 7
        %v1220 = vsub.s32 0, %v1219
        %v1221 = vrot.slane %v1216, %v1220
        %v1222 = vlaneseq
        %v1223 = vshrl.u32 %v1222, 7
        %v1224 = vsub.s32 1, %v1223
        %v1225 = vrot.slane %v1216, %v1224
        %v1228 = vadd.f32 %v1170, %v1221
        %v1229 = vadd.f32 %v1172, %v1225
        %v1230 = vadd.f32 %v1176, %v1221
        %v1231 = vadd.f32 %v1178, %v1225
        %v1232 = vadd.f32 %v1182, %v1221
        %v1233 = vadd.f32 %v1184, %v1225
        %v1234 = vadd.f32 %v1188, %v1221
        %v1235 = vadd.f32 %v1190, %v1225
        %v1236 = vadd.f32 %v1194, %v1221
        %v1237 = vadd.f32 %v1196, %v1225
        %v1238 = vadd.f32 %v1200, %v1221
        %v1239 = vadd.f32 %v1202, %v1225
        %v1240 = vadd.f32 %v1206, %v1221
        %v1241 = vadd.f32 %v1208, %v1225
        %v1242 = vadd.f32 %v1212, %v1221
        %v1243 = vadd.f32 %v1214, %v1225
        %v1244 = vld [vmem:[%s6] sm:$0xff]
        %v1245 = vld [vmem:[%s6 + $0x8] sm:$0xff]
        %v1246 = vld [vmem:[%s6 + $0x10] sm:$0xff]
        %v1247 = vld [vmem:[%s6 + $0x18] sm:$0xff]
        %v1248 = vld [vmem:[%s6 + $0x20] sm:$0xff]
        %v1249 = vld [vmem:[%s6 + $0x28] sm:$0xff]
        %v1250 = vld [vmem:[%s6 + $0x30] sm:$0xff]
        %v1251 = vld [vmem:[%s6 + $0x38] sm:$0xff]
        %v1252 = vld [vmem:[%s7] sm:$0xff]
        %v1253 = vld [vmem:[%s7 + $0x8] sm:$0xff]
        %v1254 = vld [vmem:[%s7 + $0x10] sm:$0xff]
        %v1255 = vld [vmem:[%s7 + $0x18] sm:$0xff]
        %v1256 = vld [vmem:[%s7 + $0x20] sm:$0xff]
        %v1257 = vld [vmem:[%s7 + $0x28] sm:$0xff]
        %v1258 = vld [vmem:[%s7 + $0x30] sm:$0xff]
        %v1259 = vld [vmem:[%s7 + $0x38] sm:$0xff]
        %vm1276 = vcmask 1040384
        %v1277 = vrot.slane %v1228, 7
        %v1278 = vrot.slane %v1229, 7
        %v1279 = vrot.slane %v1230, 7
        %v1280 = vsel %vm1276, %v1277, %v1279
        %v1281 = vrot.slane %v1231, 7
        %v1282 = vsel %vm1276, %v1278, %v1281
        %v1283 = vrot.slane %v1232, 7
        %v1284 = vsel %vm1276, %v1279, %v1283
        %v1285 = vrot.slane %v1233, 7
        %v1286 = vsel %vm1276, %v1281, %v1285
        %v1287 = vrot.slane %v1234, 7
        %v1288 = vsel %vm1276, %v1283, %v1287
        %v1289 = vrot.slane %v1235, 7
        %v1290 = vsel %vm1276, %v1285, %v1289
        %v1291 = vrot.slane %v1236, 7
        %v1292 = vsel %vm1276, %v1287, %v1291
        %v1293 = vrot.slane %v1237, 7
        %v1294 = vsel %vm1276, %v1289, %v1293
        %v1295 = vrot.slane %v1238, 7
        %v1296 = vsel %vm1276, %v1291, %v1295
        %v1297 = vrot.slane %v1239, 7
        %v1298 = vsel %vm1276, %v1293, %v1297
        %v1299 = vrot.slane %v1240, 7
        %v1300 = vsel %vm1276, %v1295, %v1299
        %v1301 = vrot.slane %v1241, 7
        %v1302 = vsel %vm1276, %v1297, %v1301
        %v1303 = vrot.slane %v1242, 7
        %v1304 = vsel %vm1276, %v1299, %v1303
        %v1305 = vrot.slane %v1243, 7
        %v1306 = vsel %vm1276, %v1301, %v1305
        %v1325 = vsel %vm1276, 0.0, %v1277
        %v1326 = vsel %vm1276, 0.0, %v1278
        %v1327 = vsel %vm1276, %v1303, 0.0
        %v1328 = vsel %vm1276, %v1305, 0.0
        %1330 = vset.pattern.permute.xlu0 0
        %1331 = vperm.xlu0 %1330, %v1244
        %v1332 = vpop.permute.xlu0 %1331
        %1335 = vset.pattern.permute.xlu0 0
        %1336 = vperm.xlu0 %1335, %v1245
        %v1337 = vpop.permute.xlu0 %1336
        %1340 = vset.pattern.permute.xlu0 0
        %1341 = vperm.xlu0 %1340, %v1246
        %v1342 = vpop.permute.xlu0 %1341
        %1345 = vset.pattern.permute.xlu0 0
        %1346 = vperm.xlu0 %1345, %v1247
        %v1347 = vpop.permute.xlu0 %1346
        %1350 = vset.pattern.permute.xlu0 0
        %1351 = vperm.xlu0 %1350, %v1248
        %v1352 = vpop.permute.xlu0 %1351
        %1355 = vset.pattern.permute.xlu0 0
        %1356 = vperm.xlu0 %1355, %v1249
        %v1357 = vpop.permute.xlu0 %1356
        %1360 = vset.pattern.permute.xlu0 0
        %1361 = vperm.xlu0 %1360, %v1250
        %v1362 = vpop.permute.xlu0 %1361
        %1365 = vset.pattern.permute.xlu0 0
        %1366 = vperm.xlu0 %1365, %v1251
        %v1367 = vpop.permute.xlu0 %1366
        %v1369 = vmul.f32 %v1325, %v1332
        %v1370 = vmul.f32 %v1326, %v1332
        %v1371 = vmul.f32 %v1280, %v1337
        %v1372 = vmul.f32 %v1282, %v1337
        %v1373 = vmul.f32 %v1284, %v1342
        %v1374 = vmul.f32 %v1286, %v1342
        %v1375 = vmul.f32 %v1288, %v1347
        %v1376 = vmul.f32 %v1290, %v1347
        %v1377 = vmul.f32 %v1292, %v1352
        %v1378 = vmul.f32 %v1294, %v1352
        %v1379 = vmul.f32 %v1296, %v1357
        %v1380 = vmul.f32 %v1298, %v1357
        %v1381 = vmul.f32 %v1300, %v1362
        %v1382 = vmul.f32 %v1302, %v1362
        %v1383 = vmul.f32 %v1304, %v1367
        %v1384 = vmul.f32 %v1306, %v1367
        %1386 = vset.pattern.permute.xlu0 0
        %1387 = vperm.xlu0 %1386, %v1252
        %v1388 = vpop.permute.xlu0 %1387
        %1390 = vset.pattern.permute.xlu0 0
        %1391 = vperm.xlu0 %1390, %v1253
        %v1392 = vpop.permute.xlu0 %1391
        %1394 = vset.pattern.permute.xlu0 0
        %1395 = vperm.xlu0 %1394, %v1254
        %v1396 = vpop.permute.xlu0 %1395
        %1398 = vset.pattern.permute.xlu0 0
        %1399 = vperm.xlu0 %1398, %v1255
        %v1400 = vpop.permute.xlu0 %1399
        %1402 = vset.pattern.permute.xlu0 0
        %1403 = vperm.xlu0 %1402, %v1256
        %v1404 = vpop.permute.xlu0 %1403
        %1406 = vset.pattern.permute.xlu0 0
        %1407 = vperm.xlu0 %1406, %v1257
        %v1408 = vpop.permute.xlu0 %1407
        %1410 = vset.pattern.permute.xlu0 0
        %1411 = vperm.xlu0 %1410, %v1258
        %v1412 = vpop.permute.xlu0 %1411
        %1414 = vset.pattern.permute.xlu0 0
        %1415 = vperm.xlu0 %1414, %v1259
        %v1416 = vpop.permute.xlu0 %1415
        %vm1417 = vcmask 1041408
        %v1418 = vrot.slane %v1388, 6
        %v1419 = vrot.slane %v1392, 6
        %v1420 = vsel %vm1417, %v1418, %v1419
        %v1421 = vrot.slane %v1396, 6
        %v1422 = vsel %vm1417, %v1419, %v1421
        %v1423 = vrot.slane %v1400, 6
        %v1424 = vsel %vm1417, %v1421, %v1423
        %v1425 = vrot.slane %v1404, 6
        %v1426 = vsel %vm1417, %v1423, %v1425
        %v1427 = vrot.slane %v1408, 6
        %v1428 = vsel %vm1417, %v1425, %v1427
        %v1429 = vrot.slane %v1412, 6
        %v1430 = vsel %vm1417, %v1427, %v1429
        %v1431 = vrot.slane %v1416, 6
        %v1432 = vsel %vm1417, %v1429, %v1431
        %v1442 = vmul.f32 %v1325, %v1418
        %v1443 = vmul.f32 %v1326, %v1418
        %v1444 = vmul.f32 %v1280, %v1420
        %v1445 = vmul.f32 %v1282, %v1420
        %v1446 = vmul.f32 %v1284, %v1422
        %v1447 = vmul.f32 %v1286, %v1422
        %v1448 = vmul.f32 %v1288, %v1424
        %v1449 = vmul.f32 %v1290, %v1424
        %v1450 = vmul.f32 %v1292, %v1426
        %v1451 = vmul.f32 %v1294, %v1426
        %v1452 = vmul.f32 %v1296, %v1428
        %v1453 = vmul.f32 %v1298, %v1428
        %v1454 = vmul.f32 %v1300, %v1430
        %v1455 = vmul.f32 %v1302, %v1430
        %v1456 = vmul.f32 %v1304, %v1432
        %v1457 = vmul.f32 %v1306, %v1432
        %v1458 = vmul.f32 %v1327, %v1431
        %v1459 = vmul.f32 %v1328, %v1431
        %vm1478 = vcmask 1045504
        %v1479 = vrot.slane %v1442, 2
        %v1480 = vrot.slane %v1444, 2
        %v1481 = vsel %vm1478, %v1479, %v1480
        %v1482 = vrot.slane %v1443, 2
        %v1483 = vrot.slane %v1445, 2
        %v1484 = vsel %vm1478, %v1482, %v1483
        %v1485 = vrot.slane %v1446, 2
        %v1486 = vsel %vm1478, %v1480, %v1485
        %v1487 = vrot.slane %v1447, 2
        %v1488 = vsel %vm1478, %v1483, %v1487
        %v1489 = vrot.slane %v1448, 2
        %v1490 = vsel %vm1478, %v1485, %v1489
        %v1491 = vrot.slane %v1449, 2
        %v1492 = vsel %vm1478, %v1487, %v1491
        %v1493 = vrot.slane %v1450, 2
        %v1494 = vsel %vm1478, %v1489, %v1493
        %v1495 = vrot.slane %v1451, 2
        %v1496 = vsel %vm1478, %v1491, %v1495
        %v1497 = vrot.slane %v1452, 2
        %v1498 = vsel %vm1478, %v1493, %v1497
        %v1499 = vrot.slane %v1453, 2
        %v1500 = vsel %vm1478, %v1495, %v1499
        %v1501 = vrot.slane %v1454, 2
        %v1502 = vsel %vm1478, %v1497, %v1501
        %v1503 = vrot.slane %v1455, 2
        %v1504 = vsel %vm1478, %v1499, %v1503
        %v1505 = vrot.slane %v1456, 2
        %v1506 = vsel %vm1478, %v1501, %v1505
        %v1507 = vrot.slane %v1457, 2
        %v1508 = vsel %vm1478, %v1503, %v1507
        %v1509 = vrot.slane %v1458, 2
        %v1510 = vsel %vm1478, %v1505, %v1509
        %v1511 = vrot.slane %v1459, 2
        %v1512 = vsel %vm1478, %v1507, %v1511
        %v1529 = vld [vmem:[#allocation10] sm:$0xff]
        %v1530 = vld [vmem:[#allocation10 + $0x8] sm:$0xff]
        %v1531 = vld [vmem:[#allocation10 + $0x10] sm:$0xff]
        %v1532 = vld [vmem:[#allocation10 + $0x18] sm:$0xff]
        %v1533 = vld [vmem:[#allocation10 + $0x20] sm:$0xff]
        %v1534 = vld [vmem:[#allocation10 + $0x28] sm:$0xff]
        %v1535 = vld [vmem:[#allocation10 + $0x30] sm:$0xff]
        %v1536 = vld [vmem:[#allocation10 + $0x38] sm:$0xff]
        %v1537 = vld [vmem:[#allocation10 + $0x40] sm:$0xff]
        %v1538 = vld [vmem:[#allocation10 + $0x48] sm:$0xff]
        %v1539 = vld [vmem:[#allocation10 + $0x50] sm:$0xff]
        %v1540 = vld [vmem:[#allocation10 + $0x58] sm:$0xff]
        %v1541 = vld [vmem:[#allocation10 + $0x60] sm:$0xff]
        %v1542 = vld [vmem:[#allocation10 + $0x68] sm:$0xff]
        %v1543 = vld [vmem:[#allocation10 + $0x70] sm:$0xff]
        %v1544 = vld [vmem:[#allocation10 + $0x78] sm:$0xff]
        %v1545 = vld [vmem:[#allocation10 + $0x80] sm:$0xff]
        %v1546 = vld [vmem:[#allocation10 + $0x88] sm:$0xff]
        %v1547 = vld [vmem:[#allocation10 + $0x90] sm:$0xff]
        %v1548 = vld [vmem:[#allocation10 + $0x98] sm:$0xff]
        %v1549 = vld [vmem:[#allocation10 + $0xa0] sm:$0xff]
        %v1550 = vld [vmem:[#allocation10 + $0xa8] sm:$0xff]
        %v1551 = vld [vmem:[#allocation10 + $0xb0] sm:$0xff]
        %v1552 = vld [vmem:[#allocation10 + $0xb8] sm:$0xff]
        %v1553 = vld [vmem:[#allocation10 + $0xc0] sm:$0xff]
        %v1554 = vld [vmem:[#allocation10 + $0xc8] sm:$0xff]
        %v1555 = vld [vmem:[#allocation10 + $0xd0] sm:$0xff]
        %v1556 = vld [vmem:[#allocation10 + $0xd8] sm:$0xff]
        %v1557 = vld [vmem:[#allocation10 + $0xe0] sm:$0xff]
        %v1558 = vld [vmem:[#allocation10 + $0xe8] sm:$0xff]
        %v1559 = vld [vmem:[#allocation10 + $0xf0] sm:$0xff]
        %v1560 = vld [vmem:[#allocation10 + $0xf8] sm:$0xff]
        %v1561 = vld [vmem:[#allocation10 + $0x100] sm:$0xff]
        %v1562 = vld [vmem:[#allocation10 + $0x108] sm:$0xff]
        %v1563 = vld [vmem:[#allocation10 + $0x110] sm:$0xff]
        %v1564 = vld [vmem:[#allocation10 + $0x118] sm:$0xff]
        %v1565 = vld [vmem:[#allocation10 + $0x120] sm:$0xff]
        %v1566 = vld [vmem:[#allocation10 + $0x128] sm:$0xff]
        %v1567 = vld [vmem:[#allocation10 + $0x130] sm:$0xff]
        %v1568 = vld [vmem:[#allocation10 + $0x138] sm:$0xff]
        %v1569 = vld [vmem:[#allocation10 + $0x140] sm:$0xff]
        %v1570 = vld [vmem:[#allocation10 + $0x148] sm:$0xff]
        %v1571 = vld [vmem:[#allocation10 + $0x150] sm:$0xff]
        %v1572 = vld [vmem:[#allocation10 + $0x158] sm:$0xff]
        %v1573 = vld [vmem:[#allocation10 + $0x160] sm:$0xff]
        %v1574 = vld [vmem:[#allocation10 + $0x168] sm:$0xff]
        %v1575 = vld [vmem:[#allocation10 + $0x170] sm:$0xff]
        %v1576 = vld [vmem:[#allocation10 + $0x178] sm:$0xff]
        %v1577 = vld [vmem:[#allocation10 + $0x180] sm:$0xff]
        %v1578 = vld [vmem:[#allocation10 + $0x188] sm:$0xff]
        %v1579 = vld [vmem:[#allocation10 + $0x190] sm:$0xff]
        %v1580 = vld [vmem:[#allocation10 + $0x198] sm:$0xff]
        %v1581 = vld [vmem:[#allocation10 + $0x1a0] sm:$0xff]
        %v1582 = vld [vmem:[#allocation10 + $0x1a8] sm:$0xff]
        %v1583 = vld [vmem:[#allocation10 + $0x1b0] sm:$0xff]
        %v1584 = vld [vmem:[#allocation10 + $0x1b8] sm:$0xff]
        %v1585 = vld [vmem:[#allocation10 + $0x1c0] sm:$0xff]
        %v1586 = vld [vmem:[#allocation10 + $0x1c8] sm:$0xff]
        %v1587 = vld [vmem:[#allocation10 + $0x1d0] sm:$0xff]
        %v1588 = vld [vmem:[#allocation10 + $0x1d8] sm:$0xff]
        %v1589 = vld [vmem:[#allocation10 + $0x1e0] sm:$0xff]
        %v1590 = vld [vmem:[#allocation10 + $0x1e8] sm:$0xff]
        %v1591 = vld [vmem:[#allocation10 + $0x1f0] sm:$0xff]
        %v1592 = vld [vmem:[#allocation10 + $0x1f8] sm:$0xff]
        %v1593 = vld [vmem:[#allocation10 + $0x200] sm:$0xff]
        %v1594 = vld [vmem:[#allocation10 + $0x208] sm:$0xff]
        %v1595 = vld [vmem:[#allocation10 + $0x210] sm:$0xff]
        %v1596 = vld [vmem:[#allocation10 + $0x218] sm:$0xff]
        %v1597 = vld [vmem:[#allocation10 + $0x220] sm:$0xff]
        %v1598 = vld [vmem:[#allocation10 + $0x228] sm:$0xff]
        %v1599 = vld [vmem:[#allocation10 + $0x230] sm:$0xff]
        %v1600 = vld [vmem:[#allocation10 + $0x238] sm:$0xff]
        %v1601 = vld [vmem:[#allocation10 + $0x240] sm:$0xff]
        %v1602 = vld [vmem:[#allocation10 + $0x248] sm:$0xff]
        %v1603 = vld [vmem:[#allocation10 + $0x250] sm:$0xff]
        %v1604 = vld [vmem:[#allocation10 + $0x258] sm:$0xff]
        %v1605 = vld [vmem:[#allocation10 + $0x260] sm:$0xff]
        %v1606 = vld [vmem:[#allocation10 + $0x268] sm:$0xff]
        %v1607 = vld [vmem:[#allocation10 + $0x270] sm:$0xff]
        %v1608 = vld [vmem:[#allocation10 + $0x278] sm:$0xff]
        %v1609 = vld [vmem:[#allocation10 + $0x280] sm:$0xff]
        %v1610 = vld [vmem:[#allocation10 + $0x288] sm:$0xff]
        %v1611 = vld [vmem:[#allocation10 + $0x290] sm:$0xff]
        %v1612 = vld [vmem:[#allocation10 + $0x298] sm:$0xff]
        %v1613 = vld [vmem:[#allocation10 + $0x2a0] sm:$0xff]
        %v1614 = vld [vmem:[#allocation10 + $0x2a8] sm:$0xff]
        %v1615 = vld [vmem:[#allocation10 + $0x2b0] sm:$0xff]
        %v1616 = vld [vmem:[#allocation10 + $0x2b8] sm:$0xff]
        %v1617 = vld [vmem:[#allocation10 + $0x2c0] sm:$0xff]
        %v1618 = vld [vmem:[#allocation10 + $0x2c8] sm:$0xff]
        %v1619 = vld [vmem:[#allocation10 + $0x2d0] sm:$0xff]
        %v1620 = vld [vmem:[#allocation10 + $0x2d8] sm:$0xff]
        %v1621 = vld [vmem:[#allocation10 + $0x2e0] sm:$0xff]
        %v1622 = vld [vmem:[#allocation10 + $0x2e8] sm:$0xff]
        %v1623 = vld [vmem:[#allocation10 + $0x2f0] sm:$0xff]
        %v1624 = vld [vmem:[#allocation10 + $0x2f8] sm:$0xff]
        %v1625 = vld [vmem:[#allocation10 + $0x300] sm:$0xff]
        %v1626 = vld [vmem:[#allocation10 + $0x308] sm:$0xff]
        %v1627 = vld [vmem:[#allocation10 + $0x310] sm:$0xff]
        %v1628 = vld [vmem:[#allocation10 + $0x318] sm:$0xff]
        %v1629 = vld [vmem:[#allocation10 + $0x320] sm:$0xff]
        %v1630 = vld [vmem:[#allocation10 + $0x328] sm:$0xff]
        %v1631 = vld [vmem:[#allocation10 + $0x330] sm:$0xff]
        %v1632 = vld [vmem:[#allocation10 + $0x338] sm:$0xff]
        %v1633 = vld [vmem:[#allocation10 + $0x340] sm:$0xff]
        %v1634 = vld [vmem:[#allocation10 + $0x348] sm:$0xff]
        %v1635 = vld [vmem:[#allocation10 + $0x350] sm:$0xff]
        %v1636 = vld [vmem:[#allocation10 + $0x358] sm:$0xff]
        %v1637 = vld [vmem:[#allocation10 + $0x360] sm:$0xff]
        %v1638 = vld [vmem:[#allocation10 + $0x368] sm:$0xff]
        %v1639 = vld [vmem:[#allocation10 + $0x370] sm:$0xff]
        %v1640 = vld [vmem:[#allocation10 + $0x378] sm:$0xff]
        %v1641 = vld [vmem:[#allocation10 + $0x380] sm:$0xff]
        %v1642 = vld [vmem:[#allocation10 + $0x388] sm:$0xff]
        %v1643 = vld [vmem:[#allocation10 + $0x390] sm:$0xff]
        %v1644 = vld [vmem:[#allocation10 + $0x398] sm:$0xff]
        %v1645 = vld [vmem:[#allocation10 + $0x3a0] sm:$0xff]
        %v1646 = vld [vmem:[#allocation10 + $0x3a8] sm:$0xff]
        %v1647 = vld [vmem:[#allocation10 + $0x3b0] sm:$0xff]
        %v1648 = vld [vmem:[#allocation10 + $0x3b8] sm:$0xff]
        %v1649 = vld [vmem:[#allocation10 + $0x3c0] sm:$0xff]
        %v1650 = vld [vmem:[#allocation10 + $0x3c8] sm:$0xff]
        %v1651 = vld [vmem:[#allocation10 + $0x3d0] sm:$0xff]
        %v1652 = vld [vmem:[#allocation10 + $0x3d8] sm:$0xff]
        %v1653 = vld [vmem:[#allocation10 + $0x3e0] sm:$0xff]
        %v1654 = vld [vmem:[#allocation10 + $0x3e8] sm:$0xff]
        %v1655 = vld [vmem:[#allocation10 + $0x3f0] sm:$0xff]
        %v1656 = vld [vmem:[#allocation10 + $0x3f8] sm:$0xff]
        %v1657 = vld [vmem:[#allocation10 + $0x400] sm:$0xff]
        %v1658 = vld [vmem:[#allocation10 + $0x408] sm:$0xff]
        %v1659 = vld [vmem:[#allocation10 + $0x410] sm:$0xff]
        %v1660 = vld [vmem:[#allocation10 + $0x418] sm:$0xff]
        %v1661 = vld [vmem:[#allocation10 + $0x420] sm:$0xff]
        %v1662 = vld [vmem:[#allocation10 + $0x428] sm:$0xff]
        %v1663 = vld [vmem:[#allocation10 + $0x430] sm:$0xff]
        %v1664 = vld [vmem:[#allocation10 + $0x438] sm:$0xff]
        %v1665 = vld [vmem:[#allocation10 + $0x440] sm:$0xff]
        %v1666 = vld [vmem:[#allocation10 + $0x448] sm:$0xff]
        %v1667 = vld [vmem:[#allocation10 + $0x450] sm:$0xff]
        %v1668 = vld [vmem:[#allocation10 + $0x458] sm:$0xff]
        %v1669 = vld [vmem:[#allocation10 + $0x460] sm:$0xff]
        %v1670 = vld [vmem:[#allocation10 + $0x468] sm:$0xff]
        %v1671 = vld [vmem:[#allocation10 + $0x470] sm:$0xff]
        %v1672 = vld [vmem:[#allocation10 + $0x478] sm:$0xff]
        %v1673 = vld [vmem:[#allocation10 + $0x480] sm:$0xff]
        %v1674 = vld [vmem:[#allocation10 + $0x488] sm:$0xff]
        %v1675 = vld [vmem:[#allocation10 + $0x490] sm:$0xff]
        %v1676 = vld [vmem:[#allocation10 + $0x498] sm:$0xff]
        %v1677 = vld [vmem:[#allocation10 + $0x4a0] sm:$0xff]
        %v1678 = vld [vmem:[#allocation10 + $0x4a8] sm:$0xff]
        %v1679 = vld [vmem:[#allocation10 + $0x4b0] sm:$0xff]
        %v1680 = vld [vmem:[#allocation10 + $0x4b8] sm:$0xff]
        %v1681 = vld [vmem:[#allocation10 + $0x4c0] sm:$0xff]
        %v1682 = vld [vmem:[#allocation10 + $0x4c8] sm:$0xff]
        %v1683 = vld [vmem:[#allocation10 + $0x4d0] sm:$0xff]
        %v1684 = vld [vmem:[#allocation10 + $0x4d8] sm:$0xff]
        %v1685 = vld [vmem:[#allocation10 + $0x4e0] sm:$0xff]
        %v1686 = vld [vmem:[#allocation10 + $0x4e8] sm:$0xff]
        %v1687 = vld [vmem:[#allocation10 + $0x4f0] sm:$0xff]
        %v1688 = vld [vmem:[#allocation10 + $0x4f8] sm:$0xff]
        %v1689 = vld [vmem:[#allocation10 + $0x500] sm:$0xff]
        %v1690 = vld [vmem:[#allocation10 + $0x508] sm:$0xff]
        %v1691 = vld [vmem:[#allocation10 + $0x510] sm:$0xff]
        %v1692 = vld [vmem:[#allocation10 + $0x518] sm:$0xff]
        %v1693 = vld [vmem:[#allocation10 + $0x520] sm:$0xff]
        %v1694 = vld [vmem:[#allocation10 + $0x528] sm:$0xff]
        %v1695 = vld [vmem:[#allocation10 + $0x530] sm:$0xff]
        %v1696 = vld [vmem:[#allocation10 + $0x538] sm:$0xff]
        %v1697 = vld [vmem:[#allocation10 + $0x540] sm:$0xff]
        %v1698 = vld [vmem:[#allocation10 + $0x548] sm:$0xff]
        %v1699 = vld [vmem:[#allocation10 + $0x550] sm:$0xff]
        %v1700 = vld [vmem:[#allocation10 + $0x558] sm:$0xff]
        %v1701 = vld [vmem:[#allocation10 + $0x560] sm:$0xff]
        %v1702 = vld [vmem:[#allocation10 + $0x568] sm:$0xff]
        %v1703 = vld [vmem:[#allocation10 + $0x570] sm:$0xff]
        %v1704 = vld [vmem:[#allocation10 + $0x578] sm:$0xff]
        %v1705 = vld [vmem:[#allocation10 + $0x580] sm:$0xff]
        %v1706 = vld [vmem:[#allocation10 + $0x588] sm:$0xff]
        %v1707 = vld [vmem:[#allocation10 + $0x590] sm:$0xff]
        %v1708 = vld [vmem:[#allocation10 + $0x598] sm:$0xff]
        %v1709 = vld [vmem:[#allocation10 + $0x5a0] sm:$0xff]
        %v1710 = vld [vmem:[#allocation10 + $0x5a8] sm:$0xff]
        %v1711 = vld [vmem:[#allocation10 + $0x5b0] sm:$0xff]
        %v1712 = vld [vmem:[#allocation10 + $0x5b8] sm:$0xff]
        %v1713 = vld [vmem:[#allocation10 + $0x5c0] sm:$0xff]
        %v1714 = vld [vmem:[#allocation10 + $0x5c8] sm:$0xff]
        %v1715 = vld [vmem:[#allocation10 + $0x5d0] sm:$0xff]
        %v1716 = vld [vmem:[#allocation10 + $0x5d8] sm:$0xff]
        %v1717 = vld [vmem:[#allocation10 + $0x5e0] sm:$0xff]
        %v1718 = vld [vmem:[#allocation10 + $0x5e8] sm:$0xff]
        %v1719 = vld [vmem:[#allocation10 + $0x5f0] sm:$0xff]
        %v1720 = vld [vmem:[#allocation10 + $0x5f8] sm:$0xff]
        %v1721 = vld [vmem:[#allocation10 + $0x600] sm:$0xff]
        %v1722 = vld [vmem:[#allocation10 + $0x608] sm:$0xff]
        %v1723 = vld [vmem:[#allocation10 + $0x610] sm:$0xff]
        %v1724 = vld [vmem:[#allocation10 + $0x618] sm:$0xff]
        %v1725 = vld [vmem:[#allocation10 + $0x620] sm:$0xff]
        %v1726 = vld [vmem:[#allocation10 + $0x628] sm:$0xff]
        %v1727 = vld [vmem:[#allocation10 + $0x630] sm:$0xff]
        %v1728 = vld [vmem:[#allocation10 + $0x638] sm:$0xff]
        %v1729 = vld [vmem:[#allocation10 + $0x640] sm:$0xff]
        %v1730 = vld [vmem:[#allocation10 + $0x648] sm:$0xff]
        %v1731 = vld [vmem:[#allocation10 + $0x650] sm:$0xff]
        %v1732 = vld [vmem:[#allocation10 + $0x658] sm:$0xff]
        %v1733 = vld [vmem:[#allocation10 + $0x660] sm:$0xff]
        %v1734 = vld [vmem:[#allocation10 + $0x668] sm:$0xff]
        %v1735 = vld [vmem:[#allocation10 + $0x670] sm:$0xff]
        %v1736 = vld [vmem:[#allocation10 + $0x678] sm:$0xff]
        %v1737 = vld [vmem:[#allocation10 + $0x680] sm:$0xff]
        %v1738 = vld [vmem:[#allocation10 + $0x688] sm:$0xff]
        %v1739 = vld [vmem:[#allocation10 + $0x690] sm:$0xff]
        %v1740 = vld [vmem:[#allocation10 + $0x698] sm:$0xff]
        %v1741 = vld [vmem:[#allocation10 + $0x6a0] sm:$0xff]
        %v1742 = vld [vmem:[#allocation10 + $0x6a8] sm:$0xff]
        %v1743 = vld [vmem:[#allocation10 + $0x6b0] sm:$0xff]
        %v1744 = vld [vmem:[#allocation10 + $0x6b8] sm:$0xff]
        %v1745 = vld [vmem:[#allocation10 + $0x6c0] sm:$0xff]
        %v1746 = vld [vmem:[#allocation10 + $0x6c8] sm:$0xff]
        %v1747 = vld [vmem:[#allocation10 + $0x6d0] sm:$0xff]
        %v1748 = vld [vmem:[#allocation10 + $0x6d8] sm:$0xff]
        %v1749 = vld [vmem:[#allocation10 + $0x6e0] sm:$0xff]
        %v1750 = vld [vmem:[#allocation10 + $0x6e8] sm:$0xff]
        %v1751 = vld [vmem:[#allocation10 + $0x6f0] sm:$0xff]
        %v1752 = vld [vmem:[#allocation10 + $0x6f8] sm:$0xff]
        %v1753 = vld [vmem:[#allocation10 + $0x700] sm:$0xff]
        %v1754 = vld [vmem:[#allocation10 + $0x708] sm:$0xff]
        %v1755 = vld [vmem:[#allocation10 + $0x710] sm:$0xff]
        %v1756 = vld [vmem:[#allocation10 + $0x718] sm:$0xff]
        %v1757 = vld [vmem:[#allocation10 + $0x720] sm:$0xff]
        %v1758 = vld [vmem:[#allocation10 + $0x728] sm:$0xff]
        %v1759 = vld [vmem:[#allocation10 + $0x730] sm:$0xff]
        %v1760 = vld [vmem:[#allocation10 + $0x738] sm:$0xff]
        %v1761 = vld [vmem:[#allocation10 + $0x740] sm:$0xff]
        %v1762 = vld [vmem:[#allocation10 + $0x748] sm:$0xff]
        %v1763 = vld [vmem:[#allocation10 + $0x750] sm:$0xff]
        %v1764 = vld [vmem:[#allocation10 + $0x758] sm:$0xff]
        %v1765 = vld [vmem:[#allocation10 + $0x760] sm:$0xff]
        %v1766 = vld [vmem:[#allocation10 + $0x768] sm:$0xff]
        %v1767 = vld [vmem:[#allocation10 + $0x770] sm:$0xff]
        %v1768 = vld [vmem:[#allocation10 + $0x778] sm:$0xff]
        %v1769 = vld [vmem:[#allocation10 + $0x780] sm:$0xff]
        %v1770 = vld [vmem:[#allocation10 + $0x788] sm:$0xff]
        %v1771 = vld [vmem:[#allocation10 + $0x790] sm:$0xff]
        %v1772 = vld [vmem:[#allocation10 + $0x798] sm:$0xff]
        %v1773 = vld [vmem:[#allocation10 + $0x7a0] sm:$0xff]
        %v1774 = vld [vmem:[#allocation10 + $0x7a8] sm:$0xff]
        %v1775 = vld [vmem:[#allocation10 + $0x7b0] sm:$0xff]
        %v1776 = vld [vmem:[#allocation10 + $0x7b8] sm:$0xff]
        %v1777 = vld [vmem:[#allocation10 + $0x7c0] sm:$0xff]
        %v1778 = vld [vmem:[#allocation10 + $0x7c8] sm:$0xff]
        %v1779 = vld [vmem:[#allocation10 + $0x7d0] sm:$0xff]
        %v1780 = vld [vmem:[#allocation10 + $0x7d8] sm:$0xff]
        %v1781 = vld [vmem:[#allocation10 + $0x7e0] sm:$0xff]
        %v1782 = vld [vmem:[#allocation10 + $0x7e8] sm:$0xff]
        %v1783 = vld [vmem:[#allocation10 + $0x7f0] sm:$0xff]
        %v1784 = vld [vmem:[#allocation10 + $0x7f8] sm:$0xff]
        %v1785 = vld [vmem:[#allocation10 + $0x800] sm:$0xff]
        %v1786 = vld [vmem:[#allocation10 + $0x808] sm:$0xff]
        %v1787 = vld [vmem:[#allocation10 + $0x810] sm:$0xff]
        %v1788 = vld [vmem:[#allocation10 + $0x818] sm:$0xff]
        %v1789 = vld [vmem:[#allocation10 + $0x820] sm:$0xff]
        %v1790 = vld [vmem:[#allocation10 + $0x828] sm:$0xff]
        %v1791 = vld [vmem:[#allocation10 + $0x830] sm:$0xff]
        %v1792 = vld [vmem:[#allocation10 + $0x838] sm:$0xff]
        %v1793 = vld [vmem:[#allocation10 + $0x840] sm:$0xff]
        %v1794 = vld [vmem:[#allocation10 + $0x848] sm:$0xff]
        %v1795 = vld [vmem:[#allocation10 + $0x850] sm:$0xff]
        %v1796 = vld [vmem:[#allocation10 + $0x858] sm:$0xff]
        %v1797 = vld [vmem:[#allocation10 + $0x860] sm:$0xff]
        %v1798 = vld [vmem:[#allocation10 + $0x868] sm:$0xff]
        %v1799 = vld [vmem:[#allocation10 + $0x870] sm:$0xff]
        %v1800 = vld [vmem:[#allocation10 + $0x878] sm:$0xff]
        %v1801 = vld [vmem:[#allocation10 + $0x880] sm:$0xff]
        %v1802 = vld [vmem:[#allocation10 + $0x888] sm:$0xff]
        %v1803 = vld [vmem:[#allocation10 + $0x890] sm:$0xff]
        %v1804 = vld [vmem:[#allocation10 + $0x898] sm:$0xff]
        %v1805 = vld [vmem:[#allocation10 + $0x8a0] sm:$0xff]
        %v1806 = vld [vmem:[#allocation10 + $0x8a8] sm:$0xff]
        %v1807 = vld [vmem:[#allocation10 + $0x8b0] sm:$0xff]
        %v1808 = vld [vmem:[#allocation10 + $0x8b8] sm:$0xff]
        %v1809 = vld [vmem:[#allocation10 + $0x8c0] sm:$0xff]
        %v1810 = vld [vmem:[#allocation10 + $0x8c8] sm:$0xff]
        %v1811 = vld [vmem:[#allocation10 + $0x8d0] sm:$0xff]
        %v1812 = vld [vmem:[#allocation10 + $0x8d8] sm:$0xff]
        %v1813 = vld [vmem:[#allocation10 + $0x8e0] sm:$0xff]
        %v1814 = vld [vmem:[#allocation10 + $0x8e8] sm:$0xff]
        %v1815 = vld [vmem:[#allocation10 + $0x8f0] sm:$0xff]
        %v1816 = vld [vmem:[#allocation10 + $0x8f8] sm:$0xff]
        %v1817 = vld [vmem:[#allocation10 + $0x900] sm:$0xff]
        %v1818 = vld [vmem:[#allocation10 + $0x908] sm:$0xff]
        %v1819 = vld [vmem:[#allocation10 + $0x910] sm:$0xff]
        %v1820 = vld [vmem:[#allocation10 + $0x918] sm:$0xff]
        %v1821 = vld [vmem:[#allocation10 + $0x920] sm:$0xff]
        %v1822 = vld [vmem:[#allocation10 + $0x928] sm:$0xff]
        %v1823 = vld [vmem:[#allocation10 + $0x930] sm:$0xff]
        %v1824 = vld [vmem:[#allocation10 + $0x938] sm:$0xff]
        %v1825 = vld [vmem:[#allocation10 + $0x940] sm:$0xff]
        %v1826 = vld [vmem:[#allocation10 + $0x948] sm:$0xff]
        %v1827 = vld [vmem:[#allocation10 + $0x950] sm:$0xff]
        %v1828 = vld [vmem:[#allocation10 + $0x958] sm:$0xff]
        %v1829 = vld [vmem:[#allocation10 + $0x960] sm:$0xff]
        %v1830 = vld [vmem:[#allocation10 + $0x968] sm:$0xff]
        %v1831 = vld [vmem:[#allocation10 + $0x970] sm:$0xff]
        %v1832 = vld [vmem:[#allocation10 + $0x978] sm:$0xff]
        %v1833 = vld [vmem:[#allocation10 + $0x980] sm:$0xff]
        %v1834 = vld [vmem:[#allocation10 + $0x988] sm:$0xff]
        %v1835 = vld [vmem:[#allocation10 + $0x990] sm:$0xff]
        %v1836 = vld [vmem:[#allocation10 + $0x998] sm:$0xff]
        %v1837 = vld [vmem:[#allocation10 + $0x9a0] sm:$0xff]
        %v1838 = vld [vmem:[#allocation10 + $0x9a8] sm:$0xff]
        %v1839 = vld [vmem:[#allocation10 + $0x9b0] sm:$0xff]
        %v1840 = vld [vmem:[#allocation10 + $0x9b8] sm:$0xff]
        %v1841 = vld [vmem:[#allocation10 + $0x9c0] sm:$0xff]
        %v1842 = vld [vmem:[#allocation10 + $0x9c8] sm:$0xff]
        %v1843 = vld [vmem:[#allocation10 + $0x9d0] sm:$0xff]
        %v1844 = vld [vmem:[#allocation10 + $0x9d8] sm:$0xff]
        %v1845 = vld [vmem:[#allocation10 + $0x9e0] sm:$0xff]
        %v1846 = vld [vmem:[#allocation10 + $0x9e8] sm:$0xff]
        %v1847 = vld [vmem:[#allocation10 + $0x9f0] sm:$0xff]
        %v1848 = vld [vmem:[#allocation10 + $0x9f8] sm:$0xff]
        %v1849 = vld [vmem:[#allocation10 + $0xa00] sm:$0xff]
        %v1850 = vld [vmem:[#allocation10 + $0xa08] sm:$0xff]
        %v1851 = vld [vmem:[#allocation10 + $0xa10] sm:$0xff]
        %v1852 = vld [vmem:[#allocation10 + $0xa18] sm:$0xff]
        %v1853 = vld [vmem:[#allocation10 + $0xa20] sm:$0xff]
        %v1854 = vld [vmem:[#allocation10 + $0xa28] sm:$0xff]
        %v1855 = vld [vmem:[#allocation10 + $0xa30] sm:$0xff]
        %v1856 = vld [vmem:[#allocation10 + $0xa38] sm:$0xff]
        %v1857 = vld [vmem:[#allocation10 + $0xa40] sm:$0xff]
        %v1858 = vld [vmem:[#allocation10 + $0xa48] sm:$0xff]
        %v1859 = vld [vmem:[#allocation10 + $0xa50] sm:$0xff]
        %v1860 = vld [vmem:[#allocation10 + $0xa58] sm:$0xff]
        %v1861 = vld [vmem:[#allocation10 + $0xa60] sm:$0xff]
        %v1862 = vld [vmem:[#allocation10 + $0xa68] sm:$0xff]
        %v1863 = vld [vmem:[#allocation10 + $0xa70] sm:$0xff]
        %v1864 = vld [vmem:[#allocation10 + $0xa78] sm:$0xff]
        %v1865 = vld [vmem:[#allocation10 + $0xa80] sm:$0xff]
        %v1866 = vld [vmem:[#allocation10 + $0xa88] sm:$0xff]
        %v1867 = vld [vmem:[#allocation10 + $0xa90] sm:$0xff]
        %v1868 = vld [vmem:[#allocation10 + $0xa98] sm:$0xff]
        %v1869 = vld [vmem:[#allocation10 + $0xaa0] sm:$0xff]
        %v1870 = vld [vmem:[#allocation10 + $0xaa8] sm:$0xff]
        %v1871 = vld [vmem:[#allocation10 + $0xab0] sm:$0xff]
        %v1872 = vld [vmem:[#allocation10 + $0xab8] sm:$0xff]
        %v1873 = vld [vmem:[#allocation10 + $0xac0] sm:$0xff]
        %v1874 = vld [vmem:[#allocation10 + $0xac8] sm:$0xff]
        %v1875 = vld [vmem:[#allocation10 + $0xad0] sm:$0xff]
        %v1876 = vld [vmem:[#allocation10 + $0xad8] sm:$0xff]
        %v1877 = vld [vmem:[#allocation10 + $0xae0] sm:$0xff]
        %v1878 = vld [vmem:[#allocation10 + $0xae8] sm:$0xff]
        %v1879 = vld [vmem:[#allocation10 + $0xaf0] sm:$0xff]
        %v1880 = vld [vmem:[#allocation10 + $0xaf8] sm:$0xff]
        %v1881 = vld [vmem:[#allocation10 + $0xb00] sm:$0xff]
        %v1882 = vld [vmem:[#allocation10 + $0xb08] sm:$0xff]
        %v1883 = vld [vmem:[#allocation10 + $0xb10] sm:$0xff]
        %v1884 = vld [vmem:[#allocation10 + $0xb18] sm:$0xff]
        %v1885 = vld [vmem:[#allocation10 + $0xb20] sm:$0xff]
        %v1886 = vld [vmem:[#allocation10 + $0xb28] sm:$0xff]
        %v1887 = vld [vmem:[#allocation10 + $0xb30] sm:$0xff]
        %v1888 = vld [vmem:[#allocation10 + $0xb38] sm:$0xff]
        %v1889 = vld [vmem:[#allocation10 + $0xb40] sm:$0xff]
        %v1890 = vld [vmem:[#allocation10 + $0xb48] sm:$0xff]
        %v1891 = vld [vmem:[#allocation10 + $0xb50] sm:$0xff]
        %v1892 = vld [vmem:[#allocation10 + $0xb58] sm:$0xff]
        %v1893 = vld [vmem:[#allocation10 + $0xb60] sm:$0xff]
        %v1894 = vld [vmem:[#allocation10 + $0xb68] sm:$0xff]
        %v1895 = vld [vmem:[#allocation10 + $0xb70] sm:$0xff]
        %v1896 = vld [vmem:[#allocation10 + $0xb78] sm:$0xff]
        %v1897 = vld [vmem:[#allocation10 + $0xb80] sm:$0xff]
        %v1898 = vld [vmem:[#allocation10 + $0xb88] sm:$0xff]
        %v1899 = vld [vmem:[#allocation10 + $0xb90] sm:$0xff]
        %v1900 = vld [vmem:[#allocation10 + $0xb98] sm:$0xff]
        %v1901 = vld [vmem:[#allocation10 + $0xba0] sm:$0xff]
        %v1902 = vld [vmem:[#allocation10 + $0xba8] sm:$0xff]
        %v1903 = vld [vmem:[#allocation10 + $0xbb0] sm:$0xff]
        %v1904 = vld [vmem:[#allocation10 + $0xbb8] sm:$0xff]
        %v1905 = vld [vmem:[#allocation10 + $0xbc0] sm:$0xff]
        %v1906 = vld [vmem:[#allocation10 + $0xbc8] sm:$0xff]
        %v1907 = vld [vmem:[#allocation10 + $0xbd0] sm:$0xff]
        %v1908 = vld [vmem:[#allocation10 + $0xbd8] sm:$0xff]
        %v1909 = vld [vmem:[#allocation10 + $0xbe0] sm:$0xff]
        %v1910 = vld [vmem:[#allocation10 + $0xbe8] sm:$0xff]
        %v1911 = vld [vmem:[#allocation10 + $0xbf0] sm:$0xff]
        %v1912 = vld [vmem:[#allocation10 + $0xbf8] sm:$0xff]
        %v1913 = vld [vmem:[#allocation10 + $0xc00] sm:$0xff]
        %v1914 = vld [vmem:[#allocation10 + $0xc08] sm:$0xff]
        %v1915 = vld [vmem:[#allocation10 + $0xc10] sm:$0xff]
        %v1916 = vld [vmem:[#allocation10 + $0xc18] sm:$0xff]
        %v1917 = vld [vmem:[#allocation10 + $0xc20] sm:$0xff]
        %v1918 = vld [vmem:[#allocation10 + $0xc28] sm:$0xff]
        %v1919 = vld [vmem:[#allocation10 + $0xc30] sm:$0xff]
        %v1920 = vld [vmem:[#allocation10 + $0xc38] sm:$0xff]
        %v1921 = vld [vmem:[#allocation10 + $0xc40] sm:$0xff]
        %v1922 = vld [vmem:[#allocation10 + $0xc48] sm:$0xff]
        %v1923 = vld [vmem:[#allocation10 + $0xc50] sm:$0xff]
        %v1924 = vld [vmem:[#allocation10 + $0xc58] sm:$0xff]
        %v1925 = vld [vmem:[#allocation10 + $0xc60] sm:$0xff]
        %v1926 = vld [vmem:[#allocation10 + $0xc68] sm:$0xff]
        %v1927 = vld [vmem:[#allocation10 + $0xc70] sm:$0xff]
        %v1928 = vld [vmem:[#allocation10 + $0xc78] sm:$0xff]
        %v1929 = vld [vmem:[#allocation10 + $0xc80] sm:$0xff]
        %v1930 = vld [vmem:[#allocation10 + $0xc88] sm:$0xff]
        %v1931 = vld [vmem:[#allocation10 + $0xc90] sm:$0xff]
        %v1932 = vld [vmem:[#allocation10 + $0xc98] sm:$0xff]
        %v1933 = vld [vmem:[#allocation10 + $0xca0] sm:$0xff]
        %v1934 = vld [vmem:[#allocation10 + $0xca8] sm:$0xff]
        %v1935 = vld [vmem:[#allocation10 + $0xcb0] sm:$0xff]
        %v1936 = vld [vmem:[#allocation10 + $0xcb8] sm:$0xff]
        %v1937 = vld [vmem:[#allocation10 + $0xcc0] sm:$0xff]
        %v1938 = vld [vmem:[#allocation10 + $0xcc8] sm:$0xff]
        %v1939 = vld [vmem:[#allocation10 + $0xcd0] sm:$0xff]
        %v1940 = vld [vmem:[#allocation10 + $0xcd8] sm:$0xff]
        %v1941 = vld [vmem:[#allocation10 + $0xce0] sm:$0xff]
        %v1942 = vld [vmem:[#allocation10 + $0xce8] sm:$0xff]
        %v1943 = vld [vmem:[#allocation10 + $0xcf0] sm:$0xff]
        %v1944 = vld [vmem:[#allocation10 + $0xcf8] sm:$0xff]
        %v1945 = vld [vmem:[#allocation10 + $0xd00] sm:$0xff]
        %v1946 = vld [vmem:[#allocation10 + $0xd08] sm:$0xff]
        %v1947 = vld [vmem:[#allocation10 + $0xd10] sm:$0xff]
        %v1948 = vld [vmem:[#allocation10 + $0xd18] sm:$0xff]
        %v1949 = vld [vmem:[#allocation10 + $0xd20] sm:$0xff]
        %v1950 = vld [vmem:[#allocation10 + $0xd28] sm:$0xff]
        %v1951 = vld [vmem:[#allocation10 + $0xd30] sm:$0xff]
        %v1952 = vld [vmem:[#allocation10 + $0xd38] sm:$0xff]
        %v1953 = vld [vmem:[#allocation10 + $0xd40] sm:$0xff]
        %v1954 = vld [vmem:[#allocation10 + $0xd48] sm:$0xff]
        %v1955 = vld [vmem:[#allocation10 + $0xd50] sm:$0xff]
        %v1956 = vld [vmem:[#allocation10 + $0xd58] sm:$0xff]
        %v1957 = vld [vmem:[#allocation10 + $0xd60] sm:$0xff]
        %v1958 = vld [vmem:[#allocation10 + $0xd68] sm:$0xff]
        %v1959 = vld [vmem:[#allocation10 + $0xd70] sm:$0xff]
        %v1960 = vld [vmem:[#allocation10 + $0xd78] sm:$0xff]
        %v1961 = vld [vmem:[#allocation10 + $0xd80] sm:$0xff]
        %v1962 = vld [vmem:[#allocation10 + $0xd88] sm:$0xff]
        %v1963 = vld [vmem:[#allocation10 + $0xd90] sm:$0xff]
        %v1964 = vld [vmem:[#allocation10 + $0xd98] sm:$0xff]
        %v1965 = vld [vmem:[#allocation10 + $0xda0] sm:$0xff]
        %v1966 = vld [vmem:[#allocation10 + $0xda8] sm:$0xff]
        %v1967 = vld [vmem:[#allocation10 + $0xdb0] sm:$0xff]
        %v1968 = vld [vmem:[#allocation10 + $0xdb8] sm:$0xff]
        %v1969 = vld [vmem:[#allocation10 + $0xdc0] sm:$0xff]
        %v1970 = vld [vmem:[#allocation10 + $0xdc8] sm:$0xff]
        %v1971 = vld [vmem:[#allocation10 + $0xdd0] sm:$0xff]
        %v1972 = vld [vmem:[#allocation10 + $0xdd8] sm:$0xff]
        %v1973 = vld [vmem:[#allocation10 + $0xde0] sm:$0xff]
        %v1974 = vld [vmem:[#allocation10 + $0xde8] sm:$0xff]
        %v1975 = vld [vmem:[#allocation10 + $0xdf0] sm:$0xff]
        %v1976 = vld [vmem:[#allocation10 + $0xdf8] sm:$0xff]
        %v1977 = vld [vmem:[#allocation10 + $0xe00] sm:$0xff]
        %v1978 = vld [vmem:[#allocation10 + $0xe08] sm:$0xff]
        %v1979 = vld [vmem:[#allocation10 + $0xe10] sm:$0xff]
        %v1980 = vld [vmem:[#allocation10 + $0xe18] sm:$0xff]
        %v1981 = vld [vmem:[#allocation10 + $0xe20] sm:$0xff]
        %v1982 = vld [vmem:[#allocation10 + $0xe28] sm:$0xff]
        %v1983 = vld [vmem:[#allocation10 + $0xe30] sm:$0xff]
        %v1984 = vld [vmem:[#allocation10 + $0xe38] sm:$0xff]
        %v1985 = vld [vmem:[#allocation10 + $0xe40] sm:$0xff]
        %v1986 = vld [vmem:[#allocation10 + $0xe48] sm:$0xff]
        %v1987 = vld [vmem:[#allocation10 + $0xe50] sm:$0xff]
        %v1988 = vld [vmem:[#allocation10 + $0xe58] sm:$0xff]
        %v1989 = vld [vmem:[#allocation10 + $0xe60] sm:$0xff]
        %v1990 = vld [vmem:[#allocation10 + $0xe68] sm:$0xff]
        %v1991 = vld [vmem:[#allocation10 + $0xe70] sm:$0xff]
        %v1992 = vld [vmem:[#allocation10 + $0xe78] sm:$0xff]
        %v1993 = vld [vmem:[#allocation10 + $0xe80] sm:$0xff]
        %v1994 = vld [vmem:[#allocation10 + $0xe88] sm:$0xff]
        %v1995 = vld [vmem:[#allocation10 + $0xe90] sm:$0xff]
        %v1996 = vld [vmem:[#allocation10 + $0xe98] sm:$0xff]
        %v1997 = vld [vmem:[#allocation10 + $0xea0] sm:$0xff]
        %v1998 = vld [vmem:[#allocation10 + $0xea8] sm:$0xff]
        %v1999 = vld [vmem:[#allocation10 + $0xeb0] sm:$0xff]
        %v2000 = vld [vmem:[#allocation10 + $0xeb8] sm:$0xff]
        %v2001 = vld [vmem:[#allocation10 + $0xec0] sm:$0xff]
        %v2002 = vld [vmem:[#allocation10 + $0xec8] sm:$0xff]
        %v2003 = vld [vmem:[#allocation10 + $0xed0] sm:$0xff]
        %v2004 = vld [vmem:[#allocation10 + $0xed8] sm:$0xff]
        %v2005 = vld [vmem:[#allocation10 + $0xee0] sm:$0xff]
        %v2006 = vld [vmem:[#allocation10 + $0xee8] sm:$0xff]
        %v2007 = vld [vmem:[#allocation10 + $0xef0] sm:$0xff]
        %v2008 = vld [vmem:[#allocation10 + $0xef8] sm:$0xff]
        %v2009 = vld [vmem:[#allocation10 + $0xf00] sm:$0xff]
        %v2010 = vld [vmem:[#allocation10 + $0xf08] sm:$0xff]
        %v2011 = vld [vmem:[#allocation10 + $0xf10] sm:$0xff]
        %v2012 = vld [vmem:[#allocation10 + $0xf18] sm:$0xff]
        %v2013 = vld [vmem:[#allocation10 + $0xf20] sm:$0xff]
        %v2014 = vld [vmem:[#allocation10 + $0xf28] sm:$0xff]
        %v2015 = vld [vmem:[#allocation10 + $0xf30] sm:$0xff]
        %v2016 = vld [vmem:[#allocation10 + $0xf38] sm:$0xff]
        %v2017 = vld [vmem:[#allocation10 + $0xf40] sm:$0xff]
        %v2018 = vld [vmem:[#allocation10 + $0xf48] sm:$0xff]
        %v2019 = vld [vmem:[#allocation10 + $0xf50] sm:$0xff]
        %v2020 = vld [vmem:[#allocation10 + $0xf58] sm:$0xff]
        %v2021 = vld [vmem:[#allocation10 + $0xf60] sm:$0xff]
        %v2022 = vld [vmem:[#allocation10 + $0xf68] sm:$0xff]
        %v2023 = vld [vmem:[#allocation10 + $0xf70] sm:$0xff]
        %v2024 = vld [vmem:[#allocation10 + $0xf78] sm:$0xff]
        %v2025 = vld [vmem:[#allocation10 + $0xf80] sm:$0xff]
        %v2026 = vld [vmem:[#allocation10 + $0xf88] sm:$0xff]
        %v2027 = vld [vmem:[#allocation10 + $0xf90] sm:$0xff]
        %v2028 = vld [vmem:[#allocation10 + $0xf98] sm:$0xff]
        %v2029 = vld [vmem:[#allocation10 + $0xfa0] sm:$0xff]
        %v2030 = vld [vmem:[#allocation10 + $0xfa8] sm:$0xff]
        %v2031 = vld [vmem:[#allocation10 + $0xfb0] sm:$0xff]
        %v2032 = vld [vmem:[#allocation10 + $0xfb8] sm:$0xff]
        %v2033 = vld [vmem:[#allocation10 + $0xfc0] sm:$0xff]
        %v2034 = vld [vmem:[#allocation10 + $0xfc8] sm:$0xff]
        %v2035 = vld [vmem:[#allocation10 + $0xfd0] sm:$0xff]
        %v2036 = vld [vmem:[#allocation10 + $0xfd8] sm:$0xff]
        %v2037 = vld [vmem:[#allocation10 + $0xfe0] sm:$0xff]
        %v2038 = vld [vmem:[#allocation10 + $0xfe8] sm:$0xff]
        %v2039 = vld [vmem:[#allocation10 + $0xff0] sm:$0xff]
        %v2040 = vld [vmem:[#allocation10 + $0xff8] sm:$0xff]
        %v2041 = vld [vmem:[#allocation10 + $0x1000] sm:$0xff]
        %v2042 = vld [vmem:[#allocation10 + $0x1008] sm:$0xff]
        %v2043 = vld [vmem:[#allocation10 + $0x1010] sm:$0xff]
        %v2044 = vld [vmem:[#allocation10 + $0x1018] sm:$0xff]
        %v2045 = vld [vmem:[#allocation10 + $0x1020] sm:$0xff]
        %v2046 = vld [vmem:[#allocation10 + $0x1028] sm:$0xff]
        %v2047 = vld [vmem:[#allocation10 + $0x1030] sm:$0xff]
        %v2048 = vld [vmem:[#allocation10 + $0x1038] sm:$0xff]
        %v2049 = vld [vmem:[#allocation10 + $0x1040] sm:$0xff]
        %v2050 = vld [vmem:[#allocation10 + $0x1048] sm:$0xff]
        %v2051 = vld [vmem:[#allocation10 + $0x1050] sm:$0xff]
        %v2052 = vld [vmem:[#allocation10 + $0x1058] sm:$0xff]
        %v2053 = vld [vmem:[#allocation10 + $0x1060] sm:$0xff]
        %v2054 = vld [vmem:[#allocation10 + $0x1068] sm:$0xff]
        %v2055 = vld [vmem:[#allocation10 + $0x1070] sm:$0xff]
        %v2056 = vld [vmem:[#allocation10 + $0x1078] sm:$0xff]
        %v2057 = vld [vmem:[#allocation10 + $0x1080] sm:$0xff]
        %v2058 = vld [vmem:[#allocation10 + $0x1088] sm:$0xff]
        %v2059 = vld [vmem:[#allocation10 + $0x1090] sm:$0xff]
        %v2060 = vld [vmem:[#allocation10 + $0x1098] sm:$0xff]
        %v2061 = vld [vmem:[#allocation10 + $0x10a0] sm:$0xff]
        %v2062 = vld [vmem:[#allocation10 + $0x10a8] sm:$0xff]
        %v2063 = vld [vmem:[#allocation10 + $0x10b0] sm:$0xff]
        %v2064 = vld [vmem:[#allocation10 + $0x10b8] sm:$0xff]
        %v2065 = vld [vmem:[#allocation10 + $0x10c0] sm:$0xff]
        %v2066 = vld [vmem:[#allocation10 + $0x10c8] sm:$0xff]
        %v2067 = vld [vmem:[#allocation10 + $0x10d0] sm:$0xff]
        %v2068 = vld [vmem:[#allocation10 + $0x10d8] sm:$0xff]
        %v2069 = vld [vmem:[#allocation10 + $0x10e0] sm:$0xff]
        %v2070 = vld [vmem:[#allocation10 + $0x10e8] sm:$0xff]
        %v2071 = vld [vmem:[#allocation10 + $0x10f0] sm:$0xff]
        %v2072 = vld [vmem:[#allocation10 + $0x10f8] sm:$0xff]
        %v2073 = vld [vmem:[#allocation10 + $0x1100] sm:$0xff]
        %v2074 = vld [vmem:[#allocation10 + $0x1108] sm:$0xff]
        %v2075 = vld [vmem:[#allocation10 + $0x1110] sm:$0xff]
        %v2076 = vld [vmem:[#allocation10 + $0x1118] sm:$0xff]
        %v2077 = vld [vmem:[#allocation10 + $0x1120] sm:$0xff]
        %v2078 = vld [vmem:[#allocation10 + $0x1128] sm:$0xff]
        %v2079 = vld [vmem:[#allocation10 + $0x1130] sm:$0xff]
        %v2080 = vld [vmem:[#allocation10 + $0x1138] sm:$0xff]
        %v2081 = vld [vmem:[#allocation10 + $0x1140] sm:$0xff]
        %v2082 = vld [vmem:[#allocation10 + $0x1148] sm:$0xff]
        %v2083 = vld [vmem:[#allocation10 + $0x1150] sm:$0xff]
        %v2084 = vld [vmem:[#allocation10 + $0x1158] sm:$0xff]
        %v2085 = vld [vmem:[#allocation10 + $0x1160] sm:$0xff]
        %v2086 = vld [vmem:[#allocation10 + $0x1168] sm:$0xff]
        %v2087 = vld [vmem:[#allocation10 + $0x1170] sm:$0xff]
        %v2088 = vld [vmem:[#allocation10 + $0x1178] sm:$0xff]
        %v2089 = vld [vmem:[#allocation10 + $0x1180] sm:$0xff]
        %v2090 = vld [vmem:[#allocation10 + $0x1188] sm:$0xff]
        %v2091 = vld [vmem:[#allocation10 + $0x1190] sm:$0xff]
        %v2092 = vld [vmem:[#allocation10 + $0x1198] sm:$0xff]
        %v2093 = vld [vmem:[#allocation10 + $0x11a0] sm:$0xff]
        %v2094 = vld [vmem:[#allocation10 + $0x11a8] sm:$0xff]
        %v2095 = vld [vmem:[#allocation10 + $0x11b0] sm:$0xff]
        %v2096 = vld [vmem:[#allocation10 + $0x11b8] sm:$0xff]
        %v2097 = vld [vmem:[#allocation10 + $0x11c0] sm:$0xff]
        %v2098 = vld [vmem:[#allocation10 + $0x11c8] sm:$0xff]
        %v2099 = vld [vmem:[#allocation10 + $0x11d0] sm:$0xff]
        %v2100 = vld [vmem:[#allocation10 + $0x11d8] sm:$0xff]
        %v2101 = vld [vmem:[#allocation10 + $0x11e0] sm:$0xff]
        %v2102 = vld [vmem:[#allocation10 + $0x11e8] sm:$0xff]
        %v2103 = vld [vmem:[#allocation10 + $0x11f0] sm:$0xff]
        %v2104 = vld [vmem:[#allocation10 + $0x11f8] sm:$0xff]
        %v2105 = vld [vmem:[#allocation11] sm:$0x3]
        %v2107 = vlaneseq
        %v2108 = vshrl.u32 %v2107, 7
        %v2109 = vsub.s32 0, %v2108
        %v2110 = vrot.slane %v2105, %v2109
        %v2111 = vlaneseq
        %v2112 = vshrl.u32 %v2111, 7
        %v2113 = vsub.s32 1, %v2112
        %v2114 = vrot.slane %v2105, %v2113
        %2117 = vmatprep.subr.mxu0 %v1560
        %2118 = vmatpush1.msra.mxu0 %v1559
        %2119 = vmatprep.subr.mxu0 %v1558
        %2120 = vmatpush1.msra.mxu0 %v1557
        %2121 = vmatprep.subr.mxu0 %v1556
        %2122 = vmatpush1.msra.mxu0 %v1555
        %2123 = vmatprep.subr.mxu0 %v1554
        %2124 = vmatpush1.msra.mxu0 %v1553
        %2125 = vmatprep.subr.mxu0 %v1552
        %2126 = vmatpush1.msra.mxu0 %v1551
        %2127 = vmatprep.subr.mxu0 %v1550
        %2128 = vmatpush1.msra.mxu0 %v1549
        %2129 = vmatprep.subr.mxu0 %v1548
        %2130 = vmatpush1.msra.mxu0 %v1547
        %2131 = vmatprep.subr.mxu0 %v1546
        %2132 = vmatpush1.msra.mxu0 %v1545
        %2133 = vmatprep.subr.mxu0 %v1544
        %2134 = vmatpush1.msra.mxu0 %v1543
        %2135 = vmatprep.subr.mxu0 %v1542
        %2136 = vmatpush1.msra.mxu0 %v1541
        %2137 = vmatprep.subr.mxu0 %v1540
        %2138 = vmatpush1.msra.mxu0 %v1539
        %2139 = vmatprep.subr.mxu0 %v1538
        %2140 = vmatpush1.msra.mxu0 %v1537
        %2141 = vmatprep.subr.mxu0 %v1536
        %2142 = vmatpush1.msra.mxu0 %v1535
        %2143 = vmatprep.subr.mxu0 %v1534
        %2144 = vmatpush1.msra.mxu0 %v1533
        %2145 = vmatprep.subr.mxu0 %v1532
        %2146 = vmatpush1.msra.mxu0 %v1531
        %2147 = vmatprep.subr.mxu0 %v1530
        %2148 = vmatpush1.msra.mxu0 %v1529
        %2149 = vmatprep.subr.mxu0 %v1592
        %2150 = vmatpush2.msra.mxu0 %v1591
        %2151 = vmatprep.subr.mxu0 %v1590
        %2152 = vmatpush2.msra.mxu0 %v1589
        %2153 = vmatprep.subr.mxu0 %v1588
        %2154 = vmatpush2.msra.mxu0 %v1587
        %2155 = vmatprep.subr.mxu0 %v1586
        %2156 = vmatpush2.msra.mxu0 %v1585
        %2157 = vmatprep.subr.mxu0 %v1584
        %2158 = vmatpush2.msra.mxu0 %v1583
        %2159 = vmatprep.subr.mxu0 %v1582
        %2160 = vmatpush2.msra.mxu0 %v1581
        %2161 = vmatprep.subr.mxu0 %v1580
        %2162 = vmatpush2.msra.mxu0 %v1579
        %2163 = vmatprep.subr.mxu0 %v1578
        %2164 = vmatpush2.msra.mxu0 %v1577
        %2165 = vmatprep.subr.mxu0 %v1576
        %2166 = vmatpush2.msra.mxu0 %v1575
        %2167 = vmatprep.subr.mxu0 %v1574
        %2168 = vmatpush2.msra.mxu0 %v1573
        %2169 = vmatprep.subr.mxu0 %v1572
        %2170 = vmatpush2.msra.mxu0 %v1571
        %2171 = vmatprep.subr.mxu0 %v1570
        %2172 = vmatpush2.msra.mxu0 %v1569
        %2173 = vmatprep.subr.mxu0 %v1568
        %2174 = vmatpush2.msra.mxu0 %v1567
        %2175 = vmatprep.subr.mxu0 %v1566
        %2176 = vmatpush2.msra.mxu0 %v1565
        %2177 = vmatprep.subr.mxu0 %v1564
        %2178 = vmatpush2.msra.mxu0 %v1563
        %2179 = vmatprep.subr.mxu0 %v1562
        %2180 = vmatpush2.msra.mxu0 %v1561
        %2181 = vmatprep.mubr.f32.mxu0 0.0
        %2182 = vmatmul.mubr.f32.gmra.mxu0 0.0
        %v2183 = vpop.f32.mrf.mxu0
        %v2184 = vadd.f32 %v2110, %v2183
        %v2185 = vpop.f32.mrf.mxu0
        %v2186 = vadd.f32 %v2114, %v2185
        %2187 = vmatprep.mubr.f32.mxu0 0.0
        %2188 = vmatmul.mubr.f32.gmra.mxu0 0.0
        %v2189 = vpop.f32.mrf.mxu0
        %v2190 = vadd.f32 %v2110, %v2189
        %v2191 = vpop.f32.mrf.mxu0
        %v2192 = vadd.f32 %v2114, %v2191
        %2193 = vmatprep.mubr.f32.mxu0 %v1370
        %2194 = vmatmul.mubr.f32.gmra.mxu0 %v1369
        %v2195 = vpop.f32.mrf.mxu0
        %v2196 = vadd.f32 %v2110, %v2195
        %v2197 = vpop.f32.mrf.mxu0
        %v2198 = vadd.f32 %v2114, %v2197
        %2199 = vmatprep.mubr.f32.mxu0 %v1372
        %2200 = vmatmul.mubr.f32.gmra.mxu0 %v1371
        %v2201 = vpop.f32.mrf.mxu0
        %v2202 = vadd.f32 %v2110, %v2201
        %v2203 = vpop.f32.mrf.mxu0
        %v2204 = vadd.f32 %v2114, %v2203
        %2205 = vmatprep.mubr.f32.mxu0 %v1374
        %2206 = vmatmul.mubr.f32.gmra.mxu0 %v1373
        %v2207 = vpop.f32.mrf.mxu0
        %v2208 = vadd.f32 %v2110, %v2207
        %v2209 = vpop.f32.mrf.mxu0
        %v2210 = vadd.f32 %v2114, %v2209
        %2211 = vmatprep.mubr.f32.mxu0 %v1376
        %2212 = vmatmul.mubr.f32.gmra.mxu0 %v1375
        %v2213 = vpop.f32.mrf.mxu0
        %v2214 = vadd.f32 %v2110, %v2213
        %v2215 = vpop.f32.mrf.mxu0
        %v2216 = vadd.f32 %v2114, %v2215
        %2217 = vmatprep.mubr.f32.mxu0 %v1378
        %2218 = vmatmul.mubr.f32.gmra.mxu0 %v1377
        %v2219 = vpop.f32.mrf.mxu0
        %v2220 = vadd.f32 %v2110, %v2219
        %v2221 = vpop.f32.mrf.mxu0
        %v2222 = vadd.f32 %v2114, %v2221
        %2223 = vmatprep.mubr.f32.mxu0 %v1380
        %2224 = vmatmul.mubr.f32.gmra.mxu0 %v1379
        %v2225 = vpop.f32.mrf.mxu0
        %v2226 = vadd.f32 %v2110, %v2225
        %v2227 = vpop.f32.mrf.mxu0
        %v2228 = vadd.f32 %v2114, %v2227
        %2229 = vdwg.mxu0
        %2230 = vmatprep.subr.mxu0 %v1624
        %2231 = vmatpush1.msra.mxu0 %v1623
        %2232 = vmatprep.subr.mxu0 %v1622
        %2233 = vmatpush1.msra.mxu0 %v1621
        %2234 = vmatprep.subr.mxu0 %v1620
        %2235 = vmatpush1.msra.mxu0 %v1619
        %2236 = vmatprep.subr.mxu0 %v1618
        %2237 = vmatpush1.msra.mxu0 %v1617
        %2238 = vmatprep.subr.mxu0 %v1616
        %2239 = vmatpush1.msra.mxu0 %v1615
        %2240 = vmatprep.subr.mxu0 %v1614
        %2241 = vmatpush1.msra.mxu0 %v1613
        %2242 = vmatprep.subr.mxu0 %v1612
        %2243 = vmatpush1.msra.mxu0 %v1611
        %2244 = vmatprep.subr.mxu0 %v1610
        %2245 = vmatpush1.msra.mxu0 %v1609
        %2246 = vmatprep.subr.mxu0 %v1608
        %2247 = vmatpush1.msra.mxu0 %v1607
        %2248 = vmatprep.subr.mxu0 %v1606
        %2249 = vmatpush1.msra.mxu0 %v1605
        %2250 = vmatprep.subr.mxu0 %v1604
        %2251 = vmatpush1.msra.mxu0 %v1603
        %2252 = vmatprep.subr.mxu0 %v1602
        %2253 = vmatpush1.msra.mxu0 %v1601
        %2254 = vmatprep.subr.mxu0 %v1600
        %2255 = vmatpush1.msra.mxu0 %v1599
        %2256 = vmatprep.subr.mxu0 %v1598
        %2257 = vmatpush1.msra.mxu0 %v1597
        %2258 = vmatprep.subr.mxu0 %v1596
        %2259 = vmatpush1.msra.mxu0 %v1595
        %2260 = vmatprep.subr.mxu0 %v1594
        %2261 = vmatpush1.msra.mxu0 %v1593
        %2262 = vmatprep.subr.mxu0 %v1656
        %2263 = vmatpush2.msra.mxu0 %v1655
        %2264 = vmatprep.subr.mxu0 %v1654
        %2265 = vmatpush2.msra.mxu0 %v1653
        %2266 = vmatprep.subr.mxu0 %v1652
        %2267 = vmatpush2.msra.mxu0 %v1651
        %2268 = vmatprep.subr.mxu0 %v1650
        %2269 = vmatpush2.msra.mxu0 %v1649
        %2270 = vmatprep.subr.mxu0 %v1648
        %2271 = vmatpush2.msra.mxu0 %v1647
        %2272 = vmatprep.subr.mxu0 %v1646
        %2273 = vmatpush2.msra.mxu0 %v1645
        %2274 = vmatprep.subr.mxu0 %v1644
        %2275 = vmatpush2.msra.mxu0 %v1643
        %2276 = vmatprep.subr.mxu0 %v1642
        %2277 = vmatpush2.msra.mxu0 %v1641
        %2278 = vmatprep.subr.mxu0 %v1640
        %2279 = vmatpush2.msra.mxu0 %v1639
        %2280 = vmatprep.subr.mxu0 %v1638
        %2281 = vmatpush2.msra.mxu0 %v1637
        %2282 = vmatprep.subr.mxu0 %v1636
        %2283 = vmatpush2.msra.mxu0 %v1635
        %2284 = vmatprep.subr.mxu0 %v1634
        %2285 = vmatpush2.msra.mxu0 %v1633
        %2286 = vmatprep.subr.mxu0 %v1632
        %2287 = vmatpush2.msra.mxu0 %v1631
        %2288 = vmatprep.subr.mxu0 %v1630
        %2289 = vmatpush2.msra.mxu0 %v1629
        %2290 = vmatprep.subr.mxu0 %v1628
        %2291 = vmatpush2.msra.mxu0 %v1627
        %2292 = vmatprep.subr.mxu0 %v1626
        %2293 = vmatpush2.msra.mxu0 %v1625
        %2294 = vmatprep.mubr.f32.mxu0 0.0
        %2295 = vmatmul.mubr.f32.gmra.mxu0 0.0
        %v2296 = vpop.f32.mrf.mxu0
        %v2297 = vadd.f32 %v2184, %v2296
        %v2298 = vpop.f32.mrf.mxu0
        %v2299 = vadd.f32 %v2186, %v2298
        %2300 = vmatprep.mubr.f32.mxu0 0.0
        %2301 = vmatmul.mubr.f32.gmra.mxu0 0.0
        %v2302 = vpop.f32.mrf.mxu0
        %v2303 = vadd.f32 %v2190, %v2302
        %v2304 = vpop.f32.mrf.mxu0
        %v2305 = vadd.f32 %v2192, %v2304
        %2306 = vmatprep.mubr.f32.mxu0 %v1229
        %2307 = vmatmul.mubr.f32.gmra.mxu0 %v1228
        %v2308 = vpop.f32.mrf.mxu0
        %v2309 = vadd.f32 %v2196, %v2308
        %v2310 = vpop.f32.mrf.mxu0
        %v2311 = vadd.f32 %v2198, %v2310
        %2312 = vmatprep.mubr.f32.mxu0 %v1231
        %2313 = vmatmul.mubr.f32.gmra.mxu0 %v1230
        %v2314 = vpop.f32.mrf.mxu0
        %v2315 = vadd.f32 %v2202, %v2314
        %v2316 = vpop.f32.mrf.mxu0
        %v2317 = vadd.f32 %v2204, %v2316
        %2318 = vmatprep.mubr.f32.mxu0 %v1233
        %2319 = vmatmul.mubr.f32.gmra.mxu0 %v1232
        %v2320 = vpop.f32.mrf.mxu0
        %v2321 = vadd.f32 %v2208, %v2320
        %v2322 = vpop.f32.mrf.mxu0
        %v2323 = vadd.f32 %v2210, %v2322
        %2324 = vmatprep.mubr.f32.mxu0 %v1235
        %2325 = vmatmul.mubr.f32.gmra.mxu0 %v1234
        %v2326 = vpop.f32.mrf.mxu0
        %v2327 = vadd.f32 %v2214, %v2326
        %v2328 = vpop.f32.mrf.mxu0
        %v2329 = vadd.f32 %v2216, %v2328
        %2330 = vmatprep.mubr.f32.mxu0 %v1237
        %2331 = vmatmul.mubr.f32.gmra.mxu0 %v1236
        %v2332 = vpop.f32.mrf.mxu0
        %v2333 = vadd.f32 %v2220, %v2332
        %v2334 = vpop.f32.mrf.mxu0
        %v2335 = vadd.f32 %v2222, %v2334
        %2336 = vmatprep.mubr.f32.mxu0 %v1239
        %2337 = vmatmul.mubr.f32.gmra.mxu0 %v1238
        %v2338 = vpop.f32.mrf.mxu0
        %v2339 = vadd.f32 %v2226, %v2338
        %v2340 = vpop.f32.mrf.mxu0
        %v2341 = vadd.f32 %v2228, %v2340
        %2342 = vdwg.mxu0
        %2343 = vmatprep.subr.mxu0 %v1688
        %2344 = vmatpush1.msra.mxu0 %v1687
        %2345 = vmatprep.subr.mxu0 %v1686
        %2346 = vmatpush1.msra.mxu0 %v1685
        %2347 = vmatprep.subr.mxu0 %v1684
        %2348 = vmatpush1.msra.mxu0 %v1683
        %2349 = vmatprep.subr.mxu0 %v1682
        %2350 = vmatpush1.msra.mxu0 %v1681
        %2351 = vmatprep.subr.mxu0 %v1680
        %2352 = vmatpush1.msra.mxu0 %v1679
        %2353 = vmatprep.subr.mxu0 %v1678
        %2354 = vmatpush1.msra.mxu0 %v1677
        %2355 = vmatprep.subr.mxu0 %v1676
        %2356 = vmatpush1.msra.mxu0 %v1675
        %2357 = vmatprep.subr.mxu0 %v1674
        %2358 = vmatpush1.msra.mxu0 %v1673
        %2359 = vmatprep.subr.mxu0 %v1672
        %2360 = vmatpush1.msra.mxu0 %v1671
        %2361 = vmatprep.subr.mxu0 %v1670
        %2362 = vmatpush1.msra.mxu0 %v1669
        %2363 = vmatprep.subr.mxu0 %v1668
        %2364 = vmatpush1.msra.mxu0 %v1667
        %2365 = vmatprep.subr.mxu0 %v1666
        %2366 = vmatpush1.msra.mxu0 %v1665
        %2367 = vmatprep.subr.mxu0 %v1664
        %2368 = vmatpush1.msra.mxu0 %v1663
        %2369 = vmatprep.subr.mxu0 %v1662
        %2370 = vmatpush1.msra.mxu0 %v1661
        %2371 = vmatprep.subr.mxu0 %v1660
        %2372 = vmatpush1.msra.mxu0 %v1659
        %2373 = vmatprep.subr.mxu0 %v1658
        %2374 = vmatpush1.msra.mxu0 %v1657
        %2375 = vmatprep.subr.mxu0 %v1720
        %2376 = vmatpush2.msra.mxu0 %v1719
        %2377 = vmatprep.subr.mxu0 %v1718
        %2378 = vmatpush2.msra.mxu0 %v1717
        %2379 = vmatprep.subr.mxu0 %v1716
        %2380 = vmatpush2.msra.mxu0 %v1715
        %2381 = vmatprep.subr.mxu0 %v1714
        %2382 = vmatpush2.msra.mxu0 %v1713
        %2383 = vmatprep.subr.mxu0 %v1712
        %2384 = vmatpush2.msra.mxu0 %v1711
        %2385 = vmatprep.subr.mxu0 %v1710
        %2386 = vmatpush2.msra.mxu0 %v1709
        %2387 = vmatprep.subr.mxu0 %v1708
        %2388 = vmatpush2.msra.mxu0 %v1707
        %2389 = vmatprep.subr.mxu0 %v1706
        %2390 = vmatpush2.msra.mxu0 %v1705
        %2391 = vmatprep.subr.mxu0 %v1704
        %2392 = vmatpush2.msra.mxu0 %v1703
        %2393 = vmatprep.subr.mxu0 %v1702
        %2394 = vmatpush2.msra.mxu0 %v1701
        %2395 = vmatprep.subr.mxu0 %v1700
        %2396 = vmatpush2.msra.mxu0 %v1699
        %2397 = vmatprep.subr.mxu0 %v1698
        %2398 = vmatpush2.msra.mxu0 %v1697
        %2399 = vmatprep.subr.mxu0 %v1696
        %2400 = vmatpush2.msra.mxu0 %v1695
        %2401 = vmatprep.subr.mxu0 %v1694
        %2402 = vmatpush2.msra.mxu0 %v1693
        %2403 = vmatprep.subr.mxu0 %v1692
        %2404 = vmatpush2.msra.mxu0 %v1691
        %2405 = vmatprep.subr.mxu0 %v1690
        %2406 = vmatpush2.msra.mxu0 %v1689
        %2407 = vmatprep.mubr.f32.mxu0 0.0
        %2408 = vmatmul.mubr.f32.gmra.mxu0 0.0
        %v2409 = vpop.f32.mrf.mxu0
        %v2410 = vadd.f32 %v2297, %v2409
        %v2411 = vpop.f32.mrf.mxu0
        %v2412 = vadd.f32 %v2299, %v2411
        %2413 = vmatprep.mubr.f32.mxu0 0.0
        %2414 = vmatmul.mubr.f32.gmra.mxu0 0.0
        %v2415 = vpop.f32.mrf.mxu0
        %v2416 = vadd.f32 %v2303, %v2415
        %v2417 = vpop.f32.mrf.mxu0
        %v2418 = vadd.f32 %v2305, %v2417
        %2419 = vmatprep.mubr.f32.mxu0 %v1484
        %2420 = vmatmul.mubr.f32.gmra.mxu0 %v1481
        %v2421 = vpop.f32.mrf.mxu0
        %v2422 = vadd.f32 %v2309, %v2421
        %v2423 = vpop.f32.mrf.mxu0
        %v2424 = vadd.f32 %v2311, %v2423
        %2425 = vmatprep.mubr.f32.mxu0 %v1488
        %2426 = vmatmul.mubr.f32.gmra.mxu0 %v1486
        %v2427 = vpop.f32.mrf.mxu0
        %v2428 = vadd.f32 %v2315, %v2427
        %v2429 = vpop.f32.mrf.mxu0
        %v2430 = vadd.f32 %v2317, %v2429
        %2431 = vmatprep.mubr.f32.mxu0 %v1492
        %2432 = vmatmul.mubr.f32.gmra.mxu0 %v1490
        %v2433 = vpop.f32.mrf.mxu0
        %v2434 = vadd.f32 %v2321, %v2433
        %v2435 = vpop.f32.mrf.mxu0
        %v2436 = vadd.f32 %v2323, %v2435
        %2437 = vmatprep.mubr.f32.mxu0 %v1496
        %2438 = vmatmul.mubr.f32.gmra.mxu0 %v1494
        %v2439 = vpop.f32.mrf.mxu0
        %v2440 = vadd.f32 %v2327, %v2439
        %v2441 = vpop.f32.mrf.mxu0
        %v2442 = vadd.f32 %v2329, %v2441
        %2443 = vmatprep.mubr.f32.mxu0 %v1500
        %2444 = vmatmul.mubr.f32.gmra.mxu0 %v1498
        %v2445 = vpop.f32.mrf.mxu0
        %v2446 = vadd.f32 %v2333, %v2445
        %v2447 = vpop.f32.mrf.mxu0
        %v2448 = vadd.f32 %v2335, %v2447
        %2449 = vmatprep.mubr.f32.mxu0 %v1504
        %2450 = vmatmul.mubr.f32.gmra.mxu0 %v1502
        %v2451 = vpop.f32.mrf.mxu0
        %v2452 = vadd.f32 %v2339, %v2451
        %v2453 = vpop.f32.mrf.mxu0
        %v2454 = vadd.f32 %v2341, %v2453
        %2455 = vdwg.mxu0
        %2456 = vmatprep.subr.mxu0 %v1752
        %2457 = vmatpush1.msra.mxu0 %v1751
        %2458 = vmatprep.subr.mxu0 %v1750
        %2459 = vmatpush1.msra.mxu0 %v1749
        %2460 = vmatprep.subr.mxu0 %v1748
        %2461 = vmatpush1.msra.mxu0 %v1747
        %2462 = vmatprep.subr.mxu0 %v1746
        %2463 = vmatpush1.msra.mxu0 %v1745
        %2464 = vmatprep.subr.mxu0 %v1744
        %2465 = vmatpush1.msra.mxu0 %v1743
        %2466 = vmatprep.subr.mxu0 %v1742
        %2467 = vmatpush1.msra.mxu0 %v1741
        %2468 = vmatprep.subr.mxu0 %v1740
        %2469 = vmatpush1.msra.mxu0 %v1739
        %2470 = vmatprep.subr.mxu0 %v1738
        %2471 = vmatpush1.msra.mxu0 %v1737
        %2472 = vmatprep.subr.mxu0 %v1736
        %2473 = vmatpush1.msra.mxu0 %v1735
        %2474 = vmatprep.subr.mxu0 %v1734
        %2475 = vmatpush1.msra.mxu0 %v1733
        %2476 = vmatprep.subr.mxu0 %v1732
        %2477 = vmatpush1.msra.mxu0 %v1731
        %2478 = vmatprep.subr.mxu0 %v1730
        %2479 = vmatpush1.msra.mxu0 %v1729
        %2480 = vmatprep.subr.mxu0 %v1728
        %2481 = vmatpush1.msra.mxu0 %v1727
        %2482 = vmatprep.subr.mxu0 %v1726
        %2483 = vmatpush1.msra.mxu0 %v1725
        %2484 = vmatprep.subr.mxu0 %v1724
        %2485 = vmatpush1.msra.mxu0 %v1723
        %2486 = vmatprep.subr.mxu0 %v1722
        %2487 = vmatpush1.msra.mxu0 %v1721
        %2488 = vmatprep.subr.mxu0 %v1784
        %2489 = vmatpush2.msra.mxu0 %v1783
        %2490 = vmatprep.subr.mxu0 %v1782
        %2491 = vmatpush2.msra.mxu0 %v1781
        %2492 = vmatprep.subr.mxu0 %v1780
        %2493 = vmatpush2.msra.mxu0 %v1779
        %2494 = vmatprep.subr.mxu0 %v1778
        %2495 = vmatpush2.msra.mxu0 %v1777
        %2496 = vmatprep.subr.mxu0 %v1776
        %2497 = vmatpush2.msra.mxu0 %v1775
        %2498 = vmatprep.subr.mxu0 %v1774
        %2499 = vmatpush2.msra.mxu0 %v1773
        %2500 = vmatprep.subr.mxu0 %v1772
        %2501 = vmatpush2.msra.mxu0 %v1771
        %2502 = vmatprep.subr.mxu0 %v1770
        %2503 = vmatpush2.msra.mxu0 %v1769
        %2504 = vmatprep.subr.mxu0 %v1768
        %2505 = vmatpush2.msra.mxu0 %v1767
        %2506 = vmatprep.subr.mxu0 %v1766
        %2507 = vmatpush2.msra.mxu0 %v1765
        %2508 = vmatprep.subr.mxu0 %v1764
        %2509 = vmatpush2.msra.mxu0 %v1763
        %2510 = vmatprep.subr.mxu0 %v1762
        %2511 = vmatpush2.msra.mxu0 %v1761
        %2512 = vmatprep.subr.mxu0 %v1760
        %2513 = vmatpush2.msra.mxu0 %v1759
        %2514 = vmatprep.subr.mxu0 %v1758
        %2515 = vmatpush2.msra.mxu0 %v1757
        %2516 = vmatprep.subr.mxu0 %v1756
        %2517 = vmatpush2.msra.mxu0 %v1755
        %2518 = vmatprep.subr.mxu0 %v1754
        %2519 = vmatpush2.msra.mxu0 %v1753
        %2520 = vmatprep.mubr.f32.mxu0 %v1370
        %2521 = vmatmul.mubr.f32.gmra.mxu0 %v1369
        %v2522 = vpop.f32.mrf.mxu0
        %v2523 = vadd.f32 %v2410, %v2522
        %v2524 = vpop.f32.mrf.mxu0
        %v2525 = vadd.f32 %v2412, %v2524
        %2526 = vmatprep.mubr.f32.mxu0 %v1372
        %2527 = vmatmul.mubr.f32.gmra.mxu0 %v1371
        %v2528 = vpop.f32.mrf.mxu0
        %v2529 = vadd.f32 %v2416, %v2528
        %v2530 = vpop.f32.mrf.mxu0
        %v2531 = vadd.f32 %v2418, %v2530
        %2532 = vmatprep.mubr.f32.mxu0 %v1374
        %2533 = vmatmul.mubr.f32.gmra.mxu0 %v1373
        %v2534 = vpop.f32.mrf.mxu0
        %v2535 = vadd.f32 %v2422, %v2534
        %v2536 = vpop.f32.mrf.mxu0
        %v2537 = vadd.f32 %v2424, %v2536
        %2538 = vmatprep.mubr.f32.mxu0 %v1376
        %2539 = vmatmul.mubr.f32.gmra.mxu0 %v1375
        %v2540 = vpop.f32.mrf.mxu0
        %v2541 = vadd.f32 %v2428, %v2540
        %v2542 = vpop.f32.mrf.mxu0
        %v2543 = vadd.f32 %v2430, %v2542
        %2544 = vmatprep.mubr.f32.mxu0 %v1378
        %2545 = vmatmul.mubr.f32.gmra.mxu0 %v1377
        %v2546 = vpop.f32.mrf.mxu0
        %v2547 = vadd.f32 %v2434, %v2546
        %v2548 = vpop.f32.mrf.mxu0
        %v2549 = vadd.f32 %v2436, %v2548
        %2550 = vmatprep.mubr.f32.mxu0 %v1380
        %2551 = vmatmul.mubr.f32.gmra.mxu0 %v1379
        %v2552 = vpop.f32.mrf.mxu0
        %v2553 = vadd.f32 %v2440, %v2552
        %v2554 = vpop.f32.mrf.mxu0
        %v2555 = vadd.f32 %v2442, %v2554
        %2556 = vmatprep.mubr.f32.mxu0 %v1382
        %2557 = vmatmul.mubr.f32.gmra.mxu0 %v1381
        %v2558 = vpop.f32.mrf.mxu0
        %v2559 = vadd.f32 %v2446, %v2558
        %v2560 = vpop.f32.mrf.mxu0
        %v2561 = vadd.f32 %v2448, %v2560
        %2562 = vmatprep.mubr.f32.mxu0 %v1384
        %2563 = vmatmul.mubr.f32.gmra.mxu0 %v1383
        %v2564 = vpop.f32.mrf.mxu0
        %v2565 = vadd.f32 %v2452, %v2564
        %v2566 = vpop.f32.mrf.mxu0
        %v2567 = vadd.f32 %v2454, %v2566
        %2568 = vdwg.mxu0
        %2569 = vmatprep.subr.mxu0 %v1816
        %2570 = vmatpush1.msra.mxu0 %v1815
        %2571 = vmatprep.subr.mxu0 %v1814
        %2572 = vmatpush1.msra.mxu0 %v1813
        %2573 = vmatprep.subr.mxu0 %v1812
        %2574 = vmatpush1.msra.mxu0 %v1811
        %2575 = vmatprep.subr.mxu0 %v1810
        %2576 = vmatpush1.msra.mxu0 %v1809
        %2577 = vmatprep.subr.mxu0 %v1808
        %2578 = vmatpush1.msra.mxu0 %v1807
        %2579 = vmatprep.subr.mxu0 %v1806
        %2580 = vmatpush1.msra.mxu0 %v1805
        %2581 = vmatprep.subr.mxu0 %v1804
        %2582 = vmatpush1.msra.mxu0 %v1803
        %2583 = vmatprep.subr.mxu0 %v1802
        %2584 = vmatpush1.msra.mxu0 %v1801
        %2585 = vmatprep.subr.mxu0 %v1800
        %2586 = vmatpush1.msra.mxu0 %v1799
        %2587 = vmatprep.subr.mxu0 %v1798
        %2588 = vmatpush1.msra.mxu0 %v1797
        %2589 = vmatprep.subr.mxu0 %v1796
        %2590 = vmatpush1.msra.mxu0 %v1795
        %2591 = vmatprep.subr.mxu0 %v1794
        %2592 = vmatpush1.msra.mxu0 %v1793
        %2593 = vmatprep.subr.mxu0 %v1792
        %2594 = vmatpush1.msra.mxu0 %v1791
        %2595 = vmatprep.subr.mxu0 %v1790
        %2596 = vmatpush1.msra.mxu0 %v1789
        %2597 = vmatprep.subr.mxu0 %v1788
        %2598 = vmatpush1.msra.mxu0 %v1787
        %2599 = vmatprep.subr.mxu0 %v1786
        %2600 = vmatpush1.msra.mxu0 %v1785
        %2601 = vmatprep.subr.mxu0 %v1848
        %2602 = vmatpush2.msra.mxu0 %v1847
        %2603 = vmatprep.subr.mxu0 %v1846
        %2604 = vmatpush2.msra.mxu0 %v1845
        %2605 = vmatprep.subr.mxu0 %v1844
        %2606 = vmatpush2.msra.mxu0 %v1843
        %2607 = vmatprep.subr.mxu0 %v1842
        %2608 = vmatpush2.msra.mxu0 %v1841
        %2609 = vmatprep.subr.mxu0 %v1840
        %2610 = vmatpush2.msra.mxu0 %v1839
        %2611 = vmatprep.subr.mxu0 %v1838
        %2612 = vmatpush2.msra.mxu0 %v1837
        %2613 = vmatprep.subr.mxu0 %v1836
        %2614 = vmatpush2.msra.mxu0 %v1835
        %2615 = vmatprep.subr.mxu0 %v1834
        %2616 = vmatpush2.msra.mxu0 %v1833
        %2617 = vmatprep.subr.mxu0 %v1832
        %2618 = vmatpush2.msra.mxu0 %v1831
        %2619 = vmatprep.subr.mxu0 %v1830
        %2620 = vmatpush2.msra.mxu0 %v1829
        %2621 = vmatprep.subr.mxu0 %v1828
        %2622 = vmatpush2.msra.mxu0 %v1827
        %2623 = vmatprep.subr.mxu0 %v1826
        %2624 = vmatpush2.msra.mxu0 %v1825
        %2625 = vmatprep.subr.mxu0 %v1824
        %2626 = vmatpush2.msra.mxu0 %v1823
        %2627 = vmatprep.subr.mxu0 %v1822
        %2628 = vmatpush2.msra.mxu0 %v1821
        %2629 = vmatprep.subr.mxu0 %v1820
        %2630 = vmatpush2.msra.mxu0 %v1819
        %2631 = vmatprep.subr.mxu0 %v1818
        %2632 = vmatpush2.msra.mxu0 %v1817
        %2633 = vmatprep.mubr.f32.mxu0 %v1229
        %2634 = vmatmul.mubr.f32.gmra.mxu0 %v1228
        %v2635 = vpop.f32.mrf.mxu0
        %v2636 = vadd.f32 %v2523, %v2635
        %v2637 = vpop.f32.mrf.mxu0
        %v2638 = vadd.f32 %v2525, %v2637
        %2639 = vmatprep.mubr.f32.mxu0 %v1231
        %2640 = vmatmul.mubr.f32.gmra.mxu0 %v1230
        %v2641 = vpop.f32.mrf.mxu0
        %v2642 = vadd.f32 %v2529, %v2641
        %v2643 = vpop.f32.mrf.mxu0
        %v2644 = vadd.f32 %v2531, %v2643
        %2645 = vmatprep.mubr.f32.mxu0 %v1233
        %2646 = vmatmul.mubr.f32.gmra.mxu0 %v1232
        %v2647 = vpop.f32.mrf.mxu0
        %v2648 = vadd.f32 %v2535, %v2647
        %v2649 = vpop.f32.mrf.mxu0
        %v2650 = vadd.f32 %v2537, %v2649
        %2651 = vmatprep.mubr.f32.mxu0 %v1235
        %2652 = vmatmul.mubr.f32.gmra.mxu0 %v1234
        %v2653 = vpop.f32.mrf.mxu0
        %v2654 = vadd.f32 %v2541, %v2653
        %v2655 = vpop.f32.mrf.mxu0
        %v2656 = vadd.f32 %v2543, %v2655
        %2657 = vmatprep.mubr.f32.mxu0 %v1237
        %2658 = vmatmul.mubr.f32.gmra.mxu0 %v1236
        %v2659 = vpop.f32.mrf.mxu0
        %v2660 = vadd.f32 %v2547, %v2659
        %v2661 = vpop.f32.mrf.mxu0
        %v2662 = vadd.f32 %v2549, %v2661
        %2663 = vmatprep.mubr.f32.mxu0 %v1239
        %2664 = vmatmul.mubr.f32.gmra.mxu0 %v1238
        %v2665 = vpop.f32.mrf.mxu0
        %v2666 = vadd.f32 %v2553, %v2665
        %v2667 = vpop.f32.mrf.mxu0
        %v2668 = vadd.f32 %v2555, %v2667
        %2669 = vmatprep.mubr.f32.mxu0 %v1241
        %2670 = vmatmul.mubr.f32.gmra.mxu0 %v1240
        %v2671 = vpop.f32.mrf.mxu0
        %v2672 = vadd.f32 %v2559, %v2671
        %v2673 = vpop.f32.mrf.mxu0
        %v2674 = vadd.f32 %v2561, %v2673
        %2675 = vmatprep.mubr.f32.mxu0 %v1243
        %2676 = vmatmul.mubr.f32.gmra.mxu0 %v1242
        %v2677 = vpop.f32.mrf.mxu0
        %v2678 = vadd.f32 %v2565, %v2677
        %v2679 = vpop.f32.mrf.mxu0
        %v2680 = vadd.f32 %v2567, %v2679
        %2681 = vdwg.mxu0
        %2682 = vmatprep.subr.mxu0 %v1880
        %2683 = vmatpush1.msra.mxu0 %v1879
        %2684 = vmatprep.subr.mxu0 %v1878
        %2685 = vmatpush1.msra.mxu0 %v1877
        %2686 = vmatprep.subr.mxu0 %v1876
        %2687 = vmatpush1.msra.mxu0 %v1875
        %2688 = vmatprep.subr.mxu0 %v1874
        %2689 = vmatpush1.msra.mxu0 %v1873
        %2690 = vmatprep.subr.mxu0 %v1872
        %2691 = vmatpush1.msra.mxu0 %v1871
        %2692 = vmatprep.subr.mxu0 %v1870
        %2693 = vmatpush1.msra.mxu0 %v1869
        %2694 = vmatprep.subr.mxu0 %v1868
        %2695 = vmatpush1.msra.mxu0 %v1867
        %2696 = vmatprep.subr.mxu0 %v1866
        %2697 = vmatpush1.msra.mxu0 %v1865
        %2698 = vmatprep.subr.mxu0 %v1864
        %2699 = vmatpush1.msra.mxu0 %v1863
        %2700 = vmatprep.subr.mxu0 %v1862
        %2701 = vmatpush1.msra.mxu0 %v1861
        %2702 = vmatprep.subr.mxu0 %v1860
        %2703 = vmatpush1.msra.mxu0 %v1859
        %2704 = vmatprep.subr.mxu0 %v1858
        %2705 = vmatpush1.msra.mxu0 %v1857
        %2706 = vmatprep.subr.mxu0 %v1856
        %2707 = vmatpush1.msra.mxu0 %v1855
        %2708 = vmatprep.subr.mxu0 %v1854
        %2709 = vmatpush1.msra.mxu0 %v1853
        %2710 = vmatprep.subr.mxu0 %v1852
        %2711 = vmatpush1.msra.mxu0 %v1851
        %2712 = vmatprep.subr.mxu0 %v1850
        %2713 = vmatpush1.msra.mxu0 %v1849
        %2714 = vmatprep.subr.mxu0 %v1912
        %2715 = vmatpush2.msra.mxu0 %v1911
        %2716 = vmatprep.subr.mxu0 %v1910
        %2717 = vmatpush2.msra.mxu0 %v1909
        %2718 = vmatprep.subr.mxu0 %v1908
        %2719 = vmatpush2.msra.mxu0 %v1907
        %2720 = vmatprep.subr.mxu0 %v1906
        %2721 = vmatpush2.msra.mxu0 %v1905
        %2722 = vmatprep.subr.mxu0 %v1904
        %2723 = vmatpush2.msra.mxu0 %v1903
        %2724 = vmatprep.subr.mxu0 %v1902
        %2725 = vmatpush2.msra.mxu0 %v1901
        %2726 = vmatprep.subr.mxu0 %v1900
        %2727 = vmatpush2.msra.mxu0 %v1899
        %2728 = vmatprep.subr.mxu0 %v1898
        %2729 = vmatpush2.msra.mxu0 %v1897
        %2730 = vmatprep.subr.mxu0 %v1896
        %2731 = vmatpush2.msra.mxu0 %v1895
        %2732 = vmatprep.subr.mxu0 %v1894
        %2733 = vmatpush2.msra.mxu0 %v1893
        %2734 = vmatprep.subr.mxu0 %v1892
        %2735 = vmatpush2.msra.mxu0 %v1891
        %2736 = vmatprep.subr.mxu0 %v1890
        %2737 = vmatpush2.msra.mxu0 %v1889
        %2738 = vmatprep.subr.mxu0 %v1888
        %2739 = vmatpush2.msra.mxu0 %v1887
        %2740 = vmatprep.subr.mxu0 %v1886
        %2741 = vmatpush2.msra.mxu0 %v1885
        %2742 = vmatprep.subr.mxu0 %v1884
        %2743 = vmatpush2.msra.mxu0 %v1883
        %2744 = vmatprep.subr.mxu0 %v1882
        %2745 = vmatpush2.msra.mxu0 %v1881
        %2746 = vmatprep.mubr.f32.mxu0 %v1484
        %2747 = vmatmul.mubr.f32.gmra.mxu0 %v1481
        %v2748 = vpop.f32.mrf.mxu0
        %v2749 = vadd.f32 %v2636, %v2748
        %v2750 = vpop.f32.mrf.mxu0
        %v2751 = vadd.f32 %v2638, %v2750
        %2752 = vmatprep.mubr.f32.mxu0 %v1488
        %2753 = vmatmul.mubr.f32.gmra.mxu0 %v1486
        %v2754 = vpop.f32.mrf.mxu0
        %v2755 = vadd.f32 %v2642, %v2754
        %v2756 = vpop.f32.mrf.mxu0
        %v2757 = vadd.f32 %v2644, %v2756
        %2758 = vmatprep.mubr.f32.mxu0 %v1492
        %2759 = vmatmul.mubr.f32.gmra.mxu0 %v1490
        %v2760 = vpop.f32.mrf.mxu0
        %v2761 = vadd.f32 %v2648, %v2760
        %v2762 = vpop.f32.mrf.mxu0
        %v2763 = vadd.f32 %v2650, %v2762
        %2764 = vmatprep.mubr.f32.mxu0 %v1496
        %2765 = vmatmul.mubr.f32.gmra.mxu0 %v1494
        %v2766 = vpop.f32.mrf.mxu0
        %v2767 = vadd.f32 %v2654, %v2766
        %v2768 = vpop.f32.mrf.mxu0
        %v2769 = vadd.f32 %v2656, %v2768
        %2770 = vmatprep.mubr.f32.mxu0 %v1500
        %2771 = vmatmul.mubr.f32.gmra.mxu0 %v1498
        %v2772 = vpop.f32.mrf.mxu0
        %v2773 = vadd.f32 %v2660, %v2772
        %v2774 = vpop.f32.mrf.mxu0
        %v2775 = vadd.f32 %v2662, %v2774
        %2776 = vmatprep.mubr.f32.mxu0 %v1504
        %2777 = vmatmul.mubr.f32.gmra.mxu0 %v1502
        %v2778 = vpop.f32.mrf.mxu0
        %v2779 = vadd.f32 %v2666, %v2778
        %v2780 = vpop.f32.mrf.mxu0
        %v2781 = vadd.f32 %v2668, %v2780
        %2782 = vmatprep.mubr.f32.mxu0 %v1508
        %2783 = vmatmul.mubr.f32.gmra.mxu0 %v1506
        %v2784 = vpop.f32.mrf.mxu0
        %v2785 = vadd.f32 %v2672, %v2784
        %v2786 = vpop.f32.mrf.mxu0
        %v2787 = vadd.f32 %v2674, %v2786
        %2788 = vmatprep.mubr.f32.mxu0 %v1512
        %2789 = vmatmul.mubr.f32.gmra.mxu0 %v1510
        %v2790 = vpop.f32.mrf.mxu0
        %v2791 = vadd.f32 %v2678, %v2790
        %v2792 = vpop.f32.mrf.mxu0
        %v2793 = vadd.f32 %v2680, %v2792
        %2794 = vdwg.mxu0
        %2795 = vmatprep.subr.mxu0 %v1944
        %2796 = vmatpush1.msra.mxu0 %v1943
        %2797 = vmatprep.subr.mxu0 %v1942
        %2798 = vmatpush1.msra.mxu0 %v1941
        %2799 = vmatprep.subr.mxu0 %v1940
        %2800 = vmatpush1.msra.mxu0 %v1939
        %2801 = vmatprep.subr.mxu0 %v1938
        %2802 = vmatpush1.msra.mxu0 %v1937
        %2803 = vmatprep.subr.mxu0 %v1936
        %2804 = vmatpush1.msra.mxu0 %v1935
        %2805 = vmatprep.subr.mxu0 %v1934
        %2806 = vmatpush1.msra.mxu0 %v1933
        %2807 = vmatprep.subr.mxu0 %v1932
        %2808 = vmatpush1.msra.mxu0 %v1931
        %2809 = vmatprep.subr.mxu0 %v1930
        %2810 = vmatpush1.msra.mxu0 %v1929
        %2811 = vmatprep.subr.mxu0 %v1928
        %2812 = vmatpush1.msra.mxu0 %v1927
        %2813 = vmatprep.subr.mxu0 %v1926
        %2814 = vmatpush1.msra.mxu0 %v1925
        %2815 = vmatprep.subr.mxu0 %v1924
        %2816 = vmatpush1.msra.mxu0 %v1923
        %2817 = vmatprep.subr.mxu0 %v1922
        %2818 = vmatpush1.msra.mxu0 %v1921
        %2819 = vmatprep.subr.mxu0 %v1920
        %2820 = vmatpush1.msra.mxu0 %v1919
        %2821 = vmatprep.subr.mxu0 %v1918
        %2822 = vmatpush1.msra.mxu0 %v1917
        %2823 = vmatprep.subr.mxu0 %v1916
        %2824 = vmatpush1.msra.mxu0 %v1915
        %2825 = vmatprep.subr.mxu0 %v1914
        %2826 = vmatpush1.msra.mxu0 %v1913
        %2827 = vmatprep.subr.mxu0 %v1976
        %2828 = vmatpush2.msra.mxu0 %v1975
        %2829 = vmatprep.subr.mxu0 %v1974
        %2830 = vmatpush2.msra.mxu0 %v1973
        %2831 = vmatprep.subr.mxu0 %v1972
        %2832 = vmatpush2.msra.mxu0 %v1971
        %2833 = vmatprep.subr.mxu0 %v1970
        %2834 = vmatpush2.msra.mxu0 %v1969
        %2835 = vmatprep.subr.mxu0 %v1968
        %2836 = vmatpush2.msra.mxu0 %v1967
        %2837 = vmatprep.subr.mxu0 %v1966
        %2838 = vmatpush2.msra.mxu0 %v1965
        %2839 = vmatprep.subr.mxu0 %v1964
        %2840 = vmatpush2.msra.mxu0 %v1963
        %2841 = vmatprep.subr.mxu0 %v1962
        %2842 = vmatpush2.msra.mxu0 %v1961
        %2843 = vmatprep.subr.mxu0 %v1960
        %2844 = vmatpush2.msra.mxu0 %v1959
        %2845 = vmatprep.subr.mxu0 %v1958
        %2846 = vmatpush2.msra.mxu0 %v1957
        %2847 = vmatprep.subr.mxu0 %v1956
        %2848 = vmatpush2.msra.mxu0 %v1955
        %2849 = vmatprep.subr.mxu0 %v1954
        %2850 = vmatpush2.msra.mxu0 %v1953
        %2851 = vmatprep.subr.mxu0 %v1952
        %2852 = vmatpush2.msra.mxu0 %v1951
        %2853 = vmatprep.subr.mxu0 %v1950
        %2854 = vmatpush2.msra.mxu0 %v1949
        %2855 = vmatprep.subr.mxu0 %v1948
        %2856 = vmatpush2.msra.mxu0 %v1947
        %2857 = vmatprep.subr.mxu0 %v1946
        %2858 = vmatpush2.msra.mxu0 %v1945
        %2859 = vmatprep.mubr.f32.mxu0 %v1374
        %2860 = vmatmul.mubr.f32.gmra.mxu0 %v1373
        %v2861 = vpop.f32.mrf.mxu0
        %v2862 = vadd.f32 %v2749, %v2861
        %v2863 = vpop.f32.mrf.mxu0
        %v2864 = vadd.f32 %v2751, %v2863
        %2865 = vmatprep.mubr.f32.mxu0 %v1376
        %2866 = vmatmul.mubr.f32.gmra.mxu0 %v1375
        %v2867 = vpop.f32.mrf.mxu0
        %v2868 = vadd.f32 %v2755, %v2867
        %v2869 = vpop.f32.mrf.mxu0
        %v2870 = vadd.f32 %v2757, %v2869
        %2871 = vmatprep.mubr.f32.mxu0 %v1378
        %2872 = vmatmul.mubr.f32.gmra.mxu0 %v1377
        %v2873 = vpop.f32.mrf.mxu0
        %v2874 = vadd.f32 %v2761, %v2873
        %v2875 = vpop.f32.mrf.mxu0
        %v2876 = vadd.f32 %v2763, %v2875
        %2877 = vmatprep.mubr.f32.mxu0 %v1380
        %2878 = vmatmul.mubr.f32.gmra.mxu0 %v1379
        %v2879 = vpop.f32.mrf.mxu0
        %v2880 = vadd.f32 %v2767, %v2879
        %v2881 = vpop.f32.mrf.mxu0
        %v2882 = vadd.f32 %v2769, %v2881
        %2883 = vmatprep.mubr.f32.mxu0 %v1382
        %2884 = vmatmul.mubr.f32.gmra.mxu0 %v1381
        %v2885 = vpop.f32.mrf.mxu0
        %v2886 = vadd.f32 %v2773, %v2885
        %v2887 = vpop.f32.mrf.mxu0
        %v2888 = vadd.f32 %v2775, %v2887
        %2889 = vmatprep.mubr.f32.mxu0 %v1384
        %2890 = vmatmul.mubr.f32.gmra.mxu0 %v1383
        %v2891 = vpop.f32.mrf.mxu0
        %v2892 = vadd.f32 %v2779, %v2891
        %v2893 = vpop.f32.mrf.mxu0
        %v2894 = vadd.f32 %v2781, %v2893
        %2895 = vmatprep.mubr.f32.mxu0 0.0
        %2896 = vmatmul.mubr.f32.gmra.mxu0 0.0
        %v2897 = vpop.f32.mrf.mxu0
        %v2898 = vadd.f32 %v2785, %v2897
        %v2899 = vpop.f32.mrf.mxu0
        %v2900 = vadd.f32 %v2787, %v2899
        %2901 = vmatprep.mubr.f32.mxu0 0.0
        %2902 = vmatmul.mubr.f32.gmra.mxu0 0.0
        %v2903 = vpop.f32.mrf.mxu0
        %v2904 = vadd.f32 %v2791, %v2903
        %v2905 = vpop.f32.mrf.mxu0
        %v2906 = vadd.f32 %v2793, %v2905
        %2907 = vdwg.mxu0
        %2908 = vmatprep.subr.mxu0 %v2008
        %2909 = vmatpush1.msra.mxu0 %v2007
        %2910 = vmatprep.subr.mxu0 %v2006
        %2911 = vmatpush1.msra.mxu0 %v2005
        %2912 = vmatprep.subr.mxu0 %v2004
        %2913 = vmatpush1.msra.mxu0 %v2003
        %2914 = vmatprep.subr.mxu0 %v2002
        %2915 = vmatpush1.msra.mxu0 %v2001
        %2916 = vmatprep.subr.mxu0 %v2000
        %2917 = vmatpush1.msra.mxu0 %v1999
        %2918 = vmatprep.subr.mxu0 %v1998
        %2919 = vmatpush1.msra.mxu0 %v1997
        %2920 = vmatprep.subr.mxu0 %v1996
        %2921 = vmatpush1.msra.mxu0 %v1995
        %2922 = vmatprep.subr.mxu0 %v1994
        %2923 = vmatpush1.msra.mxu0 %v1993
        %2924 = vmatprep.subr.mxu0 %v1992
        %2925 = vmatpush1.msra.mxu0 %v1991
        %2926 = vmatprep.subr.mxu0 %v1990
        %2927 = vmatpush1.msra.mxu0 %v1989
        %2928 = vmatprep.subr.mxu0 %v1988
        %2929 = vmatpush1.msra.mxu0 %v1987
        %2930 = vmatprep.subr.mxu0 %v1986
        %2931 = vmatpush1.msra.mxu0 %v1985
        %2932 = vmatprep.subr.mxu0 %v1984
        %2933 = vmatpush1.msra.mxu0 %v1983
        %2934 = vmatprep.subr.mxu0 %v1982
        %2935 = vmatpush1.msra.mxu0 %v1981
        %2936 = vmatprep.subr.mxu0 %v1980
        %2937 = vmatpush1.msra.mxu0 %v1979
        %2938 = vmatprep.subr.mxu0 %v1978
        %2939 = vmatpush1.msra.mxu0 %v1977
        %2940 = vmatprep.subr.mxu0 %v2040
        %2941 = vmatpush2.msra.mxu0 %v2039
        %2942 = vmatprep.subr.mxu0 %v2038
        %2943 = vmatpush2.msra.mxu0 %v2037
        %2944 = vmatprep.subr.mxu0 %v2036
        %2945 = vmatpush2.msra.mxu0 %v2035
        %2946 = vmatprep.subr.mxu0 %v2034
        %2947 = vmatpush2.msra.mxu0 %v2033
        %2948 = vmatprep.subr.mxu0 %v2032
        %2949 = vmatpush2.msra.mxu0 %v2031
        %2950 = vmatprep.subr.mxu0 %v2030
        %2951 = vmatpush2.msra.mxu0 %v2029
        %2952 = vmatprep.subr.mxu0 %v2028
        %2953 = vmatpush2.msra.mxu0 %v2027
        %2954 = vmatprep.subr.mxu0 %v2026
        %2955 = vmatpush2.msra.mxu0 %v2025
        %2956 = vmatprep.subr.mxu0 %v2024
        %2957 = vmatpush2.msra.mxu0 %v2023
        %2958 = vmatprep.subr.mxu0 %v2022
        %2959 = vmatpush2.msra.mxu0 %v2021
        %2960 = vmatprep.subr.mxu0 %v2020
        %2961 = vmatpush2.msra.mxu0 %v2019
        %2962 = vmatprep.subr.mxu0 %v2018
        %2963 = vmatpush2.msra.mxu0 %v2017
        %2964 = vmatprep.subr.mxu0 %v2016
        %2965 = vmatpush2.msra.mxu0 %v2015
        %2966 = vmatprep.subr.mxu0 %v2014
        %2967 = vmatpush2.msra.mxu0 %v2013
        %2968 = vmatprep.subr.mxu0 %v2012
        %2969 = vmatpush2.msra.mxu0 %v2011
        %2970 = vmatprep.subr.mxu0 %v2010
        %2971 = vmatpush2.msra.mxu0 %v2009
        %2972 = vmatprep.mubr.f32.mxu0 %v1233
        %2973 = vmatmul.mubr.f32.gmra.mxu0 %v1232
        %v2974 = vpop.f32.mrf.mxu0
        %v2975 = vadd.f32 %v2862, %v2974
        %v2976 = vpop.f32.mrf.mxu0
        %v2977 = vadd.f32 %v2864, %v2976
        %2978 = vmatprep.mubr.f32.mxu0 %v1235
        %2979 = vmatmul.mubr.f32.gmra.mxu0 %v1234
        %v2980 = vpop.f32.mrf.mxu0
        %v2981 = vadd.f32 %v2868, %v2980
        %v2982 = vpop.f32.mrf.mxu0
        %v2983 = vadd.f32 %v2870, %v2982
        %2984 = vmatprep.mubr.f32.mxu0 %v1237
        %2985 = vmatmul.mubr.f32.gmra.mxu0 %v1236
        %v2986 = vpop.f32.mrf.mxu0
        %v2987 = vadd.f32 %v2874, %v2986
        %v2988 = vpop.f32.mrf.mxu0
        %v2989 = vadd.f32 %v2876, %v2988
        %2990 = vmatprep.mubr.f32.mxu0 %v1239
        %2991 = vmatmul.mubr.f32.gmra.mxu0 %v1238
        %v2992 = vpop.f32.mrf.mxu0
        %v2993 = vadd.f32 %v2880, %v2992
        %v2994 = vpop.f32.mrf.mxu0
        %v2995 = vadd.f32 %v2882, %v2994
        %2996 = vmatprep.mubr.f32.mxu0 %v1241
        %2997 = vmatmul.mubr.f32.gmra.mxu0 %v1240
        %v2998 = vpop.f32.mrf.mxu0
        %v2999 = vadd.f32 %v2886, %v2998
        %v3000 = vpop.f32.mrf.mxu0
        %v3001 = vadd.f32 %v2888, %v3000
        %3002 = vmatprep.mubr.f32.mxu0 %v1243
        %3003 = vmatmul.mubr.f32.gmra.mxu0 %v1242
        %v3004 = vpop.f32.mrf.mxu0
        %v3005 = vadd.f32 %v2892, %v3004
        %v3006 = vpop.f32.mrf.mxu0
        %v3007 = vadd.f32 %v2894, %v3006
        %3008 = vmatprep.mubr.f32.mxu0 0.0
        %3009 = vmatmul.mubr.f32.gmra.mxu0 0.0
        %v3010 = vpop.f32.mrf.mxu0
        %v3011 = vadd.f32 %v2898, %v3010
        %v3012 = vpop.f32.mrf.mxu0
        %v3013 = vadd.f32 %v2900, %v3012
        %3014 = vmatprep.mubr.f32.mxu0 0.0
        %3015 = vmatmul.mubr.f32.gmra.mxu0 0.0
        %v3016 = vpop.f32.mrf.mxu0
        %v3017 = vadd.f32 %v2904, %v3016
        %v3018 = vpop.f32.mrf.mxu0
        %v3019 = vadd.f32 %v2906, %v3018
        %3020 = vdwg.mxu0
        %3021 = vmatprep.subr.mxu0 %v2072
        %3022 = vmatpush1.msra.mxu0 %v2071
        %3023 = vmatprep.subr.mxu0 %v2070
        %3024 = vmatpush1.msra.mxu0 %v2069
        %3025 = vmatprep.subr.mxu0 %v2068
        %3026 = vmatpush1.msra.mxu0 %v2067
        %3027 = vmatprep.subr.mxu0 %v2066
        %3028 = vmatpush1.msra.mxu0 %v2065
        %3029 = vmatprep.subr.mxu0 %v2064
        %3030 = vmatpush1.msra.mxu0 %v2063
        %3031 = vmatprep.subr.mxu0 %v2062
        %3032 = vmatpush1.msra.mxu0 %v2061
        %3033 = vmatprep.subr.mxu0 %v2060
        %3034 = vmatpush1.msra.mxu0 %v2059
        %3035 = vmatprep.subr.mxu0 %v2058
        %3036 = vmatpush1.msra.mxu0 %v2057
        %3037 = vmatprep.subr.mxu0 %v2056
        %3038 = vmatpush1.msra.mxu0 %v2055
        %3039 = vmatprep.subr.mxu0 %v2054
        %3040 = vmatpush1.msra.mxu0 %v2053
        %3041 = vmatprep.subr.mxu0 %v2052
        %3042 = vmatpush1.msra.mxu0 %v2051
        %3043 = vmatprep.subr.mxu0 %v2050
        %3044 = vmatpush1.msra.mxu0 %v2049
        %3045 = vmatprep.subr.mxu0 %v2048
        %3046 = vmatpush1.msra.mxu0 %v2047
        %3047 = vmatprep.subr.mxu0 %v2046
        %3048 = vmatpush1.msra.mxu0 %v2045
        %3049 = vmatprep.subr.mxu0 %v2044
        %3050 = vmatpush1.msra.mxu0 %v2043
        %3051 = vmatprep.subr.mxu0 %v2042
        %3052 = vmatpush1.msra.mxu0 %v2041
        %3053 = vmatprep.subr.mxu0 %v2104
        %3054 = vmatpush2.msra.mxu0 %v2103
        %3055 = vmatprep.subr.mxu0 %v2102
        %3056 = vmatpush2.msra.mxu0 %v2101
        %3057 = vmatprep.subr.mxu0 %v2100
        %3058 = vmatpush2.msra.mxu0 %v2099
        %3059 = vmatprep.subr.mxu0 %v2098
        %3060 = vmatpush2.msra.mxu0 %v2097
        %3061 = vmatprep.subr.mxu0 %v2096
        %3062 = vmatpush2.msra.mxu0 %v2095
        %3063 = vmatprep.subr.mxu0 %v2094
        %3064 = vmatpush2.msra.mxu0 %v2093
        %3065 = vmatprep.subr.mxu0 %v2092
        %3066 = vmatpush2.msra.mxu0 %v2091
        %3067 = vmatprep.subr.mxu0 %v2090
        %3068 = vmatpush2.msra.mxu0 %v2089
        %3069 = vmatprep.subr.mxu0 %v2088
        %3070 = vmatpush2.msra.mxu0 %v2087
        %3071 = vmatprep.subr.mxu0 %v2086
        %3072 = vmatpush2.msra.mxu0 %v2085
        %3073 = vmatprep.subr.mxu0 %v2084
        %3074 = vmatpush2.msra.mxu0 %v2083
        %3075 = vmatprep.subr.mxu0 %v2082
        %3076 = vmatpush2.msra.mxu0 %v2081
        %3077 = vmatprep.subr.mxu0 %v2080
        %3078 = vmatpush2.msra.mxu0 %v2079
        %3079 = vmatprep.subr.mxu0 %v2078
        %3080 = vmatpush2.msra.mxu0 %v2077
        %3081 = vmatprep.subr.mxu0 %v2076
        %3082 = vmatpush2.msra.mxu0 %v2075
        %3083 = vmatprep.subr.mxu0 %v2074
        %3084 = vmatpush2.msra.mxu0 %v2073
        %3085 = vmatprep.mubr.f32.mxu0 %v1492
        %3086 = vmatmul.mubr.f32.gmra.mxu0 %v1490
        %v3087 = vpop.f32.mrf.mxu0
        %v3088 = vadd.f32 %v2975, %v3087
        %v3089 = vpop.f32.mrf.mxu0
        %v3090 = vadd.f32 %v2977, %v3089
        %3091 = vmatprep.mubr.f32.mxu0 %v1496
        %3092 = vmatmul.mubr.f32.gmra.mxu0 %v1494
        %v3093 = vpop.f32.mrf.mxu0
        %v3094 = vadd.f32 %v2981, %v3093
        %v3095 = vpop.f32.mrf.mxu0
        %v3096 = vadd.f32 %v2983, %v3095
        %3097 = vmatprep.mubr.f32.mxu0 %v1500
        %3098 = vmatmul.mubr.f32.gmra.mxu0 %v1498
        %v3099 = vpop.f32.mrf.mxu0
        %v3100 = vadd.f32 %v2987, %v3099
        %v3101 = vpop.f32.mrf.mxu0
        %v3102 = vadd.f32 %v2989, %v3101
        %3103 = vmatprep.mubr.f32.mxu0 %v1504
        %3104 = vmatmul.mubr.f32.gmra.mxu0 %v1502
        %v3105 = vpop.f32.mrf.mxu0
        %v3106 = vadd.f32 %v2993, %v3105
        %v3107 = vpop.f32.mrf.mxu0
        %v3108 = vadd.f32 %v2995, %v3107
        %3109 = vmatprep.mubr.f32.mxu0 %v1508
        %3110 = vmatmul.mubr.f32.gmra.mxu0 %v1506
        %v3111 = vpop.f32.mrf.mxu0
        %v3112 = vadd.f32 %v2999, %v3111
        %v3113 = vpop.f32.mrf.mxu0
        %v3114 = vadd.f32 %v3001, %v3113
        %3115 = vmatprep.mubr.f32.mxu0 %v1512
        %3116 = vmatmul.mubr.f32.gmra.mxu0 %v1510
        %v3117 = vpop.f32.mrf.mxu0
        %v3118 = vadd.f32 %v3005, %v3117
        %v3119 = vpop.f32.mrf.mxu0
        %v3120 = vadd.f32 %v3007, %v3119
        %3121 = vmatprep.mubr.f32.mxu0 0.0
        %3122 = vmatmul.mubr.f32.gmra.mxu0 0.0
        %v3123 = vpop.f32.mrf.mxu0
        %v3124 = vadd.f32 %v3011, %v3123
        %v3125 = vpop.f32.mrf.mxu0
        %v3126 = vadd.f32 %v3013, %v3125
        %3127 = vmatprep.mubr.f32.mxu0 0.0
        %3128 = vmatmul.mubr.f32.gmra.mxu0 0.0
        %v3129 = vpop.f32.mrf.mxu0
        %v3130 = vadd.f32 %v3017, %v3129
        %v3131 = vpop.f32.mrf.mxu0
        %v3132 = vadd.f32 %v3019, %v3131
        %3133 = vdwg.mxu0
        %v3134 = vadd.f32 %v3088, %v3094
        %v3135 = vadd.f32 %v3134, %v3100
        %v3136 = vadd.f32 %v3135, %v3106
        %v3137 = vadd.f32 %v3136, %v3112
        %v3138 = vadd.f32 %v3137, %v3118
        %v3139 = vadd.f32 %v3138, %v3124
        %v3140 = vadd.f32 %v3139, %v3130
        %v3141 = vrot.slane %v3140, 4
        %v3142 = vadd.f32 %v3140, %v3141
        %v3143 = vrot.slane %v3142, 2
        %v3144 = vadd.f32 %v3142, %v3143
        %v3145 = vrot.slane %v3144, 1
        %v3146 = vadd.f32 %v3144, %v3145
        %v3147 = vadd.f32 %v3090, %v3096
        %v3148 = vadd.f32 %v3147, %v3102
        %v3149 = vadd.f32 %v3148, %v3108
        %v3150 = vadd.f32 %v3149, %v3114
        %v3151 = vadd.f32 %v3150, %v3120
        %v3152 = vadd.f32 %v3151, %v3126
        %v3153 = vadd.f32 %v3152, %v3132
        %v3154 = vrot.slane %v3153, 4
        %v3155 = vadd.f32 %v3153, %v3154
        %v3156 = vrot.slane %v3155, 2
        %v3157 = vadd.f32 %v3155, %v3156
        %v3158 = vrot.slane %v3157, 1
        %v3159 = vadd.f32 %v3157, %v3158
        %v3160 = vld [vmem:[#allocation13] sm:$0xff]
        %v3161 = vld [vmem:[#allocation13 + $0x8] sm:$0xff]
        %v3162 = vld [vmem:[#allocation13 + $0x10] sm:$0xff]
        %v3163 = vld [vmem:[#allocation13 + $0x18] sm:$0xff]
        %v3164 = vld [vmem:[#allocation13 + $0x20] sm:$0xff]
        %v3165 = vld [vmem:[#allocation13 + $0x28] sm:$0xff]
        %v3166 = vld [vmem:[#allocation13 + $0x30] sm:$0xff]
        %v3167 = vld [vmem:[#allocation13 + $0x38] sm:$0xff]
        %v3168 = vld [vmem:[#allocation13 + $0x40] sm:$0xff]
        %v3169 = vld [vmem:[#allocation13 + $0x48] sm:$0xff]
        %v3170 = vld [vmem:[#allocation13 + $0x50] sm:$0xff]
        %v3171 = vld [vmem:[#allocation13 + $0x58] sm:$0xff]
        %v3172 = vld [vmem:[#allocation13 + $0x60] sm:$0xff]
        %v3173 = vld [vmem:[#allocation13 + $0x68] sm:$0xff]
        %v3174 = vld [vmem:[#allocation13 + $0x70] sm:$0xff]
        %v3175 = vld [vmem:[#allocation13 + $0x78] sm:$0xff]
        %v3176 = vld [vmem:[#allocation13 + $0x80] sm:$0xff]
        %v3177 = vld [vmem:[#allocation13 + $0x88] sm:$0xff]
        %v3178 = vld [vmem:[#allocation13 + $0x90] sm:$0xff]
        %v3179 = vld [vmem:[#allocation13 + $0x98] sm:$0xff]
        %v3180 = vld [vmem:[#allocation13 + $0xa0] sm:$0xff]
        %v3181 = vld [vmem:[#allocation13 + $0xa8] sm:$0xff]
        %v3182 = vld [vmem:[#allocation13 + $0xb0] sm:$0xff]
        %v3183 = vld [vmem:[#allocation13 + $0xb8] sm:$0xff]
        %v3184 = vld [vmem:[#allocation13 + $0xc0] sm:$0xff]
        %v3185 = vld [vmem:[#allocation13 + $0xc8] sm:$0xff]
        %v3186 = vld [vmem:[#allocation13 + $0xd0] sm:$0xff]
        %v3187 = vld [vmem:[#allocation13 + $0xd8] sm:$0xff]
        %v3188 = vld [vmem:[#allocation13 + $0xe0] sm:$0xff]
        %v3189 = vld [vmem:[#allocation13 + $0xe8] sm:$0xff]
        %v3190 = vld [vmem:[#allocation13 + $0xf0] sm:$0xff]
        %v3191 = vld [vmem:[#allocation13 + $0xf8] sm:$0xff]
        %v3192 = vld [vmem:[#allocation13 + $0x100] sm:$0xff]
        %v3193 = vld [vmem:[#allocation13 + $0x108] sm:$0xff]
        %v3194 = vld [vmem:[#allocation13 + $0x110] sm:$0xff]
        %v3195 = vld [vmem:[#allocation13 + $0x118] sm:$0xff]
        %v3196 = vld [vmem:[#allocation13 + $0x120] sm:$0xff]
        %v3197 = vld [vmem:[#allocation13 + $0x128] sm:$0xff]
        %v3198 = vld [vmem:[#allocation13 + $0x130] sm:$0xff]
        %v3199 = vld [vmem:[#allocation13 + $0x138] sm:$0xff]
        %v3200 = vld [vmem:[#allocation13 + $0x140] sm:$0xff]
        %v3201 = vld [vmem:[#allocation13 + $0x148] sm:$0xff]
        %v3202 = vld [vmem:[#allocation13 + $0x150] sm:$0xff]
        %v3203 = vld [vmem:[#allocation13 + $0x158] sm:$0xff]
        %v3204 = vld [vmem:[#allocation13 + $0x160] sm:$0xff]
        %v3205 = vld [vmem:[#allocation13 + $0x168] sm:$0xff]
        %v3206 = vld [vmem:[#allocation13 + $0x170] sm:$0xff]
        %v3207 = vld [vmem:[#allocation13 + $0x178] sm:$0xff]
        %v3208 = vld [vmem:[#allocation13 + $0x180] sm:$0xff]
        %v3209 = vld [vmem:[#allocation13 + $0x188] sm:$0xff]
        %v3210 = vld [vmem:[#allocation13 + $0x190] sm:$0xff]
        %v3211 = vld [vmem:[#allocation13 + $0x198] sm:$0xff]
        %v3212 = vld [vmem:[#allocation13 + $0x1a0] sm:$0xff]
        %v3213 = vld [vmem:[#allocation13 + $0x1a8] sm:$0xff]
        %v3214 = vld [vmem:[#allocation13 + $0x1b0] sm:$0xff]
        %v3215 = vld [vmem:[#allocation13 + $0x1b8] sm:$0xff]
        %v3216 = vld [vmem:[#allocation13 + $0x1c0] sm:$0xff]
        %v3217 = vld [vmem:[#allocation13 + $0x1c8] sm:$0xff]
        %v3218 = vld [vmem:[#allocation13 + $0x1d0] sm:$0xff]
        %v3219 = vld [vmem:[#allocation13 + $0x1d8] sm:$0xff]
        %v3220 = vld [vmem:[#allocation13 + $0x1e0] sm:$0xff]
        %v3221 = vld [vmem:[#allocation13 + $0x1e8] sm:$0xff]
        %v3222 = vld [vmem:[#allocation13 + $0x1f0] sm:$0xff]
        %v3223 = vld [vmem:[#allocation13 + $0x1f8] sm:$0xff]
        %3224 = vmatprep.subr.mxu0 %v3191
        %3225 = vmatpush1.msra.mxu0 %v3190
        %3226 = vmatprep.subr.mxu0 %v3189
        %3227 = vmatpush1.msra.mxu0 %v3188
        %3228 = vmatprep.subr.mxu0 %v3187
        %3229 = vmatpush1.msra.mxu0 %v3186
        %3230 = vmatprep.subr.mxu0 %v3185
        %3231 = vmatpush1.msra.mxu0 %v3184
        %3232 = vmatprep.subr.mxu0 %v3183
        %3233 = vmatpush1.msra.mxu0 %v3182
        %3234 = vmatprep.subr.mxu0 %v3181
        %3235 = vmatpush1.msra.mxu0 %v3180
        %3236 = vmatprep.subr.mxu0 %v3179
        %3237 = vmatpush1.msra.mxu0 %v3178
        %3238 = vmatprep.subr.mxu0 %v3177
        %3239 = vmatpush1.msra.mxu0 %v3176
        %3240 = vmatprep.subr.mxu0 %v3175
        %3241 = vmatpush1.msra.mxu0 %v3174
        %3242 = vmatprep.subr.mxu0 %v3173
        %3243 = vmatpush1.msra.mxu0 %v3172
        %3244 = vmatprep.subr.mxu0 %v3171
        %3245 = vmatpush1.msra.mxu0 %v3170
        %3246 = vmatprep.subr.mxu0 %v3169
        %3247 = vmatpush1.msra.mxu0 %v3168
        %3248 = vmatprep.subr.mxu0 %v3167
        %3249 = vmatpush1.msra.mxu0 %v3166
        %3250 = vmatprep.subr.mxu0 %v3165
        %3251 = vmatpush1.msra.mxu0 %v3164
        %3252 = vmatprep.subr.mxu0 %v3163
        %3253 = vmatpush1.msra.mxu0 %v3162
        %3254 = vmatprep.subr.mxu0 %v3161
        %3255 = vmatpush1.msra.mxu0 %v3160
        %3256 = vmatprep.subr.mxu0 %v3223
        %3257 = vmatpush2.msra.mxu0 %v3222
        %3258 = vmatprep.subr.mxu0 %v3221
        %3259 = vmatpush2.msra.mxu0 %v3220
        %3260 = vmatprep.subr.mxu0 %v3219
        %3261 = vmatpush2.msra.mxu0 %v3218
        %3262 = vmatprep.subr.mxu0 %v3217
        %3263 = vmatpush2.msra.mxu0 %v3216
        %3264 = vmatprep.subr.mxu0 %v3215
        %3265 = vmatpush2.msra.mxu0 %v3214
        %3266 = vmatprep.subr.mxu0 %v3213
        %3267 = vmatpush2.msra.mxu0 %v3212
        %3268 = vmatprep.subr.mxu0 %v3211
        %3269 = vmatpush2.msra.mxu0 %v3210
        %3270 = vmatprep.subr.mxu0 %v3209
        %3271 = vmatpush2.msra.mxu0 %v3208
        %3272 = vmatprep.subr.mxu0 %v3207
        %3273 = vmatpush2.msra.mxu0 %v3206
        %3274 = vmatprep.subr.mxu0 %v3205
        %3275 = vmatpush2.msra.mxu0 %v3204
        %3276 = vmatprep.subr.mxu0 %v3203
        %3277 = vmatpush2.msra.mxu0 %v3202
        %3278 = vmatprep.subr.mxu0 %v3201
        %3279 = vmatpush2.msra.mxu0 %v3200
        %3280 = vmatprep.subr.mxu0 %v3199
        %3281 = vmatpush2.msra.mxu0 %v3198
        %3282 = vmatprep.subr.mxu0 %v3197
        %3283 = vmatpush2.msra.mxu0 %v3196
        %3284 = vmatprep.subr.mxu0 %v3195
        %3285 = vmatpush2.msra.mxu0 %v3194
        %3286 = vmatprep.subr.mxu0 %v3193
        %3287 = vmatpush2.msra.mxu0 %v3192
        %3288 = vmatprep.mubr.f32.mxu0 %v3159
        %3289 = vmatmul.mubr.f32.gmra.mxu0 %v3146
        %v3290 = vpop.f32.mrf.mxu0
        %v3291 = vadd.f32 0.0, %v3290
        %v3292 = vpop.f32.mrf.mxu0
        %v3293 = vadd.f32 0.0, %v3292
        %3294 = vdwg.mxu0
        %v3295 = vmul.f32 %v3291, 0.0009765625
        %v3296 = vmul.f32 %v3293, 0.0009765625
        %v3297 = vlaneseq
        %v3298 = vshrl.u32 %v3297, 7
        %v3299 = vsub.s32 0, %v3298
        %v3300 = vrot.slane %v3295, %v3299
        %v3301 = vlaneseq
        %v3302 = vshrl.u32 %v3301, 7
        %v3303 = vsub.s32 0, %v3302
        %v3304 = vrot.slane %v3296, %v3303
        %v3305 = vsub.f32 %v3088, %v3300
        %v3306 = vsub.f32 %v3090, %v3304
        %v3307 = vsub.f32 %v3094, %v3300
        %v3308 = vsub.f32 %v3096, %v3304
        %v3309 = vsub.f32 %v3100, %v3300
        %v3310 = vsub.f32 %v3102, %v3304
        %v3311 = vsub.f32 %v3106, %v3300
        %v3312 = vsub.f32 %v3108, %v3304
        %v3313 = vsub.f32 %v3112, %v3300
        %v3314 = vsub.f32 %v3114, %v3304
        %v3315 = vsub.f32 %v3118, %v3300
        %v3316 = vsub.f32 %v3120, %v3304
        %v3317 = vsub.f32 %v3124, %v3300
        %v3318 = vsub.f32 %v3126, %v3304
        %v3319 = vsub.f32 %v3130, %v3300
        %v3320 = vsub.f32 %v3132, %v3304
        %v3321 = vmul.f32 %v3305, %v3305
        %v3322 = vmul.f32 %v3306, %v3306
        %v3323 = vmul.f32 %v3307, %v3307
        %v3324 = vmul.f32 %v3308, %v3308
        %v3325 = vmul.f32 %v3309, %v3309
        %v3326 = vmul.f32 %v3310, %v3310
        %v3327 = vmul.f32 %v3311, %v3311
        %v3328 = vmul.f32 %v3312, %v3312
        %v3329 = vmul.f32 %v3313, %v3313
        %v3330 = vmul.f32 %v3314, %v3314
        %v3331 = vmul.f32 %v3315, %v3315
        %v3332 = vmul.f32 %v3316, %v3316
        %v3333 = vmul.f32 %v3317, %v3317
        %v3334 = vmul.f32 %v3318, %v3318
        %v3335 = vmul.f32 %v3319, %v3319
        %v3336 = vmul.f32 %v3320, %v3320
        %v3337 = vadd.f32 %v3321, %v3323
        %v3338 = vadd.f32 %v3337, %v3325
        %v3339 = vadd.f32 %v3338, %v3327
        %v3340 = vadd.f32 %v3339, %v3329
        %v3341 = vadd.f32 %v3340, %v3331
        %v3342 = vadd.f32 %v3341, %v3333
        %v3343 = vadd.f32 %v3342, %v3335
        %v3344 = vrot.slane %v3343, 4
        %v3345 = vadd.f32 %v3343, %v3344
        %v3346 = vrot.slane %v3345, 2
        %v3347 = vadd.f32 %v3345, %v3346
        %v3348 = vrot.slane %v3347, 1
        %v3349 = vadd.f32 %v3347, %v3348
        %v3350 = vadd.f32 %v3322, %v3324
        %v3351 = vadd.f32 %v3350, %v3326
        %v3352 = vadd.f32 %v3351, %v3328
        %v3353 = vadd.f32 %v3352, %v3330
        %v3354 = vadd.f32 %v3353, %v3332
        %v3355 = vadd.f32 %v3354, %v3334
        %v3356 = vadd.f32 %v3355, %v3336
        %v3357 = vrot.slane %v3356, 4
        %v3358 = vadd.f32 %v3356, %v3357
        %v3359 = vrot.slane %v3358, 2
        %v3360 = vadd.f32 %v3358, %v3359
        %v3361 = vrot.slane %v3360, 1
        %v3362 = vadd.f32 %v3360, %v3361
        %3363 = vmatprep.subr.mxu0 %v3191
        %3364 = vmatpush1.msra.mxu0 %v3190
        %3365 = vmatprep.subr.mxu0 %v3189
        %3366 = vmatpush1.msra.mxu0 %v3188
        %3367 = vmatprep.subr.mxu0 %v3187
        %3368 = vmatpush1.msra.mxu0 %v3186
        %3369 = vmatprep.subr.mxu0 %v3185
        %3370 = vmatpush1.msra.mxu0 %v3184
        %3371 = vmatprep.subr.mxu0 %v3183
        %3372 = vmatpush1.msra.mxu0 %v3182
        %3373 = vmatprep.subr.mxu0 %v3181
        %3374 = vmatpush1.msra.mxu0 %v3180
        %3375 = vmatprep.subr.mxu0 %v3179
        %3376 = vmatpush1.msra.mxu0 %v3178
        %3377 = vmatprep.subr.mxu0 %v3177
        %3378 = vmatpush1.msra.mxu0 %v3176
        %3379 = vmatprep.subr.mxu0 %v3175
        %3380 = vmatpush1.msra.mxu0 %v3174
        %3381 = vmatprep.subr.mxu0 %v3173
        %3382 = vmatpush1.msra.mxu0 %v3172
        %3383 = vmatprep.subr.mxu0 %v3171
        %3384 = vmatpush1.msra.mxu0 %v3170
        %3385 = vmatprep.subr.mxu0 %v3169
        %3386 = vmatpush1.msra.mxu0 %v3168
        %3387 = vmatprep.subr.mxu0 %v3167
        %3388 = vmatpush1.msra.mxu0 %v3166
        %3389 = vmatprep.subr.mxu0 %v3165
        %3390 = vmatpush1.msra.mxu0 %v3164
        %3391 = vmatprep.subr.mxu0 %v3163
        %3392 = vmatpush1.msra.mxu0 %v3162
        %3393 = vmatprep.subr.mxu0 %v3161
        %3394 = vmatpush1.msra.mxu0 %v3160
        %3395 = vmatprep.subr.mxu0 %v3223
        %3396 = vmatpush2.msra.mxu0 %v3222
        %3397 = vmatprep.subr.mxu0 %v3221
        %3398 = vmatpush2.msra.mxu0 %v3220
        %3399 = vmatprep.subr.mxu0 %v3219
        %3400 = vmatpush2.msra.mxu0 %v3218
        %3401 = vmatprep.subr.mxu0 %v3217
        %3402 = vmatpush2.msra.mxu0 %v3216
        %3403 = vmatprep.subr.mxu0 %v3215
        %3404 = vmatpush2.msra.mxu0 %v3214
        %3405 = vmatprep.subr.mxu0 %v3213
        %3406 = vmatpush2.msra.mxu0 %v3212
        %3407 = vmatprep.subr.mxu0 %v3211
        %3408 = vmatpush2.msra.mxu0 %v3210
        %3409 = vmatprep.subr.mxu0 %v3209
        %3410 = vmatpush2.msra.mxu0 %v3208
        %3411 = vmatprep.subr.mxu0 %v3207
        %3412 = vmatpush2.msra.mxu0 %v3206
        %3413 = vmatprep.subr.mxu0 %v3205
        %3414 = vmatpush2.msra.mxu0 %v3204
        %3415 = vmatprep.subr.mxu0 %v3203
        %3416 = vmatpush2.msra.mxu0 %v3202
        %3417 = vmatprep.subr.mxu0 %v3201
        %3418 = vmatpush2.msra.mxu0 %v3200
        %3419 = vmatprep.subr.mxu0 %v3199
        %3420 = vmatpush2.msra.mxu0 %v3198
        %3421 = vmatprep.subr.mxu0 %v3197
        %3422 = vmatpush2.msra.mxu0 %v3196
        %3423 = vmatprep.subr.mxu0 %v3195
        %3424 = vmatpush2.msra.mxu0 %v3194
        %3425 = vmatprep.subr.mxu0 %v3193
        %3426 = vmatpush2.msra.mxu0 %v3192
        %3427 = vmatprep.mubr.f32.mxu0 %v3362
        %3428 = vmatmul.mubr.f32.gmra.mxu0 %v3349
        %v3429 = vpop.f32.mrf.mxu0
        %v3430 = vadd.f32 0.0, %v3429
        %v3431 = vpop.f32.mrf.mxu0
        %v3432 = vadd.f32 0.0, %v3431
        %3433 = vdwg.mxu0
        %v3434 = vmul.f32 %v3430, 0.0009765625
        %v3435 = vmul.f32 %v3432, 0.0009765625
        %v3436 = vadd.f32 %v3434, 1e-05
        %v3437 = vadd.f32 %v3435, 1e-05
        %v3438 = vrsqrt.pop %v3436
        %v3439 = vrsqrt.pop %v3437
        %v3440 = vlaneseq
        %v3441 = vshrl.u32 %v3440, 7
        %v3442 = vsub.s32 0, %v3441
        %v3443 = vrot.slane %v3438, %v3442
        %v3444 = vlaneseq
        %v3445 = vshrl.u32 %v3444, 7
        %v3446 = vsub.s32 0, %v3445
        %v3447 = vrot.slane %v3439, %v3446
        %v3448 = vmul.f32 %v3305, %v3443
        %v3449 = vmul.f32 %v3306, %v3447
        %v3450 = vmul.f32 %v3307, %v3443
        %v3451 = vmul.f32 %v3308, %v3447
        %v3452 = vmul.f32 %v3309, %v3443
        %v3453 = vmul.f32 %v3310, %v3447
        %v3454 = vmul.f32 %v3311, %v3443
        %v3455 = vmul.f32 %v3312, %v3447
        %v3456 = vmul.f32 %v3313, %v3443
        %v3457 = vmul.f32 %v3314, %v3447
        %v3458 = vmul.f32 %v3315, %v3443
        %v3459 = vmul.f32 %v3316, %v3447
        %v3460 = vmul.f32 %v3317, %v3443
        %v3461 = vmul.f32 %v3318, %v3447
        %v3462 = vmul.f32 %v3319, %v3443
        %v3463 = vmul.f32 %v3320, %v3447
        %v3464 = vmul.f32 %v3448, 0.70710677
        %v3465 = vmul.f32 %v3449, 0.70710677
        %v3466 = vmul.f32 %v3450, 0.70710677
        %v3467 = vmul.f32 %v3451, 0.70710677
        %v3468 = vmul.f32 %v3452, 0.70710677
        %v3469 = vmul.f32 %v3453, 0.70710677
        %v3470 = vmul.f32 %v3454, 0.70710677
        %v3471 = vmul.f32 %v3455, 0.70710677
        %v3472 = vmul.f32 %v3456, 0.70710677
        %v3473 = vmul.f32 %v3457, 0.70710677
        %v3474 = vmul.f32 %v3458, 0.70710677
        %v3475 = vmul.f32 %v3459, 0.70710677
        %v3476 = vmul.f32 %v3460, 0.70710677
        %v3477 = vmul.f32 %v3461, 0.70710677
        %v3478 = vmul.f32 %v3462, 0.70710677
        %v3479 = vmul.f32 %v3463, 0.70710677
        %v3480 = vand.u32 2147483647, %v3464
        %v3481 = vand.u32 2147483647, %v3465
        %v3482 = vand.u32 2147483647, %v3466
        %v3483 = vand.u32 2147483647, %v3467
        %v3484 = vand.u32 2147483647, %v3468
        %v3485 = vand.u32 2147483647, %v3469
        %v3486 = vand.u32 2147483647, %v3470
        %v3487 = vand.u32 2147483647, %v3471
        %v3488 = vand.u32 2147483647, %v3472
        %v3489 = vand.u32 2147483647, %v3473
        %v3490 = vand.u32 2147483647, %v3474
        %v3491 = vand.u32 2147483647, %v3475
        %v3492 = vand.u32 2147483647, %v3476
        %v3493 = vand.u32 2147483647, %v3477
        %v3494 = vand.u32 2147483647, %v3478
        %v3495 = vand.u32 2147483647, %v3479
        %v3496 = vmul.f32 %v3480, 0.3275911
        %v3497 = vmul.f32 %v3481, 0.3275911
        %v3498 = vmul.f32 %v3482, 0.3275911
        %v3499 = vmul.f32 %v3483, 0.3275911
        %v3500 = vmul.f32 %v3484, 0.3275911
        %v3501 = vmul.f32 %v3485, 0.3275911
        %v3502 = vmul.f32 %v3486, 0.3275911
        %v3503 = vmul.f32 %v3487, 0.3275911
        %v3504 = vmul.f32 %v3488, 0.3275911
        %v3505 = vmul.f32 %v3489, 0.3275911
        %v3506 = vmul.f32 %v3490, 0.3275911
        %v3507 = vmul.f32 %v3491, 0.3275911
        %v3508 = vmul.f32 %v3492, 0.3275911
        %v3509 = vmul.f32 %v3493, 0.3275911
        %v3510 = vmul.f32 %v3494, 0.3275911
        %v3511 = vmul.f32 %v3495, 0.3275911
        %v3512 = vadd.f32 %v3496, 1.0
        %v3513 = vadd.f32 %v3497, 1.0
        %v3514 = vadd.f32 %v3498, 1.0
        %v3515 = vadd.f32 %v3499, 1.0
        %v3516 = vadd.f32 %v3500, 1.0
        %v3517 = vadd.f32 %v3501, 1.0
        %v3518 = vadd.f32 %v3502, 1.0
        %v3519 = vadd.f32 %v3503, 1.0
        %v3520 = vadd.f32 %v3504, 1.0
        %v3521 = vadd.f32 %v3505, 1.0
        %v3522 = vadd.f32 %v3506, 1.0
        %v3523 = vadd.f32 %v3507, 1.0
        %v3524 = vadd.f32 %v3508, 1.0
        %v3525 = vadd.f32 %v3509, 1.0
        %v3526 = vadd.f32 %v3510, 1.0
        %v3527 = vadd.f32 %v3511, 1.0
        %v3528 = vrcp.pop %v3512
        %v3529 = vmul.f32 1.0, %v3528
        %v3530 = vrcp.pop %v3513
        %v3531 = vmul.f32 1.0, %v3530
        %v3532 = vrcp.pop %v3514
        %v3533 = vmul.f32 1.0, %v3532
        %v3534 = vrcp.pop %v3515
        %v3535 = vmul.f32 1.0, %v3534
        %v3536 = vrcp.pop %v3516
        %v3537 = vmul.f32 1.0, %v3536
        %v3538 = vrcp.pop %v3517
        %v3539 = vmul.f32 1.0, %v3538
        %v3540 = vrcp.pop %v3518
        %v3541 = vmul.f32 1.0, %v3540
        %v3542 = vrcp.pop %v3519
        %v3543 = vmul.f32 1.0, %v3542
        %v3544 = vrcp.pop %v3520
        %v3545 = vmul.f32 1.0, %v3544
        %v3546 = vrcp.pop %v3521
        %v3547 = vmul.f32 1.0, %v3546
        %v3548 = vrcp.pop %v3522
        %v3549 = vmul.f32 1.0, %v3548
        %v3550 = vrcp.pop %v3523
        %v3551 = vmul.f32 1.0, %v3550
        %v3552 = vrcp.pop %v3524
        %v3553 = vmul.f32 1.0, %v3552
        %v3554 = vrcp.pop %v3525
        %v3555 = vmul.f32 1.0, %v3554
        %v3556 = vrcp.pop %v3526
        %v3557 = vmul.f32 1.0, %v3556
        %v3558 = vrcp.pop %v3527
        %v3559 = vmul.f32 1.0, %v3558
        %v3560 = vmul.f32 %v3529, 1.0614054
        %v3561 = vmul.f32 %v3531, 1.0614054
        %v3562 = vmul.f32 %v3533, 1.0614054
        %v3563 = vmul.f32 %v3535, 1.0614054
        %v3564 = vmul.f32 %v3537, 1.0614054
        %v3565 = vmul.f32 %v3539, 1.0614054
        %v3566 = vmul.f32 %v3541, 1.0614054
        %v3567 = vmul.f32 %v3543, 1.0614054
        %v3568 = vmul.f32 %v3545, 1.0614054
        %v3569 = vmul.f32 %v3547, 1.0614054
        %v3570 = vmul.f32 %v3549, 1.0614054
        %v3571 = vmul.f32 %v3551, 1.0614054
        %v3572 = vmul.f32 %v3553, 1.0614054
        %v3573 = vmul.f32 %v3555, 1.0614054
        %v3574 = vmul.f32 %v3557, 1.0614054
        %v3575 = vmul.f32 %v3559, 1.0614054
        %v3576 = vadd.f32 %v3560, -1.4531521
        %v3577 = vadd.f32 %v3561, -1.4531521
        %v3578 = vadd.f32 %v3562, -1.4531521
        %v3579 = vadd.f32 %v3563, -1.4531521
        %v3580 = vadd.f32 %v3564, -1.4531521
        %v3581 = vadd.f32 %v3565, -1.4531521
        %v3582 = vadd.f32 %v3566, -1.4531521
        %v3583 = vadd.f32 %v3567, -1.4531521
        %v3584 = vadd.f32 %v3568, -1.4531521
        %v3585 = vadd.f32 %v3569, -1.4531521
        %v3586 = vadd.f32 %v3570, -1.4531521
        %v3587 = vadd.f32 %v3571, -1.4531521
        %v3588 = vadd.f32 %v3572, -1.4531521
        %v3589 = vadd.f32 %v3573, -1.4531521
        %v3590 = vadd.f32 %v3574, -1.4531521
        %v3591 = vadd.f32 %v3575, -1.4531521
        %v3592 = vmul.f32 %v3529, %v3576
        %v3593 = vmul.f32 %v3531, %v3577
        %v3594 = vmul.f32 %v3533, %v3578
        %v3595 = vmul.f32 %v3535, %v3579
        %v3596 = vmul.f32 %v3537, %v3580
        %v3597 = vmul.f32 %v3539, %v3581
        %v3598 = vmul.f32 %v3541, %v3582
        %v3599 = vmul.f32 %v3543, %v3583
        %v3600 = vmul.f32 %v3545, %v3584
        %v3601 = vmul.f32 %v3547, %v3585
        %v3602 = vmul.f32 %v3549, %v3586
        %v3603 = vmul.f32 %v3551, %v3587
        %v3604 = vmul.f32 %v3553, %v3588
        %v3605 = vmul.f32 %v3555, %v3589
        %v3606 = vmul.f32 %v3557, %v3590
        %v3607 = vmul.f32 %v3559, %v3591
        %v3608 = vadd.f32 %v3592, 1.4214138
        %v3609 = vadd.f32 %v3593, 1.4214138
        %v3610 = vadd.f32 %v3594, 1.4214138
        %v3611 = vadd.f32 %v3595, 1.4214138
        %v3612 = vadd.f32 %v3596, 1.4214138
        %v3613 = vadd.f32 %v3597, 1.4214138
        %v3614 = vadd.f32 %v3598, 1.4214138
        %v3615 = vadd.f32 %v3599, 1.4214138
        %v3616 = vadd.f32 %v3600, 1.4214138
        %v3617 = vadd.f32 %v3601, 1.4214138
        %v3618 = vadd.f32 %v3602, 1.4214138
        %v3619 = vadd.f32 %v3603, 1.4214138
        %v3620 = vadd.f32 %v3604, 1.4214138
        %v3621 = vadd.f32 %v3605, 1.4214138
        %v3622 = vadd.f32 %v3606, 1.4214138
        %v3623 = vadd.f32 %v3607, 1.4214138
        %v3624 = vmul.f32 %v3529, %v3608
        %v3625 = vmul.f32 %v3531, %v3609
        %v3626 = vmul.f32 %v3533, %v3610
        %v3627 = vmul.f32 %v3535, %v3611
        %v3628 = vmul.f32 %v3537, %v3612
        %v3629 = vmul.f32 %v3539, %v3613
        %v3630 = vmul.f32 %v3541, %v3614
        %v3631 = vmul.f32 %v3543, %v3615
        %v3632 = vmul.f32 %v3545, %v3616
        %v3633 = vmul.f32 %v3547, %v3617
        %v3634 = vmul.f32 %v3549, %v3618
        %v3635 = vmul.f32 %v3551, %v3619
        %v3636 = vmul.f32 %v3553, %v3620
        %v3637 = vmul.f32 %v3555, %v3621
        %v3638 = vmul.f32 %v3557, %v3622
        %v3639 = vmul.f32 %v3559, %v3623
        %v3640 = vadd.f32 %v3624, -0.28449672
        %v3641 = vadd.f32 %v3625, -0.28449672
        %v3642 = vadd.f32 %v3626, -0.28449672
        %v3643 = vadd.f32 %v3627, -0.28449672
        %v3644 = vadd.f32 %v3628, -0.28449672
        %v3645 = vadd.f32 %v3629, -0.28449672
        %v3646 = vadd.f32 %v3630, -0.28449672
        %v3647 = vadd.f32 %v3631, -0.28449672
        %v3648 = vadd.f32 %v3632, -0.28449672
        %v3649 = vadd.f32 %v3633, -0.28449672
        %v3650 = vadd.f32 %v3634, -0.28449672
        %v3651 = vadd.f32 %v3635, -0.28449672
        %v3652 = vadd.f32 %v3636, -0.28449672
        %v3653 = vadd.f32 %v3637, -0.28449672
        %v3654 = vadd.f32 %v3638, -0.28449672
        %v3655 = vadd.f32 %v3639, -0.28449672
        %v3656 = vmul.f32 %v3529, %v3640
        %v3657 = vmul.f32 %v3531, %v3641
        %v3658 = vmul.f32 %v3533, %v3642
        %v3659 = vmul.f32 %v3535, %v3643
        %v3660 = vmul.f32 %v3537, %v3644
        %v3661 = vmul.f32 %v3539, %v3645
        %v3662 = vmul.f32 %v3541, %v3646
        %v3663 = vmul.f32 %v3543, %v3647
        %v3664 = vmul.f32 %v3545, %v3648
        %v3665 = vmul.f32 %v3547, %v3649
        %v3666 = vmul.f32 %v3549, %v3650
        %v3667 = vmul.f32 %v3551, %v3651
        %v3668 = vmul.f32 %v3553, %v3652
        %v3669 = vmul.f32 %v3555, %v3653
        %v3670 = vmul.f32 %v3557, %v3654
        %v3671 = vmul.f32 %v3559, %v3655
        %v3672 = vadd.f32 %v3656, 0.2548296
        %v3673 = vadd.f32 %v3657, 0.2548296
        %v3674 = vadd.f32 %v3658, 0.2548296
        %v3675 = vadd.f32 %v3659, 0.2548296
        %v3676 = vadd.f32 %v3660, 0.2548296
        %v3677 = vadd.f32 %v3661, 0.2548296
        %v3678 = vadd.f32 %v3662, 0.2548296
        %v3679 = vadd.f32 %v3663, 0.2548296
        %v3680 = vadd.f32 %v3664, 0.2548296
        %v3681 = vadd.f32 %v3665, 0.2548296
        %v3682 = vadd.f32 %v3666, 0.2548296
        %v3683 = vadd.f32 %v3667, 0.2548296
        %v3684 = vadd.f32 %v3668, 0.2548296
        %v3685 = vadd.f32 %v3669, 0.2548296
        %v3686 = vadd.f32 %v3670, 0.2548296
        %v3687 = vadd.f32 %v3671, 0.2548296
        %v3688 = vmul.f32 %v3529, %v3672
        %v3689 = vmul.f32 %v3531, %v3673
        %v3690 = vmul.f32 %v3533, %v3674
        %v3691 = vmul.f32 %v3535, %v3675
        %v3692 = vmul.f32 %v3537, %v3676
        %v3693 = vmul.f32 %v3539, %v3677
        %v3694 = vmul.f32 %v3541, %v3678
        %v3695 = vmul.f32 %v3543, %v3679
        %v3696 = vmul.f32 %v3545, %v3680
        %v3697 = vmul.f32 %v3547, %v3681
        %v3698 = vmul.f32 %v3549, %v3682
        %v3699 = vmul.f32 %v3551, %v3683
        %v3700 = vmul.f32 %v3553, %v3684
        %v3701 = vmul.f32 %v3555, %v3685
        %v3702 = vmul.f32 %v3557, %v3686
        %v3703 = vmul.f32 %v3559, %v3687
        %v3704 = vsub.f32 0.0, %v3480
        %v3705 = vsub.f32 0.0, %v3481
        %v3706 = vsub.f32 0.0, %v3482
        %v3707 = vsub.f32 0.0, %v3483
        %v3708 = vsub.f32 0.0, %v3484
        %v3709 = vsub.f32 0.0, %v3485
        %v3710 = vsub.f32 0.0, %v3486
        %v3711 = vsub.f32 0.0, %v3487
        %v3712 = vsub.f32 0.0, %v3488
        %v3713 = vsub.f32 0.0, %v3489
        %v3714 = vsub.f32 0.0, %v3490
        %v3715 = vsub.f32 0.0, %v3491
        %v3716 = vsub.f32 0.0, %v3492
        %v3717 = vsub.f32 0.0, %v3493
        %v3718 = vsub.f32 0.0, %v3494
        %v3719 = vsub.f32 0.0, %v3495
        %v3720 = vmul.f32 %v3704, %v3480
        %v3721 = vmul.f32 %v3705, %v3481
        %v3722 = vmul.f32 %v3706, %v3482
        %v3723 = vmul.f32 %v3707, %v3483
        %v3724 = vmul.f32 %v3708, %v3484
        %v3725 = vmul.f32 %v3709, %v3485
        %v3726 = vmul.f32 %v3710, %v3486
        %v3727 = vmul.f32 %v3711, %v3487
        %v3728 = vmul.f32 %v3712, %v3488
        %v3729 = vmul.f32 %v3713, %v3489
        %v3730 = vmul.f32 %v3714, %v3490
        %v3731 = vmul.f32 %v3715, %v3491
        %v3732 = vmul.f32 %v3716, %v3492
        %v3733 = vmul.f32 %v3717, %v3493
        %v3734 = vmul.f32 %v3718, %v3494
        %v3735 = vmul.f32 %v3719, %v3495
        %v3736 = vmul.f32 %v3720, 1.442695
        %v3737 = vpow.pop %v3736
        %v3738 = vmul.f32 %v3721, 1.442695
        %v3739 = vpow.pop %v3738
        %v3740 = vmul.f32 %v3722, 1.442695
        %v3741 = vpow.pop %v3740
        %v3742 = vmul.f32 %v3723, 1.442695
        %v3743 = vpow.pop %v3742
        %v3744 = vmul.f32 %v3724, 1.442695
        %v3745 = vpow.pop %v3744
        %v3746 = vmul.f32 %v3725, 1.442695
        %v3747 = vpow.pop %v3746
        %v3748 = vmul.f32 %v3726, 1.442695
        %v3749 = vpow.pop %v3748
        %v3750 = vmul.f32 %v3727, 1.442695
        %v3751 = vpow.pop %v3750
        %v3752 = vmul.f32 %v3728, 1.442695
        %v3753 = vpow.pop %v3752
        %v3754 = vmul.f32 %v3729, 1.442695
        %v3755 = vpow.pop %v3754
        %v3756 = vmul.f32 %v3730, 1.442695
        %v3757 = vpow.pop %v3756
        %v3758 = vmul.f32 %v3731, 1.442695
        %v3759 = vpow.pop %v3758
        %v3760 = vmul.f32 %v3732, 1.442695
        %v3761 = vpow.pop %v3760
        %v3762 = vmul.f32 %v3733, 1.442695
        %v3763 = vpow.pop %v3762
        %v3764 = vmul.f32 %v3734, 1.442695
        %v3765 = vpow.pop %v3764
        %v3766 = vmul.f32 %v3735, 1.442695
        %v3767 = vpow.pop %v3766
        %v3768 = vmul.f32 %v3688, %v3737
        %v3769 = vmul.f32 %v3689, %v3739
        %v3770 = vmul.f32 %v3690, %v3741
        %v3771 = vmul.f32 %v3691, %v3743
        %v3772 = vmul.f32 %v3692, %v3745
        %v3773 = vmul.f32 %v3693, %v3747
        %v3774 = vmul.f32 %v3694, %v3749
        %v3775 = vmul.f32 %v3695, %v3751
        %v3776 = vmul.f32 %v3696, %v3753
        %v3777 = vmul.f32 %v3697, %v3755
        %v3778 = vmul.f32 %v3698, %v3757
        %v3779 = vmul.f32 %v3699, %v3759
        %v3780 = vmul.f32 %v3700, %v3761
        %v3781 = vmul.f32 %v3701, %v3763
        %v3782 = vmul.f32 %v3702, %v3765
        %v3783 = vmul.f32 %v3703, %v3767
        %v3784 = vsub.f32 1.0, %v3768
        %v3785 = vsub.f32 1.0, %v3769
        %v3786 = vsub.f32 1.0, %v3770
        %v3787 = vsub.f32 1.0, %v3771
        %v3788 = vsub.f32 1.0, %v3772
        %v3789 = vsub.f32 1.0, %v3773
        %v3790 = vsub.f32 1.0, %v3774
        %v3791 = vsub.f32 1.0, %v3775
        %v3792 = vsub.f32 1.0, %v3776
        %v3793 = vsub.f32 1.0, %v3777
        %v3794 = vsub.f32 1.0, %v3778
        %v3795 = vsub.f32 1.0, %v3779
        %v3796 = vsub.f32 1.0, %v3780
        %v3797 = vsub.f32 1.0, %v3781
        %v3798 = vsub.f32 1.0, %v3782
        %v3799 = vsub.f32 1.0, %v3783
        %vm3800 = vcmp.ge.f32.partialorder %v3464, 0.0
        %vm3801 = vcmp.ge.f32.partialorder %v3465, 0.0
        %vm3802 = vcmp.ge.f32.partialorder %v3466, 0.0
        %vm3803 = vcmp.ge.f32.partialorder %v3467, 0.0
        %vm3804 = vcmp.ge.f32.partialorder %v3468, 0.0
        %vm3805 = vcmp.ge.f32.partialorder %v3469, 0.0
        %vm3806 = vcmp.ge.f32.partialorder %v3470, 0.0
        %vm3807 = vcmp.ge.f32.partialorder %v3471, 0.0
        %vm3808 = vcmp.ge.f32.partialorder %v3472, 0.0
        %vm3809 = vcmp.ge.f32.partialorder %v3473, 0.0
        %vm3810 = vcmp.ge.f32.partialorder %v3474, 0.0
        %vm3811 = vcmp.ge.f32.partialorder %v3475, 0.0
        %vm3812 = vcmp.ge.f32.partialorder %v3476, 0.0
        %vm3813 = vcmp.ge.f32.partialorder %v3477, 0.0
        %vm3814 = vcmp.ge.f32.partialorder %v3478, 0.0
        %vm3815 = vcmp.ge.f32.partialorder %v3479, 0.0
        %v3816 = vsub.f32 0.0, %v3784
        %v3817 = vsub.f32 0.0, %v3785
        %v3818 = vsub.f32 0.0, %v3786
        %v3819 = vsub.f32 0.0, %v3787
        %v3820 = vsub.f32 0.0, %v3788
        %v3821 = vsub.f32 0.0, %v3789
        %v3822 = vsub.f32 0.0, %v3790
        %v3823 = vsub.f32 0.0, %v3791
        %v3824 = vsub.f32 0.0, %v3792
        %v3825 = vsub.f32 0.0, %v3793
        %v3826 = vsub.f32 0.0, %v3794
        %v3827 = vsub.f32 0.0, %v3795
        %v3828 = vsub.f32 0.0, %v3796
        %v3829 = vsub.f32 0.0, %v3797
        %v3830 = vsub.f32 0.0, %v3798
        %v3831 = vsub.f32 0.0, %v3799
        %v3832 = vsel %vm3800, %v3784, %v3816
        %v3833 = vsel %vm3801, %v3785, %v3817
        %v3834 = vsel %vm3802, %v3786, %v3818
        %v3835 = vsel %vm3803, %v3787, %v3819
        %v3836 = vsel %vm3804, %v3788, %v3820
        %v3837 = vsel %vm3805, %v3789, %v3821
        %v3838 = vsel %vm3806, %v3790, %v3822
        %v3839 = vsel %vm3807, %v3791, %v3823
        %v3840 = vsel %vm3808, %v3792, %v3824
        %v3841 = vsel %vm3809, %v3793, %v3825
        %v3842 = vsel %vm3810, %v3794, %v3826
        %v3843 = vsel %vm3811, %v3795, %v3827
        %v3844 = vsel %vm3812, %v3796, %v3828
        %v3845 = vsel %vm3813, %v3797, %v3829
        %v3846 = vsel %vm3814, %v3798, %v3830
        %v3847 = vsel %vm3815, %v3799, %v3831
        %v3848 = vmul.f32 %v3448, 0.5
        %v3849 = vmul.f32 %v3449, 0.5
        %v3850 = vmul.f32 %v3450, 0.5
        %v3851 = vmul.f32 %v3451, 0.5
        %v3852 = vmul.f32 %v3452, 0.5
        %v3853 = vmul.f32 %v3453, 0.5
        %v3854 = vmul.f32 %v3454, 0.5
        %v3855 = vmul.f32 %v3455, 0.5
        %v3856 = vmul.f32 %v3456, 0.5
        %v3857 = vmul.f32 %v3457, 0.5
        %v3858 = vmul.f32 %v3458, 0.5
        %v3859 = vmul.f32 %v3459, 0.5
        %v3860 = vmul.f32 %v3460, 0.5
        %v3861 = vmul.f32 %v3461, 0.5
        %v3862 = vmul.f32 %v3462, 0.5
        %v3863 = vmul.f32 %v3463, 0.5
        %v3864 = vadd.f32 %v3832, 1.0
        %v3865 = vadd.f32 %v3833, 1.0
        %v3866 = vadd.f32 %v3834, 1.0
        %v3867 = vadd.f32 %v3835, 1.0
        %v3868 = vadd.f32 %v3836, 1.0
        %v3869 = vadd.f32 %v3837, 1.0
        %v3870 = vadd.f32 %v3838, 1.0
        %v3871 = vadd.f32 %v3839, 1.0
        %v3872 = vadd.f32 %v3840, 1.0
        %v3873 = vadd.f32 %v3841, 1.0
        %v3874 = vadd.f32 %v3842, 1.0
        %v3875 = vadd.f32 %v3843, 1.0
        %v3876 = vadd.f32 %v3844, 1.0
        %v3877 = vadd.f32 %v3845, 1.0
        %v3878 = vadd.f32 %v3846, 1.0
        %v3879 = vadd.f32 %v3847, 1.0
        %v3880 = vmul.f32 %v3848, %v3864
        %v3881 = vmul.f32 %v3849, %v3865
        %v3882 = vmul.f32 %v3850, %v3866
        %v3883 = vmul.f32 %v3851, %v3867
        %v3884 = vmul.f32 %v3852, %v3868
        %v3885 = vmul.f32 %v3853, %v3869
        %v3886 = vmul.f32 %v3854, %v3870
        %v3887 = vmul.f32 %v3855, %v3871
        %v3888 = vmul.f32 %v3856, %v3872
        %v3889 = vmul.f32 %v3857, %v3873
        %v3890 = vmul.f32 %v3858, %v3874
        %v3891 = vmul.f32 %v3859, %v3875
        %v3892 = vmul.f32 %v3860, %v3876
        %v3893 = vmul.f32 %v3861, %v3877
        %v3894 = vmul.f32 %v3862, %v3878
        %v3895 = vmul.f32 %v3863, %v3879
        %v3912 = vrot.slane %v3880, 7
        %v3913 = vrot.slane %v3881, 7
        %v3914 = vrot.slane %v3882, 7
        %v3915 = vsel %vm1276, %v3912, %v3914
        %v3916 = vrot.slane %v3883, 7
        %v3917 = vsel %vm1276, %v3913, %v3916
        %v3918 = vrot.slane %v3884, 7
        %v3919 = vsel %vm1276, %v3914, %v3918
        %v3920 = vrot.slane %v3885, 7
        %v3921 = vsel %vm1276, %v3916, %v3920
        %v3922 = vrot.slane %v3886, 7
        %v3923 = vsel %vm1276, %v3918, %v3922
        %v3924 = vrot.slane %v3887, 7
        %v3925 = vsel %vm1276, %v3920, %v3924
        %v3926 = vrot.slane %v3888, 7
        %v3927 = vsel %vm1276, %v3922, %v3926
        %v3928 = vrot.slane %v3889, 7
        %v3929 = vsel %vm1276, %v3924, %v3928
        %v3930 = vrot.slane %v3890, 7
        %v3931 = vsel %vm1276, %v3926, %v3930
        %v3932 = vrot.slane %v3891, 7
        %v3933 = vsel %vm1276, %v3928, %v3932
        %v3934 = vrot.slane %v3892, 7
        %v3935 = vsel %vm1276, %v3930, %v3934
        %v3936 = vrot.slane %v3893, 7
        %v3937 = vsel %vm1276, %v3932, %v3936
        %v3938 = vrot.slane %v3894, 7
        %v3939 = vsel %vm1276, %v3934, %v3938
        %v3940 = vrot.slane %v3895, 7
        %v3941 = vsel %vm1276, %v3936, %v3940
        %v3960 = vsel %vm1276, 0.0, %v3912
        %v3961 = vsel %vm1276, 0.0, %v3913
        %v3962 = vsel %vm1276, %v3938, 0.0
        %v3963 = vsel %vm1276, %v3940, 0.0
        %v3964 = vmul.f32 %v3960, %v1332
        %v3965 = vmul.f32 %v3961, %v1332
        %v3966 = vmul.f32 %v3915, %v1337
        %v3967 = vmul.f32 %v3917, %v1337
        %v3968 = vmul.f32 %v3919, %v1342
        %v3969 = vmul.f32 %v3921, %v1342
        %v3970 = vmul.f32 %v3923, %v1347
        %v3971 = vmul.f32 %v3925, %v1347
        %v3972 = vmul.f32 %v3927, %v1352
        %v3973 = vmul.f32 %v3929, %v1352
        %v3974 = vmul.f32 %v3931, %v1357
        %v3975 = vmul.f32 %v3933, %v1357
        %v3976 = vmul.f32 %v3935, %v1362
        %v3977 = vmul.f32 %v3937, %v1362
        %v3978 = vmul.f32 %v3939, %v1367
        %v3979 = vmul.f32 %v3941, %v1367
        %v3980 = vmul.f32 %v3960, %v1418
        %v3981 = vmul.f32 %v3961, %v1418
        %v3982 = vmul.f32 %v3915, %v1420
        %v3983 = vmul.f32 %v3917, %v1420
        %v3984 = vmul.f32 %v3919, %v1422
        %v3985 = vmul.f32 %v3921, %v1422
        %v3986 = vmul.f32 %v3923, %v1424
        %v3987 = vmul.f32 %v3925, %v1424
        %v3988 = vmul.f32 %v3927, %v1426
        %v3989 = vmul.f32 %v3929, %v1426
        %v3990 = vmul.f32 %v3931, %v1428
        %v3991 = vmul.f32 %v3933, %v1428
        %v3992 = vmul.f32 %v3935, %v1430
        %v3993 = vmul.f32 %v3937, %v1430
        %v3994 = vmul.f32 %v3939, %v1432
        %v3995 = vmul.f32 %v3941, %v1432
        %v3996 = vmul.f32 %v3962, %v1431
        %v3997 = vmul.f32 %v3963, %v1431
        %v4016 = vrot.slane %v3980, 2
        %v4017 = vrot.slane %v3982, 2
        %v4018 = vsel %vm1478, %v4016, %v4017
        %v4019 = vrot.slane %v3981, 2
        %v4020 = vrot.slane %v3983, 2
        %v4021 = vsel %vm1478, %v4019, %v4020
        %v4022 = vrot.slane %v3984, 2
        %v4023 = vsel %vm1478, %v4017, %v4022
        %v4024 = vrot.slane %v3985, 2
        %v4025 = vsel %vm1478, %v4020, %v4024
        %v4026 = vrot.slane %v3986, 2
        %v4027 = vsel %vm1478, %v4022, %v4026
        %v4028 = vrot.slane %v3987, 2
        %v4029 = vsel %vm1478, %v4024, %v4028
        %v4030 = vrot.slane %v3988, 2
        %v4031 = vsel %vm1478, %v4026, %v4030
        %v4032 = vrot.slane %v3989, 2
        %v4033 = vsel %vm1478, %v4028, %v4032
        %v4034 = vrot.slane %v3990, 2
        %v4035 = vsel %vm1478, %v4030, %v4034
        %v4036 = vrot.slane %v3991, 2
        %v4037 = vsel %vm1478, %v4032, %v4036
        %v4038 = vrot.slane %v3992, 2
        %v4039 = vsel %vm1478, %v4034, %v4038
        %v4040 = vrot.slane %v3993, 2
        %v4041 = vsel %vm1478, %v4036, %v4040
        %v4042 = vrot.slane %v3994, 2
        %v4043 = vsel %vm1478, %v4038, %v4042
        %v4044 = vrot.slane %v3995, 2
        %v4045 = vsel %vm1478, %v4040, %v4044
        %v4046 = vrot.slane %v3996, 2
        %v4047 = vsel %vm1478, %v4042, %v4046
        %v4048 = vrot.slane %v3997, 2
        %v4049 = vsel %vm1478, %v4044, %v4048
        %v4066 = vld [vmem:[#allocation14] sm:$0xff]
        %v4067 = vld [vmem:[#allocation14 + $0x8] sm:$0xff]
        %v4068 = vld [vmem:[#allocation14 + $0x10] sm:$0xff]
        %v4069 = vld [vmem:[#allocation14 + $0x18] sm:$0xff]
        %v4070 = vld [vmem:[#allocation14 + $0x20] sm:$0xff]
        %v4071 = vld [vmem:[#allocation14 + $0x28] sm:$0xff]
        %v4072 = vld [vmem:[#allocation14 + $0x30] sm:$0xff]
        %v4073 = vld [vmem:[#allocation14 + $0x38] sm:$0xff]
        %v4074 = vld [vmem:[#allocation14 + $0x40] sm:$0xff]
        %v4075 = vld [vmem:[#allocation14 + $0x48] sm:$0xff]
        %v4076 = vld [vmem:[#allocation14 + $0x50] sm:$0xff]
        %v4077 = vld [vmem:[#allocation14 + $0x58] sm:$0xff]
        %v4078 = vld [vmem:[#allocation14 + $0x60] sm:$0xff]
        %v4079 = vld [vmem:[#allocation14 + $0x68] sm:$0xff]
        %v4080 = vld [vmem:[#allocation14 + $0x70] sm:$0xff]
        %v4081 = vld [vmem:[#allocation14 + $0x78] sm:$0xff]
        %v4082 = vld [vmem:[#allocation14 + $0x80] sm:$0xff]
        %v4083 = vld [vmem:[#allocation14 + $0x88] sm:$0xff]
        %v4084 = vld [vmem:[#allocation14 + $0x90] sm:$0xff]
        %v4085 = vld [vmem:[#allocation14 + $0x98] sm:$0xff]
        %v4086 = vld [vmem:[#allocation14 + $0xa0] sm:$0xff]
        %v4087 = vld [vmem:[#allocation14 + $0xa8] sm:$0xff]
        %v4088 = vld [vmem:[#allocation14 + $0xb0] sm:$0xff]
        %v4089 = vld [vmem:[#allocation14 + $0xb8] sm:$0xff]
        %v4090 = vld [vmem:[#allocation14 + $0xc0] sm:$0xff]
        %v4091 = vld [vmem:[#allocation14 + $0xc8] sm:$0xff]
        %v4092 = vld [vmem:[#allocation14 + $0xd0] sm:$0xff]
        %v4093 = vld [vmem:[#allocation14 + $0xd8] sm:$0xff]
        %v4094 = vld [vmem:[#allocation14 + $0xe0] sm:$0xff]
        %v4095 = vld [vmem:[#allocation14 + $0xe8] sm:$0xff]
        %v4096 = vld [vmem:[#allocation14 + $0xf0] sm:$0xff]
        %v4097 = vld [vmem:[#allocation14 + $0xf8] sm:$0xff]
        %v4098 = vld [vmem:[#allocation14 + $0x100] sm:$0xff]
        %v4099 = vld [vmem:[#allocation14 + $0x108] sm:$0xff]
        %v4100 = vld [vmem:[#allocation14 + $0x110] sm:$0xff]
        %v4101 = vld [vmem:[#allocation14 + $0x118] sm:$0xff]
        %v4102 = vld [vmem:[#allocation14 + $0x120] sm:$0xff]
        %v4103 = vld [vmem:[#allocation14 + $0x128] sm:$0xff]
        %v4104 = vld [vmem:[#allocation14 + $0x130] sm:$0xff]
        %v4105 = vld [vmem:[#allocation14 + $0x138] sm:$0xff]
        %v4106 = vld [vmem:[#allocation14 + $0x140] sm:$0xff]
        %v4107 = vld [vmem:[#allocation14 + $0x148] sm:$0xff]
        %v4108 = vld [vmem:[#allocation14 + $0x150] sm:$0xff]
        %v4109 = vld [vmem:[#allocation14 + $0x158] sm:$0xff]
        %v4110 = vld [vmem:[#allocation14 + $0x160] sm:$0xff]
        %v4111 = vld [vmem:[#allocation14 + $0x168] sm:$0xff]
        %v4112 = vld [vmem:[#allocation14 + $0x170] sm:$0xff]
        %v4113 = vld [vmem:[#allocation14 + $0x178] sm:$0xff]
        %v4114 = vld [vmem:[#allocation14 + $0x180] sm:$0xff]
        %v4115 = vld [vmem:[#allocation14 + $0x188] sm:$0xff]
        %v4116 = vld [vmem:[#allocation14 + $0x190] sm:$0xff]
        %v4117 = vld [vmem:[#allocation14 + $0x198] sm:$0xff]
        %v4118 = vld [vmem:[#allocation14 + $0x1a0] sm:$0xff]
        %v4119 = vld [vmem:[#allocation14 + $0x1a8] sm:$0xff]
        %v4120 = vld [vmem:[#allocation14 + $0x1b0] sm:$0xff]
        %v4121 = vld [vmem:[#allocation14 + $0x1b8] sm:$0xff]
        %v4122 = vld [vmem:[#allocation14 + $0x1c0] sm:$0xff]
        %v4123 = vld [vmem:[#allocation14 + $0x1c8] sm:$0xff]
        %v4124 = vld [vmem:[#allocation14 + $0x1d0] sm:$0xff]
        %v4125 = vld [vmem:[#allocation14 + $0x1d8] sm:$0xff]
        %v4126 = vld [vmem:[#allocation14 + $0x1e0] sm:$0xff]
        %v4127 = vld [vmem:[#allocation14 + $0x1e8] sm:$0xff]
        %v4128 = vld [vmem:[#allocation14 + $0x1f0] sm:$0xff]
        %v4129 = vld [vmem:[#allocation14 + $0x1f8] sm:$0xff]
        %v4130 = vld [vmem:[#allocation14 + $0x200] sm:$0xff]
        %v4131 = vld [vmem:[#allocation14 + $0x208] sm:$0xff]
        %v4132 = vld [vmem:[#allocation14 + $0x210] sm:$0xff]
        %v4133 = vld [vmem:[#allocation14 + $0x218] sm:$0xff]
        %v4134 = vld [vmem:[#allocation14 + $0x220] sm:$0xff]
        %v4135 = vld [vmem:[#allocation14 + $0x228] sm:$0xff]
        %v4136 = vld [vmem:[#allocation14 + $0x230] sm:$0xff]
        %v4137 = vld [vmem:[#allocation14 + $0x238] sm:$0xff]
        %v4138 = vld [vmem:[#allocation14 + $0x240] sm:$0xff]
        %v4139 = vld [vmem:[#allocation14 + $0x248] sm:$0xff]
        %v4140 = vld [vmem:[#allocation14 + $0x250] sm:$0xff]
        %v4141 = vld [vmem:[#allocation14 + $0x258] sm:$0xff]
        %v4142 = vld [vmem:[#allocation14 + $0x260] sm:$0xff]
        %v4143 = vld [vmem:[#allocation14 + $0x268] sm:$0xff]
        %v4144 = vld [vmem:[#allocation14 + $0x270] sm:$0xff]
        %v4145 = vld [vmem:[#allocation14 + $0x278] sm:$0xff]
        %v4146 = vld [vmem:[#allocation14 + $0x280] sm:$0xff]
        %v4147 = vld [vmem:[#allocation14 + $0x288] sm:$0xff]
        %v4148 = vld [vmem:[#allocation14 + $0x290] sm:$0xff]
        %v4149 = vld [vmem:[#allocation14 + $0x298] sm:$0xff]
        %v4150 = vld [vmem:[#allocation14 + $0x2a0] sm:$0xff]
        %v4151 = vld [vmem:[#allocation14 + $0x2a8] sm:$0xff]
        %v4152 = vld [vmem:[#allocation14 + $0x2b0] sm:$0xff]
        %v4153 = vld [vmem:[#allocation14 + $0x2b8] sm:$0xff]
        %v4154 = vld [vmem:[#allocation14 + $0x2c0] sm:$0xff]
        %v4155 = vld [vmem:[#allocation14 + $0x2c8] sm:$0xff]
        %v4156 = vld [vmem:[#allocation14 + $0x2d0] sm:$0xff]
        %v4157 = vld [vmem:[#allocation14 + $0x2d8] sm:$0xff]
        %v4158 = vld [vmem:[#allocation14 + $0x2e0] sm:$0xff]
        %v4159 = vld [vmem:[#allocation14 + $0x2e8] sm:$0xff]
        %v4160 = vld [vmem:[#allocation14 + $0x2f0] sm:$0xff]
        %v4161 = vld [vmem:[#allocation14 + $0x2f8] sm:$0xff]
        %v4162 = vld [vmem:[#allocation14 + $0x300] sm:$0xff]
        %v4163 = vld [vmem:[#allocation14 + $0x308] sm:$0xff]
        %v4164 = vld [vmem:[#allocation14 + $0x310] sm:$0xff]
        %v4165 = vld [vmem:[#allocation14 + $0x318] sm:$0xff]
        %v4166 = vld [vmem:[#allocation14 + $0x320] sm:$0xff]
        %v4167 = vld [vmem:[#allocation14 + $0x328] sm:$0xff]
        %v4168 = vld [vmem:[#allocation14 + $0x330] sm:$0xff]
        %v4169 = vld [vmem:[#allocation14 + $0x338] sm:$0xff]
        %v4170 = vld [vmem:[#allocation14 + $0x340] sm:$0xff]
        %v4171 = vld [vmem:[#allocation14 + $0x348] sm:$0xff]
        %v4172 = vld [vmem:[#allocation14 + $0x350] sm:$0xff]
        %v4173 = vld [vmem:[#allocation14 + $0x358] sm:$0xff]
        %v4174 = vld [vmem:[#allocation14 + $0x360] sm:$0xff]
        %v4175 = vld [vmem:[#allocation14 + $0x368] sm:$0xff]
        %v4176 = vld [vmem:[#allocation14 + $0x370] sm:$0xff]
        %v4177 = vld [vmem:[#allocation14 + $0x378] sm:$0xff]
        %v4178 = vld [vmem:[#allocation14 + $0x380] sm:$0xff]
        %v4179 = vld [vmem:[#allocation14 + $0x388] sm:$0xff]
        %v4180 = vld [vmem:[#allocation14 + $0x390] sm:$0xff]
        %v4181 = vld [vmem:[#allocation14 + $0x398] sm:$0xff]
        %v4182 = vld [vmem:[#allocation14 + $0x3a0] sm:$0xff]
        %v4183 = vld [vmem:[#allocation14 + $0x3a8] sm:$0xff]
        %v4184 = vld [vmem:[#allocation14 + $0x3b0] sm:$0xff]
        %v4185 = vld [vmem:[#allocation14 + $0x3b8] sm:$0xff]
        %v4186 = vld [vmem:[#allocation14 + $0x3c0] sm:$0xff]
        %v4187 = vld [vmem:[#allocation14 + $0x3c8] sm:$0xff]
        %v4188 = vld [vmem:[#allocation14 + $0x3d0] sm:$0xff]
        %v4189 = vld [vmem:[#allocation14 + $0x3d8] sm:$0xff]
        %v4190 = vld [vmem:[#allocation14 + $0x3e0] sm:$0xff]
        %v4191 = vld [vmem:[#allocation14 + $0x3e8] sm:$0xff]
        %v4192 = vld [vmem:[#allocation14 + $0x3f0] sm:$0xff]
        %v4193 = vld [vmem:[#allocation14 + $0x3f8] sm:$0xff]
        %v4194 = vld [vmem:[#allocation14 + $0x400] sm:$0xff]
        %v4195 = vld [vmem:[#allocation14 + $0x408] sm:$0xff]
        %v4196 = vld [vmem:[#allocation14 + $0x410] sm:$0xff]
        %v4197 = vld [vmem:[#allocation14 + $0x418] sm:$0xff]
        %v4198 = vld [vmem:[#allocation14 + $0x420] sm:$0xff]
        %v4199 = vld [vmem:[#allocation14 + $0x428] sm:$0xff]
        %v4200 = vld [vmem:[#allocation14 + $0x430] sm:$0xff]
        %v4201 = vld [vmem:[#allocation14 + $0x438] sm:$0xff]
        %v4202 = vld [vmem:[#allocation14 + $0x440] sm:$0xff]
        %v4203 = vld [vmem:[#allocation14 + $0x448] sm:$0xff]
        %v4204 = vld [vmem:[#allocation14 + $0x450] sm:$0xff]
        %v4205 = vld [vmem:[#allocation14 + $0x458] sm:$0xff]
        %v4206 = vld [vmem:[#allocation14 + $0x460] sm:$0xff]
        %v4207 = vld [vmem:[#allocation14 + $0x468] sm:$0xff]
        %v4208 = vld [vmem:[#allocation14 + $0x470] sm:$0xff]
        %v4209 = vld [vmem:[#allocation14 + $0x478] sm:$0xff]
        %v4210 = vld [vmem:[#allocation14 + $0x480] sm:$0xff]
        %v4211 = vld [vmem:[#allocation14 + $0x488] sm:$0xff]
        %v4212 = vld [vmem:[#allocation14 + $0x490] sm:$0xff]
        %v4213 = vld [vmem:[#allocation14 + $0x498] sm:$0xff]
        %v4214 = vld [vmem:[#allocation14 + $0x4a0] sm:$0xff]
        %v4215 = vld [vmem:[#allocation14 + $0x4a8] sm:$0xff]
        %v4216 = vld [vmem:[#allocation14 + $0x4b0] sm:$0xff]
        %v4217 = vld [vmem:[#allocation14 + $0x4b8] sm:$0xff]
        %v4218 = vld [vmem:[#allocation14 + $0x4c0] sm:$0xff]
        %v4219 = vld [vmem:[#allocation14 + $0x4c8] sm:$0xff]
        %v4220 = vld [vmem:[#allocation14 + $0x4d0] sm:$0xff]
        %v4221 = vld [vmem:[#allocation14 + $0x4d8] sm:$0xff]
        %v4222 = vld [vmem:[#allocation14 + $0x4e0] sm:$0xff]
        %v4223 = vld [vmem:[#allocation14 + $0x4e8] sm:$0xff]
        %v4224 = vld [vmem:[#allocation14 + $0x4f0] sm:$0xff]
        %v4225 = vld [vmem:[#allocation14 + $0x4f8] sm:$0xff]
        %v4226 = vld [vmem:[#allocation14 + $0x500] sm:$0xff]
        %v4227 = vld [vmem:[#allocation14 + $0x508] sm:$0xff]
        %v4228 = vld [vmem:[#allocation14 + $0x510] sm:$0xff]
        %v4229 = vld [vmem:[#allocation14 + $0x518] sm:$0xff]
        %v4230 = vld [vmem:[#allocation14 + $0x520] sm:$0xff]
        %v4231 = vld [vmem:[#allocation14 + $0x528] sm:$0xff]
        %v4232 = vld [vmem:[#allocation14 + $0x530] sm:$0xff]
        %v4233 = vld [vmem:[#allocation14 + $0x538] sm:$0xff]
        %v4234 = vld [vmem:[#allocation14 + $0x540] sm:$0xff]
        %v4235 = vld [vmem:[#allocation14 + $0x548] sm:$0xff]
        %v4236 = vld [vmem:[#allocation14 + $0x550] sm:$0xff]
        %v4237 = vld [vmem:[#allocation14 + $0x558] sm:$0xff]
        %v4238 = vld [vmem:[#allocation14 + $0x560] sm:$0xff]
        %v4239 = vld [vmem:[#allocation14 + $0x568] sm:$0xff]
        %v4240 = vld [vmem:[#allocation14 + $0x570] sm:$0xff]
        %v4241 = vld [vmem:[#allocation14 + $0x578] sm:$0xff]
        %v4242 = vld [vmem:[#allocation14 + $0x580] sm:$0xff]
        %v4243 = vld [vmem:[#allocation14 + $0x588] sm:$0xff]
        %v4244 = vld [vmem:[#allocation14 + $0x590] sm:$0xff]
        %v4245 = vld [vmem:[#allocation14 + $0x598] sm:$0xff]
        %v4246 = vld [vmem:[#allocation14 + $0x5a0] sm:$0xff]
        %v4247 = vld [vmem:[#allocation14 + $0x5a8] sm:$0xff]
        %v4248 = vld [vmem:[#allocation14 + $0x5b0] sm:$0xff]
        %v4249 = vld [vmem:[#allocation14 + $0x5b8] sm:$0xff]
        %v4250 = vld [vmem:[#allocation14 + $0x5c0] sm:$0xff]
        %v4251 = vld [vmem:[#allocation14 + $0x5c8] sm:$0xff]
        %v4252 = vld [vmem:[#allocation14 + $0x5d0] sm:$0xff]
        %v4253 = vld [vmem:[#allocation14 + $0x5d8] sm:$0xff]
        %v4254 = vld [vmem:[#allocation14 + $0x5e0] sm:$0xff]
        %v4255 = vld [vmem:[#allocation14 + $0x5e8] sm:$0xff]
        %v4256 = vld [vmem:[#allocation14 + $0x5f0] sm:$0xff]
        %v4257 = vld [vmem:[#allocation14 + $0x5f8] sm:$0xff]
        %v4258 = vld [vmem:[#allocation14 + $0x600] sm:$0xff]
        %v4259 = vld [vmem:[#allocation14 + $0x608] sm:$0xff]
        %v4260 = vld [vmem:[#allocation14 + $0x610] sm:$0xff]
        %v4261 = vld [vmem:[#allocation14 + $0x618] sm:$0xff]
        %v4262 = vld [vmem:[#allocation14 + $0x620] sm:$0xff]
        %v4263 = vld [vmem:[#allocation14 + $0x628] sm:$0xff]
        %v4264 = vld [vmem:[#allocation14 + $0x630] sm:$0xff]
        %v4265 = vld [vmem:[#allocation14 + $0x638] sm:$0xff]
        %v4266 = vld [vmem:[#allocation14 + $0x640] sm:$0xff]
        %v4267 = vld [vmem:[#allocation14 + $0x648] sm:$0xff]
        %v4268 = vld [vmem:[#allocation14 + $0x650] sm:$0xff]
        %v4269 = vld [vmem:[#allocation14 + $0x658] sm:$0xff]
        %v4270 = vld [vmem:[#allocation14 + $0x660] sm:$0xff]
        %v4271 = vld [vmem:[#allocation14 + $0x668] sm:$0xff]
        %v4272 = vld [vmem:[#allocation14 + $0x670] sm:$0xff]
        %v4273 = vld [vmem:[#allocation14 + $0x678] sm:$0xff]
        %v4274 = vld [vmem:[#allocation14 + $0x680] sm:$0xff]
        %v4275 = vld [vmem:[#allocation14 + $0x688] sm:$0xff]
        %v4276 = vld [vmem:[#allocation14 + $0x690] sm:$0xff]
        %v4277 = vld [vmem:[#allocation14 + $0x698] sm:$0xff]
        %v4278 = vld [vmem:[#allocation14 + $0x6a0] sm:$0xff]
        %v4279 = vld [vmem:[#allocation14 + $0x6a8] sm:$0xff]
        %v4280 = vld [vmem:[#allocation14 + $0x6b0] sm:$0xff]
        %v4281 = vld [vmem:[#allocation14 + $0x6b8] sm:$0xff]
        %v4282 = vld [vmem:[#allocation14 + $0x6c0] sm:$0xff]
        %v4283 = vld [vmem:[#allocation14 + $0x6c8] sm:$0xff]
        %v4284 = vld [vmem:[#allocation14 + $0x6d0] sm:$0xff]
        %v4285 = vld [vmem:[#allocation14 + $0x6d8] sm:$0xff]
        %v4286 = vld [vmem:[#allocation14 + $0x6e0] sm:$0xff]
        %v4287 = vld [vmem:[#allocation14 + $0x6e8] sm:$0xff]
        %v4288 = vld [vmem:[#allocation14 + $0x6f0] sm:$0xff]
        %v4289 = vld [vmem:[#allocation14 + $0x6f8] sm:$0xff]
        %v4290 = vld [vmem:[#allocation14 + $0x700] sm:$0xff]
        %v4291 = vld [vmem:[#allocation14 + $0x708] sm:$0xff]
        %v4292 = vld [vmem:[#allocation14 + $0x710] sm:$0xff]
        %v4293 = vld [vmem:[#allocation14 + $0x718] sm:$0xff]
        %v4294 = vld [vmem:[#allocation14 + $0x720] sm:$0xff]
        %v4295 = vld [vmem:[#allocation14 + $0x728] sm:$0xff]
        %v4296 = vld [vmem:[#allocation14 + $0x730] sm:$0xff]
        %v4297 = vld [vmem:[#allocation14 + $0x738] sm:$0xff]
        %v4298 = vld [vmem:[#allocation14 + $0x740] sm:$0xff]
        %v4299 = vld [vmem:[#allocation14 + $0x748] sm:$0xff]
        %v4300 = vld [vmem:[#allocation14 + $0x750] sm:$0xff]
        %v4301 = vld [vmem:[#allocation14 + $0x758] sm:$0xff]
        %v4302 = vld [vmem:[#allocation14 + $0x760] sm:$0xff]
        %v4303 = vld [vmem:[#allocation14 + $0x768] sm:$0xff]
        %v4304 = vld [vmem:[#allocation14 + $0x770] sm:$0xff]
        %v4305 = vld [vmem:[#allocation14 + $0x778] sm:$0xff]
        %v4306 = vld [vmem:[#allocation14 + $0x780] sm:$0xff]
        %v4307 = vld [vmem:[#allocation14 + $0x788] sm:$0xff]
        %v4308 = vld [vmem:[#allocation14 + $0x790] sm:$0xff]
        %v4309 = vld [vmem:[#allocation14 + $0x798] sm:$0xff]
        %v4310 = vld [vmem:[#allocation14 + $0x7a0] sm:$0xff]
        %v4311 = vld [vmem:[#allocation14 + $0x7a8] sm:$0xff]
        %v4312 = vld [vmem:[#allocation14 + $0x7b0] sm:$0xff]
        %v4313 = vld [vmem:[#allocation14 + $0x7b8] sm:$0xff]
        %v4314 = vld [vmem:[#allocation14 + $0x7c0] sm:$0xff]
        %v4315 = vld [vmem:[#allocation14 + $0x7c8] sm:$0xff]
        %v4316 = vld [vmem:[#allocation14 + $0x7d0] sm:$0xff]
        %v4317 = vld [vmem:[#allocation14 + $0x7d8] sm:$0xff]
        %v4318 = vld [vmem:[#allocation14 + $0x7e0] sm:$0xff]
        %v4319 = vld [vmem:[#allocation14 + $0x7e8] sm:$0xff]
        %v4320 = vld [vmem:[#allocation14 + $0x7f0] sm:$0xff]
        %v4321 = vld [vmem:[#allocation14 + $0x7f8] sm:$0xff]
        %v4322 = vld [vmem:[#allocation14 + $0x800] sm:$0xff]
        %v4323 = vld [vmem:[#allocation14 + $0x808] sm:$0xff]
        %v4324 = vld [vmem:[#allocation14 + $0x810] sm:$0xff]
        %v4325 = vld [vmem:[#allocation14 + $0x818] sm:$0xff]
        %v4326 = vld [vmem:[#allocation14 + $0x820] sm:$0xff]
        %v4327 = vld [vmem:[#allocation14 + $0x828] sm:$0xff]
        %v4328 = vld [vmem:[#allocation14 + $0x830] sm:$0xff]
        %v4329 = vld [vmem:[#allocation14 + $0x838] sm:$0xff]
        %v4330 = vld [vmem:[#allocation14 + $0x840] sm:$0xff]
        %v4331 = vld [vmem:[#allocation14 + $0x848] sm:$0xff]
        %v4332 = vld [vmem:[#allocation14 + $0x850] sm:$0xff]
        %v4333 = vld [vmem:[#allocation14 + $0x858] sm:$0xff]
        %v4334 = vld [vmem:[#allocation14 + $0x860] sm:$0xff]
        %v4335 = vld [vmem:[#allocation14 + $0x868] sm:$0xff]
        %v4336 = vld [vmem:[#allocation14 + $0x870] sm:$0xff]
        %v4337 = vld [vmem:[#allocation14 + $0x878] sm:$0xff]
        %v4338 = vld [vmem:[#allocation14 + $0x880] sm:$0xff]
        %v4339 = vld [vmem:[#allocation14 + $0x888] sm:$0xff]
        %v4340 = vld [vmem:[#allocation14 + $0x890] sm:$0xff]
        %v4341 = vld [vmem:[#allocation14 + $0x898] sm:$0xff]
        %v4342 = vld [vmem:[#allocation14 + $0x8a0] sm:$0xff]
        %v4343 = vld [vmem:[#allocation14 + $0x8a8] sm:$0xff]
        %v4344 = vld [vmem:[#allocation14 + $0x8b0] sm:$0xff]
        %v4345 = vld [vmem:[#allocation14 + $0x8b8] sm:$0xff]
        %v4346 = vld [vmem:[#allocation14 + $0x8c0] sm:$0xff]
        %v4347 = vld [vmem:[#allocation14 + $0x8c8] sm:$0xff]
        %v4348 = vld [vmem:[#allocation14 + $0x8d0] sm:$0xff]
        %v4349 = vld [vmem:[#allocation14 + $0x8d8] sm:$0xff]
        %v4350 = vld [vmem:[#allocation14 + $0x8e0] sm:$0xff]
        %v4351 = vld [vmem:[#allocation14 + $0x8e8] sm:$0xff]
        %v4352 = vld [vmem:[#allocation14 + $0x8f0] sm:$0xff]
        %v4353 = vld [vmem:[#allocation14 + $0x8f8] sm:$0xff]
        %v4354 = vld [vmem:[#allocation14 + $0x900] sm:$0xff]
        %v4355 = vld [vmem:[#allocation14 + $0x908] sm:$0xff]
        %v4356 = vld [vmem:[#allocation14 + $0x910] sm:$0xff]
        %v4357 = vld [vmem:[#allocation14 + $0x918] sm:$0xff]
        %v4358 = vld [vmem:[#allocation14 + $0x920] sm:$0xff]
        %v4359 = vld [vmem:[#allocation14 + $0x928] sm:$0xff]
        %v4360 = vld [vmem:[#allocation14 + $0x930] sm:$0xff]
        %v4361 = vld [vmem:[#allocation14 + $0x938] sm:$0xff]
        %v4362 = vld [vmem:[#allocation14 + $0x940] sm:$0xff]
        %v4363 = vld [vmem:[#allocation14 + $0x948] sm:$0xff]
        %v4364 = vld [vmem:[#allocation14 + $0x950] sm:$0xff]
        %v4365 = vld [vmem:[#allocation14 + $0x958] sm:$0xff]
        %v4366 = vld [vmem:[#allocation14 + $0x960] sm:$0xff]
        %v4367 = vld [vmem:[#allocation14 + $0x968] sm:$0xff]
        %v4368 = vld [vmem:[#allocation14 + $0x970] sm:$0xff]
        %v4369 = vld [vmem:[#allocation14 + $0x978] sm:$0xff]
        %v4370 = vld [vmem:[#allocation14 + $0x980] sm:$0xff]
        %v4371 = vld [vmem:[#allocation14 + $0x988] sm:$0xff]
        %v4372 = vld [vmem:[#allocation14 + $0x990] sm:$0xff]
        %v4373 = vld [vmem:[#allocation14 + $0x998] sm:$0xff]
        %v4374 = vld [vmem:[#allocation14 + $0x9a0] sm:$0xff]
        %v4375 = vld [vmem:[#allocation14 + $0x9a8] sm:$0xff]
        %v4376 = vld [vmem:[#allocation14 + $0x9b0] sm:$0xff]
        %v4377 = vld [vmem:[#allocation14 + $0x9b8] sm:$0xff]
        %v4378 = vld [vmem:[#allocation14 + $0x9c0] sm:$0xff]
        %v4379 = vld [vmem:[#allocation14 + $0x9c8] sm:$0xff]
        %v4380 = vld [vmem:[#allocation14 + $0x9d0] sm:$0xff]
        %v4381 = vld [vmem:[#allocation14 + $0x9d8] sm:$0xff]
        %v4382 = vld [vmem:[#allocation14 + $0x9e0] sm:$0xff]
        %v4383 = vld [vmem:[#allocation14 + $0x9e8] sm:$0xff]
        %v4384 = vld [vmem:[#allocation14 + $0x9f0] sm:$0xff]
        %v4385 = vld [vmem:[#allocation14 + $0x9f8] sm:$0xff]
        %v4386 = vld [vmem:[#allocation14 + $0xa00] sm:$0xff]
        %v4387 = vld [vmem:[#allocation14 + $0xa08] sm:$0xff]
        %v4388 = vld [vmem:[#allocation14 + $0xa10] sm:$0xff]
        %v4389 = vld [vmem:[#allocation14 + $0xa18] sm:$0xff]
        %v4390 = vld [vmem:[#allocation14 + $0xa20] sm:$0xff]
        %v4391 = vld [vmem:[#allocation14 + $0xa28] sm:$0xff]
        %v4392 = vld [vmem:[#allocation14 + $0xa30] sm:$0xff]
        %v4393 = vld [vmem:[#allocation14 + $0xa38] sm:$0xff]
        %v4394 = vld [vmem:[#allocation14 + $0xa40] sm:$0xff]
        %v4395 = vld [vmem:[#allocation14 + $0xa48] sm:$0xff]
        %v4396 = vld [vmem:[#allocation14 + $0xa50] sm:$0xff]
        %v4397 = vld [vmem:[#allocation14 + $0xa58] sm:$0xff]
        %v4398 = vld [vmem:[#allocation14 + $0xa60] sm:$0xff]
        %v4399 = vld [vmem:[#allocation14 + $0xa68] sm:$0xff]
        %v4400 = vld [vmem:[#allocation14 + $0xa70] sm:$0xff]
        %v4401 = vld [vmem:[#allocation14 + $0xa78] sm:$0xff]
        %v4402 = vld [vmem:[#allocation14 + $0xa80] sm:$0xff]
        %v4403 = vld [vmem:[#allocation14 + $0xa88] sm:$0xff]
        %v4404 = vld [vmem:[#allocation14 + $0xa90] sm:$0xff]
        %v4405 = vld [vmem:[#allocation14 + $0xa98] sm:$0xff]
        %v4406 = vld [vmem:[#allocation14 + $0xaa0] sm:$0xff]
        %v4407 = vld [vmem:[#allocation14 + $0xaa8] sm:$0xff]
        %v4408 = vld [vmem:[#allocation14 + $0xab0] sm:$0xff]
        %v4409 = vld [vmem:[#allocation14 + $0xab8] sm:$0xff]
        %v4410 = vld [vmem:[#allocation14 + $0xac0] sm:$0xff]
        %v4411 = vld [vmem:[#allocation14 + $0xac8] sm:$0xff]
        %v4412 = vld [vmem:[#allocation14 + $0xad0] sm:$0xff]
        %v4413 = vld [vmem:[#allocation14 + $0xad8] sm:$0xff]
        %v4414 = vld [vmem:[#allocation14 + $0xae0] sm:$0xff]
        %v4415 = vld [vmem:[#allocation14 + $0xae8] sm:$0xff]
        %v4416 = vld [vmem:[#allocation14 + $0xaf0] sm:$0xff]
        %v4417 = vld [vmem:[#allocation14 + $0xaf8] sm:$0xff]
        %v4418 = vld [vmem:[#allocation14 + $0xb00] sm:$0xff]
        %v4419 = vld [vmem:[#allocation14 + $0xb08] sm:$0xff]
        %v4420 = vld [vmem:[#allocation14 + $0xb10] sm:$0xff]
        %v4421 = vld [vmem:[#allocation14 + $0xb18] sm:$0xff]
        %v4422 = vld [vmem:[#allocation14 + $0xb20] sm:$0xff]
        %v4423 = vld [vmem:[#allocation14 + $0xb28] sm:$0xff]
        %v4424 = vld [vmem:[#allocation14 + $0xb30] sm:$0xff]
        %v4425 = vld [vmem:[#allocation14 + $0xb38] sm:$0xff]
        %v4426 = vld [vmem:[#allocation14 + $0xb40] sm:$0xff]
        %v4427 = vld [vmem:[#allocation14 + $0xb48] sm:$0xff]
        %v4428 = vld [vmem:[#allocation14 + $0xb50] sm:$0xff]
        %v4429 = vld [vmem:[#allocation14 + $0xb58] sm:$0xff]
        %v4430 = vld [vmem:[#allocation14 + $0xb60] sm:$0xff]
        %v4431 = vld [vmem:[#allocation14 + $0xb68] sm:$0xff]
        %v4432 = vld [vmem:[#allocation14 + $0xb70] sm:$0xff]
        %v4433 = vld [vmem:[#allocation14 + $0xb78] sm:$0xff]
        %v4434 = vld [vmem:[#allocation14 + $0xb80] sm:$0xff]
        %v4435 = vld [vmem:[#allocation14 + $0xb88] sm:$0xff]
        %v4436 = vld [vmem:[#allocation14 + $0xb90] sm:$0xff]
        %v4437 = vld [vmem:[#allocation14 + $0xb98] sm:$0xff]
        %v4438 = vld [vmem:[#allocation14 + $0xba0] sm:$0xff]
        %v4439 = vld [vmem:[#allocation14 + $0xba8] sm:$0xff]
        %v4440 = vld [vmem:[#allocation14 + $0xbb0] sm:$0xff]
        %v4441 = vld [vmem:[#allocation14 + $0xbb8] sm:$0xff]
        %v4442 = vld [vmem:[#allocation14 + $0xbc0] sm:$0xff]
        %v4443 = vld [vmem:[#allocation14 + $0xbc8] sm:$0xff]
        %v4444 = vld [vmem:[#allocation14 + $0xbd0] sm:$0xff]
        %v4445 = vld [vmem:[#allocation14 + $0xbd8] sm:$0xff]
        %v4446 = vld [vmem:[#allocation14 + $0xbe0] sm:$0xff]
        %v4447 = vld [vmem:[#allocation14 + $0xbe8] sm:$0xff]
        %v4448 = vld [vmem:[#allocation14 + $0xbf0] sm:$0xff]
        %v4449 = vld [vmem:[#allocation14 + $0xbf8] sm:$0xff]
        %v4450 = vld [vmem:[#allocation14 + $0xc00] sm:$0xff]
        %v4451 = vld [vmem:[#allocation14 + $0xc08] sm:$0xff]
        %v4452 = vld [vmem:[#allocation14 + $0xc10] sm:$0xff]
        %v4453 = vld [vmem:[#allocation14 + $0xc18] sm:$0xff]
        %v4454 = vld [vmem:[#allocation14 + $0xc20] sm:$0xff]
        %v4455 = vld [vmem:[#allocation14 + $0xc28] sm:$0xff]
        %v4456 = vld [vmem:[#allocation14 + $0xc30] sm:$0xff]
        %v4457 = vld [vmem:[#allocation14 + $0xc38] sm:$0xff]
        %v4458 = vld [vmem:[#allocation14 + $0xc40] sm:$0xff]
        %v4459 = vld [vmem:[#allocation14 + $0xc48] sm:$0xff]
        %v4460 = vld [vmem:[#allocation14 + $0xc50] sm:$0xff]
        %v4461 = vld [vmem:[#allocation14 + $0xc58] sm:$0xff]
        %v4462 = vld [vmem:[#allocation14 + $0xc60] sm:$0xff]
        %v4463 = vld [vmem:[#allocation14 + $0xc68] sm:$0xff]
        %v4464 = vld [vmem:[#allocation14 + $0xc70] sm:$0xff]
        %v4465 = vld [vmem:[#allocation14 + $0xc78] sm:$0xff]
        %v4466 = vld [vmem:[#allocation14 + $0xc80] sm:$0xff]
        %v4467 = vld [vmem:[#allocation14 + $0xc88] sm:$0xff]
        %v4468 = vld [vmem:[#allocation14 + $0xc90] sm:$0xff]
        %v4469 = vld [vmem:[#allocation14 + $0xc98] sm:$0xff]
        %v4470 = vld [vmem:[#allocation14 + $0xca0] sm:$0xff]
        %v4471 = vld [vmem:[#allocation14 + $0xca8] sm:$0xff]
        %v4472 = vld [vmem:[#allocation14 + $0xcb0] sm:$0xff]
        %v4473 = vld [vmem:[#allocation14 + $0xcb8] sm:$0xff]
        %v4474 = vld [vmem:[#allocation14 + $0xcc0] sm:$0xff]
        %v4475 = vld [vmem:[#allocation14 + $0xcc8] sm:$0xff]
        %v4476 = vld [vmem:[#allocation14 + $0xcd0] sm:$0xff]
        %v4477 = vld [vmem:[#allocation14 + $0xcd8] sm:$0xff]
        %v4478 = vld [vmem:[#allocation14 + $0xce0] sm:$0xff]
        %v4479 = vld [vmem:[#allocation14 + $0xce8] sm:$0xff]
        %v4480 = vld [vmem:[#allocation14 + $0xcf0] sm:$0xff]
        %v4481 = vld [vmem:[#allocation14 + $0xcf8] sm:$0xff]
        %v4482 = vld [vmem:[#allocation14 + $0xd00] sm:$0xff]
        %v4483 = vld [vmem:[#allocation14 + $0xd08] sm:$0xff]
        %v4484 = vld [vmem:[#allocation14 + $0xd10] sm:$0xff]
        %v4485 = vld [vmem:[#allocation14 + $0xd18] sm:$0xff]
        %v4486 = vld [vmem:[#allocation14 + $0xd20] sm:$0xff]
        %v4487 = vld [vmem:[#allocation14 + $0xd28] sm:$0xff]
        %v4488 = vld [vmem:[#allocation14 + $0xd30] sm:$0xff]
        %v4489 = vld [vmem:[#allocation14 + $0xd38] sm:$0xff]
        %v4490 = vld [vmem:[#allocation14 + $0xd40] sm:$0xff]
        %v4491 = vld [vmem:[#allocation14 + $0xd48] sm:$0xff]
        %v4492 = vld [vmem:[#allocation14 + $0xd50] sm:$0xff]
        %v4493 = vld [vmem:[#allocation14 + $0xd58] sm:$0xff]
        %v4494 = vld [vmem:[#allocation14 + $0xd60] sm:$0xff]
        %v4495 = vld [vmem:[#allocation14 + $0xd68] sm:$0xff]
        %v4496 = vld [vmem:[#allocation14 + $0xd70] sm:$0xff]
        %v4497 = vld [vmem:[#allocation14 + $0xd78] sm:$0xff]
        %v4498 = vld [vmem:[#allocation14 + $0xd80] sm:$0xff]
        %v4499 = vld [vmem:[#allocation14 + $0xd88] sm:$0xff]
        %v4500 = vld [vmem:[#allocation14 + $0xd90] sm:$0xff]
        %v4501 = vld [vmem:[#allocation14 + $0xd98] sm:$0xff]
        %v4502 = vld [vmem:[#allocation14 + $0xda0] sm:$0xff]
        %v4503 = vld [vmem:[#allocation14 + $0xda8] sm:$0xff]
        %v4504 = vld [vmem:[#allocation14 + $0xdb0] sm:$0xff]
        %v4505 = vld [vmem:[#allocation14 + $0xdb8] sm:$0xff]
        %v4506 = vld [vmem:[#allocation14 + $0xdc0] sm:$0xff]
        %v4507 = vld [vmem:[#allocation14 + $0xdc8] sm:$0xff]
        %v4508 = vld [vmem:[#allocation14 + $0xdd0] sm:$0xff]
        %v4509 = vld [vmem:[#allocation14 + $0xdd8] sm:$0xff]
        %v4510 = vld [vmem:[#allocation14 + $0xde0] sm:$0xff]
        %v4511 = vld [vmem:[#allocation14 + $0xde8] sm:$0xff]
        %v4512 = vld [vmem:[#allocation14 + $0xdf0] sm:$0xff]
        %v4513 = vld [vmem:[#allocation14 + $0xdf8] sm:$0xff]
        %v4514 = vld [vmem:[#allocation14 + $0xe00] sm:$0xff]
        %v4515 = vld [vmem:[#allocation14 + $0xe08] sm:$0xff]
        %v4516 = vld [vmem:[#allocation14 + $0xe10] sm:$0xff]
        %v4517 = vld [vmem:[#allocation14 + $0xe18] sm:$0xff]
        %v4518 = vld [vmem:[#allocation14 + $0xe20] sm:$0xff]
        %v4519 = vld [vmem:[#allocation14 + $0xe28] sm:$0xff]
        %v4520 = vld [vmem:[#allocation14 + $0xe30] sm:$0xff]
        %v4521 = vld [vmem:[#allocation14 + $0xe38] sm:$0xff]
        %v4522 = vld [vmem:[#allocation14 + $0xe40] sm:$0xff]
        %v4523 = vld [vmem:[#allocation14 + $0xe48] sm:$0xff]
        %v4524 = vld [vmem:[#allocation14 + $0xe50] sm:$0xff]
        %v4525 = vld [vmem:[#allocation14 + $0xe58] sm:$0xff]
        %v4526 = vld [vmem:[#allocation14 + $0xe60] sm:$0xff]
        %v4527 = vld [vmem:[#allocation14 + $0xe68] sm:$0xff]
        %v4528 = vld [vmem:[#allocation14 + $0xe70] sm:$0xff]
        %v4529 = vld [vmem:[#allocation14 + $0xe78] sm:$0xff]
        %v4530 = vld [vmem:[#allocation14 + $0xe80] sm:$0xff]
        %v4531 = vld [vmem:[#allocation14 + $0xe88] sm:$0xff]
        %v4532 = vld [vmem:[#allocation14 + $0xe90] sm:$0xff]
        %v4533 = vld [vmem:[#allocation14 + $0xe98] sm:$0xff]
        %v4534 = vld [vmem:[#allocation14 + $0xea0] sm:$0xff]
        %v4535 = vld [vmem:[#allocation14 + $0xea8] sm:$0xff]
        %v4536 = vld [vmem:[#allocation14 + $0xeb0] sm:$0xff]
        %v4537 = vld [vmem:[#allocation14 + $0xeb8] sm:$0xff]
        %v4538 = vld [vmem:[#allocation14 + $0xec0] sm:$0xff]
        %v4539 = vld [vmem:[#allocation14 + $0xec8] sm:$0xff]
        %v4540 = vld [vmem:[#allocation14 + $0xed0] sm:$0xff]
        %v4541 = vld [vmem:[#allocation14 + $0xed8] sm:$0xff]
        %v4542 = vld [vmem:[#allocation14 + $0xee0] sm:$0xff]
        %v4543 = vld [vmem:[#allocation14 + $0xee8] sm:$0xff]
        %v4544 = vld [vmem:[#allocation14 + $0xef0] sm:$0xff]
        %v4545 = vld [vmem:[#allocation14 + $0xef8] sm:$0xff]
        %v4546 = vld [vmem:[#allocation14 + $0xf00] sm:$0xff]
        %v4547 = vld [vmem:[#allocation14 + $0xf08] sm:$0xff]
        %v4548 = vld [vmem:[#allocation14 + $0xf10] sm:$0xff]
        %v4549 = vld [vmem:[#allocation14 + $0xf18] sm:$0xff]
        %v4550 = vld [vmem:[#allocation14 + $0xf20] sm:$0xff]
        %v4551 = vld [vmem:[#allocation14 + $0xf28] sm:$0xff]
        %v4552 = vld [vmem:[#allocation14 + $0xf30] sm:$0xff]
        %v4553 = vld [vmem:[#allocation14 + $0xf38] sm:$0xff]
        %v4554 = vld [vmem:[#allocation14 + $0xf40] sm:$0xff]
        %v4555 = vld [vmem:[#allocation14 + $0xf48] sm:$0xff]
        %v4556 = vld [vmem:[#allocation14 + $0xf50] sm:$0xff]
        %v4557 = vld [vmem:[#allocation14 + $0xf58] sm:$0xff]
        %v4558 = vld [vmem:[#allocation14 + $0xf60] sm:$0xff]
        %v4559 = vld [vmem:[#allocation14 + $0xf68] sm:$0xff]
        %v4560 = vld [vmem:[#allocation14 + $0xf70] sm:$0xff]
        %v4561 = vld [vmem:[#allocation14 + $0xf78] sm:$0xff]
        %v4562 = vld [vmem:[#allocation14 + $0xf80] sm:$0xff]
        %v4563 = vld [vmem:[#allocation14 + $0xf88] sm:$0xff]
        %v4564 = vld [vmem:[#allocation14 + $0xf90] sm:$0xff]
        %v4565 = vld [vmem:[#allocation14 + $0xf98] sm:$0xff]
        %v4566 = vld [vmem:[#allocation14 + $0xfa0] sm:$0xff]
        %v4567 = vld [vmem:[#allocation14 + $0xfa8] sm:$0xff]
        %v4568 = vld [vmem:[#allocation14 + $0xfb0] sm:$0xff]
        %v4569 = vld [vmem:[#allocation14 + $0xfb8] sm:$0xff]
        %v4570 = vld [vmem:[#allocation14 + $0xfc0] sm:$0xff]
        %v4571 = vld [vmem:[#allocation14 + $0xfc8] sm:$0xff]
        %v4572 = vld [vmem:[#allocation14 + $0xfd0] sm:$0xff]
        %v4573 = vld [vmem:[#allocation14 + $0xfd8] sm:$0xff]
        %v4574 = vld [vmem:[#allocation14 + $0xfe0] sm:$0xff]
        %v4575 = vld [vmem:[#allocation14 + $0xfe8] sm:$0xff]
        %v4576 = vld [vmem:[#allocation14 + $0xff0] sm:$0xff]
        %v4577 = vld [vmem:[#allocation14 + $0xff8] sm:$0xff]
        %v4578 = vld [vmem:[#allocation14 + $0x1000] sm:$0xff]
        %v4579 = vld [vmem:[#allocation14 + $0x1008] sm:$0xff]
        %v4580 = vld [vmem:[#allocation14 + $0x1010] sm:$0xff]
        %v4581 = vld [vmem:[#allocation14 + $0x1018] sm:$0xff]
        %v4582 = vld [vmem:[#allocation14 + $0x1020] sm:$0xff]
        %v4583 = vld [vmem:[#allocation14 + $0x1028] sm:$0xff]
        %v4584 = vld [vmem:[#allocation14 + $0x1030] sm:$0xff]
        %v4585 = vld [vmem:[#allocation14 + $0x1038] sm:$0xff]
        %v4586 = vld [vmem:[#allocation14 + $0x1040] sm:$0xff]
        %v4587 = vld [vmem:[#allocation14 + $0x1048] sm:$0xff]
        %v4588 = vld [vmem:[#allocation14 + $0x1050] sm:$0xff]
        %v4589 = vld [vmem:[#allocation14 + $0x1058] sm:$0xff]
        %v4590 = vld [vmem:[#allocation14 + $0x1060] sm:$0xff]
        %v4591 = vld [vmem:[#allocation14 + $0x1068] sm:$0xff]
        %v4592 = vld [vmem:[#allocation14 + $0x1070] sm:$0xff]
        %v4593 = vld [vmem:[#allocation14 + $0x1078] sm:$0xff]
        %v4594 = vld [vmem:[#allocation14 + $0x1080] sm:$0xff]
        %v4595 = vld [vmem:[#allocation14 + $0x1088] sm:$0xff]
        %v4596 = vld [vmem:[#allocation14 + $0x1090] sm:$0xff]
        %v4597 = vld [vmem:[#allocation14 + $0x1098] sm:$0xff]
        %v4598 = vld [vmem:[#allocation14 + $0x10a0] sm:$0xff]
        %v4599 = vld [vmem:[#allocation14 + $0x10a8] sm:$0xff]
        %v4600 = vld [vmem:[#allocation14 + $0x10b0] sm:$0xff]
        %v4601 = vld [vmem:[#allocation14 + $0x10b8] sm:$0xff]
        %v4602 = vld [vmem:[#allocation14 + $0x10c0] sm:$0xff]
        %v4603 = vld [vmem:[#allocation14 + $0x10c8] sm:$0xff]
        %v4604 = vld [vmem:[#allocation14 + $0x10d0] sm:$0xff]
        %v4605 = vld [vmem:[#allocation14 + $0x10d8] sm:$0xff]
        %v4606 = vld [vmem:[#allocation14 + $0x10e0] sm:$0xff]
        %v4607 = vld [vmem:[#allocation14 + $0x10e8] sm:$0xff]
        %v4608 = vld [vmem:[#allocation14 + $0x10f0] sm:$0xff]
        %v4609 = vld [vmem:[#allocation14 + $0x10f8] sm:$0xff]
        %v4610 = vld [vmem:[#allocation14 + $0x1100] sm:$0xff]
        %v4611 = vld [vmem:[#allocation14 + $0x1108] sm:$0xff]
        %v4612 = vld [vmem:[#allocation14 + $0x1110] sm:$0xff]
        %v4613 = vld [vmem:[#allocation14 + $0x1118] sm:$0xff]
        %v4614 = vld [vmem:[#allocation14 + $0x1120] sm:$0xff]
        %v4615 = vld [vmem:[#allocation14 + $0x1128] sm:$0xff]
        %v4616 = vld [vmem:[#allocation14 + $0x1130] sm:$0xff]
        %v4617 = vld [vmem:[#allocation14 + $0x1138] sm:$0xff]
        %v4618 = vld [vmem:[#allocation14 + $0x1140] sm:$0xff]
        %v4619 = vld [vmem:[#allocation14 + $0x1148] sm:$0xff]
        %v4620 = vld [vmem:[#allocation14 + $0x1150] sm:$0xff]
        %v4621 = vld [vmem:[#allocation14 + $0x1158] sm:$0xff]
        %v4622 = vld [vmem:[#allocation14 + $0x1160] sm:$0xff]
        %v4623 = vld [vmem:[#allocation14 + $0x1168] sm:$0xff]
        %v4624 = vld [vmem:[#allocation14 + $0x1170] sm:$0xff]
        %v4625 = vld [vmem:[#allocation14 + $0x1178] sm:$0xff]
        %v4626 = vld [vmem:[#allocation14 + $0x1180] sm:$0xff]
        %v4627 = vld [vmem:[#allocation14 + $0x1188] sm:$0xff]
        %v4628 = vld [vmem:[#allocation14 + $0x1190] sm:$0xff]
        %v4629 = vld [vmem:[#allocation14 + $0x1198] sm:$0xff]
        %v4630 = vld [vmem:[#allocation14 + $0x11a0] sm:$0xff]
        %v4631 = vld [vmem:[#allocation14 + $0x11a8] sm:$0xff]
        %v4632 = vld [vmem:[#allocation14 + $0x11b0] sm:$0xff]
        %v4633 = vld [vmem:[#allocation14 + $0x11b8] sm:$0xff]
        %v4634 = vld [vmem:[#allocation14 + $0x11c0] sm:$0xff]
        %v4635 = vld [vmem:[#allocation14 + $0x11c8] sm:$0xff]
        %v4636 = vld [vmem:[#allocation14 + $0x11d0] sm:$0xff]
        %v4637 = vld [vmem:[#allocation14 + $0x11d8] sm:$0xff]
        %v4638 = vld [vmem:[#allocation14 + $0x11e0] sm:$0xff]
        %v4639 = vld [vmem:[#allocation14 + $0x11e8] sm:$0xff]
        %v4640 = vld [vmem:[#allocation14 + $0x11f0] sm:$0xff]
        %v4641 = vld [vmem:[#allocation14 + $0x11f8] sm:$0xff]
        %v4642 = vld [vmem:[#allocation16] sm:$0x3]
        %v4644 = vlaneseq
        %v4645 = vshrl.u32 %v4644, 7
        %v4646 = vsub.s32 0, %v4645
        %v4647 = vrot.slane %v4642, %v4646
        %v4648 = vlaneseq
        %v4649 = vshrl.u32 %v4648, 7
        %v4650 = vsub.s32 1, %v4649
        %v4651 = vrot.slane %v4642, %v4650
        %4654 = vmatprep.subr.mxu0 %v4097
        %4655 = vmatpush1.msra.mxu0 %v4096
        %4656 = vmatprep.subr.mxu0 %v4095
        %4657 = vmatpush1.msra.mxu0 %v4094
        %4658 = vmatprep.subr.mxu0 %v4093
        %4659 = vmatpush1.msra.mxu0 %v4092
        %4660 = vmatprep.subr.mxu0 %v4091
        %4661 = vmatpush1.msra.mxu0 %v4090
        %4662 = vmatprep.subr.mxu0 %v4089
        %4663 = vmatpush1.msra.mxu0 %v4088
        %4664 = vmatprep.subr.mxu0 %v4087
        %4665 = vmatpush1.msra.mxu0 %v4086
        %4666 = vmatprep.subr.mxu0 %v4085
        %4667 = vmatpush1.msra.mxu0 %v4084
        %4668 = vmatprep.subr.mxu0 %v4083
        %4669 = vmatpush1.msra.mxu0 %v4082
        %4670 = vmatprep.subr.mxu0 %v4081
        %4671 = vmatpush1.msra.mxu0 %v4080
        %4672 = vmatprep.subr.mxu0 %v4079
        %4673 = vmatpush1.msra.mxu0 %v4078
        %4674 = vmatprep.subr.mxu0 %v4077
        %4675 = vmatpush1.msra.mxu0 %v4076
        %4676 = vmatprep.subr.mxu0 %v4075
        %4677 = vmatpush1.msra.mxu0 %v4074
        %4678 = vmatprep.subr.mxu0 %v4073
        %4679 = vmatpush1.msra.mxu0 %v4072
        %4680 = vmatprep.subr.mxu0 %v4071
        %4681 = vmatpush1.msra.mxu0 %v4070
        %4682 = vmatprep.subr.mxu0 %v4069
        %4683 = vmatpush1.msra.mxu0 %v4068
        %4684 = vmatprep.subr.mxu0 %v4067
        %4685 = vmatpush1.msra.mxu0 %v4066
        %4686 = vmatprep.subr.mxu0 %v4129
        %4687 = vmatpush2.msra.mxu0 %v4128
        %4688 = vmatprep.subr.mxu0 %v4127
        %4689 = vmatpush2.msra.mxu0 %v4126
        %4690 = vmatprep.subr.mxu0 %v4125
        %4691 = vmatpush2.msra.mxu0 %v4124
        %4692 = vmatprep.subr.mxu0 %v4123
        %4693 = vmatpush2.msra.mxu0 %v4122
        %4694 = vmatprep.subr.mxu0 %v4121
        %4695 = vmatpush2.msra.mxu0 %v4120
        %4696 = vmatprep.subr.mxu0 %v4119
        %4697 = vmatpush2.msra.mxu0 %v4118
        %4698 = vmatprep.subr.mxu0 %v4117
        %4699 = vmatpush2.msra.mxu0 %v4116
        %4700 = vmatprep.subr.mxu0 %v4115
        %4701 = vmatpush2.msra.mxu0 %v4114
        %4702 = vmatprep.subr.mxu0 %v4113
        %4703 = vmatpush2.msra.mxu0 %v4112
        %4704 = vmatprep.subr.mxu0 %v4111
        %4705 = vmatpush2.msra.mxu0 %v4110
        %4706 = vmatprep.subr.mxu0 %v4109
        %4707 = vmatpush2.msra.mxu0 %v4108
        %4708 = vmatprep.subr.mxu0 %v4107
        %4709 = vmatpush2.msra.mxu0 %v4106
        %4710 = vmatprep.subr.mxu0 %v4105
        %4711 = vmatpush2.msra.mxu0 %v4104
        %4712 = vmatprep.subr.mxu0 %v4103
        %4713 = vmatpush2.msra.mxu0 %v4102
        %4714 = vmatprep.subr.mxu0 %v4101
        %4715 = vmatpush2.msra.mxu0 %v4100
        %4716 = vmatprep.subr.mxu0 %v4099
        %4717 = vmatpush2.msra.mxu0 %v4098
        %4718 = vmatprep.mubr.f32.mxu0 0.0
        %4719 = vmatmul.mubr.f32.gmra.mxu0 0.0
        %v4720 = vpop.f32.mrf.mxu0
        %v4721 = vadd.f32 %v4647, %v4720
        %v4722 = vpop.f32.mrf.mxu0
        %v4723 = vadd.f32 %v4651, %v4722
        %4724 = vmatprep.mubr.f32.mxu0 0.0
        %4725 = vmatmul.mubr.f32.gmra.mxu0 0.0
        %v4726 = vpop.f32.mrf.mxu0
        %v4727 = vadd.f32 %v4647, %v4726
        %v4728 = vpop.f32.mrf.mxu0
        %v4729 = vadd.f32 %v4651, %v4728
        %4730 = vmatprep.mubr.f32.mxu0 %v3965
        %4731 = vmatmul.mubr.f32.gmra.mxu0 %v3964
        %v4732 = vpop.f32.mrf.mxu0
        %v4733 = vadd.f32 %v4647, %v4732
        %v4734 = vpop.f32.mrf.mxu0
        %v4735 = vadd.f32 %v4651, %v4734
        %4736 = vmatprep.mubr.f32.mxu0 %v3967
        %4737 = vmatmul.mubr.f32.gmra.mxu0 %v3966
        %v4738 = vpop.f32.mrf.mxu0
        %v4739 = vadd.f32 %v4647, %v4738
        %v4740 = vpop.f32.mrf.mxu0
        %v4741 = vadd.f32 %v4651, %v4740
        %4742 = vmatprep.mubr.f32.mxu0 %v3969
        %4743 = vmatmul.mubr.f32.gmra.mxu0 %v3968
        %v4744 = vpop.f32.mrf.mxu0
        %v4745 = vadd.f32 %v4647, %v4744
        %v4746 = vpop.f32.mrf.mxu0
        %v4747 = vadd.f32 %v4651, %v4746
        %4748 = vmatprep.mubr.f32.mxu0 %v3971
        %4749 = vmatmul.mubr.f32.gmra.mxu0 %v3970
        %v4750 = vpop.f32.mrf.mxu0
        %v4751 = vadd.f32 %v4647, %v4750
        %v4752 = vpop.f32.mrf.mxu0
        %v4753 = vadd.f32 %v4651, %v4752
        %4754 = vmatprep.mubr.f32.mxu0 %v3973
        %4755 = vmatmul.mubr.f32.gmra.mxu0 %v3972
        %v4756 = vpop.f32.mrf.mxu0
        %v4757 = vadd.f32 %v4647, %v4756
        %v4758 = vpop.f32.mrf.mxu0
        %v4759 = vadd.f32 %v4651, %v4758
        %4760 = vmatprep.mubr.f32.mxu0 %v3975
        %4761 = vmatmul.mubr.f32.gmra.mxu0 %v3974
        %v4762 = vpop.f32.mrf.mxu0
        %v4763 = vadd.f32 %v4647, %v4762
        %v4764 = vpop.f32.mrf.mxu0
        %v4765 = vadd.f32 %v4651, %v4764
        %4766 = vdwg.mxu0
        %4767 = vmatprep.subr.mxu0 %v4161
        %4768 = vmatpush1.msra.mxu0 %v4160
        %4769 = vmatprep.subr.mxu0 %v4159
        %4770 = vmatpush1.msra.mxu0 %v4158
        %4771 = vmatprep.subr.mxu0 %v4157
        %4772 = vmatpush1.msra.mxu0 %v4156
        %4773 = vmatprep.subr.mxu0 %v4155
        %4774 = vmatpush1.msra.mxu0 %v4154
        %4775 = vmatprep.subr.mxu0 %v4153
        %4776 = vmatpush1.msra.mxu0 %v4152
        %4777 = vmatprep.subr.mxu0 %v4151
        %4778 = vmatpush1.msra.mxu0 %v4150
        %4779 = vmatprep.subr.mxu0 %v4149
        %4780 = vmatpush1.msra.mxu0 %v4148
        %4781 = vmatprep.subr.mxu0 %v4147
        %4782 = vmatpush1.msra.mxu0 %v4146
        %4783 = vmatprep.subr.mxu0 %v4145
        %4784 = vmatpush1.msra.mxu0 %v4144
        %4785 = vmatprep.subr.mxu0 %v4143
        %4786 = vmatpush1.msra.mxu0 %v4142
        %4787 = vmatprep.subr.mxu0 %v4141
        %4788 = vmatpush1.msra.mxu0 %v4140
        %4789 = vmatprep.subr.mxu0 %v4139
        %4790 = vmatpush1.msra.mxu0 %v4138
        %4791 = vmatprep.subr.mxu0 %v4137
        %4792 = vmatpush1.msra.mxu0 %v4136
        %4793 = vmatprep.subr.mxu0 %v4135
        %4794 = vmatpush1.msra.mxu0 %v4134
        %4795 = vmatprep.subr.mxu0 %v4133
        %4796 = vmatpush1.msra.mxu0 %v4132
        %4797 = vmatprep.subr.mxu0 %v4131
        %4798 = vmatpush1.msra.mxu0 %v4130
        %4799 = vmatprep.subr.mxu0 %v4193
        %4800 = vmatpush2.msra.mxu0 %v4192
        %4801 = vmatprep.subr.mxu0 %v4191
        %4802 = vmatpush2.msra.mxu0 %v4190
        %4803 = vmatprep.subr.mxu0 %v4189
        %4804 = vmatpush2.msra.mxu0 %v4188
        %4805 = vmatprep.subr.mxu0 %v4187
        %4806 = vmatpush2.msra.mxu0 %v4186
        %4807 = vmatprep.subr.mxu0 %v4185
        %4808 = vmatpush2.msra.mxu0 %v4184
        %4809 = vmatprep.subr.mxu0 %v4183
        %4810 = vmatpush2.msra.mxu0 %v4182
        %4811 = vmatprep.subr.mxu0 %v4181
        %4812 = vmatpush2.msra.mxu0 %v4180
        %4813 = vmatprep.subr.mxu0 %v4179
        %4814 = vmatpush2.msra.mxu0 %v4178
        %4815 = vmatprep.subr.mxu0 %v4177
        %4816 = vmatpush2.msra.mxu0 %v4176
        %4817 = vmatprep.subr.mxu0 %v4175
        %4818 = vmatpush2.msra.mxu0 %v4174
        %4819 = vmatprep.subr.mxu0 %v4173
        %4820 = vmatpush2.msra.mxu0 %v4172
        %4821 = vmatprep.subr.mxu0 %v4171
        %4822 = vmatpush2.msra.mxu0 %v4170
        %4823 = vmatprep.subr.mxu0 %v4169
        %4824 = vmatpush2.msra.mxu0 %v4168
        %4825 = vmatprep.subr.mxu0 %v4167
        %4826 = vmatpush2.msra.mxu0 %v4166
        %4827 = vmatprep.subr.mxu0 %v4165
        %4828 = vmatpush2.msra.mxu0 %v4164
        %4829 = vmatprep.subr.mxu0 %v4163
        %4830 = vmatpush2.msra.mxu0 %v4162
        %4831 = vmatprep.mubr.f32.mxu0 0.0
        %4832 = vmatmul.mubr.f32.gmra.mxu0 0.0
        %v4833 = vpop.f32.mrf.mxu0
        %v4834 = vadd.f32 %v4721, %v4833
        %v4835 = vpop.f32.mrf.mxu0
        %v4836 = vadd.f32 %v4723, %v4835
        %4837 = vmatprep.mubr.f32.mxu0 0.0
        %4838 = vmatmul.mubr.f32.gmra.mxu0 0.0
        %v4839 = vpop.f32.mrf.mxu0
        %v4840 = vadd.f32 %v4727, %v4839
        %v4841 = vpop.f32.mrf.mxu0
        %v4842 = vadd.f32 %v4729, %v4841
        %4843 = vmatprep.mubr.f32.mxu0 %v3881
        %4844 = vmatmul.mubr.f32.gmra.mxu0 %v3880
        %v4845 = vpop.f32.mrf.mxu0
        %v4846 = vadd.f32 %v4733, %v4845
        %v4847 = vpop.f32.mrf.mxu0
        %v4848 = vadd.f32 %v4735, %v4847
        %4849 = vmatprep.mubr.f32.mxu0 %v3883
        %4850 = vmatmul.mubr.f32.gmra.mxu0 %v3882
        %v4851 = vpop.f32.mrf.mxu0
        %v4852 = vadd.f32 %v4739, %v4851
        %v4853 = vpop.f32.mrf.mxu0
        %v4854 = vadd.f32 %v4741, %v4853
        %4855 = vmatprep.mubr.f32.mxu0 %v3885
        %4856 = vmatmul.mubr.f32.gmra.mxu0 %v3884
        %v4857 = vpop.f32.mrf.mxu0
        %v4858 = vadd.f32 %v4745, %v4857
        %v4859 = vpop.f32.mrf.mxu0
        %v4860 = vadd.f32 %v4747, %v4859
        %4861 = vmatprep.mubr.f32.mxu0 %v3887
        %4862 = vmatmul.mubr.f32.gmra.mxu0 %v3886
        %v4863 = vpop.f32.mrf.mxu0
        %v4864 = vadd.f32 %v4751, %v4863
        %v4865 = vpop.f32.mrf.mxu0
        %v4866 = vadd.f32 %v4753, %v4865
        %4867 = vmatprep.mubr.f32.mxu0 %v3889
        %4868 = vmatmul.mubr.f32.gmra.mxu0 %v3888
        %v4869 = vpop.f32.mrf.mxu0
        %v4870 = vadd.f32 %v4757, %v4869
        %v4871 = vpop.f32.mrf.mxu0
        %v4872 = vadd.f32 %v4759, %v4871
        %4873 = vmatprep.mubr.f32.mxu0 %v3891
        %4874 = vmatmul.mubr.f32.gmra.mxu0 %v3890
        %v4875 = vpop.f32.mrf.mxu0
        %v4876 = vadd.f32 %v4763, %v4875
        %v4877 = vpop.f32.mrf.mxu0
        %v4878 = vadd.f32 %v4765, %v4877
        %4879 = vdwg.mxu0
        %4880 = vmatprep.subr.mxu0 %v4225
        %4881 = vmatpush1.msra.mxu0 %v4224
        %4882 = vmatprep.subr.mxu0 %v4223
        %4883 = vmatpush1.msra.mxu0 %v4222
        %4884 = vmatprep.subr.mxu0 %v4221
        %4885 = vmatpush1.msra.mxu0 %v4220
        %4886 = vmatprep.subr.mxu0 %v4219
        %4887 = vmatpush1.msra.mxu0 %v4218
        %4888 = vmatprep.subr.mxu0 %v4217
        %4889 = vmatpush1.msra.mxu0 %v4216
        %4890 = vmatprep.subr.mxu0 %v4215
        %4891 = vmatpush1.msra.mxu0 %v4214
        %4892 = vmatprep.subr.mxu0 %v4213
        %4893 = vmatpush1.msra.mxu0 %v4212
        %4894 = vmatprep.subr.mxu0 %v4211
        %4895 = vmatpush1.msra.mxu0 %v4210
        %4896 = vmatprep.subr.mxu0 %v4209
        %4897 = vmatpush1.msra.mxu0 %v4208
        %4898 = vmatprep.subr.mxu0 %v4207
        %4899 = vmatpush1.msra.mxu0 %v4206
        %4900 = vmatprep.subr.mxu0 %v4205
        %4901 = vmatpush1.msra.mxu0 %v4204
        %4902 = vmatprep.subr.mxu0 %v4203
        %4903 = vmatpush1.msra.mxu0 %v4202
        %4904 = vmatprep.subr.mxu0 %v4201
        %4905 = vmatpush1.msra.mxu0 %v4200
        %4906 = vmatprep.subr.mxu0 %v4199
        %4907 = vmatpush1.msra.mxu0 %v4198
        %4908 = vmatprep.subr.mxu0 %v4197
        %4909 = vmatpush1.msra.mxu0 %v4196
        %4910 = vmatprep.subr.mxu0 %v4195
        %4911 = vmatpush1.msra.mxu0 %v4194
        %4912 = vmatprep.subr.mxu0 %v4257
        %4913 = vmatpush2.msra.mxu0 %v4256
        %4914 = vmatprep.subr.mxu0 %v4255
        %4915 = vmatpush2.msra.mxu0 %v4254
        %4916 = vmatprep.subr.mxu0 %v4253
        %4917 = vmatpush2.msra.mxu0 %v4252
        %4918 = vmatprep.subr.mxu0 %v4251
        %4919 = vmatpush2.msra.mxu0 %v4250
        %4920 = vmatprep.subr.mxu0 %v4249
        %4921 = vmatpush2.msra.mxu0 %v4248
        %4922 = vmatprep.subr.mxu0 %v4247
        %4923 = vmatpush2.msra.mxu0 %v4246
        %4924 = vmatprep.subr.mxu0 %v4245
        %4925 = vmatpush2.msra.mxu0 %v4244
        %4926 = vmatprep.subr.mxu0 %v4243
        %4927 = vmatpush2.msra.mxu0 %v4242
        %4928 = vmatprep.subr.mxu0 %v4241
        %4929 = vmatpush2.msra.mxu0 %v4240
        %4930 = vmatprep.subr.mxu0 %v4239
        %4931 = vmatpush2.msra.mxu0 %v4238
        %4932 = vmatprep.subr.mxu0 %v4237
        %4933 = vmatpush2.msra.mxu0 %v4236
        %4934 = vmatprep.subr.mxu0 %v4235
        %4935 = vmatpush2.msra.mxu0 %v4234
        %4936 = vmatprep.subr.mxu0 %v4233
        %4937 = vmatpush2.msra.mxu0 %v4232
        %4938 = vmatprep.subr.mxu0 %v4231
        %4939 = vmatpush2.msra.mxu0 %v4230
        %4940 = vmatprep.subr.mxu0 %v4229
        %4941 = vmatpush2.msra.mxu0 %v4228
        %4942 = vmatprep.subr.mxu0 %v4227
        %4943 = vmatpush2.msra.mxu0 %v4226
        %4944 = vmatprep.mubr.f32.mxu0 0.0
        %4945 = vmatmul.mubr.f32.gmra.mxu0 0.0
        %v4946 = vpop.f32.mrf.mxu0
        %v4947 = vadd.f32 %v4834, %v4946
        %v4948 = vpop.f32.mrf.mxu0
        %v4949 = vadd.f32 %v4836, %v4948
        %4950 = vmatprep.mubr.f32.mxu0 0.0
        %4951 = vmatmul.mubr.f32.gmra.mxu0 0.0
        %v4952 = vpop.f32.mrf.mxu0
        %v4953 = vadd.f32 %v4840, %v4952
        %v4954 = vpop.f32.mrf.mxu0
        %v4955 = vadd.f32 %v4842, %v4954
        %4956 = vmatprep.mubr.f32.mxu0 %v4021
        %4957 = vmatmul.mubr.f32.gmra.mxu0 %v4018
        %v4958 = vpop.f32.mrf.mxu0
        %v4959 = vadd.f32 %v4846, %v4958
        %v4960 = vpop.f32.mrf.mxu0
        %v4961 = vadd.f32 %v4848, %v4960
        %4962 = vmatprep.mubr.f32.mxu0 %v4025
        %4963 = vmatmul.mubr.f32.gmra.mxu0 %v4023
        %v4964 = vpop.f32.mrf.mxu0
        %v4965 = vadd.f32 %v4852, %v4964
        %v4966 = vpop.f32.mrf.mxu0
        %v4967 = vadd.f32 %v4854, %v4966
        %4968 = vmatprep.mubr.f32.mxu0 %v4029
        %4969 = vmatmul.mubr.f32.gmra.mxu0 %v4027
        %v4970 = vpop.f32.mrf.mxu0
        %v4971 = vadd.f32 %v4858, %v4970
        %v4972 = vpop.f32.mrf.mxu0
        %v4973 = vadd.f32 %v4860, %v4972
        %4974 = vmatprep.mubr.f32.mxu0 %v4033
        %4975 = vmatmul.mubr.f32.gmra.mxu0 %v4031
        %v4976 = vpop.f32.mrf.mxu0
        %v4977 = vadd.f32 %v4864, %v4976
        %v4978 = vpop.f32.mrf.mxu0
        %v4979 = vadd.f32 %v4866, %v4978
        %4980 = vmatprep.mubr.f32.mxu0 %v4037
        %4981 = vmatmul.mubr.f32.gmra.mxu0 %v4035
        %v4982 = vpop.f32.mrf.mxu0
        %v4983 = vadd.f32 %v4870, %v4982
        %v4984 = vpop.f32.mrf.mxu0
        %v4985 = vadd.f32 %v4872, %v4984
        %4986 = vmatprep.mubr.f32.mxu0 %v4041
        %4987 = vmatmul.mubr.f32.gmra.mxu0 %v4039
        %v4988 = vpop.f32.mrf.mxu0
        %v4989 = vadd.f32 %v4876, %v4988
        %v4990 = vpop.f32.mrf.mxu0
        %v4991 = vadd.f32 %v4878, %v4990
        %4992 = vdwg.mxu0
        %4993 = vmatprep.subr.mxu0 %v4289
        %4994 = vmatpush1.msra.mxu0 %v4288
        %4995 = vmatprep.subr.mxu0 %v4287
        %4996 = vmatpush1.msra.mxu0 %v4286
        %4997 = vmatprep.subr.mxu0 %v4285
        %4998 = vmatpush1.msra.mxu0 %v4284
        %4999 = vmatprep.subr.mxu0 %v4283
        %5000 = vmatpush1.msra.mxu0 %v4282
        %5001 = vmatprep.subr.mxu0 %v4281
        %5002 = vmatpush1.msra.mxu0 %v4280
        %5003 = vmatprep.subr.mxu0 %v4279
        %5004 = vmatpush1.msra.mxu0 %v4278
        %5005 = vmatprep.subr.mxu0 %v4277
        %5006 = vmatpush1.msra.mxu0 %v4276
        %5007 = vmatprep.subr.mxu0 %v4275
        %5008 = vmatpush1.msra.mxu0 %v4274
        %5009 = vmatprep.subr.mxu0 %v4273
        %5010 = vmatpush1.msra.mxu0 %v4272
        %5011 = vmatprep.subr.mxu0 %v4271
        %5012 = vmatpush1.msra.mxu0 %v4270
        %5013 = vmatprep.subr.mxu0 %v4269
        %5014 = vmatpush1.msra.mxu0 %v4268
        %5015 = vmatprep.subr.mxu0 %v4267
        %5016 = vmatpush1.msra.mxu0 %v4266
        %5017 = vmatprep.subr.mxu0 %v4265
        %5018 = vmatpush1.msra.mxu0 %v4264
        %5019 = vmatprep.subr.mxu0 %v4263
        %5020 = vmatpush1.msra.mxu0 %v4262
        %5021 = vmatprep.subr.mxu0 %v4261
        %5022 = vmatpush1.msra.mxu0 %v4260
        %5023 = vmatprep.subr.mxu0 %v4259
        %5024 = vmatpush1.msra.mxu0 %v4258
        %5025 = vmatprep.subr.mxu0 %v4321
        %5026 = vmatpush2.msra.mxu0 %v4320
        %5027 = vmatprep.subr.mxu0 %v4319
        %5028 = vmatpush2.msra.mxu0 %v4318
        %5029 = vmatprep.subr.mxu0 %v4317
        %5030 = vmatpush2.msra.mxu0 %v4316
        %5031 = vmatprep.subr.mxu0 %v4315
        %5032 = vmatpush2.msra.mxu0 %v4314
        %5033 = vmatprep.subr.mxu0 %v4313
        %5034 = vmatpush2.msra.mxu0 %v4312
        %5035 = vmatprep.subr.mxu0 %v4311
        %5036 = vmatpush2.msra.mxu0 %v4310
        %5037 = vmatprep.subr.mxu0 %v4309
        %5038 = vmatpush2.msra.mxu0 %v4308
        %5039 = vmatprep.subr.mxu0 %v4307
        %5040 = vmatpush2.msra.mxu0 %v4306
        %5041 = vmatprep.subr.mxu0 %v4305
        %5042 = vmatpush2.msra.mxu0 %v4304
        %5043 = vmatprep.subr.mxu0 %v4303
        %5044 = vmatpush2.msra.mxu0 %v4302
        %5045 = vmatprep.subr.mxu0 %v4301
        %5046 = vmatpush2.msra.mxu0 %v4300
        %5047 = vmatprep.subr.mxu0 %v4299
        %5048 = vmatpush2.msra.mxu0 %v4298
        %5049 = vmatprep.subr.mxu0 %v4297
        %5050 = vmatpush2.msra.mxu0 %v4296
        %5051 = vmatprep.subr.mxu0 %v4295
        %5052 = vmatpush2.msra.mxu0 %v4294
        %5053 = vmatprep.subr.mxu0 %v4293
        %5054 = vmatpush2.msra.mxu0 %v4292
        %5055 = vmatprep.subr.mxu0 %v4291
        %5056 = vmatpush2.msra.mxu0 %v4290
        %5057 = vmatprep.mubr.f32.mxu0 %v3965
        %5058 = vmatmul.mubr.f32.gmra.mxu0 %v3964
        %v5059 = vpop.f32.mrf.mxu0
        %v5060 = vadd.f32 %v4947, %v5059
        %v5061 = vpop.f32.mrf.mxu0
        %v5062 = vadd.f32 %v4949, %v5061
        %5063 = vmatprep.mubr.f32.mxu0 %v3967
        %5064 = vmatmul.mubr.f32.gmra.mxu0 %v3966
        %v5065 = vpop.f32.mrf.mxu0
        %v5066 = vadd.f32 %v4953, %v5065
        %v5067 = vpop.f32.mrf.mxu0
        %v5068 = vadd.f32 %v4955, %v5067
        %5069 = vmatprep.mubr.f32.mxu0 %v3969
        %5070 = vmatmul.mubr.f32.gmra.mxu0 %v3968
        %v5071 = vpop.f32.mrf.mxu0
        %v5072 = vadd.f32 %v4959, %v5071
        %v5073 = vpop.f32.mrf.mxu0
        %v5074 = vadd.f32 %v4961, %v5073
        %5075 = vmatprep.mubr.f32.mxu0 %v3971
        %5076 = vmatmul.mubr.f32.gmra.mxu0 %v3970
        %v5077 = vpop.f32.mrf.mxu0
        %v5078 = vadd.f32 %v4965, %v5077
        %v5079 = vpop.f32.mrf.mxu0
        %v5080 = vadd.f32 %v4967, %v5079
        %5081 = vmatprep.mubr.f32.mxu0 %v3973
        %5082 = vmatmul.mubr.f32.gmra.mxu0 %v3972
        %v5083 = vpop.f32.mrf.mxu0
        %v5084 = vadd.f32 %v4971, %v5083
        %v5085 = vpop.f32.mrf.mxu0
        %v5086 = vadd.f32 %v4973, %v5085
        %5087 = vmatprep.mubr.f32.mxu0 %v3975
        %5088 = vmatmul.mubr.f32.gmra.mxu0 %v3974
        %v5089 = vpop.f32.mrf.mxu0
        %v5090 = vadd.f32 %v4977, %v5089
        %v5091 = vpop.f32.mrf.mxu0
        %v5092 = vadd.f32 %v4979, %v5091
        %5093 = vmatprep.mubr.f32.mxu0 %v3977
        %5094 = vmatmul.mubr.f32.gmra.mxu0 %v3976
        %v5095 = vpop.f32.mrf.mxu0
        %v5096 = vadd.f32 %v4983, %v5095
        %v5097 = vpop.f32.mrf.mxu0
        %v5098 = vadd.f32 %v4985, %v5097
        %5099 = vmatprep.mubr.f32.mxu0 %v3979
        %5100 = vmatmul.mubr.f32.gmra.mxu0 %v3978
        %v5101 = vpop.f32.mrf.mxu0
        %v5102 = vadd.f32 %v4989, %v5101
        %v5103 = vpop.f32.mrf.mxu0
        %v5104 = vadd.f32 %v4991, %v5103
        %5105 = vdwg.mxu0
        %5106 = vmatprep.subr.mxu0 %v4353
        %5107 = vmatpush1.msra.mxu0 %v4352
        %5108 = vmatprep.subr.mxu0 %v4351
        %5109 = vmatpush1.msra.mxu0 %v4350
        %5110 = vmatprep.subr.mxu0 %v4349
        %5111 = vmatpush1.msra.mxu0 %v4348
        %5112 = vmatprep.subr.mxu0 %v4347
        %5113 = vmatpush1.msra.mxu0 %v4346
        %5114 = vmatprep.subr.mxu0 %v4345
        %5115 = vmatpush1.msra.mxu0 %v4344
        %5116 = vmatprep.subr.mxu0 %v4343
        %5117 = vmatpush1.msra.mxu0 %v4342
        %5118 = vmatprep.subr.mxu0 %v4341
        %5119 = vmatpush1.msra.mxu0 %v4340
        %5120 = vmatprep.subr.mxu0 %v4339
        %5121 = vmatpush1.msra.mxu0 %v4338
        %5122 = vmatprep.subr.mxu0 %v4337
        %5123 = vmatpush1.msra.mxu0 %v4336
        %5124 = vmatprep.subr.mxu0 %v4335
        %5125 = vmatpush1.msra.mxu0 %v4334
        %5126 = vmatprep.subr.mxu0 %v4333
        %5127 = vmatpush1.msra.mxu0 %v4332
        %5128 = vmatprep.subr.mxu0 %v4331
        %5129 = vmatpush1.msra.mxu0 %v4330
        %5130 = vmatprep.subr.mxu0 %v4329
        %5131 = vmatpush1.msra.mxu0 %v4328
        %5132 = vmatprep.subr.mxu0 %v4327
        %5133 = vmatpush1.msra.mxu0 %v4326
        %5134 = vmatprep.subr.mxu0 %v4325
        %5135 = vmatpush1.msra.mxu0 %v4324
        %5136 = vmatprep.subr.mxu0 %v4323
        %5137 = vmatpush1.msra.mxu0 %v4322
        %5138 = vmatprep.subr.mxu0 %v4385
        %5139 = vmatpush2.msra.mxu0 %v4384
        %5140 = vmatprep.subr.mxu0 %v4383
        %5141 = vmatpush2.msra.mxu0 %v4382
        %5142 = vmatprep.subr.mxu0 %v4381
        %5143 = vmatpush2.msra.mxu0 %v4380
        %5144 = vmatprep.subr.mxu0 %v4379
        %5145 = vmatpush2.msra.mxu0 %v4378
        %5146 = vmatprep.subr.mxu0 %v4377
        %5147 = vmatpush2.msra.mxu0 %v4376
        %5148 = vmatprep.subr.mxu0 %v4375
        %5149 = vmatpush2.msra.mxu0 %v4374
        %5150 = vmatprep.subr.mxu0 %v4373
        %5151 = vmatpush2.msra.mxu0 %v4372
        %5152 = vmatprep.subr.mxu0 %v4371
        %5153 = vmatpush2.msra.mxu0 %v4370
        %5154 = vmatprep.subr.mxu0 %v4369
        %5155 = vmatpush2.msra.mxu0 %v4368
        %5156 = vmatprep.subr.mxu0 %v4367
        %5157 = vmatpush2.msra.mxu0 %v4366
        %5158 = vmatprep.subr.mxu0 %v4365
        %5159 = vmatpush2.msra.mxu0 %v4364
        %5160 = vmatprep.subr.mxu0 %v4363
        %5161 = vmatpush2.msra.mxu0 %v4362
        %5162 = vmatprep.subr.mxu0 %v4361
        %5163 = vmatpush2.msra.mxu0 %v4360
        %5164 = vmatprep.subr.mxu0 %v4359
        %5165 = vmatpush2.msra.mxu0 %v4358
        %5166 = vmatprep.subr.mxu0 %v4357
        %5167 = vmatpush2.msra.mxu0 %v4356
        %5168 = vmatprep.subr.mxu0 %v4355
        %5169 = vmatpush2.msra.mxu0 %v4354
        %5170 = vmatprep.mubr.f32.mxu0 %v3881
        %5171 = vmatmul.mubr.f32.gmra.mxu0 %v3880
        %v5172 = vpop.f32.mrf.mxu0
        %v5173 = vadd.f32 %v5060, %v5172
        %v5174 = vpop.f32.mrf.mxu0
        %v5175 = vadd.f32 %v5062, %v5174
        %5176 = vmatprep.mubr.f32.mxu0 %v3883
        %5177 = vmatmul.mubr.f32.gmra.mxu0 %v3882
        %v5178 = vpop.f32.mrf.mxu0
        %v5179 = vadd.f32 %v5066, %v5178
        %v5180 = vpop.f32.mrf.mxu0
        %v5181 = vadd.f32 %v5068, %v5180
        %5182 = vmatprep.mubr.f32.mxu0 %v3885
        %5183 = vmatmul.mubr.f32.gmra.mxu0 %v3884
        %v5184 = vpop.f32.mrf.mxu0
        %v5185 = vadd.f32 %v5072, %v5184
        %v5186 = vpop.f32.mrf.mxu0
        %v5187 = vadd.f32 %v5074, %v5186
        %5188 = vmatprep.mubr.f32.mxu0 %v3887
        %5189 = vmatmul.mubr.f32.gmra.mxu0 %v3886
        %v5190 = vpop.f32.mrf.mxu0
        %v5191 = vadd.f32 %v5078, %v5190
        %v5192 = vpop.f32.mrf.mxu0
        %v5193 = vadd.f32 %v5080, %v5192
        %5194 = vmatprep.mubr.f32.mxu0 %v3889
        %5195 = vmatmul.mubr.f32.gmra.mxu0 %v3888
        %v5196 = vpop.f32.mrf.mxu0
        %v5197 = vadd.f32 %v5084, %v5196
        %v5198 = vpop.f32.mrf.mxu0
        %v5199 = vadd.f32 %v5086, %v5198
        %5200 = vmatprep.mubr.f32.mxu0 %v3891
        %5201 = vmatmul.mubr.f32.gmra.mxu0 %v3890
        %v5202 = vpop.f32.mrf.mxu0
        %v5203 = vadd.f32 %v5090, %v5202
        %v5204 = vpop.f32.mrf.mxu0
        %v5205 = vadd.f32 %v5092, %v5204
        %5206 = vmatprep.mubr.f32.mxu0 %v3893
        %5207 = vmatmul.mubr.f32.gmra.mxu0 %v3892
        %v5208 = vpop.f32.mrf.mxu0
        %v5209 = vadd.f32 %v5096, %v5208
        %v5210 = vpop.f32.mrf.mxu0
        %v5211 = vadd.f32 %v5098, %v5210
        %5212 = vmatprep.mubr.f32.mxu0 %v3895
        %5213 = vmatmul.mubr.f32.gmra.mxu0 %v3894
        %v5214 = vpop.f32.mrf.mxu0
        %v5215 = vadd.f32 %v5102, %v5214
        %v5216 = vpop.f32.mrf.mxu0
        %v5217 = vadd.f32 %v5104, %v5216
        %5218 = vdwg.mxu0
        %5219 = vmatprep.subr.mxu0 %v4417
        %5220 = vmatpush1.msra.mxu0 %v4416
        %5221 = vmatprep.subr.mxu0 %v4415
        %5222 = vmatpush1.msra.mxu0 %v4414
        %5223 = vmatprep.subr.mxu0 %v4413
        %5224 = vmatpush1.msra.mxu0 %v4412
        %5225 = vmatprep.subr.mxu0 %v4411
        %5226 = vmatpush1.msra.mxu0 %v4410
        %5227 = vmatprep.subr.mxu0 %v4409
        %5228 = vmatpush1.msra.mxu0 %v4408
        %5229 = vmatprep.subr.mxu0 %v4407
        %5230 = vmatpush1.msra.mxu0 %v4406
        %5231 = vmatprep.subr.mxu0 %v4405
        %5232 = vmatpush1.msra.mxu0 %v4404
        %5233 = vmatprep.subr.mxu0 %v4403
        %5234 = vmatpush1.msra.mxu0 %v4402
        %5235 = vmatprep.subr.mxu0 %v4401
        %5236 = vmatpush1.msra.mxu0 %v4400
        %5237 = vmatprep.subr.mxu0 %v4399
        %5238 = vmatpush1.msra.mxu0 %v4398
        %5239 = vmatprep.subr.mxu0 %v4397
        %5240 = vmatpush1.msra.mxu0 %v4396
        %5241 = vmatprep.subr.mxu0 %v4395
        %5242 = vmatpush1.msra.mxu0 %v4394
        %5243 = vmatprep.subr.mxu0 %v4393
        %5244 = vmatpush1.msra.mxu0 %v4392
        %5245 = vmatprep.subr.mxu0 %v4391
        %5246 = vmatpush1.msra.mxu0 %v4390
        %5247 = vmatprep.subr.mxu0 %v4389
        %5248 = vmatpush1.msra.mxu0 %v4388
        %5249 = vmatprep.subr.mxu0 %v4387
        %5250 = vmatpush1.msra.mxu0 %v4386
        %5251 = vmatprep.subr.mxu0 %v4449
        %5252 = vmatpush2.msra.mxu0 %v4448
        %5253 = vmatprep.subr.mxu0 %v4447
        %5254 = vmatpush2.msra.mxu0 %v4446
        %5255 = vmatprep.subr.mxu0 %v4445
        %5256 = vmatpush2.msra.mxu0 %v4444
        %5257 = vmatprep.subr.mxu0 %v4443
        %5258 = vmatpush2.msra.mxu0 %v4442
        %5259 = vmatprep.subr.mxu0 %v4441
        %5260 = vmatpush2.msra.mxu0 %v4440
        %5261 = vmatprep.subr.mxu0 %v4439
        %5262 = vmatpush2.msra.mxu0 %v4438
        %5263 = vmatprep.subr.mxu0 %v4437
        %5264 = vmatpush2.msra.mxu0 %v4436
        %5265 = vmatprep.subr.mxu0 %v4435
        %5266 = vmatpush2.msra.mxu0 %v4434
        %5267 = vmatprep.subr.mxu0 %v4433
        %5268 = vmatpush2.msra.mxu0 %v4432
        %5269 = vmatprep.subr.mxu0 %v4431
        %5270 = vmatpush2.msra.mxu0 %v4430
        %5271 = vmatprep.subr.mxu0 %v4429
        %5272 = vmatpush2.msra.mxu0 %v4428
        %5273 = vmatprep.subr.mxu0 %v4427
        %5274 = vmatpush2.msra.mxu0 %v4426
        %5275 = vmatprep.subr.mxu0 %v4425
        %5276 = vmatpush2.msra.mxu0 %v4424
        %5277 = vmatprep.subr.mxu0 %v4423
        %5278 = vmatpush2.msra.mxu0 %v4422
        %5279 = vmatprep.subr.mxu0 %v4421
        %5280 = vmatpush2.msra.mxu0 %v4420
        %5281 = vmatprep.subr.mxu0 %v4419
        %5282 = vmatpush2.msra.mxu0 %v4418
        %5283 = vmatprep.mubr.f32.mxu0 %v4021
        %5284 = vmatmul.mubr.f32.gmra.mxu0 %v4018
        %v5285 = vpop.f32.mrf.mxu0
        %v5286 = vadd.f32 %v5173, %v5285
        %v5287 = vpop.f32.mrf.mxu0
        %v5288 = vadd.f32 %v5175, %v5287
        %5289 = vmatprep.mubr.f32.mxu0 %v4025
        %5290 = vmatmul.mubr.f32.gmra.mxu0 %v4023
        %v5291 = vpop.f32.mrf.mxu0
        %v5292 = vadd.f32 %v5179, %v5291
        %v5293 = vpop.f32.mrf.mxu0
        %v5294 = vadd.f32 %v5181, %v5293
        %5295 = vmatprep.mubr.f32.mxu0 %v4029
        %5296 = vmatmul.mubr.f32.gmra.mxu0 %v4027
        %v5297 = vpop.f32.mrf.mxu0
        %v5298 = vadd.f32 %v5185, %v5297
        %v5299 = vpop.f32.mrf.mxu0
        %v5300 = vadd.f32 %v5187, %v5299
        %5301 = vmatprep.mubr.f32.mxu0 %v4033
        %5302 = vmatmul.mubr.f32.gmra.mxu0 %v4031
        %v5303 = vpop.f32.mrf.mxu0
        %v5304 = vadd.f32 %v5191, %v5303
        %v5305 = vpop.f32.mrf.mxu0
        %v5306 = vadd.f32 %v5193, %v5305
        %5307 = vmatprep.mubr.f32.mxu0 %v4037
        %5308 = vmatmul.mubr.f32.gmra.mxu0 %v4035
        %v5309 = vpop.f32.mrf.mxu0
        %v5310 = vadd.f32 %v5197, %v5309
        %v5311 = vpop.f32.mrf.mxu0
        %v5312 = vadd.f32 %v5199, %v5311
        %5313 = vmatprep.mubr.f32.mxu0 %v4041
        %5314 = vmatmul.mubr.f32.gmra.mxu0 %v4039
        %v5315 = vpop.f32.mrf.mxu0
        %v5316 = vadd.f32 %v5203, %v5315
        %v5317 = vpop.f32.mrf.mxu0
        %v5318 = vadd.f32 %v5205, %v5317
        %5319 = vmatprep.mubr.f32.mxu0 %v4045
        %5320 = vmatmul.mubr.f32.gmra.mxu0 %v4043
        %v5321 = vpop.f32.mrf.mxu0
        %v5322 = vadd.f32 %v5209, %v5321
        %v5323 = vpop.f32.mrf.mxu0
        %v5324 = vadd.f32 %v5211, %v5323
        %5325 = vmatprep.mubr.f32.mxu0 %v4049
        %5326 = vmatmul.mubr.f32.gmra.mxu0 %v4047
        %v5327 = vpop.f32.mrf.mxu0
        %v5328 = vadd.f32 %v5215, %v5327
        %v5329 = vpop.f32.mrf.mxu0
        %v5330 = vadd.f32 %v5217, %v5329
        %5331 = vdwg.mxu0
        %5332 = vmatprep.subr.mxu0 %v4481
        %5333 = vmatpush1.msra.mxu0 %v4480
        %5334 = vmatprep.subr.mxu0 %v4479
        %5335 = vmatpush1.msra.mxu0 %v4478
        %5336 = vmatprep.subr.mxu0 %v4477
        %5337 = vmatpush1.msra.mxu0 %v4476
        %5338 = vmatprep.subr.mxu0 %v4475
        %5339 = vmatpush1.msra.mxu0 %v4474
        %5340 = vmatprep.subr.mxu0 %v4473
        %5341 = vmatpush1.msra.mxu0 %v4472
        %5342 = vmatprep.subr.mxu0 %v4471
        %5343 = vmatpush1.msra.mxu0 %v4470
        %5344 = vmatprep.subr.mxu0 %v4469
        %5345 = vmatpush1.msra.mxu0 %v4468
        %5346 = vmatprep.subr.mxu0 %v4467
        %5347 = vmatpush1.msra.mxu0 %v4466
        %5348 = vmatprep.subr.mxu0 %v4465
        %5349 = vmatpush1.msra.mxu0 %v4464
        %5350 = vmatprep.subr.mxu0 %v4463
        %5351 = vmatpush1.msra.mxu0 %v4462
        %5352 = vmatprep.subr.mxu0 %v4461
        %5353 = vmatpush1.msra.mxu0 %v4460
        %5354 = vmatprep.subr.mxu0 %v4459
        %5355 = vmatpush1.msra.mxu0 %v4458
        %5356 = vmatprep.subr.mxu0 %v4457
        %5357 = vmatpush1.msra.mxu0 %v4456
        %5358 = vmatprep.subr.mxu0 %v4455
        %5359 = vmatpush1.msra.mxu0 %v4454
        %5360 = vmatprep.subr.mxu0 %v4453
        %5361 = vmatpush1.msra.mxu0 %v4452
        %5362 = vmatprep.subr.mxu0 %v4451
        %5363 = vmatpush1.msra.mxu0 %v4450
        %5364 = vmatprep.subr.mxu0 %v4513
        %5365 = vmatpush2.msra.mxu0 %v4512
        %5366 = vmatprep.subr.mxu0 %v4511
        %5367 = vmatpush2.msra.mxu0 %v4510
        %5368 = vmatprep.subr.mxu0 %v4509
        %5369 = vmatpush2.msra.mxu0 %v4508
        %5370 = vmatprep.subr.mxu0 %v4507
        %5371 = vmatpush2.msra.mxu0 %v4506
        %5372 = vmatprep.subr.mxu0 %v4505
        %5373 = vmatpush2.msra.mxu0 %v4504
        %5374 = vmatprep.subr.mxu0 %v4503
        %5375 = vmatpush2.msra.mxu0 %v4502
        %5376 = vmatprep.subr.mxu0 %v4501
        %5377 = vmatpush2.msra.mxu0 %v4500
        %5378 = vmatprep.subr.mxu0 %v4499
        %5379 = vmatpush2.msra.mxu0 %v4498
        %5380 = vmatprep.subr.mxu0 %v4497
        %5381 = vmatpush2.msra.mxu0 %v4496
        %5382 = vmatprep.subr.mxu0 %v4495
        %5383 = vmatpush2.msra.mxu0 %v4494
        %5384 = vmatprep.subr.mxu0 %v4493
        %5385 = vmatpush2.msra.mxu0 %v4492
        %5386 = vmatprep.subr.mxu0 %v4491
        %5387 = vmatpush2.msra.mxu0 %v4490
        %5388 = vmatprep.subr.mxu0 %v4489
        %5389 = vmatpush2.msra.mxu0 %v4488
        %5390 = vmatprep.subr.mxu0 %v4487
        %5391 = vmatpush2.msra.mxu0 %v4486
        %5392 = vmatprep.subr.mxu0 %v4485
        %5393 = vmatpush2.msra.mxu0 %v4484
        %5394 = vmatprep.subr.mxu0 %v4483
        %5395 = vmatpush2.msra.mxu0 %v4482
        %5396 = vmatprep.mubr.f32.mxu0 %v3969
        %5397 = vmatmul.mubr.f32.gmra.mxu0 %v3968
        %v5398 = vpop.f32.mrf.mxu0
        %v5399 = vadd.f32 %v5286, %v5398
        %v5400 = vpop.f32.mrf.mxu0
        %v5401 = vadd.f32 %v5288, %v5400
        %5402 = vmatprep.mubr.f32.mxu0 %v3971
        %5403 = vmatmul.mubr.f32.gmra.mxu0 %v3970
        %v5404 = vpop.f32.mrf.mxu0
        %v5405 = vadd.f32 %v5292, %v5404
        %v5406 = vpop.f32.mrf.mxu0
        %v5407 = vadd.f32 %v5294, %v5406
        %5408 = vmatprep.mubr.f32.mxu0 %v3973
        %5409 = vmatmul.mubr.f32.gmra.mxu0 %v3972
        %v5410 = vpop.f32.mrf.mxu0
        %v5411 = vadd.f32 %v5298, %v5410
        %v5412 = vpop.f32.mrf.mxu0
        %v5413 = vadd.f32 %v5300, %v5412
        %5414 = vmatprep.mubr.f32.mxu0 %v3975
        %5415 = vmatmul.mubr.f32.gmra.mxu0 %v3974
        %v5416 = vpop.f32.mrf.mxu0
        %v5417 = vadd.f32 %v5304, %v5416
        %v5418 = vpop.f32.mrf.mxu0
        %v5419 = vadd.f32 %v5306, %v5418
        %5420 = vmatprep.mubr.f32.mxu0 %v3977
        %5421 = vmatmul.mubr.f32.gmra.mxu0 %v3976
        %v5422 = vpop.f32.mrf.mxu0
        %v5423 = vadd.f32 %v5310, %v5422
        %v5424 = vpop.f32.mrf.mxu0
        %v5425 = vadd.f32 %v5312, %v5424
        %5426 = vmatprep.mubr.f32.mxu0 %v3979
        %5427 = vmatmul.mubr.f32.gmra.mxu0 %v3978
        %v5428 = vpop.f32.mrf.mxu0
        %v5429 = vadd.f32 %v5316, %v5428
        %v5430 = vpop.f32.mrf.mxu0
        %v5431 = vadd.f32 %v5318, %v5430
        %5432 = vmatprep.mubr.f32.mxu0 0.0
        %5433 = vmatmul.mubr.f32.gmra.mxu0 0.0
        %v5434 = vpop.f32.mrf.mxu0
        %v5435 = vadd.f32 %v5322, %v5434
        %v5436 = vpop.f32.mrf.mxu0
        %v5437 = vadd.f32 %v5324, %v5436
        %5438 = vmatprep.mubr.f32.mxu0 0.0
        %5439 = vmatmul.mubr.f32.gmra.mxu0 0.0
        %v5440 = vpop.f32.mrf.mxu0
        %v5441 = vadd.f32 %v5328, %v5440
        %v5442 = vpop.f32.mrf.mxu0
        %v5443 = vadd.f32 %v5330, %v5442
        %5444 = vdwg.mxu0
        %5445 = vmatprep.subr.mxu0 %v4545
        %5446 = vmatpush1.msra.mxu0 %v4544
        %5447 = vmatprep.subr.mxu0 %v4543
        %5448 = vmatpush1.msra.mxu0 %v4542
        %5449 = vmatprep.subr.mxu0 %v4541
        %5450 = vmatpush1.msra.mxu0 %v4540
        %5451 = vmatprep.subr.mxu0 %v4539
        %5452 = vmatpush1.msra.mxu0 %v4538
        %5453 = vmatprep.subr.mxu0 %v4537
        %5454 = vmatpush1.msra.mxu0 %v4536
        %5455 = vmatprep.subr.mxu0 %v4535
        %5456 = vmatpush1.msra.mxu0 %v4534
        %5457 = vmatprep.subr.mxu0 %v4533
        %5458 = vmatpush1.msra.mxu0 %v4532
        %5459 = vmatprep.subr.mxu0 %v4531
        %5460 = vmatpush1.msra.mxu0 %v4530
        %5461 = vmatprep.subr.mxu0 %v4529
        %5462 = vmatpush1.msra.mxu0 %v4528
        %5463 = vmatprep.subr.mxu0 %v4527
        %5464 = vmatpush1.msra.mxu0 %v4526
        %5465 = vmatprep.subr.mxu0 %v4525
        %5466 = vmatpush1.msra.mxu0 %v4524
        %5467 = vmatprep.subr.mxu0 %v4523
        %5468 = vmatpush1.msra.mxu0 %v4522
        %5469 = vmatprep.subr.mxu0 %v4521
        %5470 = vmatpush1.msra.mxu0 %v4520
        %5471 = vmatprep.subr.mxu0 %v4519
        %5472 = vmatpush1.msra.mxu0 %v4518
        %5473 = vmatprep.subr.mxu0 %v4517
        %5474 = vmatpush1.msra.mxu0 %v4516
        %5475 = vmatprep.subr.mxu0 %v4515
        %5476 = vmatpush1.msra.mxu0 %v4514
        %5477 = vmatprep.subr.mxu0 %v4577
        %5478 = vmatpush2.msra.mxu0 %v4576
        %5479 = vmatprep.subr.mxu0 %v4575
        %5480 = vmatpush2.msra.mxu0 %v4574
        %5481 = vmatprep.subr.mxu0 %v4573
        %5482 = vmatpush2.msra.mxu0 %v4572
        %5483 = vmatprep.subr.mxu0 %v4571
        %5484 = vmatpush2.msra.mxu0 %v4570
        %5485 = vmatprep.subr.mxu0 %v4569
        %5486 = vmatpush2.msra.mxu0 %v4568
        %5487 = vmatprep.subr.mxu0 %v4567
        %5488 = vmatpush2.msra.mxu0 %v4566
        %5489 = vmatprep.subr.mxu0 %v4565
        %5490 = vmatpush2.msra.mxu0 %v4564
        %5491 = vmatprep.subr.mxu0 %v4563
        %5492 = vmatpush2.msra.mxu0 %v4562
        %5493 = vmatprep.subr.mxu0 %v4561
        %5494 = vmatpush2.msra.mxu0 %v4560
        %5495 = vmatprep.subr.mxu0 %v4559
        %5496 = vmatpush2.msra.mxu0 %v4558
        %5497 = vmatprep.subr.mxu0 %v4557
        %5498 = vmatpush2.msra.mxu0 %v4556
        %5499 = vmatprep.subr.mxu0 %v4555
        %5500 = vmatpush2.msra.mxu0 %v4554
        %5501 = vmatprep.subr.mxu0 %v4553
        %5502 = vmatpush2.msra.mxu0 %v4552
        %5503 = vmatprep.subr.mxu0 %v4551
        %5504 = vmatpush2.msra.mxu0 %v4550
        %5505 = vmatprep.subr.mxu0 %v4549
        %5506 = vmatpush2.msra.mxu0 %v4548
        %5507 = vmatprep.subr.mxu0 %v4547
        %5508 = vmatpush2.msra.mxu0 %v4546
        %5509 = vmatprep.mubr.f32.mxu0 %v3885
        %5510 = vmatmul.mubr.f32.gmra.mxu0 %v3884
        %v5511 = vpop.f32.mrf.mxu0
        %v5512 = vadd.f32 %v5399, %v5511
        %v5513 = vpop.f32.mrf.mxu0
        %v5514 = vadd.f32 %v5401, %v5513
        %5515 = vmatprep.mubr.f32.mxu0 %v3887
        %5516 = vmatmul.mubr.f32.gmra.mxu0 %v3886
        %v5517 = vpop.f32.mrf.mxu0
        %v5518 = vadd.f32 %v5405, %v5517
        %v5519 = vpop.f32.mrf.mxu0
        %v5520 = vadd.f32 %v5407, %v5519
        %5521 = vmatprep.mubr.f32.mxu0 %v3889
        %5522 = vmatmul.mubr.f32.gmra.mxu0 %v3888
        %v5523 = vpop.f32.mrf.mxu0
        %v5524 = vadd.f32 %v5411, %v5523
        %v5525 = vpop.f32.mrf.mxu0
        %v5526 = vadd.f32 %v5413, %v5525
        %5527 = vmatprep.mubr.f32.mxu0 %v3891
        %5528 = vmatmul.mubr.f32.gmra.mxu0 %v3890
        %v5529 = vpop.f32.mrf.mxu0
        %v5530 = vadd.f32 %v5417, %v5529
        %v5531 = vpop.f32.mrf.mxu0
        %v5532 = vadd.f32 %v5419, %v5531
        %5533 = vmatprep.mubr.f32.mxu0 %v3893
        %5534 = vmatmul.mubr.f32.gmra.mxu0 %v3892
        %v5535 = vpop.f32.mrf.mxu0
        %v5536 = vadd.f32 %v5423, %v5535
        %v5537 = vpop.f32.mrf.mxu0
        %v5538 = vadd.f32 %v5425, %v5537
        %5539 = vmatprep.mubr.f32.mxu0 %v3895
        %5540 = vmatmul.mubr.f32.gmra.mxu0 %v3894
        %v5541 = vpop.f32.mrf.mxu0
        %v5542 = vadd.f32 %v5429, %v5541
        %v5543 = vpop.f32.mrf.mxu0
        %v5544 = vadd.f32 %v5431, %v5543
        %5545 = vmatprep.mubr.f32.mxu0 0.0
        %5546 = vmatmul.mubr.f32.gmra.mxu0 0.0
        %v5547 = vpop.f32.mrf.mxu0
        %v5548 = vadd.f32 %v5435, %v5547
        %v5549 = vpop.f32.mrf.mxu0
        %v5550 = vadd.f32 %v5437, %v5549
        %5551 = vmatprep.mubr.f32.mxu0 0.0
        %5552 = vmatmul.mubr.f32.gmra.mxu0 0.0
        %v5553 = vpop.f32.mrf.mxu0
        %v5554 = vadd.f32 %v5441, %v5553
        %v5555 = vpop.f32.mrf.mxu0
        %v5556 = vadd.f32 %v5443, %v5555
        %5557 = vdwg.mxu0
        %5558 = vmatprep.subr.mxu0 %v4609
        %5559 = vmatpush1.msra.mxu0 %v4608
        %5560 = vmatprep.subr.mxu0 %v4607
        %5561 = vmatpush1.msra.mxu0 %v4606
        %5562 = vmatprep.subr.mxu0 %v4605
        %5563 = vmatpush1.msra.mxu0 %v4604
        %5564 = vmatprep.subr.mxu0 %v4603
        %5565 = vmatpush1.msra.mxu0 %v4602
        %5566 = vmatprep.subr.mxu0 %v4601
        %5567 = vmatpush1.msra.mxu0 %v4600
        %5568 = vmatprep.subr.mxu0 %v4599
        %5569 = vmatpush1.msra.mxu0 %v4598
        %5570 = vmatprep.subr.mxu0 %v4597
        %5571 = vmatpush1.msra.mxu0 %v4596
        %5572 = vmatprep.subr.mxu0 %v4595
        %5573 = vmatpush1.msra.mxu0 %v4594
        %5574 = vmatprep.subr.mxu0 %v4593
        %5575 = vmatpush1.msra.mxu0 %v4592
        %5576 = vmatprep.subr.mxu0 %v4591
        %5577 = vmatpush1.msra.mxu0 %v4590
        %5578 = vmatprep.subr.mxu0 %v4589
        %5579 = vmatpush1.msra.mxu0 %v4588
        %5580 = vmatprep.subr.mxu0 %v4587
        %5581 = vmatpush1.msra.mxu0 %v4586
        %5582 = vmatprep.subr.mxu0 %v4585
        %5583 = vmatpush1.msra.mxu0 %v4584
        %5584 = vmatprep.subr.mxu0 %v4583
        %5585 = vmatpush1.msra.mxu0 %v4582
        %5586 = vmatprep.subr.mxu0 %v4581
        %5587 = vmatpush1.msra.mxu0 %v4580
        %5588 = vmatprep.subr.mxu0 %v4579
        %5589 = vmatpush1.msra.mxu0 %v4578
        %5590 = vmatprep.subr.mxu0 %v4641
        %5591 = vmatpush2.msra.mxu0 %v4640
        %5592 = vmatprep.subr.mxu0 %v4639
        %5593 = vmatpush2.msra.mxu0 %v4638
        %5594 = vmatprep.subr.mxu0 %v4637
        %5595 = vmatpush2.msra.mxu0 %v4636
        %5596 = vmatprep.subr.mxu0 %v4635
        %5597 = vmatpush2.msra.mxu0 %v4634
        %5598 = vmatprep.subr.mxu0 %v4633
        %5599 = vmatpush2.msra.mxu0 %v4632
        %5600 = vmatprep.subr.mxu0 %v4631
        %5601 = vmatpush2.msra.mxu0 %v4630
        %5602 = vmatprep.subr.mxu0 %v4629
        %5603 = vmatpush2.msra.mxu0 %v4628
        %5604 = vmatprep.subr.mxu0 %v4627
        %5605 = vmatpush2.msra.mxu0 %v4626
        %5606 = vmatprep.subr.mxu0 %v4625
        %5607 = vmatpush2.msra.mxu0 %v4624
        %5608 = vmatprep.subr.mxu0 %v4623
        %5609 = vmatpush2.msra.mxu0 %v4622
        %5610 = vmatprep.subr.mxu0 %v4621
        %5611 = vmatpush2.msra.mxu0 %v4620
        %5612 = vmatprep.subr.mxu0 %v4619
        %5613 = vmatpush2.msra.mxu0 %v4618
        %5614 = vmatprep.subr.mxu0 %v4617
        %5615 = vmatpush2.msra.mxu0 %v4616
        %5616 = vmatprep.subr.mxu0 %v4615
        %5617 = vmatpush2.msra.mxu0 %v4614
        %5618 = vmatprep.subr.mxu0 %v4613
        %5619 = vmatpush2.msra.mxu0 %v4612
        %5620 = vmatprep.subr.mxu0 %v4611
        %5621 = vmatpush2.msra.mxu0 %v4610
        %5622 = vmatprep.mubr.f32.mxu0 %v4029
        %5623 = vmatmul.mubr.f32.gmra.mxu0 %v4027
        %v5624 = vpop.f32.mrf.mxu0
        %v5625 = vadd.f32 %v5512, %v5624
        %v5626 = vpop.f32.mrf.mxu0
        %v5627 = vadd.f32 %v5514, %v5626
        %5628 = vmatprep.mubr.f32.mxu0 %v4033
        %5629 = vmatmul.mubr.f32.gmra.mxu0 %v4031
        %v5630 = vpop.f32.mrf.mxu0
        %v5631 = vadd.f32 %v5518, %v5630
        %v5632 = vpop.f32.mrf.mxu0
        %v5633 = vadd.f32 %v5520, %v5632
        %5634 = vmatprep.mubr.f32.mxu0 %v4037
        %5635 = vmatmul.mubr.f32.gmra.mxu0 %v4035
        %v5636 = vpop.f32.mrf.mxu0
        %v5637 = vadd.f32 %v5524, %v5636
        %v5638 = vpop.f32.mrf.mxu0
        %v5639 = vadd.f32 %v5526, %v5638
        %5640 = vmatprep.mubr.f32.mxu0 %v4041
        %5641 = vmatmul.mubr.f32.gmra.mxu0 %v4039
        %v5642 = vpop.f32.mrf.mxu0
        %v5643 = vadd.f32 %v5530, %v5642
        %v5644 = vpop.f32.mrf.mxu0
        %v5645 = vadd.f32 %v5532, %v5644
        %5646 = vmatprep.mubr.f32.mxu0 %v4045
        %5647 = vmatmul.mubr.f32.gmra.mxu0 %v4043
        %v5648 = vpop.f32.mrf.mxu0
        %v5649 = vadd.f32 %v5536, %v5648
        %v5650 = vpop.f32.mrf.mxu0
        %v5651 = vadd.f32 %v5538, %v5650
        %5652 = vmatprep.mubr.f32.mxu0 %v4049
        %5653 = vmatmul.mubr.f32.gmra.mxu0 %v4047
        %v5654 = vpop.f32.mrf.mxu0
        %v5655 = vadd.f32 %v5542, %v5654
        %v5656 = vpop.f32.mrf.mxu0
        %v5657 = vadd.f32 %v5544, %v5656
        %5658 = vmatprep.mubr.f32.mxu0 0.0
        %5659 = vmatmul.mubr.f32.gmra.mxu0 0.0
        %v5660 = vpop.f32.mrf.mxu0
        %v5661 = vadd.f32 %v5548, %v5660
        %v5662 = vpop.f32.mrf.mxu0
        %v5663 = vadd.f32 %v5550, %v5662
        %5664 = vmatprep.mubr.f32.mxu0 0.0
        %5665 = vmatmul.mubr.f32.gmra.mxu0 0.0
        %v5666 = vpop.f32.mrf.mxu0
        %v5667 = vadd.f32 %v5554, %v5666
        %v5668 = vpop.f32.mrf.mxu0
        %v5669 = vadd.f32 %v5556, %v5668
        %5670 = vdwg.mxu0
        %v5671 = vadd.f32 %v5625, %v5631
        %v5672 = vadd.f32 %v5671, %v5637
        %v5673 = vadd.f32 %v5672, %v5643
        %v5674 = vadd.f32 %v5673, %v5649
        %v5675 = vadd.f32 %v5674, %v5655
        %v5676 = vadd.f32 %v5675, %v5661
        %v5677 = vadd.f32 %v5676, %v5667
        %v5678 = vrot.slane %v5677, 4
        %v5679 = vadd.f32 %v5677, %v5678
        %v5680 = vrot.slane %v5679, 2
        %v5681 = vadd.f32 %v5679, %v5680
        %v5682 = vrot.slane %v5681, 1
        %v5683 = vadd.f32 %v5681, %v5682
        %v5684 = vadd.f32 %v5627, %v5633
        %v5685 = vadd.f32 %v5684, %v5639
        %v5686 = vadd.f32 %v5685, %v5645
        %v5687 = vadd.f32 %v5686, %v5651
        %v5688 = vadd.f32 %v5687, %v5657
        %v5689 = vadd.f32 %v5688, %v5663
        %v5690 = vadd.f32 %v5689, %v5669
        %v5691 = vrot.slane %v5690, 4
        %v5692 = vadd.f32 %v5690, %v5691
        %v5693 = vrot.slane %v5692, 2
        %v5694 = vadd.f32 %v5692, %v5693
        %v5695 = vrot.slane %v5694, 1
        %v5696 = vadd.f32 %v5694, %v5695
        %v5697 = vld [vmem:[#allocation17] sm:$0xff]
        %v5698 = vld [vmem:[#allocation17 + $0x8] sm:$0xff]
        %v5699 = vld [vmem:[#allocation17 + $0x10] sm:$0xff]
        %v5700 = vld [vmem:[#allocation17 + $0x18] sm:$0xff]
        %v5701 = vld [vmem:[#allocation17 + $0x20] sm:$0xff]
        %v5702 = vld [vmem:[#allocation17 + $0x28] sm:$0xff]
        %v5703 = vld [vmem:[#allocation17 + $0x30] sm:$0xff]
        %v5704 = vld [vmem:[#allocation17 + $0x38] sm:$0xff]
        %v5705 = vld [vmem:[#allocation17 + $0x40] sm:$0xff]
        %v5706 = vld [vmem:[#allocation17 + $0x48] sm:$0xff]
        %v5707 = vld [vmem:[#allocation17 + $0x50] sm:$0xff]
        %v5708 = vld [vmem:[#allocation17 + $0x58] sm:$0xff]
        %v5709 = vld [vmem:[#allocation17 + $0x60] sm:$0xff]
        %v5710 = vld [vmem:[#allocation17 + $0x68] sm:$0xff]
        %v5711 = vld [vmem:[#allocation17 + $0x70] sm:$0xff]
        %v5712 = vld [vmem:[#allocation17 + $0x78] sm:$0xff]
        %v5713 = vld [vmem:[#allocation17 + $0x80] sm:$0xff]
        %v5714 = vld [vmem:[#allocation17 + $0x88] sm:$0xff]
        %v5715 = vld [vmem:[#allocation17 + $0x90] sm:$0xff]
        %v5716 = vld [vmem:[#allocation17 + $0x98] sm:$0xff]
        %v5717 = vld [vmem:[#allocation17 + $0xa0] sm:$0xff]
        %v5718 = vld [vmem:[#allocation17 + $0xa8] sm:$0xff]
        %v5719 = vld [vmem:[#allocation17 + $0xb0] sm:$0xff]
        %v5720 = vld [vmem:[#allocation17 + $0xb8] sm:$0xff]
        %v5721 = vld [vmem:[#allocation17 + $0xc0] sm:$0xff]
        %v5722 = vld [vmem:[#allocation17 + $0xc8] sm:$0xff]
        %v5723 = vld [vmem:[#allocation17 + $0xd0] sm:$0xff]
        %v5724 = vld [vmem:[#allocation17 + $0xd8] sm:$0xff]
        %v5725 = vld [vmem:[#allocation17 + $0xe0] sm:$0xff]
        %v5726 = vld [vmem:[#allocation17 + $0xe8] sm:$0xff]
        %v5727 = vld [vmem:[#allocation17 + $0xf0] sm:$0xff]
        %v5728 = vld [vmem:[#allocation17 + $0xf8] sm:$0xff]
        %v5729 = vld [vmem:[#allocation17 + $0x100] sm:$0xff]
        %v5730 = vld [vmem:[#allocation17 + $0x108] sm:$0xff]
        %v5731 = vld [vmem:[#allocation17 + $0x110] sm:$0xff]
        %v5732 = vld [vmem:[#allocation17 + $0x118] sm:$0xff]
        %v5733 = vld [vmem:[#allocation17 + $0x120] sm:$0xff]
        %v5734 = vld [vmem:[#allocation17 + $0x128] sm:$0xff]
        %v5735 = vld [vmem:[#allocation17 + $0x130] sm:$0xff]
        %v5736 = vld [vmem:[#allocation17 + $0x138] sm:$0xff]
        %v5737 = vld [vmem:[#allocation17 + $0x140] sm:$0xff]
        %v5738 = vld [vmem:[#allocation17 + $0x148] sm:$0xff]
        %v5739 = vld [vmem:[#allocation17 + $0x150] sm:$0xff]
        %v5740 = vld [vmem:[#allocation17 + $0x158] sm:$0xff]
        %v5741 = vld [vmem:[#allocation17 + $0x160] sm:$0xff]
        %v5742 = vld [vmem:[#allocation17 + $0x168] sm:$0xff]
        %v5743 = vld [vmem:[#allocation17 + $0x170] sm:$0xff]
        %v5744 = vld [vmem:[#allocation17 + $0x178] sm:$0xff]
        %v5745 = vld [vmem:[#allocation17 + $0x180] sm:$0xff]
        %v5746 = vld [vmem:[#allocation17 + $0x188] sm:$0xff]
        %v5747 = vld [vmem:[#allocation17 + $0x190] sm:$0xff]
        %v5748 = vld [vmem:[#allocation17 + $0x198] sm:$0xff]
        %v5749 = vld [vmem:[#allocation17 + $0x1a0] sm:$0xff]
        %v5750 = vld [vmem:[#allocation17 + $0x1a8] sm:$0xff]
        %v5751 = vld [vmem:[#allocation17 + $0x1b0] sm:$0xff]
        %v5752 = vld [vmem:[#allocation17 + $0x1b8] sm:$0xff]
        %v5753 = vld [vmem:[#allocation17 + $0x1c0] sm:$0xff]
        %v5754 = vld [vmem:[#allocation17 + $0x1c8] sm:$0xff]
        %v5755 = vld [vmem:[#allocation17 + $0x1d0] sm:$0xff]
        %v5756 = vld [vmem:[#allocation17 + $0x1d8] sm:$0xff]
        %v5757 = vld [vmem:[#allocation17 + $0x1e0] sm:$0xff]
        %v5758 = vld [vmem:[#allocation17 + $0x1e8] sm:$0xff]
        %v5759 = vld [vmem:[#allocation17 + $0x1f0] sm:$0xff]
        %v5760 = vld [vmem:[#allocation17 + $0x1f8] sm:$0xff]
        %5761 = vmatprep.subr.mxu0 %v5728
        %5762 = vmatpush1.msra.mxu0 %v5727
        %5763 = vmatprep.subr.mxu0 %v5726
        %5764 = vmatpush1.msra.mxu0 %v5725
        %5765 = vmatprep.subr.mxu0 %v5724
        %5766 = vmatpush1.msra.mxu0 %v5723
        %5767 = vmatprep.subr.mxu0 %v5722
        %5768 = vmatpush1.msra.mxu0 %v5721
        %5769 = vmatprep.subr.mxu0 %v5720
        %5770 = vmatpush1.msra.mxu0 %v5719
        %5771 = vmatprep.subr.mxu0 %v5718
        %5772 = vmatpush1.msra.mxu0 %v5717
        %5773 = vmatprep.subr.mxu0 %v5716
        %5774 = vmatpush1.msra.mxu0 %v5715
        %5775 = vmatprep.subr.mxu0 %v5714
        %5776 = vmatpush1.msra.mxu0 %v5713
        %5777 = vmatprep.subr.mxu0 %v5712
        %5778 = vmatpush1.msra.mxu0 %v5711
        %5779 = vmatprep.subr.mxu0 %v5710
        %5780 = vmatpush1.msra.mxu0 %v5709
        %5781 = vmatprep.subr.mxu0 %v5708
        %5782 = vmatpush1.msra.mxu0 %v5707
        %5783 = vmatprep.subr.mxu0 %v5706
        %5784 = vmatpush1.msra.mxu0 %v5705
        %5785 = vmatprep.subr.mxu0 %v5704
        %5786 = vmatpush1.msra.mxu0 %v5703
        %5787 = vmatprep.subr.mxu0 %v5702
        %5788 = vmatpush1.msra.mxu0 %v5701
        %5789 = vmatprep.subr.mxu0 %v5700
        %5790 = vmatpush1.msra.mxu0 %v5699
        %5791 = vmatprep.subr.mxu0 %v5698
        %5792 = vmatpush1.msra.mxu0 %v5697
        %5793 = vmatprep.subr.mxu0 %v5760
        %5794 = vmatpush2.msra.mxu0 %v5759
        %5795 = vmatprep.subr.mxu0 %v5758
        %5796 = vmatpush2.msra.mxu0 %v5757
        %5797 = vmatprep.subr.mxu0 %v5756
        %5798 = vmatpush2.msra.mxu0 %v5755
        %5799 = vmatprep.subr.mxu0 %v5754
        %5800 = vmatpush2.msra.mxu0 %v5753
        %5801 = vmatprep.subr.mxu0 %v5752
        %5802 = vmatpush2.msra.mxu0 %v5751
        %5803 = vmatprep.subr.mxu0 %v5750
        %5804 = vmatpush2.msra.mxu0 %v5749
        %5805 = vmatprep.subr.mxu0 %v5748
        %5806 = vmatpush2.msra.mxu0 %v5747
        %5807 = vmatprep.subr.mxu0 %v5746
        %5808 = vmatpush2.msra.mxu0 %v5745
        %5809 = vmatprep.subr.mxu0 %v5744
        %5810 = vmatpush2.msra.mxu0 %v5743
        %5811 = vmatprep.subr.mxu0 %v5742
        %5812 = vmatpush2.msra.mxu0 %v5741
        %5813 = vmatprep.subr.mxu0 %v5740
        %5814 = vmatpush2.msra.mxu0 %v5739
        %5815 = vmatprep.subr.mxu0 %v5738
        %5816 = vmatpush2.msra.mxu0 %v5737
        %5817 = vmatprep.subr.mxu0 %v5736
        %5818 = vmatpush2.msra.mxu0 %v5735
        %5819 = vmatprep.subr.mxu0 %v5734
        %5820 = vmatpush2.msra.mxu0 %v5733
        %5821 = vmatprep.subr.mxu0 %v5732
        %5822 = vmatpush2.msra.mxu0 %v5731
        %5823 = vmatprep.subr.mxu0 %v5730
        %5824 = vmatpush2.msra.mxu0 %v5729
        %5825 = vmatprep.mubr.f32.mxu0 %v5696
        %5826 = vmatmul.mubr.f32.gmra.mxu0 %v5683
        %v5827 = vpop.f32.mrf.mxu0
        %v5828 = vadd.f32 0.0, %v5827
        %v5829 = vpop.f32.mrf.mxu0
        %v5830 = vadd.f32 0.0, %v5829
        %5831 = vdwg.mxu0
        %v5832 = vmul.f32 %v5828, 0.0009765625
        %v5833 = vmul.f32 %v5830, 0.0009765625
        %v5834 = vlaneseq
        %v5835 = vshrl.u32 %v5834, 7
        %v5836 = vsub.s32 0, %v5835
        %v5837 = vrot.slane %v5832, %v5836
        %v5838 = vlaneseq
        %v5839 = vshrl.u32 %v5838, 7
        %v5840 = vsub.s32 0, %v5839
        %v5841 = vrot.slane %v5833, %v5840
        %v5842 = vsub.f32 %v5625, %v5837
        %v5843 = vsub.f32 %v5627, %v5841
        %v5844 = vsub.f32 %v5631, %v5837
        %v5845 = vsub.f32 %v5633, %v5841
        %v5846 = vsub.f32 %v5637, %v5837
        %v5847 = vsub.f32 %v5639, %v5841
        %v5848 = vsub.f32 %v5643, %v5837
        %v5849 = vsub.f32 %v5645, %v5841
        %v5850 = vsub.f32 %v5649, %v5837
        %v5851 = vsub.f32 %v5651, %v5841
        %v5852 = vsub.f32 %v5655, %v5837
        %v5853 = vsub.f32 %v5657, %v5841
        %v5854 = vsub.f32 %v5661, %v5837
        %v5855 = vsub.f32 %v5663, %v5841
        %v5856 = vsub.f32 %v5667, %v5837
        %v5857 = vsub.f32 %v5669, %v5841
        %v5858 = vmul.f32 %v5842, %v5842
        %v5859 = vmul.f32 %v5843, %v5843
        %v5860 = vmul.f32 %v5844, %v5844
        %v5861 = vmul.f32 %v5845, %v5845
        %v5862 = vmul.f32 %v5846, %v5846
        %v5863 = vmul.f32 %v5847, %v5847
        %v5864 = vmul.f32 %v5848, %v5848
        %v5865 = vmul.f32 %v5849, %v5849
        %v5866 = vmul.f32 %v5850, %v5850
        %v5867 = vmul.f32 %v5851, %v5851
        %v5868 = vmul.f32 %v5852, %v5852
        %v5869 = vmul.f32 %v5853, %v5853
        %v5870 = vmul.f32 %v5854, %v5854
        %v5871 = vmul.f32 %v5855, %v5855
        %v5872 = vmul.f32 %v5856, %v5856
        %v5873 = vmul.f32 %v5857, %v5857
        %v5874 = vadd.f32 %v5858, %v5860
        %v5875 = vadd.f32 %v5874, %v5862
        %v5876 = vadd.f32 %v5875, %v5864
        %v5877 = vadd.f32 %v5876, %v5866
        %v5878 = vadd.f32 %v5877, %v5868
        %v5879 = vadd.f32 %v5878, %v5870
        %v5880 = vadd.f32 %v5879, %v5872
        %v5881 = vrot.slane %v5880, 4
        %v5882 = vadd.f32 %v5880, %v5881
        %v5883 = vrot.slane %v5882, 2
        %v5884 = vadd.f32 %v5882, %v5883
        %v5885 = vrot.slane %v5884, 1
        %v5886 = vadd.f32 %v5884, %v5885
        %v5887 = vadd.f32 %v5859, %v5861
        %v5888 = vadd.f32 %v5887, %v5863
        %v5889 = vadd.f32 %v5888, %v5865
        %v5890 = vadd.f32 %v5889, %v5867
        %v5891 = vadd.f32 %v5890, %v5869
        %v5892 = vadd.f32 %v5891, %v5871
        %v5893 = vadd.f32 %v5892, %v5873
        %v5894 = vrot.slane %v5893, 4
        %v5895 = vadd.f32 %v5893, %v5894
        %v5896 = vrot.slane %v5895, 2
        %v5897 = vadd.f32 %v5895, %v5896
        %v5898 = vrot.slane %v5897, 1
        %v5899 = vadd.f32 %v5897, %v5898
        %5900 = vmatprep.subr.mxu0 %v5728
        %5901 = vmatpush1.msra.mxu0 %v5727
        %5902 = vmatprep.subr.mxu0 %v5726
        %5903 = vmatpush1.msra.mxu0 %v5725
        %5904 = vmatprep.subr.mxu0 %v5724
        %5905 = vmatpush1.msra.mxu0 %v5723
        %5906 = vmatprep.subr.mxu0 %v5722
        %5907 = vmatpush1.msra.mxu0 %v5721
        %5908 = vmatprep.subr.mxu0 %v5720
        %5909 = vmatpush1.msra.mxu0 %v5719
        %5910 = vmatprep.subr.mxu0 %v5718
        %5911 = vmatpush1.msra.mxu0 %v5717
        %5912 = vmatprep.subr.mxu0 %v5716
        %5913 = vmatpush1.msra.mxu0 %v5715
        %5914 = vmatprep.subr.mxu0 %v5714
        %5915 = vmatpush1.msra.mxu0 %v5713
        %5916 = vmatprep.subr.mxu0 %v5712
        %5917 = vmatpush1.msra.mxu0 %v5711
        %5918 = vmatprep.subr.mxu0 %v5710
        %5919 = vmatpush1.msra.mxu0 %v5709
        %5920 = vmatprep.subr.mxu0 %v5708
        %5921 = vmatpush1.msra.mxu0 %v5707
        %5922 = vmatprep.subr.mxu0 %v5706
        %5923 = vmatpush1.msra.mxu0 %v5705
        %5924 = vmatprep.subr.mxu0 %v5704
        %5925 = vmatpush1.msra.mxu0 %v5703
        %5926 = vmatprep.subr.mxu0 %v5702
        %5927 = vmatpush1.msra.mxu0 %v5701
        %5928 = vmatprep.subr.mxu0 %v5700
        %5929 = vmatpush1.msra.mxu0 %v5699
        %5930 = vmatprep.subr.mxu0 %v5698
        %5931 = vmatpush1.msra.mxu0 %v5697
        %5932 = vmatprep.subr.mxu0 %v5760
        %5933 = vmatpush2.msra.mxu0 %v5759
        %5934 = vmatprep.subr.mxu0 %v5758
        %5935 = vmatpush2.msra.mxu0 %v5757
        %5936 = vmatprep.subr.mxu0 %v5756
        %5937 = vmatpush2.msra.mxu0 %v5755
        %5938 = vmatprep.subr.mxu0 %v5754
        %5939 = vmatpush2.msra.mxu0 %v5753
        %5940 = vmatprep.subr.mxu0 %v5752
        %5941 = vmatpush2.msra.mxu0 %v5751
        %5942 = vmatprep.subr.mxu0 %v5750
        %5943 = vmatpush2.msra.mxu0 %v5749
        %5944 = vmatprep.subr.mxu0 %v5748
        %5945 = vmatpush2.msra.mxu0 %v5747
        %5946 = vmatprep.subr.mxu0 %v5746
        %5947 = vmatpush2.msra.mxu0 %v5745
        %5948 = vmatprep.subr.mxu0 %v5744
        %5949 = vmatpush2.msra.mxu0 %v5743
        %5950 = vmatprep.subr.mxu0 %v5742
        %5951 = vmatpush2.msra.mxu0 %v5741
        %5952 = vmatprep.subr.mxu0 %v5740
        %5953 = vmatpush2.msra.mxu0 %v5739
        %5954 = vmatprep.subr.mxu0 %v5738
        %5955 = vmatpush2.msra.mxu0 %v5737
        %5956 = vmatprep.subr.mxu0 %v5736
        %5957 = vmatpush2.msra.mxu0 %v5735
        %5958 = vmatprep.subr.mxu0 %v5734
        %5959 = vmatpush2.msra.mxu0 %v5733
        %5960 = vmatprep.subr.mxu0 %v5732
        %5961 = vmatpush2.msra.mxu0 %v5731
        %5962 = vmatprep.subr.mxu0 %v5730
        %5963 = vmatpush2.msra.mxu0 %v5729
        %5964 = vmatprep.mubr.f32.mxu0 %v5899
        %5965 = vmatmul.mubr.f32.gmra.mxu0 %v5886
        %v5966 = vpop.f32.mrf.mxu0
        %v5967 = vadd.f32 0.0, %v5966
        %v5968 = vpop.f32.mrf.mxu0
        %v5969 = vadd.f32 0.0, %v5968
        %5970 = vdwg.mxu0
        %v5971 = vmul.f32 %v5967, 0.0009765625
        %v5972 = vmul.f32 %v5969, 0.0009765625
        %v5973 = vadd.f32 %v5971, 1e-05
        %v5974 = vadd.f32 %v5972, 1e-05
        %v5975 = vrsqrt.pop %v5973
        %v5976 = vrsqrt.pop %v5974
        %v5977 = vlaneseq
        %v5978 = vshrl.u32 %v5977, 7
        %v5979 = vsub.s32 0, %v5978
        %v5980 = vrot.slane %v5975, %v5979
        %v5981 = vlaneseq
        %v5982 = vshrl.u32 %v5981, 7
        %v5983 = vsub.s32 0, %v5982
        %v5984 = vrot.slane %v5976, %v5983
        %v5985 = vmul.f32 %v5842, %v5980
        %v5986 = vmul.f32 %v5843, %v5984
        %v5987 = vmul.f32 %v5844, %v5980
        %v5988 = vmul.f32 %v5845, %v5984
        %v5989 = vmul.f32 %v5846, %v5980
        %v5990 = vmul.f32 %v5847, %v5984
        %v5991 = vmul.f32 %v5848, %v5980
        %v5992 = vmul.f32 %v5849, %v5984
        %v5993 = vmul.f32 %v5850, %v5980
        %v5994 = vmul.f32 %v5851, %v5984
        %v5995 = vmul.f32 %v5852, %v5980
        %v5996 = vmul.f32 %v5853, %v5984
        %v5997 = vmul.f32 %v5854, %v5980
        %v5998 = vmul.f32 %v5855, %v5984
        %v5999 = vmul.f32 %v5856, %v5980
        %v6000 = vmul.f32 %v5857, %v5984
        %v6001 = vmul.f32 %v5985, 0.70710677
        %v6002 = vmul.f32 %v5986, 0.70710677
        %v6003 = vmul.f32 %v5987, 0.70710677
        %v6004 = vmul.f32 %v5988, 0.70710677
        %v6005 = vmul.f32 %v5989, 0.70710677
        %v6006 = vmul.f32 %v5990, 0.70710677
        %v6007 = vmul.f32 %v5991, 0.70710677
        %v6008 = vmul.f32 %v5992, 0.70710677
        %v6009 = vmul.f32 %v5993, 0.70710677
        %v6010 = vmul.f32 %v5994, 0.70710677
        %v6011 = vmul.f32 %v5995, 0.70710677
        %v6012 = vmul.f32 %v5996, 0.70710677
        %v6013 = vmul.f32 %v5997, 0.70710677
        %v6014 = vmul.f32 %v5998, 0.70710677
        %v6015 = vmul.f32 %v5999, 0.70710677
        %v6016 = vmul.f32 %v6000, 0.70710677
        %v6017 = vand.u32 2147483647, %v6001
        %v6018 = vand.u32 2147483647, %v6002
        %v6019 = vand.u32 2147483647, %v6003
        %v6020 = vand.u32 2147483647, %v6004
        %v6021 = vand.u32 2147483647, %v6005
        %v6022 = vand.u32 2147483647, %v6006
        %v6023 = vand.u32 2147483647, %v6007
        %v6024 = vand.u32 2147483647, %v6008
        %v6025 = vand.u32 2147483647, %v6009
        %v6026 = vand.u32 2147483647, %v6010
        %v6027 = vand.u32 2147483647, %v6011
        %v6028 = vand.u32 2147483647, %v6012
        %v6029 = vand.u32 2147483647, %v6013
        %v6030 = vand.u32 2147483647, %v6014
        %v6031 = vand.u32 2147483647, %v6015
        %v6032 = vand.u32 2147483647, %v6016
        %v6033 = vmul.f32 %v6017, 0.3275911
        %v6034 = vmul.f32 %v6018, 0.3275911
        %v6035 = vmul.f32 %v6019, 0.3275911
        %v6036 = vmul.f32 %v6020, 0.3275911
        %v6037 = vmul.f32 %v6021, 0.3275911
        %v6038 = vmul.f32 %v6022, 0.3275911
        %v6039 = vmul.f32 %v6023, 0.3275911
        %v6040 = vmul.f32 %v6024, 0.3275911
        %v6041 = vmul.f32 %v6025, 0.3275911
        %v6042 = vmul.f32 %v6026, 0.3275911
        %v6043 = vmul.f32 %v6027, 0.3275911
        %v6044 = vmul.f32 %v6028, 0.3275911
        %v6045 = vmul.f32 %v6029, 0.3275911
        %v6046 = vmul.f32 %v6030, 0.3275911
        %v6047 = vmul.f32 %v6031, 0.3275911
        %v6048 = vmul.f32 %v6032, 0.3275911
        %v6049 = vadd.f32 %v6033, 1.0
        %v6050 = vadd.f32 %v6034, 1.0
        %v6051 = vadd.f32 %v6035, 1.0
        %v6052 = vadd.f32 %v6036, 1.0
        %v6053 = vadd.f32 %v6037, 1.0
        %v6054 = vadd.f32 %v6038, 1.0
        %v6055 = vadd.f32 %v6039, 1.0
        %v6056 = vadd.f32 %v6040, 1.0
        %v6057 = vadd.f32 %v6041, 1.0
        %v6058 = vadd.f32 %v6042, 1.0
        %v6059 = vadd.f32 %v6043, 1.0
        %v6060 = vadd.f32 %v6044, 1.0
        %v6061 = vadd.f32 %v6045, 1.0
        %v6062 = vadd.f32 %v6046, 1.0
        %v6063 = vadd.f32 %v6047, 1.0
        %v6064 = vadd.f32 %v6048, 1.0
        %v6065 = vrcp.pop %v6049
        %v6066 = vmul.f32 1.0, %v6065
        %v6067 = vrcp.pop %v6050
        %v6068 = vmul.f32 1.0, %v6067
        %v6069 = vrcp.pop %v6051
        %v6070 = vmul.f32 1.0, %v6069
        %v6071 = vrcp.pop %v6052
        %v6072 = vmul.f32 1.0, %v6071
        %v6073 = vrcp.pop %v6053
        %v6074 = vmul.f32 1.0, %v6073
        %v6075 = vrcp.pop %v6054
        %v6076 = vmul.f32 1.0, %v6075
        %v6077 = vrcp.pop %v6055
        %v6078 = vmul.f32 1.0, %v6077
        %v6079 = vrcp.pop %v6056
        %v6080 = vmul.f32 1.0, %v6079
        %v6081 = vrcp.pop %v6057
        %v6082 = vmul.f32 1.0, %v6081
        %v6083 = vrcp.pop %v6058
        %v6084 = vmul.f32 1.0, %v6083
        %v6085 = vrcp.pop %v6059
        %v6086 = vmul.f32 1.0, %v6085
        %v6087 = vrcp.pop %v6060
        %v6088 = vmul.f32 1.0, %v6087
        %v6089 = vrcp.pop %v6061
        %v6090 = vmul.f32 1.0, %v6089
        %v6091 = vrcp.pop %v6062
        %v6092 = vmul.f32 1.0, %v6091
        %v6093 = vrcp.pop %v6063
        %v6094 = vmul.f32 1.0, %v6093
        %v6095 = vrcp.pop %v6064
        %v6096 = vmul.f32 1.0, %v6095
        %v6097 = vmul.f32 %v6066, 1.0614054
        %v6098 = vmul.f32 %v6068, 1.0614054
        %v6099 = vmul.f32 %v6070, 1.0614054
        %v6100 = vmul.f32 %v6072, 1.0614054
        %v6101 = vmul.f32 %v6074, 1.0614054
        %v6102 = vmul.f32 %v6076, 1.0614054
        %v6103 = vmul.f32 %v6078, 1.0614054
        %v6104 = vmul.f32 %v6080, 1.0614054
        %v6105 = vmul.f32 %v6082, 1.0614054
        %v6106 = vmul.f32 %v6084, 1.0614054
        %v6107 = vmul.f32 %v6086, 1.0614054
        %v6108 = vmul.f32 %v6088, 1.0614054
        %v6109 = vmul.f32 %v6090, 1.0614054
        %v6110 = vmul.f32 %v6092, 1.0614054
        %v6111 = vmul.f32 %v6094, 1.0614054
        %v6112 = vmul.f32 %v6096, 1.0614054
        %v6113 = vadd.f32 %v6097, -1.4531521
        %v6114 = vadd.f32 %v6098, -1.4531521
        %v6115 = vadd.f32 %v6099, -1.4531521
        %v6116 = vadd.f32 %v6100, -1.4531521
        %v6117 = vadd.f32 %v6101, -1.4531521
        %v6118 = vadd.f32 %v6102, -1.4531521
        %v6119 = vadd.f32 %v6103, -1.4531521
        %v6120 = vadd.f32 %v6104, -1.4531521
        %v6121 = vadd.f32 %v6105, -1.4531521
        %v6122 = vadd.f32 %v6106, -1.4531521
        %v6123 = vadd.f32 %v6107, -1.4531521
        %v6124 = vadd.f32 %v6108, -1.4531521
        %v6125 = vadd.f32 %v6109, -1.4531521
        %v6126 = vadd.f32 %v6110, -1.4531521
        %v6127 = vadd.f32 %v6111, -1.4531521
        %v6128 = vadd.f32 %v6112, -1.4531521
        %v6129 = vmul.f32 %v6066, %v6113
        %v6130 = vmul.f32 %v6068, %v6114
        %v6131 = vmul.f32 %v6070, %v6115
        %v6132 = vmul.f32 %v6072, %v6116
        %v6133 = vmul.f32 %v6074, %v6117
        %v6134 = vmul.f32 %v6076, %v6118
        %v6135 = vmul.f32 %v6078, %v6119
        %v6136 = vmul.f32 %v6080, %v6120
        %v6137 = vmul.f32 %v6082, %v6121
        %v6138 = vmul.f32 %v6084, %v6122
        %v6139 = vmul.f32 %v6086, %v6123
        %v6140 = vmul.f32 %v6088, %v6124
        %v6141 = vmul.f32 %v6090, %v6125
        %v6142 = vmul.f32 %v6092, %v6126
        %v6143 = vmul.f32 %v6094, %v6127
        %v6144 = vmul.f32 %v6096, %v6128
        %v6145 = vadd.f32 %v6129, 1.4214138
        %v6146 = vadd.f32 %v6130, 1.4214138
        %v6147 = vadd.f32 %v6131, 1.4214138
        %v6148 = vadd.f32 %v6132, 1.4214138
        %v6149 = vadd.f32 %v6133, 1.4214138
        %v6150 = vadd.f32 %v6134, 1.4214138
        %v6151 = vadd.f32 %v6135, 1.4214138
        %v6152 = vadd.f32 %v6136, 1.4214138
        %v6153 = vadd.f32 %v6137, 1.4214138
        %v6154 = vadd.f32 %v6138, 1.4214138
        %v6155 = vadd.f32 %v6139, 1.4214138
        %v6156 = vadd.f32 %v6140, 1.4214138
        %v6157 = vadd.f32 %v6141, 1.4214138
        %v6158 = vadd.f32 %v6142, 1.4214138
        %v6159 = vadd.f32 %v6143, 1.4214138
        %v6160 = vadd.f32 %v6144, 1.4214138
        %v6161 = vmul.f32 %v6066, %v6145
        %v6162 = vmul.f32 %v6068, %v6146
        %v6163 = vmul.f32 %v6070, %v6147
        %v6164 = vmul.f32 %v6072, %v6148
        %v6165 = vmul.f32 %v6074, %v6149
        %v6166 = vmul.f32 %v6076, %v6150
        %v6167 = vmul.f32 %v6078, %v6151
        %v6168 = vmul.f32 %v6080, %v6152
        %v6169 = vmul.f32 %v6082, %v6153
        %v6170 = vmul.f32 %v6084, %v6154
        %v6171 = vmul.f32 %v6086, %v6155
        %v6172 = vmul.f32 %v6088, %v6156
        %v6173 = vmul.f32 %v6090, %v6157
        %v6174 = vmul.f32 %v6092, %v6158
        %v6175 = vmul.f32 %v6094, %v6159
        %v6176 = vmul.f32 %v6096, %v6160
        %v6177 = vadd.f32 %v6161, -0.28449672
        %v6178 = vadd.f32 %v6162, -0.28449672
        %v6179 = vadd.f32 %v6163, -0.28449672
        %v6180 = vadd.f32 %v6164, -0.28449672
        %v6181 = vadd.f32 %v6165, -0.28449672
        %v6182 = vadd.f32 %v6166, -0.28449672
        %v6183 = vadd.f32 %v6167, -0.28449672
        %v6184 = vadd.f32 %v6168, -0.28449672
        %v6185 = vadd.f32 %v6169, -0.28449672
        %v6186 = vadd.f32 %v6170, -0.28449672
        %v6187 = vadd.f32 %v6171, -0.28449672
        %v6188 = vadd.f32 %v6172, -0.28449672
        %v6189 = vadd.f32 %v6173, -0.28449672
        %v6190 = vadd.f32 %v6174, -0.28449672
        %v6191 = vadd.f32 %v6175, -0.28449672
        %v6192 = vadd.f32 %v6176, -0.28449672
        %v6193 = vmul.f32 %v6066, %v6177
        %v6194 = vmul.f32 %v6068, %v6178
        %v6195 = vmul.f32 %v6070, %v6179
        %v6196 = vmul.f32 %v6072, %v6180
        %v6197 = vmul.f32 %v6074, %v6181
        %v6198 = vmul.f32 %v6076, %v6182
        %v6199 = vmul.f32 %v6078, %v6183
        %v6200 = vmul.f32 %v6080, %v6184
        %v6201 = vmul.f32 %v6082, %v6185
        %v6202 = vmul.f32 %v6084, %v6186
        %v6203 = vmul.f32 %v6086, %v6187
        %v6204 = vmul.f32 %v6088, %v6188
        %v6205 = vmul.f32 %v6090, %v6189
        %v6206 = vmul.f32 %v6092, %v6190
        %v6207 = vmul.f32 %v6094, %v6191
        %v6208 = vmul.f32 %v6096, %v6192
        %v6209 = vadd.f32 %v6193, 0.2548296
        %v6210 = vadd.f32 %v6194, 0.2548296
        %v6211 = vadd.f32 %v6195, 0.2548296
        %v6212 = vadd.f32 %v6196, 0.2548296
        %v6213 = vadd.f32 %v6197, 0.2548296
        %v6214 = vadd.f32 %v6198, 0.2548296
        %v6215 = vadd.f32 %v6199, 0.2548296
        %v6216 = vadd.f32 %v6200, 0.2548296
        %v6217 = vadd.f32 %v6201, 0.2548296
        %v6218 = vadd.f32 %v6202, 0.2548296
        %v6219 = vadd.f32 %v6203, 0.2548296
        %v6220 = vadd.f32 %v6204, 0.2548296
        %v6221 = vadd.f32 %v6205, 0.2548296
        %v6222 = vadd.f32 %v6206, 0.2548296
        %v6223 = vadd.f32 %v6207, 0.2548296
        %v6224 = vadd.f32 %v6208, 0.2548296
        %v6225 = vmul.f32 %v6066, %v6209
        %v6226 = vmul.f32 %v6068, %v6210
        %v6227 = vmul.f32 %v6070, %v6211
        %v6228 = vmul.f32 %v6072, %v6212
        %v6229 = vmul.f32 %v6074, %v6213
        %v6230 = vmul.f32 %v6076, %v6214
        %v6231 = vmul.f32 %v6078, %v6215
        %v6232 = vmul.f32 %v6080, %v6216
        %v6233 = vmul.f32 %v6082, %v6217
        %v6234 = vmul.f32 %v6084, %v6218
        %v6235 = vmul.f32 %v6086, %v6219
        %v6236 = vmul.f32 %v6088, %v6220
        %v6237 = vmul.f32 %v6090, %v6221
        %v6238 = vmul.f32 %v6092, %v6222
        %v6239 = vmul.f32 %v6094, %v6223
        %v6240 = vmul.f32 %v6096, %v6224
        %v6241 = vsub.f32 0.0, %v6017
        %v6242 = vsub.f32 0.0, %v6018
        %v6243 = vsub.f32 0.0, %v6019
        %v6244 = vsub.f32 0.0, %v6020
        %v6245 = vsub.f32 0.0, %v6021
        %v6246 = vsub.f32 0.0, %v6022
        %v6247 = vsub.f32 0.0, %v6023
        %v6248 = vsub.f32 0.0, %v6024
        %v6249 = vsub.f32 0.0, %v6025
        %v6250 = vsub.f32 0.0, %v6026
        %v6251 = vsub.f32 0.0, %v6027
        %v6252 = vsub.f32 0.0, %v6028
        %v6253 = vsub.f32 0.0, %v6029
        %v6254 = vsub.f32 0.0, %v6030
        %v6255 = vsub.f32 0.0, %v6031
        %v6256 = vsub.f32 0.0, %v6032
        %v6257 = vmul.f32 %v6241, %v6017
        %v6258 = vmul.f32 %v6242, %v6018
        %v6259 = vmul.f32 %v6243, %v6019
        %v6260 = vmul.f32 %v6244, %v6020
        %v6261 = vmul.f32 %v6245, %v6021
        %v6262 = vmul.f32 %v6246, %v6022
        %v6263 = vmul.f32 %v6247, %v6023
        %v6264 = vmul.f32 %v6248, %v6024
        %v6265 = vmul.f32 %v6249, %v6025
        %v6266 = vmul.f32 %v6250, %v6026
        %v6267 = vmul.f32 %v6251, %v6027
        %v6268 = vmul.f32 %v6252, %v6028
        %v6269 = vmul.f32 %v6253, %v6029
        %v6270 = vmul.f32 %v6254, %v6030
        %v6271 = vmul.f32 %v6255, %v6031
        %v6272 = vmul.f32 %v6256, %v6032
        %v6273 = vmul.f32 %v6257, 1.442695
        %v6274 = vpow.pop %v6273
        %v6275 = vmul.f32 %v6258, 1.442695
        %v6276 = vpow.pop %v6275
        %v6277 = vmul.f32 %v6259, 1.442695
        %v6278 = vpow.pop %v6277
        %v6279 = vmul.f32 %v6260, 1.442695
        %v6280 = vpow.pop %v6279
        %v6281 = vmul.f32 %v6261, 1.442695
        %v6282 = vpow.pop %v6281
        %v6283 = vmul.f32 %v6262, 1.442695
        %v6284 = vpow.pop %v6283
        %v6285 = vmul.f32 %v6263, 1.442695
        %v6286 = vpow.pop %v6285
        %v6287 = vmul.f32 %v6264, 1.442695
        %v6288 = vpow.pop %v6287
        %v6289 = vmul.f32 %v6265, 1.442695
        %v6290 = vpow.pop %v6289
        %v6291 = vmul.f32 %v6266, 1.442695
        %v6292 = vpow.pop %v6291
        %v6293 = vmul.f32 %v6267, 1.442695
        %v6294 = vpow.pop %v6293
        %v6295 = vmul.f32 %v6268, 1.442695
        %v6296 = vpow.pop %v6295
        %v6297 = vmul.f32 %v6269, 1.442695
        %v6298 = vpow.pop %v6297
        %v6299 = vmul.f32 %v6270, 1.442695
        %v6300 = vpow.pop %v6299
        %v6301 = vmul.f32 %v6271, 1.442695
        %v6302 = vpow.pop %v6301
        %v6303 = vmul.f32 %v6272, 1.442695
        %v6304 = vpow.pop %v6303
        %v6305 = vmul.f32 %v6225, %v6274
        %v6306 = vmul.f32 %v6226, %v6276
        %v6307 = vmul.f32 %v6227, %v6278
        %v6308 = vmul.f32 %v6228, %v6280
        %v6309 = vmul.f32 %v6229, %v6282
        %v6310 = vmul.f32 %v6230, %v6284
        %v6311 = vmul.f32 %v6231, %v6286
        %v6312 = vmul.f32 %v6232, %v6288
        %v6313 = vmul.f32 %v6233, %v6290
        %v6314 = vmul.f32 %v6234, %v6292
        %v6315 = vmul.f32 %v6235, %v6294
        %v6316 = vmul.f32 %v6236, %v6296
        %v6317 = vmul.f32 %v6237, %v6298
        %v6318 = vmul.f32 %v6238, %v6300
        %v6319 = vmul.f32 %v6239, %v6302
        %v6320 = vmul.f32 %v6240, %v6304
        %v6321 = vsub.f32 1.0, %v6305
        %v6322 = vsub.f32 1.0, %v6306
        %v6323 = vsub.f32 1.0, %v6307
        %v6324 = vsub.f32 1.0, %v6308
        %v6325 = vsub.f32 1.0, %v6309
        %v6326 = vsub.f32 1.0, %v6310
        %v6327 = vsub.f32 1.0, %v6311
        %v6328 = vsub.f32 1.0, %v6312
        %v6329 = vsub.f32 1.0, %v6313
        %v6330 = vsub.f32 1.0, %v6314
        %v6331 = vsub.f32 1.0, %v6315
        %v6332 = vsub.f32 1.0, %v6316
        %v6333 = vsub.f32 1.0, %v6317
        %v6334 = vsub.f32 1.0, %v6318
        %v6335 = vsub.f32 1.0, %v6319
        %v6336 = vsub.f32 1.0, %v6320
        %vm6337 = vcmp.ge.f32.partialorder %v6001, 0.0
        %vm6338 = vcmp.ge.f32.partialorder %v6002, 0.0
        %vm6339 = vcmp.ge.f32.partialorder %v6003, 0.0
        %vm6340 = vcmp.ge.f32.partialorder %v6004, 0.0
        %vm6341 = vcmp.ge.f32.partialorder %v6005, 0.0
        %vm6342 = vcmp.ge.f32.partialorder %v6006, 0.0
        %vm6343 = vcmp.ge.f32.partialorder %v6007, 0.0
        %vm6344 = vcmp.ge.f32.partialorder %v6008, 0.0
        %vm6345 = vcmp.ge.f32.partialorder %v6009, 0.0
        %vm6346 = vcmp.ge.f32.partialorder %v6010, 0.0
        %vm6347 = vcmp.ge.f32.partialorder %v6011, 0.0
        %vm6348 = vcmp.ge.f32.partialorder %v6012, 0.0
        %vm6349 = vcmp.ge.f32.partialorder %v6013, 0.0
        %vm6350 = vcmp.ge.f32.partialorder %v6014, 0.0
        %vm6351 = vcmp.ge.f32.partialorder %v6015, 0.0
        %vm6352 = vcmp.ge.f32.partialorder %v6016, 0.0
        %v6353 = vsub.f32 0.0, %v6321
        %v6354 = vsub.f32 0.0, %v6322
        %v6355 = vsub.f32 0.0, %v6323
        %v6356 = vsub.f32 0.0, %v6324
        %v6357 = vsub.f32 0.0, %v6325
        %v6358 = vsub.f32 0.0, %v6326
        %v6359 = vsub.f32 0.0, %v6327
        %v6360 = vsub.f32 0.0, %v6328
        %v6361 = vsub.f32 0.0, %v6329
        %v6362 = vsub.f32 0.0, %v6330
        %v6363 = vsub.f32 0.0, %v6331
        %v6364 = vsub.f32 0.0, %v6332
        %v6365 = vsub.f32 0.0, %v6333
        %v6366 = vsub.f32 0.0, %v6334
        %v6367 = vsub.f32 0.0, %v6335
        %v6368 = vsub.f32 0.0, %v6336
        %v6369 = vsel %vm6337, %v6321, %v6353
        %v6370 = vsel %vm6338, %v6322, %v6354
        %v6371 = vsel %vm6339, %v6323, %v6355
        %v6372 = vsel %vm6340, %v6324, %v6356
        %v6373 = vsel %vm6341, %v6325, %v6357
        %v6374 = vsel %vm6342, %v6326, %v6358
        %v6375 = vsel %vm6343, %v6327, %v6359
        %v6376 = vsel %vm6344, %v6328, %v6360
        %v6377 = vsel %vm6345, %v6329, %v6361
        %v6378 = vsel %vm6346, %v6330, %v6362
        %v6379 = vsel %vm6347, %v6331, %v6363
        %v6380 = vsel %vm6348, %v6332, %v6364
        %v6381 = vsel %vm6349, %v6333, %v6365
        %v6382 = vsel %vm6350, %v6334, %v6366
        %v6383 = vsel %vm6351, %v6335, %v6367
        %v6384 = vsel %vm6352, %v6336, %v6368
        %v6385 = vmul.f32 %v5985, 0.5
        %v6386 = vmul.f32 %v5986, 0.5
        %v6387 = vmul.f32 %v5987, 0.5
        %v6388 = vmul.f32 %v5988, 0.5
        %v6389 = vmul.f32 %v5989, 0.5
        %v6390 = vmul.f32 %v5990, 0.5
        %v6391 = vmul.f32 %v5991, 0.5
        %v6392 = vmul.f32 %v5992, 0.5
        %v6393 = vmul.f32 %v5993, 0.5
        %v6394 = vmul.f32 %v5994, 0.5
        %v6395 = vmul.f32 %v5995, 0.5
        %v6396 = vmul.f32 %v5996, 0.5
        %v6397 = vmul.f32 %v5997, 0.5
        %v6398 = vmul.f32 %v5998, 0.5
        %v6399 = vmul.f32 %v5999, 0.5
        %v6400 = vmul.f32 %v6000, 0.5
        %v6401 = vadd.f32 %v6369, 1.0
        %v6402 = vadd.f32 %v6370, 1.0
        %v6403 = vadd.f32 %v6371, 1.0
        %v6404 = vadd.f32 %v6372, 1.0
        %v6405 = vadd.f32 %v6373, 1.0
        %v6406 = vadd.f32 %v6374, 1.0
        %v6407 = vadd.f32 %v6375, 1.0
        %v6408 = vadd.f32 %v6376, 1.0
        %v6409 = vadd.f32 %v6377, 1.0
        %v6410 = vadd.f32 %v6378, 1.0
        %v6411 = vadd.f32 %v6379, 1.0
        %v6412 = vadd.f32 %v6380, 1.0
        %v6413 = vadd.f32 %v6381, 1.0
        %v6414 = vadd.f32 %v6382, 1.0
        %v6415 = vadd.f32 %v6383, 1.0
        %v6416 = vadd.f32 %v6384, 1.0
        %v6417 = vmul.f32 %v6385, %v6401
        %v6418 = vmul.f32 %v6386, %v6402
        %v6419 = vmul.f32 %v6387, %v6403
        %v6420 = vmul.f32 %v6388, %v6404
        %v6421 = vmul.f32 %v6389, %v6405
        %v6422 = vmul.f32 %v6390, %v6406
        %v6423 = vmul.f32 %v6391, %v6407
        %v6424 = vmul.f32 %v6392, %v6408
        %v6425 = vmul.f32 %v6393, %v6409
        %v6426 = vmul.f32 %v6394, %v6410
        %v6427 = vmul.f32 %v6395, %v6411
        %v6428 = vmul.f32 %v6396, %v6412
        %v6429 = vmul.f32 %v6397, %v6413
        %v6430 = vmul.f32 %v6398, %v6414
        %v6431 = vmul.f32 %v6399, %v6415
        %v6432 = vmul.f32 %v6400, %v6416
        %6433 = vst [vmem:[%s610] sm:$0xff] %v6417
        %6434 = vst [vmem:[%s610 + $0x8] sm:$0xff] %v6418
        %6435 = vst [vmem:[%s610 + $0x10] sm:$0xff] %v6419
        %6436 = vst [vmem:[%s610 + $0x18] sm:$0xff] %v6420
        %6437 = vst [vmem:[%s610 + $0x20] sm:$0xff] %v6421
        %6438 = vst [vmem:[%s610 + $0x28] sm:$0xff] %v6422
        %6439 = vst [vmem:[%s610 + $0x30] sm:$0xff] %v6423
        %6440 = vst [vmem:[%s610 + $0x38] sm:$0xff] %v6424
        %6441 = vst [vmem:[%s610 + $0x40] sm:$0xff] %v6425
        %6442 = vst [vmem:[%s610 + $0x48] sm:$0xff] %v6426
        %6443 = vst [vmem:[%s610 + $0x50] sm:$0xff] %v6427
        %6444 = vst [vmem:[%s610 + $0x58] sm:$0xff] %v6428
        %6445 = vst [vmem:[%s610 + $0x60] sm:$0xff] %v6429
        %6446 = vst [vmem:[%s610 + $0x68] sm:$0xff] %v6430
        %6447 = vst [vmem:[%s610 + $0x70] sm:$0xff] %v6431
        %6448 = vst [vmem:[%s610 + $0x78] sm:$0xff] %v6432
        %s6449 = sand.u32 %s343, 1
        %s6450 = scalar_lea.sflag [#allocation4], %s6449
        %s6451 = sand.u32 %s343, 1
        %s6452 = smul.addr %s6451, 128
        %s6453 = scalar_lea.vmem [#allocation19], %s6452
        // Predicated region
        $region117: #{tpu_custom_call.1} parent=75 // pred_check
          %p6454 = pneg %p353
        $region118: #{tpu_custom_call.1} parent=75 // pred_check_branch
          %6456 = sbr.rel (%p6454) target = $region120
        $region119: #{tpu_custom_call.1} parent=75 // pred_region
          %s6458 = ssub.s32 2048, 2048
          %6459 = vsyncadd %s6450, %s6458
          %s6460 = smul.addr %s36, 16
          %s6461 = smul.addr %s6460, 128
          %s6462 = scalar_lea.hbm %s14, %s6461
          %s6463 = sshll.u32 %s6453, 4
          %s6464 = int_to_ptr.vmem [resolvable:$true] %s6463
          %6469 = dma.vmem_to_hbm [thread:$0]  %s6464, 2048, %s6462, %s6450, 256, 256, 16
        $region120: #{tpu_custom_call.1} parent=75 // pred_fallthru
          _
      $region76: #{tpu_custom_call.1} parent=5 // pred_fallthru
        _
      %p6470 = scmp.le.s32.totalorder 2, %s31
      // Predicated region
      $region121: #{tpu_custom_call.1} parent=5 // pred_check
        %p6471 = pneg %p6470
      $region122: #{tpu_custom_call.1} parent=5 // pred_check_branch
        %6473 = sbr.rel (%p6471) target = $region124
      $region123: #{tpu_custom_call.1} parent=5 // pred_region
        %s6474 = ssub.s32 %s31, 2
        // Predicated region
        $region125: #{tpu_custom_call.1} parent=123 // pred_check
          %p6475 = pneg %p359
        $region126: #{tpu_custom_call.1} parent=123 // pred_check_branch
          %6477 = sbr.rel (%p6475) target = $region128
        $region127: #{tpu_custom_call.1} parent=123 // pred_region
          %s6478 = sand.u32 %s344, 1
          %s6479 = scalar_lea.sflag [#allocation4], %s6478
          %s6480 = sand.u32 %s344, 1
          %s6481 = smul.addr %s6480, 128
          %s6482 = scalar_lea.vmem [#allocation19], %s6481
          %6483 = dma.done %s6479, 2048
        $region128: #{tpu_custom_call.1} parent=123 // pred_fallthru
          _
      $region124: #{tpu_custom_call.1} parent=5 // pred_fallthru
        _
    $region6: #{tpu_custom_call.1} parent=1 // loop_footer
      %s35 = sadd.s32 1, %s31
    $region7: #{tpu_custom_call.1} parent=1 // loop_footer_branch
      %30 = sbr.rel target = $region3
    $region8: #{tpu_custom_call.1} parent=1 // loop_exit
      _
    %6484 = vsyncpa [#allocation3], 1
    %s6485 = scalar_lea.sflag [#allocation3], 1
    %6486 = vsyncpa %s6485, 1
    %6487 = vsyncpa [#allocation6], 1
    %6488 = vsyncpa [#allocation9], 1
    %6489 = vsyncpa [#allocation12], 1
    %6490 = vsyncpa [#allocation15], 1
    %6491 = vsyncpa [#allocation18], 1
    %6492 = vsyncpa [#allocation4], 1
    %s6493 = scalar_lea.sflag [#allocation4], 1
    %6494 = vsyncpa %s6493, 1

</llo_original>
